<compile_context>
chip_gen: v5e
topology: v5e:2x2
jax: 0.10.0
libtpu: 0.0.40
codegen_flags: <defaults>
</compile_context>

<pallas_src>
import jax
import jax.numpy as jnp
from jax.experimental import pallas as pl
from jax.experimental.pallas import tpu as pltpu


# ----------------------------------------------------------------------------
# In-kernel conv helper (layers 2-4)
# ----------------------------------------------------------------------------
def _conv5x5_relu_pool(x, w_ref, b_ref):
    """Conv2d(5x5, padding=2) -> ReLU -> MaxPool2d(2) on an NHWC bf16 activation.

    x:     (tb, H, W, Cin) bfloat16 value (VMEM resident)
    w_ref: (5, 5*Cin, Cout) bfloat16 ref; w_ref[dh][dw*Cin+ci, co] = W[dh, dw, ci, co]
    b_ref: (1, Cout) float32 ref
    returns (tb, H//2, W//2, Cout) float32
    """
    tb, H, W, Cin = x.shape
    Cout = w_ref.shape[-1]

    # 'same' padding (2 each side) built in bf16 (half the copy traffic of f32).
    zh = jnp.zeros((tb, 2, W, Cin), x.dtype)
    xp = jnp.concatenate([zh, x, zh], axis=1)                     # (tb, H+4, W, Cin)
    zw = jnp.zeros((tb, H + 4, 2, Cin), x.dtype)
    xp = jnp.concatenate([zw, xp, zw], axis=2)                    # (tb, H+4, W+4, Cin)

    # 5 column (dw) shifts concatenated along lanes -> K = 5*Cin.
    xcols = jnp.concatenate(
        [xp[:, :, dw:dw + W, :] for dw in range(5)], axis=3)      # (tb, H+4, W, 5*Cin)

    # 5 accumulated MXU matmuls over dh (free leading-dim slices); no full
    # (M, 25*Cin) patch materialization.  bf16 operands, f32 accumulation.
    acc = None
    for dh in range(5):
        a = xcols[:, dh:dh + H, :, :].reshape(tb * H * W, 5 * Cin)
        d = jnp.dot(a, w_ref[dh], preferred_element_type=jnp.float32)
        acc = d if acc is None else acc + d                       # (tb*H*W, Cout) f32

    z = jnp.maximum(acc + b_ref[...], 0.0)                        # bias + ReLU (f32)

    # MaxPool2d(2): pair-reduce rows (leading dim) then columns (sublane dim).
    z = z.reshape(tb * (H // 2), 2, W, Cout).max(axis=1)
    z = z.reshape(tb * (H // 2), W // 2, 2, Cout).max(axis=2)
    return z.reshape(tb, H // 2, W // 2, Cout)


# ----------------------------------------------------------------------------
# Fused kernel body
# ----------------------------------------------------------------------------
def _conv_block_kernel(p_ref, w1_ref, b1_ref, w2_ref, b2_ref, w3_ref, b3_ref,
                       w4_ref, b4_ref, scale_ref, shift_ref, o_ref):
    # TODO(synk): training-mode Dropout2d / batch-statistics BatchNorm are stochastic
    # and not reproduced; eval semantics are implemented (dropout = identity,
    # BN = running stats folded into scale/shift).
    tb = p_ref.shape[0]

    # ---- layer 1: wrapper-built im2col patches (K zero-padded 75 -> 128), 1 matmul.
    p = p_ref[...].reshape(tb * 256, 128)                              # bf16
    z = jnp.dot(p, w1_ref[...], preferred_element_type=jnp.float32)    # (tb*256, 64)
    z = jnp.maximum(z + b1_ref[...], 0.0)
    z = z.reshape(tb * 8, 2, 16, 64).max(axis=1)                       # pool rows
    z = z.reshape(tb * 8, 8, 2, 64).max(axis=2)                        # pool cols
    x = z.reshape(tb, 8, 8, 64).astype(jnp.bfloat16)                   # (tb,8,8,64)

    # ---- layers 2-4: in-kernel padded im2col, 5 accumulated K=5*Cin matmuls each.
    x = _conv5x5_relu_pool(x, w2_ref, b2_ref).astype(jnp.bfloat16)     # (tb,4,4,128)
    x = _conv5x5_relu_pool(x, w3_ref, b3_ref).astype(jnp.bfloat16)     # (tb,2,2,128)
    x = _conv5x5_relu_pool(x, w4_ref, b4_ref)                          # (tb,1,1,256) f32

    # After 4 pools on 16x16 the spatial extent is 1x1, so NHWC flatten == PyTorch's
    # NCHW flatten; fused eval-mode BatchNorm1d scale/shift epilogue (f32).
    feat = x.reshape(tb, 256)
    o_ref[...] = feat * scale_ref[...] + shift_ref[...]


# ----------------------------------------------------------------------------
# Wrapper
# ----------------------------------------------------------------------------
def _tpu_is_v7x():
    try:
        kind = jax.devices()[0].device_kind.lower()
    except Exception:
        return False
    return "7" in kind


def _pick_tiling(B, is_v7x):
    """Batch tile tb (multiple of 8, or equal to the padded batch) and padded batch."""
    if B <= 8:
        return B, B                       # one block covering the (tiny) batch
    cap = 32                              # ~20 MiB bf16 working set at tb=32
    if is_v7x:
        # Keep >= 2 grid steps so ("parallel",) can use both TensorCores.
        cap = min(cap, max(8, ((B // 2) // 8) * 8))
    tb = min(cap, (B // 8) * 8)
    Bp = -(-B // tb) * tb                 # pad batch up to a multiple of tb
    return tb, Bp


def conv_block_forward(x_nchw, params):
    """Matches ConvBlock.forward in eval mode (NCHW input, (B, 256) output)."""
    B, C, H, W = x_nchw.shape
    assert (C, H, W) == (3, 16, 16), (
        "ConvBlock expects (B, 3, 16, 16) so Flatten -> BatchNorm1d(256) is valid")

    is_v7x = _tpu_is_v7x()
    tb, Bp = _pick_tiling(B, is_v7x)
    vmem_limit = (48 << 20) if is_v7x else (64 << 20)

    # ---- layer-1 im2col in the XLA wrapper, fused with the NCHW->NHWC transpose;
    # K ordered as (dh*5 + dw)*3 + ci, zero-padded 75 -> 128, bf16.
    x = jnp.transpose(x_nchw, (0, 2, 3, 1)).astype(jnp.float32)        # (B,16,16,3)
    if Bp != B:
        x = jnp.pad(x, ((0, Bp - B), (0, 0), (0, 0), (0, 0)))
    xpad = jnp.pad(x, ((0, 0), (2, 2), (2, 2), (0, 0)))                # (Bp,20,20,3)
    patches = jnp.concatenate(
        [xpad[:, dh:dh + 16, dw:dw + 16, :] for dh in range(5) for dw in range(5)],
        axis=-1)                                                       # (Bp,16,16,75)
    patches = jnp.pad(patches, ((0, 0), (0, 0), (0, 0), (0, 128 - 75)))
    patches = patches.astype(jnp.bfloat16).reshape(Bp, 256, 128)

    # ---- weights: layer 1 -> (128, 64) with zero-padded K; layers 2-4 ->
    # (5, 5*Cin, Cout) matching the in-kernel dh-loop; bf16 for the MXU.
    (w1, b1r), (w2, b2r), (w3, b3r), (w4, b4r) = params["convs"]
    w1p = jnp.zeros((128, 64), jnp.bfloat16).at[:75, :].set(
        w1.reshape(75, 64).astype(jnp.bfloat16))
    w2r = w2.reshape(5, 5 * 64, 128).astype(jnp.bfloat16)
    w3r = w3.reshape(5, 5 * 128, 128).astype(jnp.bfloat16)
    w4r = w4.reshape(5, 5 * 128, 256).astype(jnp.bfloat16)
    b1 = b1r.reshape(1, 64).astype(jnp.float32)
    b2 = b2r.reshape(1, 128).astype(jnp.float32)
    b3 = b3r.reshape(1, 128).astype(jnp.float32)
    b4 = b4r.reshape(1, 256).astype(jnp.float32)

    # ---- eval-mode BatchNorm1d folded into a single scale/shift (applied in-kernel).
    eps = 1e-5
    inv_std = 1.0 / jnp.sqrt(params["bn_var"] + eps)
    scale = (params["bn_gamma"] * inv_std).reshape(1, 256).astype(jnp.float32)
    shift = (params["bn_beta"]
             - params["bn_mean"] * params["bn_gamma"] * inv_std
             ).reshape(1, 256).astype(jnp.float32)

    out = pl.pallas_call(
        _conv_block_kernel,
        out_shape=jax.ShapeDtypeStruct((Bp, 256), jnp.float32),
        grid=(Bp // tb,),
        in_specs=[
            pl.BlockSpec((tb, 256, 128), lambda i: (i, 0, 0)),   # layer-1 patches
            pl.BlockSpec((128, 64), lambda i: (0, 0)),           # w1 (K-padded)
            pl.BlockSpec((1, 64), lambda i: (0, 0)),             # b1
            pl.BlockSpec((5, 320, 128), lambda i: (0, 0, 0)),    # w2
            pl.BlockSpec((1, 128), lambda i: (0, 0)),            # b2
            pl.BlockSpec((5, 640, 128), lambda i: (0, 0, 0)),    # w3
            pl.BlockSpec((1, 128), lambda i: (0, 0)),            # b3
            pl.BlockSpec((5, 640, 256), lambda i: (0, 0, 0)),    # w4
            pl.BlockSpec((1, 256), lambda i: (0, 0)),            # b4
            pl.BlockSpec((1, 256), lambda i: (0, 0)),            # BN scale
            pl.BlockSpec((1, 256), lambda i: (0, 0)),            # BN shift
        ],
        out_specs=pl.BlockSpec((tb, 256), lambda i: (i, 0)),
        compiler_params=pltpu.CompilerParams(
            dimension_semantics=("parallel",),
            vmem_limit_bytes=vmem_limit),
    )(patches, w1p, b1, w2r, b2, w3r, b3, w4r, b4, scale, shift)

    return out[:B]


# ----------------------------------------------------------------------------
# Pure-JAX f32 reference (eval-mode PyTorch semantics) for validation
# ----------------------------------------------------------------------------
def _reference_forward(x_nchw, params):
    x = jnp.transpose(x_nchw, (0, 2, 3, 1)).astype(jnp.float32)
    for (w, b) in params["convs"]:
        x = jax.lax.conv_general_dilated(
            x, w, window_strides=(1, 1), padding=((2, 2), (2, 2)),
            dimension_numbers=("NHWC", "HWIO", "NHWC"))
        x = jnp.maximum(x + b, 0.0)
        n, h, ww, c = x.shape
        x = x.reshape(n, h // 2, 2, ww // 2, 2, c).max(axis=(2, 4))
    feat = x.reshape(x.shape[0], -1)
    inv_std = 1.0 / jnp.sqrt(params["bn_var"] + 1e-5)
    return (feat - params["bn_mean"]) * inv_std * params["bn_gamma"] + params["bn_beta"]


def init_params(key):
    # Deterministic synthetic parameters matching ConvBlock.__init__ shapes (HWIO).
    channel_pairs = [(3, 64), (64, 128), (128, 128), (128, 256)]
    params = {"convs": []}
    for cin, cout in channel_pairs:
        key, kw, kb = jax.random.split(key, 3)
        fan_in = cin * 5 * 5
        w = jax.random.normal(kw, (5, 5, cin, cout), jnp.float32) * (2.0 / fan_in) ** 0.5
        b = jax.random.normal(kb, (cout,), jnp.float32) * 0.01
        params["convs"].append((w, b))
    key, kg, kb2 = jax.random.split(key, 3)
    params["bn_gamma"] = 1.0 + 0.1 * jax.random.normal(kg, (256,), jnp.float32)
    params["bn_beta"] = 0.1 * jax.random.normal(kb2, (256,), jnp.float32)
    params["bn_mean"] = jnp.zeros((256,), jnp.float32)   # PyTorch default running stats
    params["bn_var"] = jnp.ones((256,), jnp.float32)
    return params


if __name__ == "__main__":
    key = jax.random.PRNGKey(0)
    kx, kp = jax.random.split(key)
    # Input must be 16x16 spatially so that Flatten -> BatchNorm1d(256) is valid.
    x = jax.random.normal(kx, (2, 3, 16, 16), jnp.float32)   # NCHW, like PyTorch
    params = init_params(kp)

    out = jax.jit(conv_block_forward)(x, params)
    out = jax.block_until_ready(out)
    assert out.shape == (2, 256), out.shape
    assert bool(jnp.all(jnp.isfinite(out)))

    # Validate the bf16-matmul kernel against the f32 reference (generous tolerance
    # to absorb bf16 operand rounding across 4 stacked convs).
    ref = _reference_forward(x, params)
    err = float(jnp.max(jnp.abs(out - ref)))
    ref_scale = float(jnp.max(jnp.abs(ref))) + 1e-6
    assert err <= 0.08 * ref_scale + 1e-3, (err, ref_scale)

    print("KERNEL_OK")
</pallas_src>

<mosaic_0001>
module attributes {stable_mosaic.version = 11 : i64} {
  func.func @_conv_block_kernel(%arg0: i32, %arg1: memref<2x256x128xbf16, #tpu.memory_space<vmem>>, %arg2: memref<128x64xbf16, #tpu.memory_space<vmem>>, %arg3: memref<1x64xf32, #tpu.memory_space<vmem>>, %arg4: memref<5x320x128xbf16, #tpu.memory_space<vmem>>, %arg5: memref<1x128xf32, #tpu.memory_space<vmem>>, %arg6: memref<5x640x128xbf16, #tpu.memory_space<vmem>>, %arg7: memref<1x128xf32, #tpu.memory_space<vmem>>, %arg8: memref<5x640x256xbf16, #tpu.memory_space<vmem>>, %arg9: memref<1x256xf32, #tpu.memory_space<vmem>>, %arg10: memref<1x256xf32, #tpu.memory_space<vmem>>, %arg11: memref<1x256xf32, #tpu.memory_space<vmem>>, %arg12: memref<2x256xf32, #tpu.memory_space<vmem>>) attributes {dimension_semantics = [#tpu.dimension_semantics<parallel>], iteration_bounds = array<i64: 1>, scalar_prefetch = 0 : i64, scratch_operands = 0 : i64, tpu.core_type = #tpu.core_type<tc>, window_params = [{transform_indices = @transform_0, window_bounds = array<i64: 2, 256, 128>}, {pipeline_mode = #tpu.pipeline_mode<synchronous>, transform_indices = @transform_1, window_bounds = array<i64: 128, 64>}, {pipeline_mode = #tpu.pipeline_mode<synchronous>, transform_indices = @transform_2, window_bounds = array<i64: 1, 64>}, {pipeline_mode = #tpu.pipeline_mode<synchronous>, transform_indices = @transform_3, window_bounds = array<i64: 5, 320, 128>}, {pipeline_mode = #tpu.pipeline_mode<synchronous>, transform_indices = @transform_4, window_bounds = array<i64: 1, 128>}, {pipeline_mode = #tpu.pipeline_mode<synchronous>, transform_indices = @transform_5, window_bounds = array<i64: 5, 640, 128>}, {pipeline_mode = #tpu.pipeline_mode<synchronous>, transform_indices = @transform_6, window_bounds = array<i64: 1, 128>}, {pipeline_mode = #tpu.pipeline_mode<synchronous>, transform_indices = @transform_7, window_bounds = array<i64: 5, 640, 256>}, {pipeline_mode = #tpu.pipeline_mode<synchronous>, transform_indices = @transform_8, window_bounds = array<i64: 1, 256>}, {pipeline_mode = #tpu.pipeline_mode<synchronous>, transform_indices = @transform_9, window_bounds = array<i64: 1, 256>}, {pipeline_mode = #tpu.pipeline_mode<synchronous>, transform_indices = @transform_10, window_bounds = array<i64: 1, 256>}, {transform_indices = @transform_11, window_bounds = array<i64: 2, 256>}]} {
    %c0 = arith.constant 0 : index
    %c0_0 = arith.constant 0 : index
    %c0_1 = arith.constant 0 : index
    %0 = vector.load %arg1[%c0, %c0_0, %c0_1] : memref<2x256x128xbf16, #tpu.memory_space<vmem>>, vector<2x256x128xbf16>
    %1 = vector.shape_cast %0 : vector<2x256x128xbf16> to vector<512x128xbf16>
    %c0_2 = arith.constant 0 : index
    %c0_3 = arith.constant 0 : index
    %2 = vector.load %arg2[%c0_2, %c0_3] : memref<128x64xbf16, #tpu.memory_space<vmem>>, vector<128x64xbf16>
    %cst = arith.constant dense<0.000000e+00> : vector<512x64xf32>
    %3 = tpu.matmul %1, %2, %cst {dimension_numbers = #tpu.dot_dimension_numbers<[1], [0], [0], [1], [0, 0, 1, 1], [], []>} : vector<512x128xbf16>, vector<128x64xbf16>, vector<512x64xf32> -> vector<512x64xf32>
    %c0_4 = arith.constant 0 : index
    %c0_5 = arith.constant 0 : index
    %4 = vector.load %arg3[%c0_4, %c0_5] : memref<1x64xf32, #tpu.memory_space<vmem>>, vector<1x64xf32>
    %5 = vector.broadcast %4 : vector<1x64xf32> to vector<512x64xf32>
    %6 = arith.addf %3, %5 : vector<512x64xf32>
    %cst_6 = arith.constant 0.000000e+00 : f32
    %7 = vector.broadcast %cst_6 : f32 to vector<512x64xf32>
    %8 = arith.maximumf %6, %7 : vector<512x64xf32>
    %9 = vector.shape_cast %8 : vector<512x64xf32> to vector<16x2x16x64xf32>
    %cst_7 = arith.constant dense<0xFF800000> : vector<16x16x64xf32>
    %10 = vector.multi_reduction <maximumf>, %9, %cst_7 [1] : vector<16x2x16x64xf32> to vector<16x16x64xf32>
    %11 = vector.shape_cast %10 : vector<16x16x64xf32> to vector<16x8x2x64xf32>
    %cst_8 = arith.constant dense<0xFF800000> : vector<16x8x64xf32>
    %12 = vector.multi_reduction <maximumf>, %11, %cst_8 [2] : vector<16x8x2x64xf32> to vector<16x8x64xf32>
    %13 = vector.shape_cast %12 : vector<16x8x64xf32> to vector<2x8x8x64xf32>
    %14 = arith.truncf %13 : vector<2x8x8x64xf32> to vector<2x8x8x64xbf16>
    %cst_9 = arith.constant 0.000000e+00 : bf16
    %15 = vector.broadcast %cst_9 : bf16 to vector<2x2x8x64xbf16>
    %16 = tpu.concatenate %15, %14, %15 in 1 : vector<2x2x8x64xbf16>, vector<2x8x8x64xbf16>, vector<2x2x8x64xbf16> -> vector<2x12x8x64xbf16>
    %cst_10 = arith.constant 0.000000e+00 : bf16
    %17 = vector.broadcast %cst_10 : bf16 to vector<2x12x2x64xbf16>
    %18 = tpu.concatenate %17, %16, %17 in 2 : vector<2x12x2x64xbf16>, vector<2x12x8x64xbf16>, vector<2x12x2x64xbf16> -> vector<2x12x12x64xbf16>
    %19 = vector.extract_strided_slice %18 {offsets = [0, 0, 0, 0], sizes = [2, 12, 8, 64], strides = [1, 1, 1, 1]} : vector<2x12x12x64xbf16> to vector<2x12x8x64xbf16>
    %20 = vector.extract_strided_slice %18 {offsets = [0, 0, 1, 0], sizes = [2, 12, 8, 64], strides = [1, 1, 1, 1]} : vector<2x12x12x64xbf16> to vector<2x12x8x64xbf16>
    %21 = vector.extract_strided_slice %18 {offsets = [0, 0, 2, 0], sizes = [2, 12, 8, 64], strides = [1, 1, 1, 1]} : vector<2x12x12x64xbf16> to vector<2x12x8x64xbf16>
    %22 = vector.extract_strided_slice %18 {offsets = [0, 0, 3, 0], sizes = [2, 12, 8, 64], strides = [1, 1, 1, 1]} : vector<2x12x12x64xbf16> to vector<2x12x8x64xbf16>
    %23 = vector.extract_strided_slice %18 {offsets = [0, 0, 4, 0], sizes = [2, 12, 8, 64], strides = [1, 1, 1, 1]} : vector<2x12x12x64xbf16> to vector<2x12x8x64xbf16>
    %24 = tpu.concatenate %19, %20, %21, %22, %23 in 3 : vector<2x12x8x64xbf16>, vector<2x12x8x64xbf16>, vector<2x12x8x64xbf16>, vector<2x12x8x64xbf16>, vector<2x12x8x64xbf16> -> vector<2x12x8x320xbf16>
    %25 = vector.extract_strided_slice %24 {offsets = [0, 0, 0, 0], sizes = [2, 8, 8, 320], strides = [1, 1, 1, 1]} : vector<2x12x8x320xbf16> to vector<2x8x8x320xbf16>
    %26 = vector.shape_cast %25 : vector<2x8x8x320xbf16> to vector<128x320xbf16>
    %c0_11 = arith.constant 0 : index
    %c0_12 = arith.constant 0 : index
    %c0_13 = arith.constant 0 : index
    %27 = vector.load %arg4[%c0_11, %c0_12, %c0_13] : memref<5x320x128xbf16, #tpu.memory_space<vmem>>, vector<1x320x128xbf16>
    %28 = vector.shape_cast %27 : vector<1x320x128xbf16> to vector<320x128xbf16>
    %cst_14 = arith.constant dense<0.000000e+00> : vector<128x128xf32>
    %29 = tpu.matmul %26, %28, %cst_14 {dimension_numbers = #tpu.dot_dimension_numbers<[1], [0], [0], [1], [0, 0, 1, 1], [], []>} : vector<128x320xbf16>, vector<320x128xbf16>, vector<128x128xf32> -> vector<128x128xf32>
    %30 = vector.extract_strided_slice %24 {offsets = [0, 1, 0, 0], sizes = [2, 8, 8, 320], strides = [1, 1, 1, 1]} : vector<2x12x8x320xbf16> to vector<2x8x8x320xbf16>
    %31 = vector.shape_cast %30 : vector<2x8x8x320xbf16> to vector<128x320xbf16>
    %c1 = arith.constant 1 : index
    %c0_15 = arith.constant 0 : index
    %c0_16 = arith.constant 0 : index
    %32 = vector.load %arg4[%c1, %c0_15, %c0_16] : memref<5x320x128xbf16, #tpu.memory_space<vmem>>, vector<1x320x128xbf16>
    %33 = vector.shape_cast %32 : vector<1x320x128xbf16> to vector<320x128xbf16>
    %cst_17 = arith.constant dense<0.000000e+00> : vector<128x128xf32>
    %34 = tpu.matmul %31, %33, %cst_17 {dimension_numbers = #tpu.dot_dimension_numbers<[1], [0], [0], [1], [0, 0, 1, 1], [], []>} : vector<128x320xbf16>, vector<320x128xbf16>, vector<128x128xf32> -> vector<128x128xf32>
    %35 = arith.addf %29, %34 : vector<128x128xf32>
    %36 = vector.extract_strided_slice %24 {offsets = [0, 2, 0, 0], sizes = [2, 8, 8, 320], strides = [1, 1, 1, 1]} : vector<2x12x8x320xbf16> to vector<2x8x8x320xbf16>
    %37 = vector.shape_cast %36 : vector<2x8x8x320xbf16> to vector<128x320xbf16>
    %c2 = arith.constant 2 : index
    %c0_18 = arith.constant 0 : index
    %c0_19 = arith.constant 0 : index
    %38 = vector.load %arg4[%c2, %c0_18, %c0_19] : memref<5x320x128xbf16, #tpu.memory_space<vmem>>, vector<1x320x128xbf16>
    %39 = vector.shape_cast %38 : vector<1x320x128xbf16> to vector<320x128xbf16>
    %cst_20 = arith.constant dense<0.000000e+00> : vector<128x128xf32>
    %40 = tpu.matmul %37, %39, %cst_20 {dimension_numbers = #tpu.dot_dimension_numbers<[1], [0], [0], [1], [0, 0, 1, 1], [], []>} : vector<128x320xbf16>, vector<320x128xbf16>, vector<128x128xf32> -> vector<128x128xf32>
    %41 = arith.addf %35, %40 : vector<128x128xf32>
    %42 = vector.extract_strided_slice %24 {offsets = [0, 3, 0, 0], sizes = [2, 8, 8, 320], strides = [1, 1, 1, 1]} : vector<2x12x8x320xbf16> to vector<2x8x8x320xbf16>
    %43 = vector.shape_cast %42 : vector<2x8x8x320xbf16> to vector<128x320xbf16>
    %c3 = arith.constant 3 : index
    %c0_21 = arith.constant 0 : index
    %c0_22 = arith.constant 0 : index
    %44 = vector.load %arg4[%c3, %c0_21, %c0_22] : memref<5x320x128xbf16, #tpu.memory_space<vmem>>, vector<1x320x128xbf16>
    %45 = vector.shape_cast %44 : vector<1x320x128xbf16> to vector<320x128xbf16>
    %cst_23 = arith.constant dense<0.000000e+00> : vector<128x128xf32>
    %46 = tpu.matmul %43, %45, %cst_23 {dimension_numbers = #tpu.dot_dimension_numbers<[1], [0], [0], [1], [0, 0, 1, 1], [], []>} : vector<128x320xbf16>, vector<320x128xbf16>, vector<128x128xf32> -> vector<128x128xf32>
    %47 = arith.addf %41, %46 : vector<128x128xf32>
    %48 = vector.extract_strided_slice %24 {offsets = [0, 4, 0, 0], sizes = [2, 8, 8, 320], strides = [1, 1, 1, 1]} : vector<2x12x8x320xbf16> to vector<2x8x8x320xbf16>
    %49 = vector.shape_cast %48 : vector<2x8x8x320xbf16> to vector<128x320xbf16>
    %c4 = arith.constant 4 : index
    %c0_24 = arith.constant 0 : index
    %c0_25 = arith.constant 0 : index
    %50 = vector.load %arg4[%c4, %c0_24, %c0_25] : memref<5x320x128xbf16, #tpu.memory_space<vmem>>, vector<1x320x128xbf16>
    %51 = vector.shape_cast %50 : vector<1x320x128xbf16> to vector<320x128xbf16>
    %cst_26 = arith.constant dense<0.000000e+00> : vector<128x128xf32>
    %52 = tpu.matmul %49, %51, %cst_26 {dimension_numbers = #tpu.dot_dimension_numbers<[1], [0], [0], [1], [0, 0, 1, 1], [], []>} : vector<128x320xbf16>, vector<320x128xbf16>, vector<128x128xf32> -> vector<128x128xf32>
    %53 = arith.addf %47, %52 : vector<128x128xf32>
    %c0_27 = arith.constant 0 : index
    %c0_28 = arith.constant 0 : index
    %54 = vector.load %arg5[%c0_27, %c0_28] : memref<1x128xf32, #tpu.memory_space<vmem>>, vector<1x128xf32>
    %55 = vector.broadcast %54 : vector<1x128xf32> to vector<128x128xf32>
    %56 = arith.addf %53, %55 : vector<128x128xf32>
    %cst_29 = arith.constant 0.000000e+00 : f32
    %57 = vector.broadcast %cst_29 : f32 to vector<128x128xf32>
    %58 = arith.maximumf %56, %57 : vector<128x128xf32>
    %59 = vector.shape_cast %58 : vector<128x128xf32> to vector<8x2x8x128xf32>
    %cst_30 = arith.constant dense<0xFF800000> : vector<8x8x128xf32>
    %60 = vector.multi_reduction <maximumf>, %59, %cst_30 [1] : vector<8x2x8x128xf32> to vector<8x8x128xf32>
    %61 = vector.shape_cast %60 : vector<8x8x128xf32> to vector<8x4x2x128xf32>
    %cst_31 = arith.constant dense<0xFF800000> : vector<8x4x128xf32>
    %62 = vector.multi_reduction <maximumf>, %61, %cst_31 [2] : vector<8x4x2x128xf32> to vector<8x4x128xf32>
    %63 = vector.shape_cast %62 : vector<8x4x128xf32> to vector<2x4x4x128xf32>
    %64 = arith.truncf %63 : vector<2x4x4x128xf32> to vector<2x4x4x128xbf16>
    %cst_32 = arith.constant 0.000000e+00 : bf16
    %65 = vector.broadcast %cst_32 : bf16 to vector<2x2x4x128xbf16>
    %66 = tpu.concatenate %65, %64, %65 in 1 : vector<2x2x4x128xbf16>, vector<2x4x4x128xbf16>, vector<2x2x4x128xbf16> -> vector<2x8x4x128xbf16>
    %cst_33 = arith.constant 0.000000e+00 : bf16
    %67 = vector.broadcast %cst_33 : bf16 to vector<2x8x2x128xbf16>
    %68 = tpu.concatenate %67, %66, %67 in 2 : vector<2x8x2x128xbf16>, vector<2x8x4x128xbf16>, vector<2x8x2x128xbf16> -> vector<2x8x8x128xbf16>
    %69 = vector.extract_strided_slice %68 {offsets = [0, 0, 0, 0], sizes = [2, 8, 4, 128], strides = [1, 1, 1, 1]} : vector<2x8x8x128xbf16> to vector<2x8x4x128xbf16>
    %70 = vector.extract_strided_slice %68 {offsets = [0, 0, 1, 0], sizes = [2, 8, 4, 128], strides = [1, 1, 1, 1]} : vector<2x8x8x128xbf16> to vector<2x8x4x128xbf16>
    %71 = vector.extract_strided_slice %68 {offsets = [0, 0, 2, 0], sizes = [2, 8, 4, 128], strides = [1, 1, 1, 1]} : vector<2x8x8x128xbf16> to vector<2x8x4x128xbf16>
    %72 = vector.extract_strided_slice %68 {offsets = [0, 0, 3, 0], sizes = [2, 8, 4, 128], strides = [1, 1, 1, 1]} : vector<2x8x8x128xbf16> to vector<2x8x4x128xbf16>
    %73 = vector.extract_strided_slice %68 {offsets = [0, 0, 4, 0], sizes = [2, 8, 4, 128], strides = [1, 1, 1, 1]} : vector<2x8x8x128xbf16> to vector<2x8x4x128xbf16>
    %74 = tpu.concatenate %69, %70, %71, %72, %73 in 3 : vector<2x8x4x128xbf16>, vector<2x8x4x128xbf16>, vector<2x8x4x128xbf16>, vector<2x8x4x128xbf16>, vector<2x8x4x128xbf16> -> vector<2x8x4x640xbf16>
    %75 = vector.extract_strided_slice %74 {offsets = [0, 0, 0, 0], sizes = [2, 4, 4, 640], strides = [1, 1, 1, 1]} : vector<2x8x4x640xbf16> to vector<2x4x4x640xbf16>
    %76 = vector.shape_cast %75 : vector<2x4x4x640xbf16> to vector<32x640xbf16>
    %c0_34 = arith.constant 0 : index
    %c0_35 = arith.constant 0 : index
    %c0_36 = arith.constant 0 : index
    %77 = vector.load %arg6[%c0_34, %c0_35, %c0_36] : memref<5x640x128xbf16, #tpu.memory_space<vmem>>, vector<1x640x128xbf16>
    %78 = vector.shape_cast %77 : vector<1x640x128xbf16> to vector<640x128xbf16>
    %cst_37 = arith.constant dense<0.000000e+00> : vector<32x128xf32>
    %79 = tpu.matmul %76, %78, %cst_37 {dimension_numbers = #tpu.dot_dimension_numbers<[1], [0], [0], [1], [0, 0, 1, 1], [], []>} : vector<32x640xbf16>, vector<640x128xbf16>, vector<32x128xf32> -> vector<32x128xf32>
    %80 = vector.extract_strided_slice %74 {offsets = [0, 1, 0, 0], sizes = [2, 4, 4, 640], strides = [1, 1, 1, 1]} : vector<2x8x4x640xbf16> to vector<2x4x4x640xbf16>
    %81 = vector.shape_cast %80 : vector<2x4x4x640xbf16> to vector<32x640xbf16>
    %c1_38 = arith.constant 1 : index
    %c0_39 = arith.constant 0 : index
    %c0_40 = arith.constant 0 : index
    %82 = vector.load %arg6[%c1_38, %c0_39, %c0_40] : memref<5x640x128xbf16, #tpu.memory_space<vmem>>, vector<1x640x128xbf16>
    %83 = vector.shape_cast %82 : vector<1x640x128xbf16> to vector<640x128xbf16>
    %cst_41 = arith.constant dense<0.000000e+00> : vector<32x128xf32>
    %84 = tpu.matmul %81, %83, %cst_41 {dimension_numbers = #tpu.dot_dimension_numbers<[1], [0], [0], [1], [0, 0, 1, 1], [], []>} : vector<32x640xbf16>, vector<640x128xbf16>, vector<32x128xf32> -> vector<32x128xf32>
    %85 = arith.addf %79, %84 : vector<32x128xf32>
    %86 = vector.extract_strided_slice %74 {offsets = [0, 2, 0, 0], sizes = [2, 4, 4, 640], strides = [1, 1, 1, 1]} : vector<2x8x4x640xbf16> to vector<2x4x4x640xbf16>
    %87 = vector.shape_cast %86 : vector<2x4x4x640xbf16> to vector<32x640xbf16>
    %c2_42 = arith.constant 2 : index
    %c0_43 = arith.constant 0 : index
    %c0_44 = arith.constant 0 : index
    %88 = vector.load %arg6[%c2_42, %c0_43, %c0_44] : memref<5x640x128xbf16, #tpu.memory_space<vmem>>, vector<1x640x128xbf16>
    %89 = vector.shape_cast %88 : vector<1x640x128xbf16> to vector<640x128xbf16>
    %cst_45 = arith.constant dense<0.000000e+00> : vector<32x128xf32>
    %90 = tpu.matmul %87, %89, %cst_45 {dimension_numbers = #tpu.dot_dimension_numbers<[1], [0], [0], [1], [0, 0, 1, 1], [], []>} : vector<32x640xbf16>, vector<640x128xbf16>, vector<32x128xf32> -> vector<32x128xf32>
    %91 = arith.addf %85, %90 : vector<32x128xf32>
    %92 = vector.extract_strided_slice %74 {offsets = [0, 3, 0, 0], sizes = [2, 4, 4, 640], strides = [1, 1, 1, 1]} : vector<2x8x4x640xbf16> to vector<2x4x4x640xbf16>
    %93 = vector.shape_cast %92 : vector<2x4x4x640xbf16> to vector<32x640xbf16>
    %c3_46 = arith.constant 3 : index
    %c0_47 = arith.constant 0 : index
    %c0_48 = arith.constant 0 : index
    %94 = vector.load %arg6[%c3_46, %c0_47, %c0_48] : memref<5x640x128xbf16, #tpu.memory_space<vmem>>, vector<1x640x128xbf16>
    %95 = vector.shape_cast %94 : vector<1x640x128xbf16> to vector<640x128xbf16>
    %cst_49 = arith.constant dense<0.000000e+00> : vector<32x128xf32>
    %96 = tpu.matmul %93, %95, %cst_49 {dimension_numbers = #tpu.dot_dimension_numbers<[1], [0], [0], [1], [0, 0, 1, 1], [], []>} : vector<32x640xbf16>, vector<640x128xbf16>, vector<32x128xf32> -> vector<32x128xf32>
    %97 = arith.addf %91, %96 : vector<32x128xf32>
    %98 = vector.extract_strided_slice %74 {offsets = [0, 4, 0, 0], sizes = [2, 4, 4, 640], strides = [1, 1, 1, 1]} : vector<2x8x4x640xbf16> to vector<2x4x4x640xbf16>
    %99 = vector.shape_cast %98 : vector<2x4x4x640xbf16> to vector<32x640xbf16>
    %c4_50 = arith.constant 4 : index
    %c0_51 = arith.constant 0 : index
    %c0_52 = arith.constant 0 : index
    %100 = vector.load %arg6[%c4_50, %c0_51, %c0_52] : memref<5x640x128xbf16, #tpu.memory_space<vmem>>, vector<1x640x128xbf16>
    %101 = vector.shape_cast %100 : vector<1x640x128xbf16> to vector<640x128xbf16>
    %cst_53 = arith.constant dense<0.000000e+00> : vector<32x128xf32>
    %102 = tpu.matmul %99, %101, %cst_53 {dimension_numbers = #tpu.dot_dimension_numbers<[1], [0], [0], [1], [0, 0, 1, 1], [], []>} : vector<32x640xbf16>, vector<640x128xbf16>, vector<32x128xf32> -> vector<32x128xf32>
    %103 = arith.addf %97, %102 : vector<32x128xf32>
    %c0_54 = arith.constant 0 : index
    %c0_55 = arith.constant 0 : index
    %104 = vector.load %arg7[%c0_54, %c0_55] : memref<1x128xf32, #tpu.memory_space<vmem>>, vector<1x128xf32>
    %105 = vector.broadcast %104 : vector<1x128xf32> to vector<32x128xf32>
    %106 = arith.addf %103, %105 : vector<32x128xf32>
    %cst_56 = arith.constant 0.000000e+00 : f32
    %107 = vector.broadcast %cst_56 : f32 to vector<32x128xf32>
    %108 = arith.maximumf %106, %107 : vector<32x128xf32>
    %109 = vector.shape_cast %108 : vector<32x128xf32> to vector<4x2x4x128xf32>
    %cst_57 = arith.constant dense<0xFF800000> : vector<4x4x128xf32>
    %110 = vector.multi_reduction <maximumf>, %109, %cst_57 [1] : vector<4x2x4x128xf32> to vector<4x4x128xf32>
    %111 = vector.shape_cast %110 : vector<4x4x128xf32> to vector<4x2x2x128xf32>
    %cst_58 = arith.constant dense<0xFF800000> : vector<4x2x128xf32>
    %112 = vector.multi_reduction <maximumf>, %111, %cst_58 [2] : vector<4x2x2x128xf32> to vector<4x2x128xf32>
    %113 = vector.shape_cast %112 : vector<4x2x128xf32> to vector<2x2x2x128xf32>
    %114 = arith.truncf %113 : vector<2x2x2x128xf32> to vector<2x2x2x128xbf16>
    %cst_59 = arith.constant 0.000000e+00 : bf16
    %115 = vector.broadcast %cst_59 : bf16 to vector<2x2x2x128xbf16>
    %116 = tpu.concatenate %115, %114, %115 in 1 : vector<2x2x2x128xbf16>, vector<2x2x2x128xbf16>, vector<2x2x2x128xbf16> -> vector<2x6x2x128xbf16>
    %cst_60 = arith.constant 0.000000e+00 : bf16
    %117 = vector.broadcast %cst_60 : bf16 to vector<2x6x2x128xbf16>
    %118 = tpu.concatenate %117, %116, %117 in 2 : vector<2x6x2x128xbf16>, vector<2x6x2x128xbf16>, vector<2x6x2x128xbf16> -> vector<2x6x6x128xbf16>
    %119 = vector.extract_strided_slice %118 {offsets = [0, 0, 0, 0], sizes = [2, 6, 2, 128], strides = [1, 1, 1, 1]} : vector<2x6x6x128xbf16> to vector<2x6x2x128xbf16>
    %120 = vector.extract_strided_slice %118 {offsets = [0, 0, 1, 0], sizes = [2, 6, 2, 128], strides = [1, 1, 1, 1]} : vector<2x6x6x128xbf16> to vector<2x6x2x128xbf16>
    %121 = vector.extract_strided_slice %118 {offsets = [0, 0, 2, 0], sizes = [2, 6, 2, 128], strides = [1, 1, 1, 1]} : vector<2x6x6x128xbf16> to vector<2x6x2x128xbf16>
    %122 = vector.extract_strided_slice %118 {offsets = [0, 0, 3, 0], sizes = [2, 6, 2, 128], strides = [1, 1, 1, 1]} : vector<2x6x6x128xbf16> to vector<2x6x2x128xbf16>
    %123 = vector.extract_strided_slice %118 {offsets = [0, 0, 4, 0], sizes = [2, 6, 2, 128], strides = [1, 1, 1, 1]} : vector<2x6x6x128xbf16> to vector<2x6x2x128xbf16>
    %124 = tpu.concatenate %119, %120, %121, %122, %123 in 3 : vector<2x6x2x128xbf16>, vector<2x6x2x128xbf16>, vector<2x6x2x128xbf16>, vector<2x6x2x128xbf16>, vector<2x6x2x128xbf16> -> vector<2x6x2x640xbf16>
    %125 = vector.extract_strided_slice %124 {offsets = [0, 0, 0, 0], sizes = [2, 2, 2, 640], strides = [1, 1, 1, 1]} : vector<2x6x2x640xbf16> to vector<2x2x2x640xbf16>
    %126 = vector.shape_cast %125 : vector<2x2x2x640xbf16> to vector<8x640xbf16>
    %c0_61 = arith.constant 0 : index
    %c0_62 = arith.constant 0 : index
    %c0_63 = arith.constant 0 : index
    %127 = vector.load %arg8[%c0_61, %c0_62, %c0_63] : memref<5x640x256xbf16, #tpu.memory_space<vmem>>, vector<1x640x256xbf16>
    %128 = vector.shape_cast %127 : vector<1x640x256xbf16> to vector<640x256xbf16>
    %cst_64 = arith.constant dense<0.000000e+00> : vector<8x256xf32>
    %129 = tpu.matmul %126, %128, %cst_64 {dimension_numbers = #tpu.dot_dimension_numbers<[1], [0], [0], [1], [0, 0, 1, 1], [], []>} : vector<8x640xbf16>, vector<640x256xbf16>, vector<8x256xf32> -> vector<8x256xf32>
    %130 = vector.extract_strided_slice %124 {offsets = [0, 1, 0, 0], sizes = [2, 2, 2, 640], strides = [1, 1, 1, 1]} : vector<2x6x2x640xbf16> to vector<2x2x2x640xbf16>
    %131 = vector.shape_cast %130 : vector<2x2x2x640xbf16> to vector<8x640xbf16>
    %c1_65 = arith.constant 1 : index
    %c0_66 = arith.constant 0 : index
    %c0_67 = arith.constant 0 : index
    %132 = vector.load %arg8[%c1_65, %c0_66, %c0_67] : memref<5x640x256xbf16, #tpu.memory_space<vmem>>, vector<1x640x256xbf16>
    %133 = vector.shape_cast %132 : vector<1x640x256xbf16> to vector<640x256xbf16>
    %cst_68 = arith.constant dense<0.000000e+00> : vector<8x256xf32>
    %134 = tpu.matmul %131, %133, %cst_68 {dimension_numbers = #tpu.dot_dimension_numbers<[1], [0], [0], [1], [0, 0, 1, 1], [], []>} : vector<8x640xbf16>, vector<640x256xbf16>, vector<8x256xf32> -> vector<8x256xf32>
    %135 = arith.addf %129, %134 : vector<8x256xf32>
    %136 = vector.extract_strided_slice %124 {offsets = [0, 2, 0, 0], sizes = [2, 2, 2, 640], strides = [1, 1, 1, 1]} : vector<2x6x2x640xbf16> to vector<2x2x2x640xbf16>
    %137 = vector.shape_cast %136 : vector<2x2x2x640xbf16> to vector<8x640xbf16>
    %c2_69 = arith.constant 2 : index
    %c0_70 = arith.constant 0 : index
    %c0_71 = arith.constant 0 : index
    %138 = vector.load %arg8[%c2_69, %c0_70, %c0_71] : memref<5x640x256xbf16, #tpu.memory_space<vmem>>, vector<1x640x256xbf16>
    %139 = vector.shape_cast %138 : vector<1x640x256xbf16> to vector<640x256xbf16>
    %cst_72 = arith.constant dense<0.000000e+00> : vector<8x256xf32>
    %140 = tpu.matmul %137, %139, %cst_72 {dimension_numbers = #tpu.dot_dimension_numbers<[1], [0], [0], [1], [0, 0, 1, 1], [], []>} : vector<8x640xbf16>, vector<640x256xbf16>, vector<8x256xf32> -> vector<8x256xf32>
    %141 = arith.addf %135, %140 : vector<8x256xf32>
    %142 = vector.extract_strided_slice %124 {offsets = [0, 3, 0, 0], sizes = [2, 2, 2, 640], strides = [1, 1, 1, 1]} : vector<2x6x2x640xbf16> to vector<2x2x2x640xbf16>
    %143 = vector.shape_cast %142 : vector<2x2x2x640xbf16> to vector<8x640xbf16>
    %c3_73 = arith.constant 3 : index
    %c0_74 = arith.constant 0 : index
    %c0_75 = arith.constant 0 : index
    %144 = vector.load %arg8[%c3_73, %c0_74, %c0_75] : memref<5x640x256xbf16, #tpu.memory_space<vmem>>, vector<1x640x256xbf16>
    %145 = vector.shape_cast %144 : vector<1x640x256xbf16> to vector<640x256xbf16>
    %cst_76 = arith.constant dense<0.000000e+00> : vector<8x256xf32>
    %146 = tpu.matmul %143, %145, %cst_76 {dimension_numbers = #tpu.dot_dimension_numbers<[1], [0], [0], [1], [0, 0, 1, 1], [], []>} : vector<8x640xbf16>, vector<640x256xbf16>, vector<8x256xf32> -> vector<8x256xf32>
    %147 = arith.addf %141, %146 : vector<8x256xf32>
    %148 = vector.extract_strided_slice %124 {offsets = [0, 4, 0, 0], sizes = [2, 2, 2, 640], strides = [1, 1, 1, 1]} : vector<2x6x2x640xbf16> to vector<2x2x2x640xbf16>
    %149 = vector.shape_cast %148 : vector<2x2x2x640xbf16> to vector<8x640xbf16>
    %c4_77 = arith.constant 4 : index
    %c0_78 = arith.constant 0 : index
    %c0_79 = arith.constant 0 : index
    %150 = vector.load %arg8[%c4_77, %c0_78, %c0_79] : memref<5x640x256xbf16, #tpu.memory_space<vmem>>, vector<1x640x256xbf16>
    %151 = vector.shape_cast %150 : vector<1x640x256xbf16> to vector<640x256xbf16>
    %cst_80 = arith.constant dense<0.000000e+00> : vector<8x256xf32>
    %152 = tpu.matmul %149, %151, %cst_80 {dimension_numbers = #tpu.dot_dimension_numbers<[1], [0], [0], [1], [0, 0, 1, 1], [], []>} : vector<8x640xbf16>, vector<640x256xbf16>, vector<8x256xf32> -> vector<8x256xf32>
    %153 = arith.addf %147, %152 : vector<8x256xf32>
    %c0_81 = arith.constant 0 : index
    %c0_82 = arith.constant 0 : index
    %154 = vector.load %arg9[%c0_81, %c0_82] : memref<1x256xf32, #tpu.memory_space<vmem>>, vector<1x256xf32>
    %155 = vector.broadcast %154 : vector<1x256xf32> to vector<8x256xf32>
    %156 = arith.addf %153, %155 : vector<8x256xf32>
    %cst_83 = arith.constant 0.000000e+00 : f32
    %157 = vector.broadcast %cst_83 : f32 to vector<8x256xf32>
    %158 = arith.maximumf %156, %157 : vector<8x256xf32>
    %159 = vector.shape_cast %158 : vector<8x256xf32> to vector<2x2x2x256xf32>
    %cst_84 = arith.constant dense<0xFF800000> : vector<2x2x256xf32>
    %160 = vector.multi_reduction <maximumf>, %159, %cst_84 [1] : vector<2x2x2x256xf32> to vector<2x2x256xf32>
    %161 = vector.shape_cast %160 : vector<2x2x256xf32> to vector<2x1x2x256xf32>
    %cst_85 = arith.constant dense<0xFF800000> : vector<2x1x256xf32>
    %162 = vector.multi_reduction <maximumf>, %161, %cst_85 [2] : vector<2x1x2x256xf32> to vector<2x1x256xf32>
    %163 = vector.shape_cast %162 : vector<2x1x256xf32> to vector<2x1x1x256xf32>
    %164 = vector.shape_cast %163 : vector<2x1x1x256xf32> to vector<2x256xf32>
    %c0_86 = arith.constant 0 : index
    %c0_87 = arith.constant 0 : index
    %165 = vector.load %arg10[%c0_86, %c0_87] : memref<1x256xf32, #tpu.memory_space<vmem>>, vector<1x256xf32>
    %166 = vector.broadcast %165 : vector<1x256xf32> to vector<2x256xf32>
    %167 = arith.mulf %164, %166 : vector<2x256xf32>
    %c0_88 = arith.constant 0 : index
    %c0_89 = arith.constant 0 : index
    %168 = vector.load %arg11[%c0_88, %c0_89] : memref<1x256xf32, #tpu.memory_space<vmem>>, vector<1x256xf32>
    %169 = vector.broadcast %168 : vector<1x256xf32> to vector<2x256xf32>
    %170 = arith.addf %167, %169 : vector<2x256xf32>
    %c0_90 = arith.constant 0 : index
    %c0_91 = arith.constant 0 : index
    %171 = vector.load %arg12[%c0_90, %c0_91] : memref<2x256xf32, #tpu.memory_space<vmem>>, vector<2x256xf32>
    tpu.vector_store %arg12[%c0_90, %c0_91], %170 {strides = array<i32>} : memref<2x256xf32, #tpu.memory_space<vmem>>, vector<2x256xf32>,
    return
  }
  func.func @transform_0(%arg0: i32) -> (i32, i32, i32) {
    %c0_i32 = arith.constant 0 : i32
    %c0_i32_0 = arith.constant 0 : i32
    %c0_i32_1 = arith.constant 0 : i32
    return %arg0, %c0_i32, %c0_i32_0 : i32, i32, i32
  }
  func.func @transform_1(%arg0: i32) -> (i32, i32) {
    %c0_i32 = arith.constant 0 : i32
    %c0_i32_0 = arith.constant 0 : i32
    %c0_i32_1 = arith.constant 0 : i32
    return %c0_i32, %c0_i32_0 : i32, i32
  }
  func.func @transform_2(%arg0: i32) -> (i32, i32) {
    %c0_i32 = arith.constant 0 : i32
    %c0_i32_0 = arith.constant 0 : i32
    %c0_i32_1 = arith.constant 0 : i32
    return %c0_i32, %c0_i32_0 : i32, i32
  }
  func.func @transform_3(%arg0: i32) -> (i32, i32, i32) {
    %c0_i32 = arith.constant 0 : i32
    %c0_i32_0 = arith.constant 0 : i32
    %c0_i32_1 = arith.constant 0 : i32
    %c0_i32_2 = arith.constant 0 : i32
    return %c0_i32, %c0_i32_0, %c0_i32_1 : i32, i32, i32
  }
  func.func @transform_4(%arg0: i32) -> (i32, i32) {
    %c0_i32 = arith.constant 0 : i32
    %c0_i32_0 = arith.constant 0 : i32
    %c0_i32_1 = arith.constant 0 : i32
    return %c0_i32, %c0_i32_0 : i32, i32
  }
  func.func @transform_5(%arg0: i32) -> (i32, i32, i32) {
    %c0_i32 = arith.constant 0 : i32
    %c0_i32_0 = arith.constant 0 : i32
    %c0_i32_1 = arith.constant 0 : i32
    %c0_i32_2 = arith.constant 0 : i32
    return %c0_i32, %c0_i32_0, %c0_i32_1 : i32, i32, i32
  }
  func.func @transform_6(%arg0: i32) -> (i32, i32) {
    %c0_i32 = arith.constant 0 : i32
    %c0_i32_0 = arith.constant 0 : i32
    %c0_i32_1 = arith.constant 0 : i32
    return %c0_i32, %c0_i32_0 : i32, i32
  }
  func.func @transform_7(%arg0: i32) -> (i32, i32, i32) {
    %c0_i32 = arith.constant 0 : i32
    %c0_i32_0 = arith.constant 0 : i32
    %c0_i32_1 = arith.constant 0 : i32
    %c0_i32_2 = arith.constant 0 : i32
    return %c0_i32, %c0_i32_0, %c0_i32_1 : i32, i32, i32
  }
  func.func @transform_8(%arg0: i32) -> (i32, i32) {
    %c0_i32 = arith.constant 0 : i32
    %c0_i32_0 = arith.constant 0 : i32
    %c0_i32_1 = arith.constant 0 : i32
    return %c0_i32, %c0_i32_0 : i32, i32
  }
  func.func @transform_9(%arg0: i32) -> (i32, i32) {
    %c0_i32 = arith.constant 0 : i32
    %c0_i32_0 = arith.constant 0 : i32
    %c0_i32_1 = arith.constant 0 : i32
    return %c0_i32, %c0_i32_0 : i32, i32
  }
  func.func @transform_10(%arg0: i32) -> (i32, i32) {
    %c0_i32 = arith.constant 0 : i32
    %c0_i32_0 = arith.constant 0 : i32
    %c0_i32_1 = arith.constant 0 : i32
    return %c0_i32, %c0_i32_0 : i32, i32
  }
  func.func @transform_11(%arg0: i32) -> (i32, i32) {
    %c0_i32 = arith.constant 0 : i32
    %c0_i32_0 = arith.constant 0 : i32
    return %arg0, %c0_i32 : i32, i32
  }
}

</mosaic_0001>

<llo_original>
// kernel: conv_block_forward.1
$region0: #{conv_block_forward.1}
  #allocation0 [shape = 'u32[]', space=smem, size = 0x4, offset = 0x4, fixed_abs, tag = 'smem constant byte address 0x4 - core index']
  #allocation1 [shape = 'u32[72,128]{1,0:T(1,128)}', space=vmem, size = 0x9000, scoped, tag = 'internal scratch']
  %s0 = inlined_call_operand.vmem [shape: bf16[2,256,128], index: 0, kind: input, shape index: {}]
  %s1 = inlined_call_operand.vmem [shape: bf16[128,64], index: 1, kind: input, shape index: {}]
  %s2 = inlined_call_operand.vmem [shape: f32[1,64], index: 2, kind: input, shape index: {}]
  %s3 = inlined_call_operand.vmem [shape: bf16[5,320,128], index: 3, kind: input, shape index: {}]
  %s4 = inlined_call_operand.vmem [shape: f32[1,128], index: 4, kind: input, shape index: {}]
  %s5 = inlined_call_operand.vmem [shape: bf16[5,640,128], index: 5, kind: input, shape index: {}]
  %s6 = inlined_call_operand.vmem [shape: f32[1,128], index: 6, kind: input, shape index: {}]
  %s7 = inlined_call_operand.vmem [shape: bf16[5,640,256], index: 7, kind: input, shape index: {}]
  %s8 = inlined_call_operand.vmem [shape: f32[1,256], index: 8, kind: input, shape index: {}]
  %s9 = inlined_call_operand.vmem [shape: f32[1,256], index: 9, kind: input, shape index: {}]
  %s10 = inlined_call_operand.vmem [shape: f32[1,256], index: 10, kind: input, shape index: {}]
  %s11 = inlined_call_operand.hbm [shape: f32[2,256], index: 11, kind: output, shape index: {}]
  %s12 = sld [smem:[#allocation0]]
  $region54: #{conv_block_forward.1} parent=0
    _
  %s14 = ssub.s32 1, %s12
  %s15 = scalar_select 0, %s14, %s12
  $region1: #{conv_block_forward.1} parent=0
    #allocation2 [shape = 'u8[2048]{0}', space=vmem, size = 0x800, scoped, tag = 'output window, operand 0, single buffered']
    #allocation3 [shape = 's32[1]{0}', space=sflag, size = 0x4, scoped, tag = 'scoped memory for conv_block_forward.1']
    %16 = vsyncpa [#allocation3], 0
    // Predicated region
    $region2: #{conv_block_forward.1} parent=1 // pred_check
      _
    $region3: #{conv_block_forward.1} parent=1 // pred_check_branch
      %18 = sbr.rel (0) target = $region5
    $region4: #{conv_block_forward.1} parent=1 // pred_region
      _
    $region5: #{conv_block_forward.1} parent=1 // pred_fallthru
      _
    // Predicated region
    $region6: #{conv_block_forward.1} parent=1 // pred_check
      _
    $region7: #{conv_block_forward.1} parent=1 // pred_check_branch
      %20 = sbr.rel (0) target = $region9
    $region8: #{conv_block_forward.1} parent=1 // pred_region
      _
    $region9: #{conv_block_forward.1} parent=1 // pred_fallthru
      _
    // Predicated region
    $region10: #{conv_block_forward.1} parent=1 // pred_check
      _
    $region11: #{conv_block_forward.1} parent=1 // pred_check_branch
      %22 = sbr.rel (0) target = $region13
    $region12: #{conv_block_forward.1} parent=1 // pred_region
      _
    $region13: #{conv_block_forward.1} parent=1 // pred_fallthru
      _
    // Predicated region
    $region14: #{conv_block_forward.1} parent=1 // pred_check
      _
    $region15: #{conv_block_forward.1} parent=1 // pred_check_branch
      %24 = sbr.rel (0) target = $region17
    $region16: #{conv_block_forward.1} parent=1 // pred_region
      _
    $region17: #{conv_block_forward.1} parent=1 // pred_fallthru
      _
    // Predicated region
    $region18: #{conv_block_forward.1} parent=1 // pred_check
      _
    $region19: #{conv_block_forward.1} parent=1 // pred_check_branch
      %26 = sbr.rel (0) target = $region21
    $region20: #{conv_block_forward.1} parent=1 // pred_region
      _
    $region21: #{conv_block_forward.1} parent=1 // pred_fallthru
      _
    // Predicated region
    $region22: #{conv_block_forward.1} parent=1 // pred_check
      _
    $region23: #{conv_block_forward.1} parent=1 // pred_check_branch
      %28 = sbr.rel (0) target = $region25
    $region24: #{conv_block_forward.1} parent=1 // pred_region
      _
    $region25: #{conv_block_forward.1} parent=1 // pred_fallthru
      _
    // Predicated region
    $region26: #{conv_block_forward.1} parent=1 // pred_check
      _
    $region27: #{conv_block_forward.1} parent=1 // pred_check_branch
      %30 = sbr.rel (0) target = $region29
    $region28: #{conv_block_forward.1} parent=1 // pred_region
      _
    $region29: #{conv_block_forward.1} parent=1 // pred_fallthru
      _
    // Predicated region
    $region30: #{conv_block_forward.1} parent=1 // pred_check
      _
    $region31: #{conv_block_forward.1} parent=1 // pred_check_branch
      %32 = sbr.rel (0) target = $region33
    $region32: #{conv_block_forward.1} parent=1 // pred_region
      _
    $region33: #{conv_block_forward.1} parent=1 // pred_fallthru
      _
    // Predicated region
    $region34: #{conv_block_forward.1} parent=1 // pred_check
      _
    $region35: #{conv_block_forward.1} parent=1 // pred_check_branch
      %34 = sbr.rel (0) target = $region37
    $region36: #{conv_block_forward.1} parent=1 // pred_region
      _
    $region37: #{conv_block_forward.1} parent=1 // pred_fallthru
      _
    // Predicated region
    $region38: #{conv_block_forward.1} parent=1 // pred_check
      _
    $region39: #{conv_block_forward.1} parent=1 // pred_check_branch
      %36 = sbr.rel (0) target = $region41
    $region40: #{conv_block_forward.1} parent=1 // pred_region
      _
    $region41: #{conv_block_forward.1} parent=1 // pred_fallthru
      _
    // Predicated region
    $region42: #{conv_block_forward.1} parent=1 // pred_check
      _
    $region43: #{conv_block_forward.1} parent=1 // pred_check_branch
      %38 = sbr.rel (0) target = $region45
    $region44: #{conv_block_forward.1} parent=1 // pred_region
      _
    $region45: #{conv_block_forward.1} parent=1 // pred_fallthru
      _
    %v40 = vld [vmem:[%s0] sm:$0xf]
    %v41 = vld [vmem:[%s0 + $0x4] sm:$0xf]
    %v42 = vld [vmem:[%s0 + $0x8] sm:$0xf]
    %v43 = vld [vmem:[%s0 + $0xc] sm:$0xf]
    %v44 = vld [vmem:[%s0 + $0x10] sm:$0xf]
    %v45 = vld [vmem:[%s0 + $0x14] sm:$0xf]
    %v46 = vld [vmem:[%s0 + $0x18] sm:$0xf]
    %v47 = vld [vmem:[%s0 + $0x1c] sm:$0xf]
    %v48 = vld [vmem:[%s0 + $0x20] sm:$0xf]
    %v49 = vld [vmem:[%s0 + $0x24] sm:$0xf]
    %v50 = vld [vmem:[%s0 + $0x28] sm:$0xf]
    %v51 = vld [vmem:[%s0 + $0x2c] sm:$0xf]
    %v52 = vld [vmem:[%s0 + $0x30] sm:$0xf]
    %v53 = vld [vmem:[%s0 + $0x34] sm:$0xf]
    %v54 = vld [vmem:[%s0 + $0x38] sm:$0xf]
    %v55 = vld [vmem:[%s0 + $0x3c] sm:$0xf]
    %v56 = vld [vmem:[%s0 + $0x40] sm:$0xf]
    %v57 = vld [vmem:[%s0 + $0x44] sm:$0xf]
    %v58 = vld [vmem:[%s0 + $0x48] sm:$0xf]
    %v59 = vld [vmem:[%s0 + $0x4c] sm:$0xf]
    %v60 = vld [vmem:[%s0 + $0x50] sm:$0xf]
    %v61 = vld [vmem:[%s0 + $0x54] sm:$0xf]
    %v62 = vld [vmem:[%s0 + $0x58] sm:$0xf]
    %v63 = vld [vmem:[%s0 + $0x5c] sm:$0xf]
    %v64 = vld [vmem:[%s0 + $0x60] sm:$0xf]
    %v65 = vld [vmem:[%s0 + $0x64] sm:$0xf]
    %v66 = vld [vmem:[%s0 + $0x68] sm:$0xf]
    %v67 = vld [vmem:[%s0 + $0x6c] sm:$0xf]
    %v68 = vld [vmem:[%s0 + $0x70] sm:$0xf]
    %v69 = vld [vmem:[%s0 + $0x74] sm:$0xf]
    %v70 = vld [vmem:[%s0 + $0x78] sm:$0xf]
    %v71 = vld [vmem:[%s0 + $0x7c] sm:$0xf]
    %v72 = vld [vmem:[%s0 + $0x80] sm:$0xf]
    %v73 = vld [vmem:[%s0 + $0x84] sm:$0xf]
    %v74 = vld [vmem:[%s0 + $0x88] sm:$0xf]
    %v75 = vld [vmem:[%s0 + $0x8c] sm:$0xf]
    %v76 = vld [vmem:[%s0 + $0x90] sm:$0xf]
    %v77 = vld [vmem:[%s0 + $0x94] sm:$0xf]
    %v78 = vld [vmem:[%s0 + $0x98] sm:$0xf]
    %v79 = vld [vmem:[%s0 + $0x9c] sm:$0xf]
    %v80 = vld [vmem:[%s0 + $0xa0] sm:$0xf]
    %v81 = vld [vmem:[%s0 + $0xa4] sm:$0xf]
    %v82 = vld [vmem:[%s0 + $0xa8] sm:$0xf]
    %v83 = vld [vmem:[%s0 + $0xac] sm:$0xf]
    %v84 = vld [vmem:[%s0 + $0xb0] sm:$0xf]
    %v85 = vld [vmem:[%s0 + $0xb4] sm:$0xf]
    %v86 = vld [vmem:[%s0 + $0xb8] sm:$0xf]
    %v87 = vld [vmem:[%s0 + $0xbc] sm:$0xf]
    %v88 = vld [vmem:[%s0 + $0xc0] sm:$0xf]
    %v89 = vld [vmem:[%s0 + $0xc4] sm:$0xf]
    %v90 = vld [vmem:[%s0 + $0xc8] sm:$0xf]
    %v91 = vld [vmem:[%s0 + $0xcc] sm:$0xf]
    %v92 = vld [vmem:[%s0 + $0xd0] sm:$0xf]
    %v93 = vld [vmem:[%s0 + $0xd4] sm:$0xf]
    %v94 = vld [vmem:[%s0 + $0xd8] sm:$0xf]
    %v95 = vld [vmem:[%s0 + $0xdc] sm:$0xf]
    %v96 = vld [vmem:[%s0 + $0xe0] sm:$0xf]
    %v97 = vld [vmem:[%s0 + $0xe4] sm:$0xf]
    %v98 = vld [vmem:[%s0 + $0xe8] sm:$0xf]
    %v99 = vld [vmem:[%s0 + $0xec] sm:$0xf]
    %v100 = vld [vmem:[%s0 + $0xf0] sm:$0xf]
    %v101 = vld [vmem:[%s0 + $0xf4] sm:$0xf]
    %v102 = vld [vmem:[%s0 + $0xf8] sm:$0xf]
    %v103 = vld [vmem:[%s0 + $0xfc] sm:$0xf]
    %v104 = vld [vmem:[%s1] sm:$0xf]
    %v105 = vld [vmem:[%s1 + $0x4] sm:$0xf]
    %v106 = vld [vmem:[%s1 + $0x8] sm:$0xf]
    %v107 = vld [vmem:[%s1 + $0xc] sm:$0xf]
    %v108 = vld [vmem:[%s1 + $0x10] sm:$0xf]
    %v109 = vld [vmem:[%s1 + $0x14] sm:$0xf]
    %v110 = vld [vmem:[%s1 + $0x18] sm:$0xf]
    %v111 = vld [vmem:[%s1 + $0x1c] sm:$0xf]
    %v112 = vld [vmem:[%s1 + $0x20] sm:$0xf]
    %v113 = vld [vmem:[%s1 + $0x24] sm:$0xf]
    %v114 = vld [vmem:[%s1 + $0x28] sm:$0xf]
    %v115 = vld [vmem:[%s1 + $0x2c] sm:$0xf]
    %v116 = vld [vmem:[%s1 + $0x30] sm:$0xf]
    %v117 = vld [vmem:[%s1 + $0x34] sm:$0xf]
    %v118 = vld [vmem:[%s1 + $0x38] sm:$0xf]
    %v119 = vld [vmem:[%s1 + $0x3c] sm:$0xf]
    %v120 = vld [vmem:[%s2] sm:$0x1]
    %v122 = vperm.slane %v120, 0
    %v188 = vunpack.c.l.b16 %v40
    %v189 = vunpack.c.l.b16 %v41
    %v190 = vunpack.c.l.b16 %v42
    %v191 = vunpack.c.l.b16 %v43
    %v192 = vunpack.c.l.b16 %v44
    %v193 = vunpack.c.l.b16 %v45
    %v194 = vunpack.c.l.b16 %v46
    %v195 = vunpack.c.l.b16 %v47
    %v196 = vunpack.c.l.b16 %v48
    %v197 = vunpack.c.l.b16 %v49
    %v198 = vunpack.c.l.b16 %v50
    %v199 = vunpack.c.l.b16 %v51
    %v200 = vunpack.c.l.b16 %v52
    %v201 = vunpack.c.l.b16 %v53
    %v202 = vunpack.c.l.b16 %v54
    %v203 = vunpack.c.l.b16 %v55
    %v204 = vunpack.c.l.b16 %v56
    %v205 = vunpack.c.l.b16 %v57
    %v206 = vunpack.c.l.b16 %v58
    %v207 = vunpack.c.l.b16 %v59
    %v208 = vunpack.c.l.b16 %v60
    %v209 = vunpack.c.l.b16 %v61
    %v210 = vunpack.c.l.b16 %v62
    %v211 = vunpack.c.l.b16 %v63
    %v212 = vunpack.c.l.b16 %v64
    %v213 = vunpack.c.l.b16 %v65
    %v214 = vunpack.c.l.b16 %v66
    %v215 = vunpack.c.l.b16 %v67
    %v216 = vunpack.c.l.b16 %v68
    %v217 = vunpack.c.l.b16 %v69
    %v218 = vunpack.c.l.b16 %v70
    %v219 = vunpack.c.l.b16 %v71
    %v220 = vunpack.c.l.b16 %v72
    %v221 = vunpack.c.l.b16 %v73
    %v222 = vunpack.c.l.b16 %v74
    %v223 = vunpack.c.l.b16 %v75
    %v224 = vunpack.c.l.b16 %v76
    %v225 = vunpack.c.l.b16 %v77
    %v226 = vunpack.c.l.b16 %v78
    %v227 = vunpack.c.l.b16 %v79
    %v228 = vunpack.c.l.b16 %v80
    %v229 = vunpack.c.l.b16 %v81
    %v230 = vunpack.c.l.b16 %v82
    %v231 = vunpack.c.l.b16 %v83
    %v232 = vunpack.c.l.b16 %v84
    %v233 = vunpack.c.l.b16 %v85
    %v234 = vunpack.c.l.b16 %v86
    %v235 = vunpack.c.l.b16 %v87
    %v236 = vunpack.c.l.b16 %v88
    %v237 = vunpack.c.l.b16 %v89
    %v238 = vunpack.c.l.b16 %v90
    %v239 = vunpack.c.l.b16 %v91
    %v240 = vunpack.c.l.b16 %v92
    %v241 = vunpack.c.l.b16 %v93
    %v242 = vunpack.c.l.b16 %v94
    %v243 = vunpack.c.l.b16 %v95
    %v244 = vunpack.c.l.b16 %v96
    %v245 = vunpack.c.l.b16 %v97
    %v246 = vunpack.c.l.b16 %v98
    %v247 = vunpack.c.l.b16 %v99
    %v248 = vunpack.c.l.b16 %v100
    %v249 = vunpack.c.l.b16 %v101
    %v250 = vunpack.c.l.b16 %v102
    %v251 = vunpack.c.l.b16 %v103
    %v252 = vpack.c.b16 %v189, %v188
    %v253 = vpack.c.b16 %v191, %v190
    %v254 = vpack.c.b16 %v193, %v192
    %v255 = vpack.c.b16 %v195, %v194
    %v256 = vpack.c.b16 %v197, %v196
    %v257 = vpack.c.b16 %v199, %v198
    %v258 = vpack.c.b16 %v201, %v200
    %v259 = vpack.c.b16 %v203, %v202
    %v260 = vpack.c.b16 %v205, %v204
    %v261 = vpack.c.b16 %v207, %v206
    %v262 = vpack.c.b16 %v209, %v208
    %v263 = vpack.c.b16 %v211, %v210
    %v264 = vpack.c.b16 %v213, %v212
    %v265 = vpack.c.b16 %v215, %v214
    %v266 = vpack.c.b16 %v217, %v216
    %v267 = vpack.c.b16 %v219, %v218
    %v268 = vpack.c.b16 %v221, %v220
    %v269 = vpack.c.b16 %v223, %v222
    %v270 = vpack.c.b16 %v225, %v224
    %v271 = vpack.c.b16 %v227, %v226
    %v272 = vpack.c.b16 %v229, %v228
    %v273 = vpack.c.b16 %v231, %v230
    %v274 = vpack.c.b16 %v233, %v232
    %v275 = vpack.c.b16 %v235, %v234
    %v276 = vpack.c.b16 %v237, %v236
    %v277 = vpack.c.b16 %v239, %v238
    %v278 = vpack.c.b16 %v241, %v240
    %v279 = vpack.c.b16 %v243, %v242
    %v280 = vpack.c.b16 %v245, %v244
    %v281 = vpack.c.b16 %v247, %v246
    %v282 = vpack.c.b16 %v249, %v248
    %v283 = vpack.c.b16 %v251, %v250
    %v332 = vunpack.c.l.b16 %v104
    %v333 = vunpack.c.l.b16 %v105
    %v334 = vunpack.c.l.b16 %v106
    %v335 = vunpack.c.l.b16 %v107
    %v336 = vunpack.c.l.b16 %v108
    %v337 = vunpack.c.l.b16 %v109
    %v338 = vunpack.c.l.b16 %v110
    %v339 = vunpack.c.l.b16 %v111
    %v340 = vunpack.c.l.b16 %v112
    %v341 = vunpack.c.l.b16 %v113
    %v342 = vunpack.c.l.b16 %v114
    %v343 = vunpack.c.l.b16 %v115
    %v344 = vunpack.c.l.b16 %v116
    %v345 = vunpack.c.l.b16 %v117
    %v346 = vunpack.c.l.b16 %v118
    %v347 = vunpack.c.l.b16 %v119
    %v348 = vpack.c.b16 %v333, %v332
    %v349 = vpack.c.b16 %v335, %v334
    %v350 = vpack.c.b16 %v337, %v336
    %v351 = vpack.c.b16 %v339, %v338
    %v352 = vpack.c.b16 %v341, %v340
    %v353 = vpack.c.b16 %v343, %v342
    %v354 = vpack.c.b16 %v345, %v344
    %v355 = vpack.c.b16 %v347, %v346
    %364 = vmatpush.bf16.msra.mxu0 %v355
    %365 = vmatpush.bf16.msra.mxu0 %v354
    %366 = vmatpush.bf16.msra.mxu0 %v353
    %367 = vmatpush.bf16.msra.mxu0 %v352
    %368 = vmatpush.bf16.msra.mxu0 %v351
    %369 = vmatpush.bf16.msra.mxu0 %v350
    %370 = vmatpush.bf16.msra.mxu0 %v349
    %371 = vmatpush.bf16.msra.mxu0 %v348
    %372 = vmatmul.bf16.gmra.mxu0 %v252
    %v373 = vpop.f32.mrf.mxu0
    %v374 = vadd.f32 %v122, %v373
    %v375 = vpop.f32.mrf.mxu0
    %v376 = vadd.f32 %v122, %v375
    %377 = vmatmul.bf16.gmra.mxu0 %v253
    %v378 = vpop.f32.mrf.mxu0
    %v379 = vadd.f32 %v122, %v378
    %v380 = vpop.f32.mrf.mxu0
    %v381 = vadd.f32 %v122, %v380
    %382 = vmatmul.bf16.gmra.mxu0 %v254
    %v383 = vpop.f32.mrf.mxu0
    %v384 = vadd.f32 %v122, %v383
    %v385 = vpop.f32.mrf.mxu0
    %v386 = vadd.f32 %v122, %v385
    %387 = vmatmul.bf16.gmra.mxu0 %v255
    %v388 = vpop.f32.mrf.mxu0
    %v389 = vadd.f32 %v122, %v388
    %v390 = vpop.f32.mrf.mxu0
    %v391 = vadd.f32 %v122, %v390
    %392 = vmatmul.bf16.gmra.mxu0 %v256
    %v393 = vpop.f32.mrf.mxu0
    %v394 = vadd.f32 %v122, %v393
    %v395 = vpop.f32.mrf.mxu0
    %v396 = vadd.f32 %v122, %v395
    %397 = vmatmul.bf16.gmra.mxu0 %v257
    %v398 = vpop.f32.mrf.mxu0
    %v399 = vadd.f32 %v122, %v398
    %v400 = vpop.f32.mrf.mxu0
    %v401 = vadd.f32 %v122, %v400
    %402 = vmatmul.bf16.gmra.mxu0 %v258
    %v403 = vpop.f32.mrf.mxu0
    %v404 = vadd.f32 %v122, %v403
    %v405 = vpop.f32.mrf.mxu0
    %v406 = vadd.f32 %v122, %v405
    %407 = vmatmul.bf16.gmra.mxu0 %v259
    %v408 = vpop.f32.mrf.mxu0
    %v409 = vadd.f32 %v122, %v408
    %v410 = vpop.f32.mrf.mxu0
    %v411 = vadd.f32 %v122, %v410
    %412 = vmatmul.bf16.gmra.mxu0 %v260
    %v413 = vpop.f32.mrf.mxu0
    %v414 = vadd.f32 %v122, %v413
    %v415 = vpop.f32.mrf.mxu0
    %v416 = vadd.f32 %v122, %v415
    %417 = vmatmul.bf16.gmra.mxu0 %v261
    %v418 = vpop.f32.mrf.mxu0
    %v419 = vadd.f32 %v122, %v418
    %v420 = vpop.f32.mrf.mxu0
    %v421 = vadd.f32 %v122, %v420
    %422 = vmatmul.bf16.gmra.mxu0 %v262
    %v423 = vpop.f32.mrf.mxu0
    %v424 = vadd.f32 %v122, %v423
    %v425 = vpop.f32.mrf.mxu0
    %v426 = vadd.f32 %v122, %v425
    %427 = vmatmul.bf16.gmra.mxu0 %v263
    %v428 = vpop.f32.mrf.mxu0
    %v429 = vadd.f32 %v122, %v428
    %v430 = vpop.f32.mrf.mxu0
    %v431 = vadd.f32 %v122, %v430
    %432 = vmatmul.bf16.gmra.mxu0 %v264
    %v433 = vpop.f32.mrf.mxu0
    %v434 = vadd.f32 %v122, %v433
    %v435 = vpop.f32.mrf.mxu0
    %v436 = vadd.f32 %v122, %v435
    %437 = vmatmul.bf16.gmra.mxu0 %v265
    %v438 = vpop.f32.mrf.mxu0
    %v439 = vadd.f32 %v122, %v438
    %v440 = vpop.f32.mrf.mxu0
    %v441 = vadd.f32 %v122, %v440
    %442 = vmatmul.bf16.gmra.mxu0 %v266
    %v443 = vpop.f32.mrf.mxu0
    %v444 = vadd.f32 %v122, %v443
    %v445 = vpop.f32.mrf.mxu0
    %v446 = vadd.f32 %v122, %v445
    %447 = vmatmul.bf16.gmra.mxu0 %v267
    %v448 = vpop.f32.mrf.mxu0
    %v449 = vadd.f32 %v122, %v448
    %v450 = vpop.f32.mrf.mxu0
    %v451 = vadd.f32 %v122, %v450
    %452 = vmatmul.bf16.gmra.mxu0 %v268
    %v453 = vpop.f32.mrf.mxu0
    %v454 = vadd.f32 %v122, %v453
    %v455 = vpop.f32.mrf.mxu0
    %v456 = vadd.f32 %v122, %v455
    %457 = vmatmul.bf16.gmra.mxu0 %v269
    %v458 = vpop.f32.mrf.mxu0
    %v459 = vadd.f32 %v122, %v458
    %v460 = vpop.f32.mrf.mxu0
    %v461 = vadd.f32 %v122, %v460
    %462 = vmatmul.bf16.gmra.mxu0 %v270
    %v463 = vpop.f32.mrf.mxu0
    %v464 = vadd.f32 %v122, %v463
    %v465 = vpop.f32.mrf.mxu0
    %v466 = vadd.f32 %v122, %v465
    %467 = vmatmul.bf16.gmra.mxu0 %v271
    %v468 = vpop.f32.mrf.mxu0
    %v469 = vadd.f32 %v122, %v468
    %v470 = vpop.f32.mrf.mxu0
    %v471 = vadd.f32 %v122, %v470
    %472 = vmatmul.bf16.gmra.mxu0 %v272
    %v473 = vpop.f32.mrf.mxu0
    %v474 = vadd.f32 %v122, %v473
    %v475 = vpop.f32.mrf.mxu0
    %v476 = vadd.f32 %v122, %v475
    %477 = vmatmul.bf16.gmra.mxu0 %v273
    %v478 = vpop.f32.mrf.mxu0
    %v479 = vadd.f32 %v122, %v478
    %v480 = vpop.f32.mrf.mxu0
    %v481 = vadd.f32 %v122, %v480
    %482 = vmatmul.bf16.gmra.mxu0 %v274
    %v483 = vpop.f32.mrf.mxu0
    %v484 = vadd.f32 %v122, %v483
    %v485 = vpop.f32.mrf.mxu0
    %v486 = vadd.f32 %v122, %v485
    %487 = vmatmul.bf16.gmra.mxu0 %v275
    %v488 = vpop.f32.mrf.mxu0
    %v489 = vadd.f32 %v122, %v488
    %v490 = vpop.f32.mrf.mxu0
    %v491 = vadd.f32 %v122, %v490
    %492 = vmatmul.bf16.gmra.mxu0 %v276
    %v493 = vpop.f32.mrf.mxu0
    %v494 = vadd.f32 %v122, %v493
    %v495 = vpop.f32.mrf.mxu0
    %v496 = vadd.f32 %v122, %v495
    %497 = vmatmul.bf16.gmra.mxu0 %v277
    %v498 = vpop.f32.mrf.mxu0
    %v499 = vadd.f32 %v122, %v498
    %v500 = vpop.f32.mrf.mxu0
    %v501 = vadd.f32 %v122, %v500
    %502 = vmatmul.bf16.gmra.mxu0 %v278
    %v503 = vpop.f32.mrf.mxu0
    %v504 = vadd.f32 %v122, %v503
    %v505 = vpop.f32.mrf.mxu0
    %v506 = vadd.f32 %v122, %v505
    %507 = vmatmul.bf16.gmra.mxu0 %v279
    %v508 = vpop.f32.mrf.mxu0
    %v509 = vadd.f32 %v122, %v508
    %v510 = vpop.f32.mrf.mxu0
    %v511 = vadd.f32 %v122, %v510
    %512 = vmatmul.bf16.gmra.mxu0 %v280
    %v513 = vpop.f32.mrf.mxu0
    %v514 = vadd.f32 %v122, %v513
    %v515 = vpop.f32.mrf.mxu0
    %v516 = vadd.f32 %v122, %v515
    %517 = vmatmul.bf16.gmra.mxu0 %v281
    %v518 = vpop.f32.mrf.mxu0
    %v519 = vadd.f32 %v122, %v518
    %v520 = vpop.f32.mrf.mxu0
    %v521 = vadd.f32 %v122, %v520
    %522 = vmatmul.bf16.gmra.mxu0 %v282
    %v523 = vpop.f32.mrf.mxu0
    %v524 = vadd.f32 %v122, %v523
    %v525 = vpop.f32.mrf.mxu0
    %v526 = vadd.f32 %v122, %v525
    %527 = vmatmul.bf16.gmra.mxu0 %v283
    %v528 = vpop.f32.mrf.mxu0
    %v529 = vadd.f32 %v122, %v528
    %v530 = vpop.f32.mrf.mxu0
    %v531 = vadd.f32 %v122, %v530
    %532 = vdwg.mxu0
    %v533 = vmax.f32 %v374, 0.0
    %v534 = vmax.f32 %v376, 0.0
    %v535 = vmax.f32 %v379, 0.0
    %v536 = vmax.f32 %v381, 0.0
    %v537 = vmax.f32 %v384, 0.0
    %v538 = vmax.f32 %v386, 0.0
    %v539 = vmax.f32 %v389, 0.0
    %v540 = vmax.f32 %v391, 0.0
    %v541 = vmax.f32 %v394, 0.0
    %v542 = vmax.f32 %v396, 0.0
    %v543 = vmax.f32 %v399, 0.0
    %v544 = vmax.f32 %v401, 0.0
    %v545 = vmax.f32 %v404, 0.0
    %v546 = vmax.f32 %v406, 0.0
    %v547 = vmax.f32 %v409, 0.0
    %v548 = vmax.f32 %v411, 0.0
    %v549 = vmax.f32 %v414, 0.0
    %v550 = vmax.f32 %v416, 0.0
    %v551 = vmax.f32 %v419, 0.0
    %v552 = vmax.f32 %v421, 0.0
    %v553 = vmax.f32 %v424, 0.0
    %v554 = vmax.f32 %v426, 0.0
    %v555 = vmax.f32 %v429, 0.0
    %v556 = vmax.f32 %v431, 0.0
    %v557 = vmax.f32 %v434, 0.0
    %v558 = vmax.f32 %v436, 0.0
    %v559 = vmax.f32 %v439, 0.0
    %v560 = vmax.f32 %v441, 0.0
    %v561 = vmax.f32 %v444, 0.0
    %v562 = vmax.f32 %v446, 0.0
    %v563 = vmax.f32 %v449, 0.0
    %v564 = vmax.f32 %v451, 0.0
    %v565 = vmax.f32 %v454, 0.0
    %v566 = vmax.f32 %v456, 0.0
    %v567 = vmax.f32 %v459, 0.0
    %v568 = vmax.f32 %v461, 0.0
    %v569 = vmax.f32 %v464, 0.0
    %v570 = vmax.f32 %v466, 0.0
    %v571 = vmax.f32 %v469, 0.0
    %v572 = vmax.f32 %v471, 0.0
    %v573 = vmax.f32 %v474, 0.0
    %v574 = vmax.f32 %v476, 0.0
    %v575 = vmax.f32 %v479, 0.0
    %v576 = vmax.f32 %v481, 0.0
    %v577 = vmax.f32 %v484, 0.0
    %v578 = vmax.f32 %v486, 0.0
    %v579 = vmax.f32 %v489, 0.0
    %v580 = vmax.f32 %v491, 0.0
    %v581 = vmax.f32 %v494, 0.0
    %v582 = vmax.f32 %v496, 0.0
    %v583 = vmax.f32 %v499, 0.0
    %v584 = vmax.f32 %v501, 0.0
    %v585 = vmax.f32 %v504, 0.0
    %v586 = vmax.f32 %v506, 0.0
    %v587 = vmax.f32 %v509, 0.0
    %v588 = vmax.f32 %v511, 0.0
    %v589 = vmax.f32 %v514, 0.0
    %v590 = vmax.f32 %v516, 0.0
    %v591 = vmax.f32 %v519, 0.0
    %v592 = vmax.f32 %v521, 0.0
    %v593 = vmax.f32 %v524, 0.0
    %v594 = vmax.f32 %v526, 0.0
    %v595 = vmax.f32 %v529, 0.0
    %v596 = vmax.f32 %v531, 0.0
    %vm597 = vcmask 523264
    %v598 = vsel %vm597, %v533, -inf
    %v599 = vsel %vm597, %v535, -inf
    %v600 = vmax.f32 %v598, %v599
    %v601 = vsel %vm597, %v534, -inf
    %v602 = vsel %vm597, %v536, -inf
    %v603 = vmax.f32 %v601, %v602
    %v604 = vsel %vm597, %v537, -inf
    %v605 = vsel %vm597, %v539, -inf
    %v606 = vmax.f32 %v604, %v605
    %v607 = vsel %vm597, %v538, -inf
    %v608 = vsel %vm597, %v540, -inf
    %v609 = vmax.f32 %v607, %v608
    %v610 = vsel %vm597, %v541, -inf
    %v611 = vsel %vm597, %v543, -inf
    %v612 = vmax.f32 %v610, %v611
    %v613 = vsel %vm597, %v542, -inf
    %v614 = vsel %vm597, %v544, -inf
    %v615 = vmax.f32 %v613, %v614
    %v616 = vsel %vm597, %v545, -inf
    %v617 = vsel %vm597, %v547, -inf
    %v618 = vmax.f32 %v616, %v617
    %v619 = vsel %vm597, %v546, -inf
    %v620 = vsel %vm597, %v548, -inf
    %v621 = vmax.f32 %v619, %v620
    %v622 = vsel %vm597, %v549, -inf
    %v623 = vsel %vm597, %v551, -inf
    %v624 = vmax.f32 %v622, %v623
    %v625 = vsel %vm597, %v550, -inf
    %v626 = vsel %vm597, %v552, -inf
    %v627 = vmax.f32 %v625, %v626
    %v628 = vsel %vm597, %v553, -inf
    %v629 = vsel %vm597, %v555, -inf
    %v630 = vmax.f32 %v628, %v629
    %v631 = vsel %vm597, %v554, -inf
    %v632 = vsel %vm597, %v556, -inf
    %v633 = vmax.f32 %v631, %v632
    %v634 = vsel %vm597, %v557, -inf
    %v635 = vsel %vm597, %v559, -inf
    %v636 = vmax.f32 %v634, %v635
    %v637 = vsel %vm597, %v558, -inf
    %v638 = vsel %vm597, %v560, -inf
    %v639 = vmax.f32 %v637, %v638
    %v640 = vsel %vm597, %v561, -inf
    %v641 = vsel %vm597, %v563, -inf
    %v642 = vmax.f32 %v640, %v641
    %v643 = vsel %vm597, %v562, -inf
    %v644 = vsel %vm597, %v564, -inf
    %v645 = vmax.f32 %v643, %v644
    %v646 = vsel %vm597, %v565, -inf
    %v647 = vsel %vm597, %v567, -inf
    %v648 = vmax.f32 %v646, %v647
    %v649 = vsel %vm597, %v566, -inf
    %v650 = vsel %vm597, %v568, -inf
    %v651 = vmax.f32 %v649, %v650
    %v652 = vsel %vm597, %v569, -inf
    %v653 = vsel %vm597, %v571, -inf
    %v654 = vmax.f32 %v652, %v653
    %v655 = vsel %vm597, %v570, -inf
    %v656 = vsel %vm597, %v572, -inf
    %v657 = vmax.f32 %v655, %v656
    %v658 = vsel %vm597, %v573, -inf
    %v659 = vsel %vm597, %v575, -inf
    %v660 = vmax.f32 %v658, %v659
    %v661 = vsel %vm597, %v574, -inf
    %v662 = vsel %vm597, %v576, -inf
    %v663 = vmax.f32 %v661, %v662
    %v664 = vsel %vm597, %v577, -inf
    %v665 = vsel %vm597, %v579, -inf
    %v666 = vmax.f32 %v664, %v665
    %v667 = vsel %vm597, %v578, -inf
    %v668 = vsel %vm597, %v580, -inf
    %v669 = vmax.f32 %v667, %v668
    %v670 = vsel %vm597, %v581, -inf
    %v671 = vsel %vm597, %v583, -inf
    %v672 = vmax.f32 %v670, %v671
    %v673 = vsel %vm597, %v582, -inf
    %v674 = vsel %vm597, %v584, -inf
    %v675 = vmax.f32 %v673, %v674
    %v676 = vsel %vm597, %v585, -inf
    %v677 = vsel %vm597, %v587, -inf
    %v678 = vmax.f32 %v676, %v677
    %v679 = vsel %vm597, %v586, -inf
    %v680 = vsel %vm597, %v588, -inf
    %v681 = vmax.f32 %v679, %v680
    %v682 = vsel %vm597, %v589, -inf
    %v683 = vsel %vm597, %v591, -inf
    %v684 = vmax.f32 %v682, %v683
    %v685 = vsel %vm597, %v590, -inf
    %v686 = vsel %vm597, %v592, -inf
    %v687 = vmax.f32 %v685, %v686
    %v688 = vsel %vm597, %v593, -inf
    %v689 = vsel %vm597, %v595, -inf
    %v690 = vmax.f32 %v688, %v689
    %v691 = vsel %vm597, %v594, -inf
    %v692 = vsel %vm597, %v596, -inf
    %v693 = vmax.f32 %v691, %v692
    %v726 = vrot.slane %v600, 2
    %v727 = vrot.slane %v600, 4
    %v728 = vrot.slane %v600, 6
    %v729 = vrot.slane %v603, 2
    %v730 = vrot.slane %v603, 4
    %v731 = vrot.slane %v603, 6
    %v732 = vrot.slane %v606, 2
    %v733 = vrot.slane %v606, 4
    %v734 = vrot.slane %v606, 6
    %v735 = vrot.slane %v609, 2
    %v736 = vrot.slane %v609, 4
    %v737 = vrot.slane %v609, 6
    %v738 = vrot.slane %v612, 2
    %v739 = vrot.slane %v612, 4
    %v740 = vrot.slane %v612, 6
    %v741 = vrot.slane %v615, 2
    %v742 = vrot.slane %v615, 4
    %v743 = vrot.slane %v615, 6
    %v744 = vrot.slane %v618, 2
    %v745 = vrot.slane %v618, 4
    %v746 = vrot.slane %v618, 6
    %v747 = vrot.slane %v621, 2
    %v748 = vrot.slane %v621, 4
    %v749 = vrot.slane %v621, 6
    %v750 = vrot.slane %v624, 2
    %v751 = vrot.slane %v624, 4
    %v752 = vrot.slane %v624, 6
    %v753 = vrot.slane %v627, 2
    %v754 = vrot.slane %v627, 4
    %v755 = vrot.slane %v627, 6
    %v756 = vrot.slane %v630, 2
    %v757 = vrot.slane %v630, 4
    %v758 = vrot.slane %v630, 6
    %v759 = vrot.slane %v633, 2
    %v760 = vrot.slane %v633, 4
    %v761 = vrot.slane %v633, 6
    %v762 = vrot.slane %v636, 2
    %v763 = vrot.slane %v636, 4
    %v764 = vrot.slane %v636, 6
    %v765 = vrot.slane %v639, 2
    %v766 = vrot.slane %v639, 4
    %v767 = vrot.slane %v639, 6
    %v768 = vrot.slane %v642, 2
    %v769 = vrot.slane %v642, 4
    %v770 = vrot.slane %v642, 6
    %v771 = vrot.slane %v645, 2
    %v772 = vrot.slane %v645, 4
    %v773 = vrot.slane %v645, 6
    %v774 = vrot.slane %v648, 2
    %v775 = vrot.slane %v648, 4
    %v776 = vrot.slane %v648, 6
    %v777 = vrot.slane %v651, 2
    %v778 = vrot.slane %v651, 4
    %v779 = vrot.slane %v651, 6
    %v780 = vrot.slane %v654, 2
    %v781 = vrot.slane %v654, 4
    %v782 = vrot.slane %v654, 6
    %v783 = vrot.slane %v657, 2
    %v784 = vrot.slane %v657, 4
    %v785 = vrot.slane %v657, 6
    %v786 = vrot.slane %v660, 2
    %v787 = vrot.slane %v660, 4
    %v788 = vrot.slane %v660, 6
    %v789 = vrot.slane %v663, 2
    %v790 = vrot.slane %v663, 4
    %v791 = vrot.slane %v663, 6
    %v792 = vrot.slane %v666, 2
    %v793 = vrot.slane %v666, 4
    %v794 = vrot.slane %v666, 6
    %v795 = vrot.slane %v669, 2
    %v796 = vrot.slane %v669, 4
    %v797 = vrot.slane %v669, 6
    %v798 = vrot.slane %v672, 2
    %v799 = vrot.slane %v672, 4
    %v800 = vrot.slane %v672, 6
    %v801 = vrot.slane %v675, 2
    %v802 = vrot.slane %v675, 4
    %v803 = vrot.slane %v675, 6
    %v804 = vrot.slane %v678, 2
    %v805 = vrot.slane %v678, 4
    %v806 = vrot.slane %v678, 6
    %v807 = vrot.slane %v681, 2
    %v808 = vrot.slane %v681, 4
    %v809 = vrot.slane %v681, 6
    %v810 = vrot.slane %v684, 2
    %v811 = vrot.slane %v684, 4
    %v812 = vrot.slane %v684, 6
    %v813 = vrot.slane %v687, 2
    %v814 = vrot.slane %v687, 4
    %v815 = vrot.slane %v687, 6
    %v816 = vrot.slane %v690, 2
    %v817 = vrot.slane %v690, 4
    %v818 = vrot.slane %v690, 6
    %v819 = vrot.slane %v693, 2
    %v820 = vrot.slane %v693, 4
    %v821 = vrot.slane %v693, 6
    %vm918 = vcmask 517120
    %v919 = vsel %vm918, %v600, -inf
    %v920 = vrot.slane %v919, 4
    %v921 = vmax.f32 %v919, %v920
    %v922 = vrot.slane %v921, 2
    %v923 = vmax.f32 %v921, %v922
    %v924 = vrot.slane %v923, 1
    %v925 = vmax.f32 %v923, %v924
    %v926 = vsel %vm918, %v726, -inf
    %v927 = vrot.slane %v926, 4
    %v928 = vmax.f32 %v926, %v927
    %v929 = vrot.slane %v928, 2
    %v930 = vmax.f32 %v928, %v929
    %v931 = vrot.slane %v930, 1
    %v932 = vmax.f32 %v930, %v931
    %v933 = vsel %vm918, %v727, -inf
    %v934 = vrot.slane %v933, 4
    %v935 = vmax.f32 %v933, %v934
    %v936 = vrot.slane %v935, 2
    %v937 = vmax.f32 %v935, %v936
    %v938 = vrot.slane %v937, 1
    %v939 = vmax.f32 %v937, %v938
    %v940 = vsel %vm918, %v728, -inf
    %v941 = vrot.slane %v940, 4
    %v942 = vmax.f32 %v940, %v941
    %v943 = vrot.slane %v942, 2
    %v944 = vmax.f32 %v942, %v943
    %v945 = vrot.slane %v944, 1
    %v946 = vmax.f32 %v944, %v945
    %v947 = vsel %vm918, %v603, -inf
    %v948 = vrot.slane %v947, 4
    %v949 = vmax.f32 %v947, %v948
    %v950 = vrot.slane %v949, 2
    %v951 = vmax.f32 %v949, %v950
    %v952 = vrot.slane %v951, 1
    %v953 = vmax.f32 %v951, %v952
    %v954 = vsel %vm918, %v729, -inf
    %v955 = vrot.slane %v954, 4
    %v956 = vmax.f32 %v954, %v955
    %v957 = vrot.slane %v956, 2
    %v958 = vmax.f32 %v956, %v957
    %v959 = vrot.slane %v958, 1
    %v960 = vmax.f32 %v958, %v959
    %v961 = vsel %vm918, %v730, -inf
    %v962 = vrot.slane %v961, 4
    %v963 = vmax.f32 %v961, %v962
    %v964 = vrot.slane %v963, 2
    %v965 = vmax.f32 %v963, %v964
    %v966 = vrot.slane %v965, 1
    %v967 = vmax.f32 %v965, %v966
    %v968 = vsel %vm918, %v731, -inf
    %v969 = vrot.slane %v968, 4
    %v970 = vmax.f32 %v968, %v969
    %v971 = vrot.slane %v970, 2
    %v972 = vmax.f32 %v970, %v971
    %v973 = vrot.slane %v972, 1
    %v974 = vmax.f32 %v972, %v973
    %v975 = vsel %vm918, %v606, -inf
    %v976 = vrot.slane %v975, 4
    %v977 = vmax.f32 %v975, %v976
    %v978 = vrot.slane %v977, 2
    %v979 = vmax.f32 %v977, %v978
    %v980 = vrot.slane %v979, 1
    %v981 = vmax.f32 %v979, %v980
    %v982 = vsel %vm918, %v732, -inf
    %v983 = vrot.slane %v982, 4
    %v984 = vmax.f32 %v982, %v983
    %v985 = vrot.slane %v984, 2
    %v986 = vmax.f32 %v984, %v985
    %v987 = vrot.slane %v986, 1
    %v988 = vmax.f32 %v986, %v987
    %v989 = vsel %vm918, %v733, -inf
    %v990 = vrot.slane %v989, 4
    %v991 = vmax.f32 %v989, %v990
    %v992 = vrot.slane %v991, 2
    %v993 = vmax.f32 %v991, %v992
    %v994 = vrot.slane %v993, 1
    %v995 = vmax.f32 %v993, %v994
    %v996 = vsel %vm918, %v734, -inf
    %v997 = vrot.slane %v996, 4
    %v998 = vmax.f32 %v996, %v997
    %v999 = vrot.slane %v998, 2
    %v1000 = vmax.f32 %v998, %v999
    %v1001 = vrot.slane %v1000, 1
    %v1002 = vmax.f32 %v1000, %v1001
    %v1003 = vsel %vm918, %v609, -inf
    %v1004 = vrot.slane %v1003, 4
    %v1005 = vmax.f32 %v1003, %v1004
    %v1006 = vrot.slane %v1005, 2
    %v1007 = vmax.f32 %v1005, %v1006
    %v1008 = vrot.slane %v1007, 1
    %v1009 = vmax.f32 %v1007, %v1008
    %v1010 = vsel %vm918, %v735, -inf
    %v1011 = vrot.slane %v1010, 4
    %v1012 = vmax.f32 %v1010, %v1011
    %v1013 = vrot.slane %v1012, 2
    %v1014 = vmax.f32 %v1012, %v1013
    %v1015 = vrot.slane %v1014, 1
    %v1016 = vmax.f32 %v1014, %v1015
    %v1017 = vsel %vm918, %v736, -inf
    %v1018 = vrot.slane %v1017, 4
    %v1019 = vmax.f32 %v1017, %v1018
    %v1020 = vrot.slane %v1019, 2
    %v1021 = vmax.f32 %v1019, %v1020
    %v1022 = vrot.slane %v1021, 1
    %v1023 = vmax.f32 %v1021, %v1022
    %v1024 = vsel %vm918, %v737, -inf
    %v1025 = vrot.slane %v1024, 4
    %v1026 = vmax.f32 %v1024, %v1025
    %v1027 = vrot.slane %v1026, 2
    %v1028 = vmax.f32 %v1026, %v1027
    %v1029 = vrot.slane %v1028, 1
    %v1030 = vmax.f32 %v1028, %v1029
    %v1031 = vsel %vm918, %v612, -inf
    %v1032 = vrot.slane %v1031, 4
    %v1033 = vmax.f32 %v1031, %v1032
    %v1034 = vrot.slane %v1033, 2
    %v1035 = vmax.f32 %v1033, %v1034
    %v1036 = vrot.slane %v1035, 1
    %v1037 = vmax.f32 %v1035, %v1036
    %v1038 = vsel %vm918, %v738, -inf
    %v1039 = vrot.slane %v1038, 4
    %v1040 = vmax.f32 %v1038, %v1039
    %v1041 = vrot.slane %v1040, 2
    %v1042 = vmax.f32 %v1040, %v1041
    %v1043 = vrot.slane %v1042, 1
    %v1044 = vmax.f32 %v1042, %v1043
    %v1045 = vsel %vm918, %v739, -inf
    %v1046 = vrot.slane %v1045, 4
    %v1047 = vmax.f32 %v1045, %v1046
    %v1048 = vrot.slane %v1047, 2
    %v1049 = vmax.f32 %v1047, %v1048
    %v1050 = vrot.slane %v1049, 1
    %v1051 = vmax.f32 %v1049, %v1050
    %v1052 = vsel %vm918, %v740, -inf
    %v1053 = vrot.slane %v1052, 4
    %v1054 = vmax.f32 %v1052, %v1053
    %v1055 = vrot.slane %v1054, 2
    %v1056 = vmax.f32 %v1054, %v1055
    %v1057 = vrot.slane %v1056, 1
    %v1058 = vmax.f32 %v1056, %v1057
    %v1059 = vsel %vm918, %v615, -inf
    %v1060 = vrot.slane %v1059, 4
    %v1061 = vmax.f32 %v1059, %v1060
    %v1062 = vrot.slane %v1061, 2
    %v1063 = vmax.f32 %v1061, %v1062
    %v1064 = vrot.slane %v1063, 1
    %v1065 = vmax.f32 %v1063, %v1064
    %v1066 = vsel %vm918, %v741, -inf
    %v1067 = vrot.slane %v1066, 4
    %v1068 = vmax.f32 %v1066, %v1067
    %v1069 = vrot.slane %v1068, 2
    %v1070 = vmax.f32 %v1068, %v1069
    %v1071 = vrot.slane %v1070, 1
    %v1072 = vmax.f32 %v1070, %v1071
    %v1073 = vsel %vm918, %v742, -inf
    %v1074 = vrot.slane %v1073, 4
    %v1075 = vmax.f32 %v1073, %v1074
    %v1076 = vrot.slane %v1075, 2
    %v1077 = vmax.f32 %v1075, %v1076
    %v1078 = vrot.slane %v1077, 1
    %v1079 = vmax.f32 %v1077, %v1078
    %v1080 = vsel %vm918, %v743, -inf
    %v1081 = vrot.slane %v1080, 4
    %v1082 = vmax.f32 %v1080, %v1081
    %v1083 = vrot.slane %v1082, 2
    %v1084 = vmax.f32 %v1082, %v1083
    %v1085 = vrot.slane %v1084, 1
    %v1086 = vmax.f32 %v1084, %v1085
    %v1087 = vsel %vm918, %v618, -inf
    %v1088 = vrot.slane %v1087, 4
    %v1089 = vmax.f32 %v1087, %v1088
    %v1090 = vrot.slane %v1089, 2
    %v1091 = vmax.f32 %v1089, %v1090
    %v1092 = vrot.slane %v1091, 1
    %v1093 = vmax.f32 %v1091, %v1092
    %v1094 = vsel %vm918, %v744, -inf
    %v1095 = vrot.slane %v1094, 4
    %v1096 = vmax.f32 %v1094, %v1095
    %v1097 = vrot.slane %v1096, 2
    %v1098 = vmax.f32 %v1096, %v1097
    %v1099 = vrot.slane %v1098, 1
    %v1100 = vmax.f32 %v1098, %v1099
    %v1101 = vsel %vm918, %v745, -inf
    %v1102 = vrot.slane %v1101, 4
    %v1103 = vmax.f32 %v1101, %v1102
    %v1104 = vrot.slane %v1103, 2
    %v1105 = vmax.f32 %v1103, %v1104
    %v1106 = vrot.slane %v1105, 1
    %v1107 = vmax.f32 %v1105, %v1106
    %v1108 = vsel %vm918, %v746, -inf
    %v1109 = vrot.slane %v1108, 4
    %v1110 = vmax.f32 %v1108, %v1109
    %v1111 = vrot.slane %v1110, 2
    %v1112 = vmax.f32 %v1110, %v1111
    %v1113 = vrot.slane %v1112, 1
    %v1114 = vmax.f32 %v1112, %v1113
    %v1115 = vsel %vm918, %v621, -inf
    %v1116 = vrot.slane %v1115, 4
    %v1117 = vmax.f32 %v1115, %v1116
    %v1118 = vrot.slane %v1117, 2
    %v1119 = vmax.f32 %v1117, %v1118
    %v1120 = vrot.slane %v1119, 1
    %v1121 = vmax.f32 %v1119, %v1120
    %v1122 = vsel %vm918, %v747, -inf
    %v1123 = vrot.slane %v1122, 4
    %v1124 = vmax.f32 %v1122, %v1123
    %v1125 = vrot.slane %v1124, 2
    %v1126 = vmax.f32 %v1124, %v1125
    %v1127 = vrot.slane %v1126, 1
    %v1128 = vmax.f32 %v1126, %v1127
    %v1129 = vsel %vm918, %v748, -inf
    %v1130 = vrot.slane %v1129, 4
    %v1131 = vmax.f32 %v1129, %v1130
    %v1132 = vrot.slane %v1131, 2
    %v1133 = vmax.f32 %v1131, %v1132
    %v1134 = vrot.slane %v1133, 1
    %v1135 = vmax.f32 %v1133, %v1134
    %v1136 = vsel %vm918, %v749, -inf
    %v1137 = vrot.slane %v1136, 4
    %v1138 = vmax.f32 %v1136, %v1137
    %v1139 = vrot.slane %v1138, 2
    %v1140 = vmax.f32 %v1138, %v1139
    %v1141 = vrot.slane %v1140, 1
    %v1142 = vmax.f32 %v1140, %v1141
    %v1143 = vsel %vm918, %v624, -inf
    %v1144 = vrot.slane %v1143, 4
    %v1145 = vmax.f32 %v1143, %v1144
    %v1146 = vrot.slane %v1145, 2
    %v1147 = vmax.f32 %v1145, %v1146
    %v1148 = vrot.slane %v1147, 1
    %v1149 = vmax.f32 %v1147, %v1148
    %v1150 = vsel %vm918, %v750, -inf
    %v1151 = vrot.slane %v1150, 4
    %v1152 = vmax.f32 %v1150, %v1151
    %v1153 = vrot.slane %v1152, 2
    %v1154 = vmax.f32 %v1152, %v1153
    %v1155 = vrot.slane %v1154, 1
    %v1156 = vmax.f32 %v1154, %v1155
    %v1157 = vsel %vm918, %v751, -inf
    %v1158 = vrot.slane %v1157, 4
    %v1159 = vmax.f32 %v1157, %v1158
    %v1160 = vrot.slane %v1159, 2
    %v1161 = vmax.f32 %v1159, %v1160
    %v1162 = vrot.slane %v1161, 1
    %v1163 = vmax.f32 %v1161, %v1162
    %v1164 = vsel %vm918, %v752, -inf
    %v1165 = vrot.slane %v1164, 4
    %v1166 = vmax.f32 %v1164, %v1165
    %v1167 = vrot.slane %v1166, 2
    %v1168 = vmax.f32 %v1166, %v1167
    %v1169 = vrot.slane %v1168, 1
    %v1170 = vmax.f32 %v1168, %v1169
    %v1171 = vsel %vm918, %v627, -inf
    %v1172 = vrot.slane %v1171, 4
    %v1173 = vmax.f32 %v1171, %v1172
    %v1174 = vrot.slane %v1173, 2
    %v1175 = vmax.f32 %v1173, %v1174
    %v1176 = vrot.slane %v1175, 1
    %v1177 = vmax.f32 %v1175, %v1176
    %v1178 = vsel %vm918, %v753, -inf
    %v1179 = vrot.slane %v1178, 4
    %v1180 = vmax.f32 %v1178, %v1179
    %v1181 = vrot.slane %v1180, 2
    %v1182 = vmax.f32 %v1180, %v1181
    %v1183 = vrot.slane %v1182, 1
    %v1184 = vmax.f32 %v1182, %v1183
    %v1185 = vsel %vm918, %v754, -inf
    %v1186 = vrot.slane %v1185, 4
    %v1187 = vmax.f32 %v1185, %v1186
    %v1188 = vrot.slane %v1187, 2
    %v1189 = vmax.f32 %v1187, %v1188
    %v1190 = vrot.slane %v1189, 1
    %v1191 = vmax.f32 %v1189, %v1190
    %v1192 = vsel %vm918, %v755, -inf
    %v1193 = vrot.slane %v1192, 4
    %v1194 = vmax.f32 %v1192, %v1193
    %v1195 = vrot.slane %v1194, 2
    %v1196 = vmax.f32 %v1194, %v1195
    %v1197 = vrot.slane %v1196, 1
    %v1198 = vmax.f32 %v1196, %v1197
    %v1199 = vsel %vm918, %v630, -inf
    %v1200 = vrot.slane %v1199, 4
    %v1201 = vmax.f32 %v1199, %v1200
    %v1202 = vrot.slane %v1201, 2
    %v1203 = vmax.f32 %v1201, %v1202
    %v1204 = vrot.slane %v1203, 1
    %v1205 = vmax.f32 %v1203, %v1204
    %v1206 = vsel %vm918, %v756, -inf
    %v1207 = vrot.slane %v1206, 4
    %v1208 = vmax.f32 %v1206, %v1207
    %v1209 = vrot.slane %v1208, 2
    %v1210 = vmax.f32 %v1208, %v1209
    %v1211 = vrot.slane %v1210, 1
    %v1212 = vmax.f32 %v1210, %v1211
    %v1213 = vsel %vm918, %v757, -inf
    %v1214 = vrot.slane %v1213, 4
    %v1215 = vmax.f32 %v1213, %v1214
    %v1216 = vrot.slane %v1215, 2
    %v1217 = vmax.f32 %v1215, %v1216
    %v1218 = vrot.slane %v1217, 1
    %v1219 = vmax.f32 %v1217, %v1218
    %v1220 = vsel %vm918, %v758, -inf
    %v1221 = vrot.slane %v1220, 4
    %v1222 = vmax.f32 %v1220, %v1221
    %v1223 = vrot.slane %v1222, 2
    %v1224 = vmax.f32 %v1222, %v1223
    %v1225 = vrot.slane %v1224, 1
    %v1226 = vmax.f32 %v1224, %v1225
    %v1227 = vsel %vm918, %v633, -inf
    %v1228 = vrot.slane %v1227, 4
    %v1229 = vmax.f32 %v1227, %v1228
    %v1230 = vrot.slane %v1229, 2
    %v1231 = vmax.f32 %v1229, %v1230
    %v1232 = vrot.slane %v1231, 1
    %v1233 = vmax.f32 %v1231, %v1232
    %v1234 = vsel %vm918, %v759, -inf
    %v1235 = vrot.slane %v1234, 4
    %v1236 = vmax.f32 %v1234, %v1235
    %v1237 = vrot.slane %v1236, 2
    %v1238 = vmax.f32 %v1236, %v1237
    %v1239 = vrot.slane %v1238, 1
    %v1240 = vmax.f32 %v1238, %v1239
    %v1241 = vsel %vm918, %v760, -inf
    %v1242 = vrot.slane %v1241, 4
    %v1243 = vmax.f32 %v1241, %v1242
    %v1244 = vrot.slane %v1243, 2
    %v1245 = vmax.f32 %v1243, %v1244
    %v1246 = vrot.slane %v1245, 1
    %v1247 = vmax.f32 %v1245, %v1246
    %v1248 = vsel %vm918, %v761, -inf
    %v1249 = vrot.slane %v1248, 4
    %v1250 = vmax.f32 %v1248, %v1249
    %v1251 = vrot.slane %v1250, 2
    %v1252 = vmax.f32 %v1250, %v1251
    %v1253 = vrot.slane %v1252, 1
    %v1254 = vmax.f32 %v1252, %v1253
    %v1255 = vsel %vm918, %v636, -inf
    %v1256 = vrot.slane %v1255, 4
    %v1257 = vmax.f32 %v1255, %v1256
    %v1258 = vrot.slane %v1257, 2
    %v1259 = vmax.f32 %v1257, %v1258
    %v1260 = vrot.slane %v1259, 1
    %v1261 = vmax.f32 %v1259, %v1260
    %v1262 = vsel %vm918, %v762, -inf
    %v1263 = vrot.slane %v1262, 4
    %v1264 = vmax.f32 %v1262, %v1263
    %v1265 = vrot.slane %v1264, 2
    %v1266 = vmax.f32 %v1264, %v1265
    %v1267 = vrot.slane %v1266, 1
    %v1268 = vmax.f32 %v1266, %v1267
    %v1269 = vsel %vm918, %v763, -inf
    %v1270 = vrot.slane %v1269, 4
    %v1271 = vmax.f32 %v1269, %v1270
    %v1272 = vrot.slane %v1271, 2
    %v1273 = vmax.f32 %v1271, %v1272
    %v1274 = vrot.slane %v1273, 1
    %v1275 = vmax.f32 %v1273, %v1274
    %v1276 = vsel %vm918, %v764, -inf
    %v1277 = vrot.slane %v1276, 4
    %v1278 = vmax.f32 %v1276, %v1277
    %v1279 = vrot.slane %v1278, 2
    %v1280 = vmax.f32 %v1278, %v1279
    %v1281 = vrot.slane %v1280, 1
    %v1282 = vmax.f32 %v1280, %v1281
    %v1283 = vsel %vm918, %v639, -inf
    %v1284 = vrot.slane %v1283, 4
    %v1285 = vmax.f32 %v1283, %v1284
    %v1286 = vrot.slane %v1285, 2
    %v1287 = vmax.f32 %v1285, %v1286
    %v1288 = vrot.slane %v1287, 1
    %v1289 = vmax.f32 %v1287, %v1288
    %v1290 = vsel %vm918, %v765, -inf
    %v1291 = vrot.slane %v1290, 4
    %v1292 = vmax.f32 %v1290, %v1291
    %v1293 = vrot.slane %v1292, 2
    %v1294 = vmax.f32 %v1292, %v1293
    %v1295 = vrot.slane %v1294, 1
    %v1296 = vmax.f32 %v1294, %v1295
    %v1297 = vsel %vm918, %v766, -inf
    %v1298 = vrot.slane %v1297, 4
    %v1299 = vmax.f32 %v1297, %v1298
    %v1300 = vrot.slane %v1299, 2
    %v1301 = vmax.f32 %v1299, %v1300
    %v1302 = vrot.slane %v1301, 1
    %v1303 = vmax.f32 %v1301, %v1302
    %v1304 = vsel %vm918, %v767, -inf
    %v1305 = vrot.slane %v1304, 4
    %v1306 = vmax.f32 %v1304, %v1305
    %v1307 = vrot.slane %v1306, 2
    %v1308 = vmax.f32 %v1306, %v1307
    %v1309 = vrot.slane %v1308, 1
    %v1310 = vmax.f32 %v1308, %v1309
    %v1311 = vsel %vm918, %v642, -inf
    %v1312 = vrot.slane %v1311, 4
    %v1313 = vmax.f32 %v1311, %v1312
    %v1314 = vrot.slane %v1313, 2
    %v1315 = vmax.f32 %v1313, %v1314
    %v1316 = vrot.slane %v1315, 1
    %v1317 = vmax.f32 %v1315, %v1316
    %v1318 = vsel %vm918, %v768, -inf
    %v1319 = vrot.slane %v1318, 4
    %v1320 = vmax.f32 %v1318, %v1319
    %v1321 = vrot.slane %v1320, 2
    %v1322 = vmax.f32 %v1320, %v1321
    %v1323 = vrot.slane %v1322, 1
    %v1324 = vmax.f32 %v1322, %v1323
    %v1325 = vsel %vm918, %v769, -inf
    %v1326 = vrot.slane %v1325, 4
    %v1327 = vmax.f32 %v1325, %v1326
    %v1328 = vrot.slane %v1327, 2
    %v1329 = vmax.f32 %v1327, %v1328
    %v1330 = vrot.slane %v1329, 1
    %v1331 = vmax.f32 %v1329, %v1330
    %v1332 = vsel %vm918, %v770, -inf
    %v1333 = vrot.slane %v1332, 4
    %v1334 = vmax.f32 %v1332, %v1333
    %v1335 = vrot.slane %v1334, 2
    %v1336 = vmax.f32 %v1334, %v1335
    %v1337 = vrot.slane %v1336, 1
    %v1338 = vmax.f32 %v1336, %v1337
    %v1339 = vsel %vm918, %v645, -inf
    %v1340 = vrot.slane %v1339, 4
    %v1341 = vmax.f32 %v1339, %v1340
    %v1342 = vrot.slane %v1341, 2
    %v1343 = vmax.f32 %v1341, %v1342
    %v1344 = vrot.slane %v1343, 1
    %v1345 = vmax.f32 %v1343, %v1344
    %v1346 = vsel %vm918, %v771, -inf
    %v1347 = vrot.slane %v1346, 4
    %v1348 = vmax.f32 %v1346, %v1347
    %v1349 = vrot.slane %v1348, 2
    %v1350 = vmax.f32 %v1348, %v1349
    %v1351 = vrot.slane %v1350, 1
    %v1352 = vmax.f32 %v1350, %v1351
    %v1353 = vsel %vm918, %v772, -inf
    %v1354 = vrot.slane %v1353, 4
    %v1355 = vmax.f32 %v1353, %v1354
    %v1356 = vrot.slane %v1355, 2
    %v1357 = vmax.f32 %v1355, %v1356
    %v1358 = vrot.slane %v1357, 1
    %v1359 = vmax.f32 %v1357, %v1358
    %v1360 = vsel %vm918, %v773, -inf
    %v1361 = vrot.slane %v1360, 4
    %v1362 = vmax.f32 %v1360, %v1361
    %v1363 = vrot.slane %v1362, 2
    %v1364 = vmax.f32 %v1362, %v1363
    %v1365 = vrot.slane %v1364, 1
    %v1366 = vmax.f32 %v1364, %v1365
    %v1367 = vsel %vm918, %v648, -inf
    %v1368 = vrot.slane %v1367, 4
    %v1369 = vmax.f32 %v1367, %v1368
    %v1370 = vrot.slane %v1369, 2
    %v1371 = vmax.f32 %v1369, %v1370
    %v1372 = vrot.slane %v1371, 1
    %v1373 = vmax.f32 %v1371, %v1372
    %v1374 = vsel %vm918, %v774, -inf
    %v1375 = vrot.slane %v1374, 4
    %v1376 = vmax.f32 %v1374, %v1375
    %v1377 = vrot.slane %v1376, 2
    %v1378 = vmax.f32 %v1376, %v1377
    %v1379 = vrot.slane %v1378, 1
    %v1380 = vmax.f32 %v1378, %v1379
    %v1381 = vsel %vm918, %v775, -inf
    %v1382 = vrot.slane %v1381, 4
    %v1383 = vmax.f32 %v1381, %v1382
    %v1384 = vrot.slane %v1383, 2
    %v1385 = vmax.f32 %v1383, %v1384
    %v1386 = vrot.slane %v1385, 1
    %v1387 = vmax.f32 %v1385, %v1386
    %v1388 = vsel %vm918, %v776, -inf
    %v1389 = vrot.slane %v1388, 4
    %v1390 = vmax.f32 %v1388, %v1389
    %v1391 = vrot.slane %v1390, 2
    %v1392 = vmax.f32 %v1390, %v1391
    %v1393 = vrot.slane %v1392, 1
    %v1394 = vmax.f32 %v1392, %v1393
    %v1395 = vsel %vm918, %v651, -inf
    %v1396 = vrot.slane %v1395, 4
    %v1397 = vmax.f32 %v1395, %v1396
    %v1398 = vrot.slane %v1397, 2
    %v1399 = vmax.f32 %v1397, %v1398
    %v1400 = vrot.slane %v1399, 1
    %v1401 = vmax.f32 %v1399, %v1400
    %v1402 = vsel %vm918, %v777, -inf
    %v1403 = vrot.slane %v1402, 4
    %v1404 = vmax.f32 %v1402, %v1403
    %v1405 = vrot.slane %v1404, 2
    %v1406 = vmax.f32 %v1404, %v1405
    %v1407 = vrot.slane %v1406, 1
    %v1408 = vmax.f32 %v1406, %v1407
    %v1409 = vsel %vm918, %v778, -inf
    %v1410 = vrot.slane %v1409, 4
    %v1411 = vmax.f32 %v1409, %v1410
    %v1412 = vrot.slane %v1411, 2
    %v1413 = vmax.f32 %v1411, %v1412
    %v1414 = vrot.slane %v1413, 1
    %v1415 = vmax.f32 %v1413, %v1414
    %v1416 = vsel %vm918, %v779, -inf
    %v1417 = vrot.slane %v1416, 4
    %v1418 = vmax.f32 %v1416, %v1417
    %v1419 = vrot.slane %v1418, 2
    %v1420 = vmax.f32 %v1418, %v1419
    %v1421 = vrot.slane %v1420, 1
    %v1422 = vmax.f32 %v1420, %v1421
    %v1423 = vsel %vm918, %v654, -inf
    %v1424 = vrot.slane %v1423, 4
    %v1425 = vmax.f32 %v1423, %v1424
    %v1426 = vrot.slane %v1425, 2
    %v1427 = vmax.f32 %v1425, %v1426
    %v1428 = vrot.slane %v1427, 1
    %v1429 = vmax.f32 %v1427, %v1428
    %v1430 = vsel %vm918, %v780, -inf
    %v1431 = vrot.slane %v1430, 4
    %v1432 = vmax.f32 %v1430, %v1431
    %v1433 = vrot.slane %v1432, 2
    %v1434 = vmax.f32 %v1432, %v1433
    %v1435 = vrot.slane %v1434, 1
    %v1436 = vmax.f32 %v1434, %v1435
    %v1437 = vsel %vm918, %v781, -inf
    %v1438 = vrot.slane %v1437, 4
    %v1439 = vmax.f32 %v1437, %v1438
    %v1440 = vrot.slane %v1439, 2
    %v1441 = vmax.f32 %v1439, %v1440
    %v1442 = vrot.slane %v1441, 1
    %v1443 = vmax.f32 %v1441, %v1442
    %v1444 = vsel %vm918, %v782, -inf
    %v1445 = vrot.slane %v1444, 4
    %v1446 = vmax.f32 %v1444, %v1445
    %v1447 = vrot.slane %v1446, 2
    %v1448 = vmax.f32 %v1446, %v1447
    %v1449 = vrot.slane %v1448, 1
    %v1450 = vmax.f32 %v1448, %v1449
    %v1451 = vsel %vm918, %v657, -inf
    %v1452 = vrot.slane %v1451, 4
    %v1453 = vmax.f32 %v1451, %v1452
    %v1454 = vrot.slane %v1453, 2
    %v1455 = vmax.f32 %v1453, %v1454
    %v1456 = vrot.slane %v1455, 1
    %v1457 = vmax.f32 %v1455, %v1456
    %v1458 = vsel %vm918, %v783, -inf
    %v1459 = vrot.slane %v1458, 4
    %v1460 = vmax.f32 %v1458, %v1459
    %v1461 = vrot.slane %v1460, 2
    %v1462 = vmax.f32 %v1460, %v1461
    %v1463 = vrot.slane %v1462, 1
    %v1464 = vmax.f32 %v1462, %v1463
    %v1465 = vsel %vm918, %v784, -inf
    %v1466 = vrot.slane %v1465, 4
    %v1467 = vmax.f32 %v1465, %v1466
    %v1468 = vrot.slane %v1467, 2
    %v1469 = vmax.f32 %v1467, %v1468
    %v1470 = vrot.slane %v1469, 1
    %v1471 = vmax.f32 %v1469, %v1470
    %v1472 = vsel %vm918, %v785, -inf
    %v1473 = vrot.slane %v1472, 4
    %v1474 = vmax.f32 %v1472, %v1473
    %v1475 = vrot.slane %v1474, 2
    %v1476 = vmax.f32 %v1474, %v1475
    %v1477 = vrot.slane %v1476, 1
    %v1478 = vmax.f32 %v1476, %v1477
    %v1479 = vsel %vm918, %v660, -inf
    %v1480 = vrot.slane %v1479, 4
    %v1481 = vmax.f32 %v1479, %v1480
    %v1482 = vrot.slane %v1481, 2
    %v1483 = vmax.f32 %v1481, %v1482
    %v1484 = vrot.slane %v1483, 1
    %v1485 = vmax.f32 %v1483, %v1484
    %v1486 = vsel %vm918, %v786, -inf
    %v1487 = vrot.slane %v1486, 4
    %v1488 = vmax.f32 %v1486, %v1487
    %v1489 = vrot.slane %v1488, 2
    %v1490 = vmax.f32 %v1488, %v1489
    %v1491 = vrot.slane %v1490, 1
    %v1492 = vmax.f32 %v1490, %v1491
    %v1493 = vsel %vm918, %v787, -inf
    %v1494 = vrot.slane %v1493, 4
    %v1495 = vmax.f32 %v1493, %v1494
    %v1496 = vrot.slane %v1495, 2
    %v1497 = vmax.f32 %v1495, %v1496
    %v1498 = vrot.slane %v1497, 1
    %v1499 = vmax.f32 %v1497, %v1498
    %v1500 = vsel %vm918, %v788, -inf
    %v1501 = vrot.slane %v1500, 4
    %v1502 = vmax.f32 %v1500, %v1501
    %v1503 = vrot.slane %v1502, 2
    %v1504 = vmax.f32 %v1502, %v1503
    %v1505 = vrot.slane %v1504, 1
    %v1506 = vmax.f32 %v1504, %v1505
    %v1507 = vsel %vm918, %v663, -inf
    %v1508 = vrot.slane %v1507, 4
    %v1509 = vmax.f32 %v1507, %v1508
    %v1510 = vrot.slane %v1509, 2
    %v1511 = vmax.f32 %v1509, %v1510
    %v1512 = vrot.slane %v1511, 1
    %v1513 = vmax.f32 %v1511, %v1512
    %v1514 = vsel %vm918, %v789, -inf
    %v1515 = vrot.slane %v1514, 4
    %v1516 = vmax.f32 %v1514, %v1515
    %v1517 = vrot.slane %v1516, 2
    %v1518 = vmax.f32 %v1516, %v1517
    %v1519 = vrot.slane %v1518, 1
    %v1520 = vmax.f32 %v1518, %v1519
    %v1521 = vsel %vm918, %v790, -inf
    %v1522 = vrot.slane %v1521, 4
    %v1523 = vmax.f32 %v1521, %v1522
    %v1524 = vrot.slane %v1523, 2
    %v1525 = vmax.f32 %v1523, %v1524
    %v1526 = vrot.slane %v1525, 1
    %v1527 = vmax.f32 %v1525, %v1526
    %v1528 = vsel %vm918, %v791, -inf
    %v1529 = vrot.slane %v1528, 4
    %v1530 = vmax.f32 %v1528, %v1529
    %v1531 = vrot.slane %v1530, 2
    %v1532 = vmax.f32 %v1530, %v1531
    %v1533 = vrot.slane %v1532, 1
    %v1534 = vmax.f32 %v1532, %v1533
    %v1535 = vsel %vm918, %v666, -inf
    %v1536 = vrot.slane %v1535, 4
    %v1537 = vmax.f32 %v1535, %v1536
    %v1538 = vrot.slane %v1537, 2
    %v1539 = vmax.f32 %v1537, %v1538
    %v1540 = vrot.slane %v1539, 1
    %v1541 = vmax.f32 %v1539, %v1540
    %v1542 = vsel %vm918, %v792, -inf
    %v1543 = vrot.slane %v1542, 4
    %v1544 = vmax.f32 %v1542, %v1543
    %v1545 = vrot.slane %v1544, 2
    %v1546 = vmax.f32 %v1544, %v1545
    %v1547 = vrot.slane %v1546, 1
    %v1548 = vmax.f32 %v1546, %v1547
    %v1549 = vsel %vm918, %v793, -inf
    %v1550 = vrot.slane %v1549, 4
    %v1551 = vmax.f32 %v1549, %v1550
    %v1552 = vrot.slane %v1551, 2
    %v1553 = vmax.f32 %v1551, %v1552
    %v1554 = vrot.slane %v1553, 1
    %v1555 = vmax.f32 %v1553, %v1554
    %v1556 = vsel %vm918, %v794, -inf
    %v1557 = vrot.slane %v1556, 4
    %v1558 = vmax.f32 %v1556, %v1557
    %v1559 = vrot.slane %v1558, 2
    %v1560 = vmax.f32 %v1558, %v1559
    %v1561 = vrot.slane %v1560, 1
    %v1562 = vmax.f32 %v1560, %v1561
    %v1563 = vsel %vm918, %v669, -inf
    %v1564 = vrot.slane %v1563, 4
    %v1565 = vmax.f32 %v1563, %v1564
    %v1566 = vrot.slane %v1565, 2
    %v1567 = vmax.f32 %v1565, %v1566
    %v1568 = vrot.slane %v1567, 1
    %v1569 = vmax.f32 %v1567, %v1568
    %v1570 = vsel %vm918, %v795, -inf
    %v1571 = vrot.slane %v1570, 4
    %v1572 = vmax.f32 %v1570, %v1571
    %v1573 = vrot.slane %v1572, 2
    %v1574 = vmax.f32 %v1572, %v1573
    %v1575 = vrot.slane %v1574, 1
    %v1576 = vmax.f32 %v1574, %v1575
    %v1577 = vsel %vm918, %v796, -inf
    %v1578 = vrot.slane %v1577, 4
    %v1579 = vmax.f32 %v1577, %v1578
    %v1580 = vrot.slane %v1579, 2
    %v1581 = vmax.f32 %v1579, %v1580
    %v1582 = vrot.slane %v1581, 1
    %v1583 = vmax.f32 %v1581, %v1582
    %v1584 = vsel %vm918, %v797, -inf
    %v1585 = vrot.slane %v1584, 4
    %v1586 = vmax.f32 %v1584, %v1585
    %v1587 = vrot.slane %v1586, 2
    %v1588 = vmax.f32 %v1586, %v1587
    %v1589 = vrot.slane %v1588, 1
    %v1590 = vmax.f32 %v1588, %v1589
    %v1591 = vsel %vm918, %v672, -inf
    %v1592 = vrot.slane %v1591, 4
    %v1593 = vmax.f32 %v1591, %v1592
    %v1594 = vrot.slane %v1593, 2
    %v1595 = vmax.f32 %v1593, %v1594
    %v1596 = vrot.slane %v1595, 1
    %v1597 = vmax.f32 %v1595, %v1596
    %v1598 = vsel %vm918, %v798, -inf
    %v1599 = vrot.slane %v1598, 4
    %v1600 = vmax.f32 %v1598, %v1599
    %v1601 = vrot.slane %v1600, 2
    %v1602 = vmax.f32 %v1600, %v1601
    %v1603 = vrot.slane %v1602, 1
    %v1604 = vmax.f32 %v1602, %v1603
    %v1605 = vsel %vm918, %v799, -inf
    %v1606 = vrot.slane %v1605, 4
    %v1607 = vmax.f32 %v1605, %v1606
    %v1608 = vrot.slane %v1607, 2
    %v1609 = vmax.f32 %v1607, %v1608
    %v1610 = vrot.slane %v1609, 1
    %v1611 = vmax.f32 %v1609, %v1610
    %v1612 = vsel %vm918, %v800, -inf
    %v1613 = vrot.slane %v1612, 4
    %v1614 = vmax.f32 %v1612, %v1613
    %v1615 = vrot.slane %v1614, 2
    %v1616 = vmax.f32 %v1614, %v1615
    %v1617 = vrot.slane %v1616, 1
    %v1618 = vmax.f32 %v1616, %v1617
    %v1619 = vsel %vm918, %v675, -inf
    %v1620 = vrot.slane %v1619, 4
    %v1621 = vmax.f32 %v1619, %v1620
    %v1622 = vrot.slane %v1621, 2
    %v1623 = vmax.f32 %v1621, %v1622
    %v1624 = vrot.slane %v1623, 1
    %v1625 = vmax.f32 %v1623, %v1624
    %v1626 = vsel %vm918, %v801, -inf
    %v1627 = vrot.slane %v1626, 4
    %v1628 = vmax.f32 %v1626, %v1627
    %v1629 = vrot.slane %v1628, 2
    %v1630 = vmax.f32 %v1628, %v1629
    %v1631 = vrot.slane %v1630, 1
    %v1632 = vmax.f32 %v1630, %v1631
    %v1633 = vsel %vm918, %v802, -inf
    %v1634 = vrot.slane %v1633, 4
    %v1635 = vmax.f32 %v1633, %v1634
    %v1636 = vrot.slane %v1635, 2
    %v1637 = vmax.f32 %v1635, %v1636
    %v1638 = vrot.slane %v1637, 1
    %v1639 = vmax.f32 %v1637, %v1638
    %v1640 = vsel %vm918, %v803, -inf
    %v1641 = vrot.slane %v1640, 4
    %v1642 = vmax.f32 %v1640, %v1641
    %v1643 = vrot.slane %v1642, 2
    %v1644 = vmax.f32 %v1642, %v1643
    %v1645 = vrot.slane %v1644, 1
    %v1646 = vmax.f32 %v1644, %v1645
    %v1647 = vsel %vm918, %v678, -inf
    %v1648 = vrot.slane %v1647, 4
    %v1649 = vmax.f32 %v1647, %v1648
    %v1650 = vrot.slane %v1649, 2
    %v1651 = vmax.f32 %v1649, %v1650
    %v1652 = vrot.slane %v1651, 1
    %v1653 = vmax.f32 %v1651, %v1652
    %v1654 = vsel %vm918, %v804, -inf
    %v1655 = vrot.slane %v1654, 4
    %v1656 = vmax.f32 %v1654, %v1655
    %v1657 = vrot.slane %v1656, 2
    %v1658 = vmax.f32 %v1656, %v1657
    %v1659 = vrot.slane %v1658, 1
    %v1660 = vmax.f32 %v1658, %v1659
    %v1661 = vsel %vm918, %v805, -inf
    %v1662 = vrot.slane %v1661, 4
    %v1663 = vmax.f32 %v1661, %v1662
    %v1664 = vrot.slane %v1663, 2
    %v1665 = vmax.f32 %v1663, %v1664
    %v1666 = vrot.slane %v1665, 1
    %v1667 = vmax.f32 %v1665, %v1666
    %v1668 = vsel %vm918, %v806, -inf
    %v1669 = vrot.slane %v1668, 4
    %v1670 = vmax.f32 %v1668, %v1669
    %v1671 = vrot.slane %v1670, 2
    %v1672 = vmax.f32 %v1670, %v1671
    %v1673 = vrot.slane %v1672, 1
    %v1674 = vmax.f32 %v1672, %v1673
    %v1675 = vsel %vm918, %v681, -inf
    %v1676 = vrot.slane %v1675, 4
    %v1677 = vmax.f32 %v1675, %v1676
    %v1678 = vrot.slane %v1677, 2
    %v1679 = vmax.f32 %v1677, %v1678
    %v1680 = vrot.slane %v1679, 1
    %v1681 = vmax.f32 %v1679, %v1680
    %v1682 = vsel %vm918, %v807, -inf
    %v1683 = vrot.slane %v1682, 4
    %v1684 = vmax.f32 %v1682, %v1683
    %v1685 = vrot.slane %v1684, 2
    %v1686 = vmax.f32 %v1684, %v1685
    %v1687 = vrot.slane %v1686, 1
    %v1688 = vmax.f32 %v1686, %v1687
    %v1689 = vsel %vm918, %v808, -inf
    %v1690 = vrot.slane %v1689, 4
    %v1691 = vmax.f32 %v1689, %v1690
    %v1692 = vrot.slane %v1691, 2
    %v1693 = vmax.f32 %v1691, %v1692
    %v1694 = vrot.slane %v1693, 1
    %v1695 = vmax.f32 %v1693, %v1694
    %v1696 = vsel %vm918, %v809, -inf
    %v1697 = vrot.slane %v1696, 4
    %v1698 = vmax.f32 %v1696, %v1697
    %v1699 = vrot.slane %v1698, 2
    %v1700 = vmax.f32 %v1698, %v1699
    %v1701 = vrot.slane %v1700, 1
    %v1702 = vmax.f32 %v1700, %v1701
    %v1703 = vsel %vm918, %v684, -inf
    %v1704 = vrot.slane %v1703, 4
    %v1705 = vmax.f32 %v1703, %v1704
    %v1706 = vrot.slane %v1705, 2
    %v1707 = vmax.f32 %v1705, %v1706
    %v1708 = vrot.slane %v1707, 1
    %v1709 = vmax.f32 %v1707, %v1708
    %v1710 = vsel %vm918, %v810, -inf
    %v1711 = vrot.slane %v1710, 4
    %v1712 = vmax.f32 %v1710, %v1711
    %v1713 = vrot.slane %v1712, 2
    %v1714 = vmax.f32 %v1712, %v1713
    %v1715 = vrot.slane %v1714, 1
    %v1716 = vmax.f32 %v1714, %v1715
    %v1717 = vsel %vm918, %v811, -inf
    %v1718 = vrot.slane %v1717, 4
    %v1719 = vmax.f32 %v1717, %v1718
    %v1720 = vrot.slane %v1719, 2
    %v1721 = vmax.f32 %v1719, %v1720
    %v1722 = vrot.slane %v1721, 1
    %v1723 = vmax.f32 %v1721, %v1722
    %v1724 = vsel %vm918, %v812, -inf
    %v1725 = vrot.slane %v1724, 4
    %v1726 = vmax.f32 %v1724, %v1725
    %v1727 = vrot.slane %v1726, 2
    %v1728 = vmax.f32 %v1726, %v1727
    %v1729 = vrot.slane %v1728, 1
    %v1730 = vmax.f32 %v1728, %v1729
    %v1731 = vsel %vm918, %v687, -inf
    %v1732 = vrot.slane %v1731, 4
    %v1733 = vmax.f32 %v1731, %v1732
    %v1734 = vrot.slane %v1733, 2
    %v1735 = vmax.f32 %v1733, %v1734
    %v1736 = vrot.slane %v1735, 1
    %v1737 = vmax.f32 %v1735, %v1736
    %v1738 = vsel %vm918, %v813, -inf
    %v1739 = vrot.slane %v1738, 4
    %v1740 = vmax.f32 %v1738, %v1739
    %v1741 = vrot.slane %v1740, 2
    %v1742 = vmax.f32 %v1740, %v1741
    %v1743 = vrot.slane %v1742, 1
    %v1744 = vmax.f32 %v1742, %v1743
    %v1745 = vsel %vm918, %v814, -inf
    %v1746 = vrot.slane %v1745, 4
    %v1747 = vmax.f32 %v1745, %v1746
    %v1748 = vrot.slane %v1747, 2
    %v1749 = vmax.f32 %v1747, %v1748
    %v1750 = vrot.slane %v1749, 1
    %v1751 = vmax.f32 %v1749, %v1750
    %v1752 = vsel %vm918, %v815, -inf
    %v1753 = vrot.slane %v1752, 4
    %v1754 = vmax.f32 %v1752, %v1753
    %v1755 = vrot.slane %v1754, 2
    %v1756 = vmax.f32 %v1754, %v1755
    %v1757 = vrot.slane %v1756, 1
    %v1758 = vmax.f32 %v1756, %v1757
    %v1759 = vsel %vm918, %v690, -inf
    %v1760 = vrot.slane %v1759, 4
    %v1761 = vmax.f32 %v1759, %v1760
    %v1762 = vrot.slane %v1761, 2
    %v1763 = vmax.f32 %v1761, %v1762
    %v1764 = vrot.slane %v1763, 1
    %v1765 = vmax.f32 %v1763, %v1764
    %v1766 = vsel %vm918, %v816, -inf
    %v1767 = vrot.slane %v1766, 4
    %v1768 = vmax.f32 %v1766, %v1767
    %v1769 = vrot.slane %v1768, 2
    %v1770 = vmax.f32 %v1768, %v1769
    %v1771 = vrot.slane %v1770, 1
    %v1772 = vmax.f32 %v1770, %v1771
    %v1773 = vsel %vm918, %v817, -inf
    %v1774 = vrot.slane %v1773, 4
    %v1775 = vmax.f32 %v1773, %v1774
    %v1776 = vrot.slane %v1775, 2
    %v1777 = vmax.f32 %v1775, %v1776
    %v1778 = vrot.slane %v1777, 1
    %v1779 = vmax.f32 %v1777, %v1778
    %v1780 = vsel %vm918, %v818, -inf
    %v1781 = vrot.slane %v1780, 4
    %v1782 = vmax.f32 %v1780, %v1781
    %v1783 = vrot.slane %v1782, 2
    %v1784 = vmax.f32 %v1782, %v1783
    %v1785 = vrot.slane %v1784, 1
    %v1786 = vmax.f32 %v1784, %v1785
    %v1787 = vsel %vm918, %v693, -inf
    %v1788 = vrot.slane %v1787, 4
    %v1789 = vmax.f32 %v1787, %v1788
    %v1790 = vrot.slane %v1789, 2
    %v1791 = vmax.f32 %v1789, %v1790
    %v1792 = vrot.slane %v1791, 1
    %v1793 = vmax.f32 %v1791, %v1792
    %v1794 = vsel %vm918, %v819, -inf
    %v1795 = vrot.slane %v1794, 4
    %v1796 = vmax.f32 %v1794, %v1795
    %v1797 = vrot.slane %v1796, 2
    %v1798 = vmax.f32 %v1796, %v1797
    %v1799 = vrot.slane %v1798, 1
    %v1800 = vmax.f32 %v1798, %v1799
    %v1801 = vsel %vm918, %v820, -inf
    %v1802 = vrot.slane %v1801, 4
    %v1803 = vmax.f32 %v1801, %v1802
    %v1804 = vrot.slane %v1803, 2
    %v1805 = vmax.f32 %v1803, %v1804
    %v1806 = vrot.slane %v1805, 1
    %v1807 = vmax.f32 %v1805, %v1806
    %v1808 = vsel %vm918, %v821, -inf
    %v1809 = vrot.slane %v1808, 4
    %v1810 = vmax.f32 %v1808, %v1809
    %v1811 = vrot.slane %v1810, 2
    %v1812 = vmax.f32 %v1810, %v1811
    %v1813 = vrot.slane %v1812, 1
    %v1814 = vmax.f32 %v1812, %v1813
    %v1815 = vpack.c.bf16 %v925, %v925
    %v1816 = vpack.c.bf16 %v932, %v932
    %v1817 = vpack.c.bf16 %v939, %v939
    %v1818 = vpack.c.bf16 %v946, %v946
    %v1819 = vpack.c.bf16 %v953, %v953
    %v1820 = vpack.c.bf16 %v960, %v960
    %v1821 = vpack.c.bf16 %v967, %v967
    %v1822 = vpack.c.bf16 %v974, %v974
    %v1823 = vpack.c.bf16 %v981, %v981
    %v1824 = vpack.c.bf16 %v988, %v988
    %v1825 = vpack.c.bf16 %v995, %v995
    %v1826 = vpack.c.bf16 %v1002, %v1002
    %v1827 = vpack.c.bf16 %v1009, %v1009
    %v1828 = vpack.c.bf16 %v1016, %v1016
    %v1829 = vpack.c.bf16 %v1023, %v1023
    %v1830 = vpack.c.bf16 %v1030, %v1030
    %v1831 = vpack.c.bf16 %v1037, %v1037
    %v1832 = vpack.c.bf16 %v1044, %v1044
    %v1833 = vpack.c.bf16 %v1051, %v1051
    %v1834 = vpack.c.bf16 %v1058, %v1058
    %v1835 = vpack.c.bf16 %v1065, %v1065
    %v1836 = vpack.c.bf16 %v1072, %v1072
    %v1837 = vpack.c.bf16 %v1079, %v1079
    %v1838 = vpack.c.bf16 %v1086, %v1086
    %v1839 = vpack.c.bf16 %v1093, %v1093
    %v1840 = vpack.c.bf16 %v1100, %v1100
    %v1841 = vpack.c.bf16 %v1107, %v1107
    %v1842 = vpack.c.bf16 %v1114, %v1114
    %v1843 = vpack.c.bf16 %v1121, %v1121
    %v1844 = vpack.c.bf16 %v1128, %v1128
    %v1845 = vpack.c.bf16 %v1135, %v1135
    %v1846 = vpack.c.bf16 %v1142, %v1142
    %v1847 = vpack.c.bf16 %v1149, %v1149
    %v1848 = vpack.c.bf16 %v1156, %v1156
    %v1849 = vpack.c.bf16 %v1163, %v1163
    %v1850 = vpack.c.bf16 %v1170, %v1170
    %v1851 = vpack.c.bf16 %v1177, %v1177
    %v1852 = vpack.c.bf16 %v1184, %v1184
    %v1853 = vpack.c.bf16 %v1191, %v1191
    %v1854 = vpack.c.bf16 %v1198, %v1198
    %v1855 = vpack.c.bf16 %v1205, %v1205
    %v1856 = vpack.c.bf16 %v1212, %v1212
    %v1857 = vpack.c.bf16 %v1219, %v1219
    %v1858 = vpack.c.bf16 %v1226, %v1226
    %v1859 = vpack.c.bf16 %v1233, %v1233
    %v1860 = vpack.c.bf16 %v1240, %v1240
    %v1861 = vpack.c.bf16 %v1247, %v1247
    %v1862 = vpack.c.bf16 %v1254, %v1254
    %v1863 = vpack.c.bf16 %v1261, %v1261
    %v1864 = vpack.c.bf16 %v1268, %v1268
    %v1865 = vpack.c.bf16 %v1275, %v1275
    %v1866 = vpack.c.bf16 %v1282, %v1282
    %v1867 = vpack.c.bf16 %v1289, %v1289
    %v1868 = vpack.c.bf16 %v1296, %v1296
    %v1869 = vpack.c.bf16 %v1303, %v1303
    %v1870 = vpack.c.bf16 %v1310, %v1310
    %v1871 = vpack.c.bf16 %v1317, %v1317
    %v1872 = vpack.c.bf16 %v1324, %v1324
    %v1873 = vpack.c.bf16 %v1331, %v1331
    %v1874 = vpack.c.bf16 %v1338, %v1338
    %v1875 = vpack.c.bf16 %v1345, %v1345
    %v1876 = vpack.c.bf16 %v1352, %v1352
    %v1877 = vpack.c.bf16 %v1359, %v1359
    %v1878 = vpack.c.bf16 %v1366, %v1366
    %v1879 = vpack.c.bf16 %v1373, %v1373
    %v1880 = vpack.c.bf16 %v1380, %v1380
    %v1881 = vpack.c.bf16 %v1387, %v1387
    %v1882 = vpack.c.bf16 %v1394, %v1394
    %v1883 = vpack.c.bf16 %v1401, %v1401
    %v1884 = vpack.c.bf16 %v1408, %v1408
    %v1885 = vpack.c.bf16 %v1415, %v1415
    %v1886 = vpack.c.bf16 %v1422, %v1422
    %v1887 = vpack.c.bf16 %v1429, %v1429
    %v1888 = vpack.c.bf16 %v1436, %v1436
    %v1889 = vpack.c.bf16 %v1443, %v1443
    %v1890 = vpack.c.bf16 %v1450, %v1450
    %v1891 = vpack.c.bf16 %v1457, %v1457
    %v1892 = vpack.c.bf16 %v1464, %v1464
    %v1893 = vpack.c.bf16 %v1471, %v1471
    %v1894 = vpack.c.bf16 %v1478, %v1478
    %v1895 = vpack.c.bf16 %v1485, %v1485
    %v1896 = vpack.c.bf16 %v1492, %v1492
    %v1897 = vpack.c.bf16 %v1499, %v1499
    %v1898 = vpack.c.bf16 %v1506, %v1506
    %v1899 = vpack.c.bf16 %v1513, %v1513
    %v1900 = vpack.c.bf16 %v1520, %v1520
    %v1901 = vpack.c.bf16 %v1527, %v1527
    %v1902 = vpack.c.bf16 %v1534, %v1534
    %v1903 = vpack.c.bf16 %v1541, %v1541
    %v1904 = vpack.c.bf16 %v1548, %v1548
    %v1905 = vpack.c.bf16 %v1555, %v1555
    %v1906 = vpack.c.bf16 %v1562, %v1562
    %v1907 = vpack.c.bf16 %v1569, %v1569
    %v1908 = vpack.c.bf16 %v1576, %v1576
    %v1909 = vpack.c.bf16 %v1583, %v1583
    %v1910 = vpack.c.bf16 %v1590, %v1590
    %v1911 = vpack.c.bf16 %v1597, %v1597
    %v1912 = vpack.c.bf16 %v1604, %v1604
    %v1913 = vpack.c.bf16 %v1611, %v1611
    %v1914 = vpack.c.bf16 %v1618, %v1618
    %v1915 = vpack.c.bf16 %v1625, %v1625
    %v1916 = vpack.c.bf16 %v1632, %v1632
    %v1917 = vpack.c.bf16 %v1639, %v1639
    %v1918 = vpack.c.bf16 %v1646, %v1646
    %v1919 = vpack.c.bf16 %v1653, %v1653
    %v1920 = vpack.c.bf16 %v1660, %v1660
    %v1921 = vpack.c.bf16 %v1667, %v1667
    %v1922 = vpack.c.bf16 %v1674, %v1674
    %v1923 = vpack.c.bf16 %v1681, %v1681
    %v1924 = vpack.c.bf16 %v1688, %v1688
    %v1925 = vpack.c.bf16 %v1695, %v1695
    %v1926 = vpack.c.bf16 %v1702, %v1702
    %v1927 = vpack.c.bf16 %v1709, %v1709
    %v1928 = vpack.c.bf16 %v1716, %v1716
    %v1929 = vpack.c.bf16 %v1723, %v1723
    %v1930 = vpack.c.bf16 %v1730, %v1730
    %v1931 = vpack.c.bf16 %v1737, %v1737
    %v1932 = vpack.c.bf16 %v1744, %v1744
    %v1933 = vpack.c.bf16 %v1751, %v1751
    %v1934 = vpack.c.bf16 %v1758, %v1758
    %v1935 = vpack.c.bf16 %v1765, %v1765
    %v1936 = vpack.c.bf16 %v1772, %v1772
    %v1937 = vpack.c.bf16 %v1779, %v1779
    %v1938 = vpack.c.bf16 %v1786, %v1786
    %v1939 = vpack.c.bf16 %v1793, %v1793
    %v1940 = vpack.c.bf16 %v1800, %v1800
    %v1941 = vpack.c.bf16 %v1807, %v1807
    %v1942 = vpack.c.bf16 %v1814, %v1814
    %v2071 = vperm.slane %v1815, 0
    %v2072 = vperm.slane %v1816, 0
    %v2073 = vperm.slane %v1817, 0
    %v2074 = vperm.slane %v1818, 0
    %v2075 = vperm.slane %v1819, 0
    %v2076 = vperm.slane %v1820, 0
    %v2077 = vperm.slane %v1821, 0
    %v2078 = vperm.slane %v1822, 0
    %v2079 = vperm.slane %v1823, 0
    %v2080 = vperm.slane %v1824, 0
    %v2081 = vperm.slane %v1825, 0
    %v2082 = vperm.slane %v1826, 0
    %v2083 = vperm.slane %v1827, 0
    %v2084 = vperm.slane %v1828, 0
    %v2085 = vperm.slane %v1829, 0
    %v2086 = vperm.slane %v1830, 0
    %v2087 = vperm.slane %v1831, 0
    %v2088 = vperm.slane %v1832, 0
    %v2089 = vperm.slane %v1833, 0
    %v2090 = vperm.slane %v1834, 0
    %v2091 = vperm.slane %v1835, 0
    %v2092 = vperm.slane %v1836, 0
    %v2093 = vperm.slane %v1837, 0
    %v2094 = vperm.slane %v1838, 0
    %v2095 = vperm.slane %v1839, 0
    %v2096 = vperm.slane %v1840, 0
    %v2097 = vperm.slane %v1841, 0
    %v2098 = vperm.slane %v1842, 0
    %v2099 = vperm.slane %v1843, 0
    %v2100 = vperm.slane %v1844, 0
    %v2101 = vperm.slane %v1845, 0
    %v2102 = vperm.slane %v1846, 0
    %v2103 = vperm.slane %v1847, 0
    %v2104 = vperm.slane %v1848, 0
    %v2105 = vperm.slane %v1849, 0
    %v2106 = vperm.slane %v1850, 0
    %v2107 = vperm.slane %v1851, 0
    %v2108 = vperm.slane %v1852, 0
    %v2109 = vperm.slane %v1853, 0
    %v2110 = vperm.slane %v1854, 0
    %v2111 = vperm.slane %v1855, 0
    %v2112 = vperm.slane %v1856, 0
    %v2113 = vperm.slane %v1857, 0
    %v2114 = vperm.slane %v1858, 0
    %v2115 = vperm.slane %v1859, 0
    %v2116 = vperm.slane %v1860, 0
    %v2117 = vperm.slane %v1861, 0
    %v2118 = vperm.slane %v1862, 0
    %v2119 = vperm.slane %v1863, 0
    %v2120 = vperm.slane %v1864, 0
    %v2121 = vperm.slane %v1865, 0
    %v2122 = vperm.slane %v1866, 0
    %v2123 = vperm.slane %v1867, 0
    %v2124 = vperm.slane %v1868, 0
    %v2125 = vperm.slane %v1869, 0
    %v2126 = vperm.slane %v1870, 0
    %v2127 = vperm.slane %v1871, 0
    %v2128 = vperm.slane %v1872, 0
    %v2129 = vperm.slane %v1873, 0
    %v2130 = vperm.slane %v1874, 0
    %v2131 = vperm.slane %v1875, 0
    %v2132 = vperm.slane %v1876, 0
    %v2133 = vperm.slane %v1877, 0
    %v2134 = vperm.slane %v1878, 0
    %v2135 = vperm.slane %v1879, 0
    %v2136 = vperm.slane %v1880, 0
    %v2137 = vperm.slane %v1881, 0
    %v2138 = vperm.slane %v1882, 0
    %v2139 = vperm.slane %v1883, 0
    %v2140 = vperm.slane %v1884, 0
    %v2141 = vperm.slane %v1885, 0
    %v2142 = vperm.slane %v1886, 0
    %v2143 = vperm.slane %v1887, 0
    %v2144 = vperm.slane %v1888, 0
    %v2145 = vperm.slane %v1889, 0
    %v2146 = vperm.slane %v1890, 0
    %v2147 = vperm.slane %v1891, 0
    %v2148 = vperm.slane %v1892, 0
    %v2149 = vperm.slane %v1893, 0
    %v2150 = vperm.slane %v1894, 0
    %v2151 = vperm.slane %v1895, 0
    %v2152 = vperm.slane %v1896, 0
    %v2153 = vperm.slane %v1897, 0
    %v2154 = vperm.slane %v1898, 0
    %v2155 = vperm.slane %v1899, 0
    %v2156 = vperm.slane %v1900, 0
    %v2157 = vperm.slane %v1901, 0
    %v2158 = vperm.slane %v1902, 0
    %v2159 = vperm.slane %v1903, 0
    %v2160 = vperm.slane %v1904, 0
    %v2161 = vperm.slane %v1905, 0
    %v2162 = vperm.slane %v1906, 0
    %v2163 = vperm.slane %v1907, 0
    %v2164 = vperm.slane %v1908, 0
    %v2165 = vperm.slane %v1909, 0
    %v2166 = vperm.slane %v1910, 0
    %v2167 = vperm.slane %v1911, 0
    %v2168 = vperm.slane %v1912, 0
    %v2169 = vperm.slane %v1913, 0
    %v2170 = vperm.slane %v1914, 0
    %v2171 = vperm.slane %v1915, 0
    %v2172 = vperm.slane %v1916, 0
    %v2173 = vperm.slane %v1917, 0
    %v2174 = vperm.slane %v1918, 0
    %v2175 = vperm.slane %v1919, 0
    %v2176 = vperm.slane %v1920, 0
    %v2177 = vperm.slane %v1921, 0
    %v2178 = vperm.slane %v1922, 0
    %v2179 = vperm.slane %v1923, 0
    %v2180 = vperm.slane %v1924, 0
    %v2181 = vperm.slane %v1925, 0
    %v2182 = vperm.slane %v1926, 0
    %v2183 = vperm.slane %v1927, 0
    %v2184 = vperm.slane %v1928, 0
    %v2185 = vperm.slane %v1929, 0
    %v2186 = vperm.slane %v1930, 0
    %v2187 = vperm.slane %v1931, 0
    %v2188 = vperm.slane %v1932, 0
    %v2189 = vperm.slane %v1933, 0
    %v2190 = vperm.slane %v1934, 0
    %v2191 = vperm.slane %v1935, 0
    %v2192 = vperm.slane %v1936, 0
    %v2193 = vperm.slane %v1937, 0
    %v2194 = vperm.slane %v1938, 0
    %v2195 = vperm.slane %v1939, 0
    %v2196 = vperm.slane %v1940, 0
    %v2197 = vperm.slane %v1941, 0
    %v2198 = vperm.slane %v1942, 0
    %v2199 = vunpack.c.l.b16 %v2071
    %v2200 = vunpack.c.l.b16 %v2072
    %v2201 = vunpack.c.l.b16 %v2073
    %v2202 = vunpack.c.l.b16 %v2074
    %v2203 = vunpack.c.l.b16 %v2075
    %v2204 = vunpack.c.l.b16 %v2076
    %v2205 = vunpack.c.l.b16 %v2077
    %v2206 = vunpack.c.l.b16 %v2078
    %v2207 = vunpack.c.l.b16 %v2079
    %v2208 = vunpack.c.l.b16 %v2080
    %v2209 = vunpack.c.l.b16 %v2081
    %v2210 = vunpack.c.l.b16 %v2082
    %v2211 = vunpack.c.l.b16 %v2083
    %v2212 = vunpack.c.l.b16 %v2084
    %v2213 = vunpack.c.l.b16 %v2085
    %v2214 = vunpack.c.l.b16 %v2086
    %v2215 = vunpack.c.l.b16 %v2087
    %v2216 = vunpack.c.l.b16 %v2088
    %v2217 = vunpack.c.l.b16 %v2089
    %v2218 = vunpack.c.l.b16 %v2090
    %v2219 = vunpack.c.l.b16 %v2091
    %v2220 = vunpack.c.l.b16 %v2092
    %v2221 = vunpack.c.l.b16 %v2093
    %v2222 = vunpack.c.l.b16 %v2094
    %v2223 = vunpack.c.l.b16 %v2095
    %v2224 = vunpack.c.l.b16 %v2096
    %v2225 = vunpack.c.l.b16 %v2097
    %v2226 = vunpack.c.l.b16 %v2098
    %v2227 = vunpack.c.l.b16 %v2099
    %v2228 = vunpack.c.l.b16 %v2100
    %v2229 = vunpack.c.l.b16 %v2101
    %v2230 = vunpack.c.l.b16 %v2102
    %v2231 = vunpack.c.l.b16 %v2103
    %v2232 = vunpack.c.l.b16 %v2104
    %v2233 = vunpack.c.l.b16 %v2105
    %v2234 = vunpack.c.l.b16 %v2106
    %v2235 = vunpack.c.l.b16 %v2107
    %v2236 = vunpack.c.l.b16 %v2108
    %v2237 = vunpack.c.l.b16 %v2109
    %v2238 = vunpack.c.l.b16 %v2110
    %v2239 = vunpack.c.l.b16 %v2111
    %v2240 = vunpack.c.l.b16 %v2112
    %v2241 = vunpack.c.l.b16 %v2113
    %v2242 = vunpack.c.l.b16 %v2114
    %v2243 = vunpack.c.l.b16 %v2115
    %v2244 = vunpack.c.l.b16 %v2116
    %v2245 = vunpack.c.l.b16 %v2117
    %v2246 = vunpack.c.l.b16 %v2118
    %v2247 = vunpack.c.l.b16 %v2119
    %v2248 = vunpack.c.l.b16 %v2120
    %v2249 = vunpack.c.l.b16 %v2121
    %v2250 = vunpack.c.l.b16 %v2122
    %v2251 = vunpack.c.l.b16 %v2123
    %v2252 = vunpack.c.l.b16 %v2124
    %v2253 = vunpack.c.l.b16 %v2125
    %v2254 = vunpack.c.l.b16 %v2126
    %v2255 = vunpack.c.l.b16 %v2127
    %v2256 = vunpack.c.l.b16 %v2128
    %v2257 = vunpack.c.l.b16 %v2129
    %v2258 = vunpack.c.l.b16 %v2130
    %v2259 = vunpack.c.l.b16 %v2131
    %v2260 = vunpack.c.l.b16 %v2132
    %v2261 = vunpack.c.l.b16 %v2133
    %v2262 = vunpack.c.l.b16 %v2134
    %v2263 = vunpack.c.l.b16 %v2135
    %v2264 = vunpack.c.l.b16 %v2136
    %v2265 = vunpack.c.l.b16 %v2137
    %v2266 = vunpack.c.l.b16 %v2138
    %v2267 = vunpack.c.l.b16 %v2139
    %v2268 = vunpack.c.l.b16 %v2140
    %v2269 = vunpack.c.l.b16 %v2141
    %v2270 = vunpack.c.l.b16 %v2142
    %v2271 = vunpack.c.l.b16 %v2143
    %v2272 = vunpack.c.l.b16 %v2144
    %v2273 = vunpack.c.l.b16 %v2145
    %v2274 = vunpack.c.l.b16 %v2146
    %v2275 = vunpack.c.l.b16 %v2147
    %v2276 = vunpack.c.l.b16 %v2148
    %v2277 = vunpack.c.l.b16 %v2149
    %v2278 = vunpack.c.l.b16 %v2150
    %v2279 = vunpack.c.l.b16 %v2151
    %v2280 = vunpack.c.l.b16 %v2152
    %v2281 = vunpack.c.l.b16 %v2153
    %v2282 = vunpack.c.l.b16 %v2154
    %v2283 = vunpack.c.l.b16 %v2155
    %v2284 = vunpack.c.l.b16 %v2156
    %v2285 = vunpack.c.l.b16 %v2157
    %v2286 = vunpack.c.l.b16 %v2158
    %v2287 = vunpack.c.l.b16 %v2159
    %v2288 = vunpack.c.l.b16 %v2160
    %v2289 = vunpack.c.l.b16 %v2161
    %v2290 = vunpack.c.l.b16 %v2162
    %v2291 = vunpack.c.l.b16 %v2163
    %v2292 = vunpack.c.l.b16 %v2164
    %v2293 = vunpack.c.l.b16 %v2165
    %v2294 = vunpack.c.l.b16 %v2166
    %v2295 = vunpack.c.l.b16 %v2167
    %v2296 = vunpack.c.l.b16 %v2168
    %v2297 = vunpack.c.l.b16 %v2169
    %v2298 = vunpack.c.l.b16 %v2170
    %v2299 = vunpack.c.l.b16 %v2171
    %v2300 = vunpack.c.l.b16 %v2172
    %v2301 = vunpack.c.l.b16 %v2173
    %v2302 = vunpack.c.l.b16 %v2174
    %v2303 = vunpack.c.l.b16 %v2175
    %v2304 = vunpack.c.l.b16 %v2176
    %v2305 = vunpack.c.l.b16 %v2177
    %v2306 = vunpack.c.l.b16 %v2178
    %v2307 = vunpack.c.l.b16 %v2179
    %v2308 = vunpack.c.l.b16 %v2180
    %v2309 = vunpack.c.l.b16 %v2181
    %v2310 = vunpack.c.l.b16 %v2182
    %v2311 = vunpack.c.l.b16 %v2183
    %v2312 = vunpack.c.l.b16 %v2184
    %v2313 = vunpack.c.l.b16 %v2185
    %v2314 = vunpack.c.l.b16 %v2186
    %v2315 = vunpack.c.l.b16 %v2187
    %v2316 = vunpack.c.l.b16 %v2188
    %v2317 = vunpack.c.l.b16 %v2189
    %v2318 = vunpack.c.l.b16 %v2190
    %v2319 = vunpack.c.l.b16 %v2191
    %v2320 = vunpack.c.l.b16 %v2192
    %v2321 = vunpack.c.l.b16 %v2193
    %v2322 = vunpack.c.l.b16 %v2194
    %v2323 = vunpack.c.l.b16 %v2195
    %v2324 = vunpack.c.l.b16 %v2196
    %v2325 = vunpack.c.l.b16 %v2197
    %v2326 = vunpack.c.l.b16 %v2198
    %vm2327 = vcmask 1041409
    %v2328 = vsel %vm2327, %v2200, %v2199
    %vm2329 = vcmask 1042434
    %v2330 = vsel %vm2329, %v2201, %v2328
    %vm2331 = vcmask 1043459
    %v2332 = vsel %vm2331, %v2202, %v2330
    %vm2333 = vcmask 1044484
    %v2334 = vsel %vm2333, %v2203, %v2332
    %vm2335 = vcmask 1045509
    %v2336 = vsel %vm2335, %v2204, %v2334
    %vm2337 = vcmask 1046534
    %v2338 = vsel %vm2337, %v2205, %v2336
    %vm2339 = vcmask 1047559
    %v2340 = vsel %vm2339, %v2206, %v2338
    %v2341 = vsel %vm2327, %v2208, %v2207
    %v2342 = vsel %vm2329, %v2209, %v2341
    %v2343 = vsel %vm2331, %v2210, %v2342
    %v2344 = vsel %vm2333, %v2211, %v2343
    %v2345 = vsel %vm2335, %v2212, %v2344
    %v2346 = vsel %vm2337, %v2213, %v2345
    %v2347 = vsel %vm2339, %v2214, %v2346
    %v2348 = vsel %vm2327, %v2216, %v2215
    %v2349 = vsel %vm2329, %v2217, %v2348
    %v2350 = vsel %vm2331, %v2218, %v2349
    %v2351 = vsel %vm2333, %v2219, %v2350
    %v2352 = vsel %vm2335, %v2220, %v2351
    %v2353 = vsel %vm2337, %v2221, %v2352
    %v2354 = vsel %vm2339, %v2222, %v2353
    %v2355 = vsel %vm2327, %v2224, %v2223
    %v2356 = vsel %vm2329, %v2225, %v2355
    %v2357 = vsel %vm2331, %v2226, %v2356
    %v2358 = vsel %vm2333, %v2227, %v2357
    %v2359 = vsel %vm2335, %v2228, %v2358
    %v2360 = vsel %vm2337, %v2229, %v2359
    %v2361 = vsel %vm2339, %v2230, %v2360
    %v2362 = vsel %vm2327, %v2232, %v2231
    %v2363 = vsel %vm2329, %v2233, %v2362
    %v2364 = vsel %vm2331, %v2234, %v2363
    %v2365 = vsel %vm2333, %v2235, %v2364
    %v2366 = vsel %vm2335, %v2236, %v2365
    %v2367 = vsel %vm2337, %v2237, %v2366
    %v2368 = vsel %vm2339, %v2238, %v2367
    %v2369 = vsel %vm2327, %v2240, %v2239
    %v2370 = vsel %vm2329, %v2241, %v2369
    %v2371 = vsel %vm2331, %v2242, %v2370
    %v2372 = vsel %vm2333, %v2243, %v2371
    %v2373 = vsel %vm2335, %v2244, %v2372
    %v2374 = vsel %vm2337, %v2245, %v2373
    %v2375 = vsel %vm2339, %v2246, %v2374
    %v2376 = vsel %vm2327, %v2248, %v2247
    %v2377 = vsel %vm2329, %v2249, %v2376
    %v2378 = vsel %vm2331, %v2250, %v2377
    %v2379 = vsel %vm2333, %v2251, %v2378
    %v2380 = vsel %vm2335, %v2252, %v2379
    %v2381 = vsel %vm2337, %v2253, %v2380
    %v2382 = vsel %vm2339, %v2254, %v2381
    %v2383 = vsel %vm2327, %v2256, %v2255
    %v2384 = vsel %vm2329, %v2257, %v2383
    %v2385 = vsel %vm2331, %v2258, %v2384
    %v2386 = vsel %vm2333, %v2259, %v2385
    %v2387 = vsel %vm2335, %v2260, %v2386
    %v2388 = vsel %vm2337, %v2261, %v2387
    %v2389 = vsel %vm2339, %v2262, %v2388
    %v2390 = vsel %vm2327, %v2264, %v2263
    %v2391 = vsel %vm2329, %v2265, %v2390
    %v2392 = vsel %vm2331, %v2266, %v2391
    %v2393 = vsel %vm2333, %v2267, %v2392
    %v2394 = vsel %vm2335, %v2268, %v2393
    %v2395 = vsel %vm2337, %v2269, %v2394
    %v2396 = vsel %vm2339, %v2270, %v2395
    %v2397 = vsel %vm2327, %v2272, %v2271
    %v2398 = vsel %vm2329, %v2273, %v2397
    %v2399 = vsel %vm2331, %v2274, %v2398
    %v2400 = vsel %vm2333, %v2275, %v2399
    %v2401 = vsel %vm2335, %v2276, %v2400
    %v2402 = vsel %vm2337, %v2277, %v2401
    %v2403 = vsel %vm2339, %v2278, %v2402
    %v2404 = vsel %vm2327, %v2280, %v2279
    %v2405 = vsel %vm2329, %v2281, %v2404
    %v2406 = vsel %vm2331, %v2282, %v2405
    %v2407 = vsel %vm2333, %v2283, %v2406
    %v2408 = vsel %vm2335, %v2284, %v2407
    %v2409 = vsel %vm2337, %v2285, %v2408
    %v2410 = vsel %vm2339, %v2286, %v2409
    %v2411 = vsel %vm2327, %v2288, %v2287
    %v2412 = vsel %vm2329, %v2289, %v2411
    %v2413 = vsel %vm2331, %v2290, %v2412
    %v2414 = vsel %vm2333, %v2291, %v2413
    %v2415 = vsel %vm2335, %v2292, %v2414
    %v2416 = vsel %vm2337, %v2293, %v2415
    %v2417 = vsel %vm2339, %v2294, %v2416
    %v2418 = vsel %vm2327, %v2296, %v2295
    %v2419 = vsel %vm2329, %v2297, %v2418
    %v2420 = vsel %vm2331, %v2298, %v2419
    %v2421 = vsel %vm2333, %v2299, %v2420
    %v2422 = vsel %vm2335, %v2300, %v2421
    %v2423 = vsel %vm2337, %v2301, %v2422
    %v2424 = vsel %vm2339, %v2302, %v2423
    %v2425 = vsel %vm2327, %v2304, %v2303
    %v2426 = vsel %vm2329, %v2305, %v2425
    %v2427 = vsel %vm2331, %v2306, %v2426
    %v2428 = vsel %vm2333, %v2307, %v2427
    %v2429 = vsel %vm2335, %v2308, %v2428
    %v2430 = vsel %vm2337, %v2309, %v2429
    %v2431 = vsel %vm2339, %v2310, %v2430
    %v2432 = vsel %vm2327, %v2312, %v2311
    %v2433 = vsel %vm2329, %v2313, %v2432
    %v2434 = vsel %vm2331, %v2314, %v2433
    %v2435 = vsel %vm2333, %v2315, %v2434
    %v2436 = vsel %vm2335, %v2316, %v2435
    %v2437 = vsel %vm2337, %v2317, %v2436
    %v2438 = vsel %vm2339, %v2318, %v2437
    %v2439 = vsel %vm2327, %v2320, %v2319
    %v2440 = vsel %vm2329, %v2321, %v2439
    %v2441 = vsel %vm2331, %v2322, %v2440
    %v2442 = vsel %vm2333, %v2323, %v2441
    %v2443 = vsel %vm2335, %v2324, %v2442
    %v2444 = vsel %vm2337, %v2325, %v2443
    %v2445 = vsel %vm2339, %v2326, %v2444
    %v2446 = vpack.c.b16 %v2340, %v2340
    %v2447 = vpack.c.b16 %v2347, %v2347
    %v2448 = vpack.c.b16 %v2354, %v2354
    %v2449 = vpack.c.b16 %v2361, %v2361
    %v2450 = vpack.c.b16 %v2368, %v2368
    %v2451 = vpack.c.b16 %v2375, %v2375
    %v2452 = vpack.c.b16 %v2382, %v2382
    %v2453 = vpack.c.b16 %v2389, %v2389
    %v2454 = vpack.c.b16 %v2396, %v2396
    %v2455 = vpack.c.b16 %v2403, %v2403
    %v2456 = vpack.c.b16 %v2410, %v2410
    %v2457 = vpack.c.b16 %v2417, %v2417
    %v2458 = vpack.c.b16 %v2424, %v2424
    %v2459 = vpack.c.b16 %v2431, %v2431
    %v2460 = vpack.c.b16 %v2438, %v2438
    %v2461 = vpack.c.b16 %v2445, %v2445
    %v2463 = vrot.slane 0, 7
    %v2464 = vrot.slane %v2446, 7
    %v2465 = vrot.slane %v2447, 7
    %v2466 = vrot.slane %v2448, 7
    %v2467 = vrot.slane %v2449, 7
    %v2468 = vrot.slane %v2450, 7
    %v2469 = vrot.slane %v2451, 7
    %v2470 = vrot.slane %v2452, 7
    %v2471 = vrot.slane %v2453, 7
    %v2472 = vrot.slane %v2454, 7
    %v2473 = vrot.slane %v2455, 7
    %v2474 = vrot.slane %v2456, 7
    %v2475 = vrot.slane %v2457, 7
    %v2476 = vrot.slane %v2458, 7
    %v2477 = vrot.slane %v2459, 7
    %v2478 = vrot.slane %v2460, 7
    %v2479 = vrot.slane %v2461, 7
    %vm2480 = vcmask 1040384
    %v2483 = vsel %vm2480, 0, %v2463
    %v2485 = vsel %vm2480, 0, %v2464
    %v2487 = vsel %vm2480, 0, %v2465
    %v2489 = vsel %vm2480, 0, %v2466
    %v2491 = vsel %vm2480, 0, %v2467
    %v2493 = vsel %vm2480, 0, %v2468
    %v2495 = vsel %vm2480, 0, %v2469
    %v2497 = vsel %vm2480, 0, %v2470
    %v2499 = vsel %vm2480, 0, %v2471
    %v2501 = vsel %vm2480, 0, %v2472
    %v2503 = vsel %vm2480, 0, %v2473
    %v2505 = vsel %vm2480, 0, %v2474
    %v2507 = vsel %vm2480, 0, %v2475
    %v2509 = vsel %vm2480, 0, %v2476
    %v2511 = vsel %vm2480, 0, %v2477
    %v2513 = vsel %vm2480, 0, %v2478
    %v2515 = vsel %vm2480, 0, %v2479
    %vm2516 = vcmask 1044480
    %v2517 = vsel %vm2516, %v2483, 0
    %v2518 = vsel %vm2516, %v2485, 0
    %v2519 = vsel %vm2516, %v2487, 0
    %v2520 = vsel %vm2516, %v2489, 0
    %v2521 = vsel %vm2516, %v2491, 0
    %v2522 = vsel %vm2516, %v2493, 0
    %v2523 = vsel %vm2516, %v2495, 0
    %v2524 = vsel %vm2516, %v2497, 0
    %v2525 = vsel %vm2516, %v2499, 0
    %v2526 = vsel %vm2516, %v2501, 0
    %v2527 = vsel %vm2516, %v2503, 0
    %v2528 = vsel %vm2516, %v2505, 0
    %v2529 = vsel %vm2516, %v2507, 0
    %v2530 = vsel %vm2516, %v2509, 0
    %v2531 = vsel %vm2516, %v2511, 0
    %v2532 = vsel %vm2516, %v2513, 0
    %v2533 = vsel %vm2516, %v2515, 0
    %v2534 = vshrl.u32 %v2517, 16
    %v2536 = vshll.u32 %v2517, 16
    %v2538 = vrot.slane %v2536, 1
    %v2539 = vor.u32 %v2534, %v2538
    %v2540 = vshrl.u32 %v2518, 16
    %v2542 = vshll.u32 %v2518, 16
    %v2544 = vrot.slane %v2542, 1
    %v2545 = vor.u32 %v2540, %v2544
    %v2546 = vshrl.u32 %v2519, 16
    %v2548 = vshll.u32 %v2519, 16
    %v2550 = vrot.slane %v2548, 1
    %v2551 = vor.u32 %v2546, %v2550
    %v2552 = vshrl.u32 %v2520, 16
    %v2554 = vshll.u32 %v2520, 16
    %v2556 = vrot.slane %v2554, 1
    %v2557 = vor.u32 %v2552, %v2556
    %v2558 = vshrl.u32 %v2521, 16
    %v2560 = vshll.u32 %v2521, 16
    %v2562 = vrot.slane %v2560, 1
    %v2563 = vor.u32 %v2558, %v2562
    %v2564 = vshrl.u32 %v2522, 16
    %v2566 = vshll.u32 %v2522, 16
    %v2568 = vrot.slane %v2566, 1
    %v2569 = vor.u32 %v2564, %v2568
    %v2570 = vshrl.u32 %v2523, 16
    %v2572 = vshll.u32 %v2523, 16
    %v2574 = vrot.slane %v2572, 1
    %v2575 = vor.u32 %v2570, %v2574
    %v2576 = vshrl.u32 %v2524, 16
    %v2578 = vshll.u32 %v2524, 16
    %v2580 = vrot.slane %v2578, 1
    %v2581 = vor.u32 %v2576, %v2580
    %v2582 = vshrl.u32 %v2525, 16
    %v2584 = vshll.u32 %v2525, 16
    %v2586 = vrot.slane %v2584, 1
    %v2587 = vor.u32 %v2582, %v2586
    %v2588 = vshrl.u32 %v2526, 16
    %v2590 = vshll.u32 %v2526, 16
    %v2592 = vrot.slane %v2590, 1
    %v2593 = vor.u32 %v2588, %v2592
    %v2594 = vshrl.u32 %v2527, 16
    %v2596 = vshll.u32 %v2527, 16
    %v2598 = vrot.slane %v2596, 1
    %v2599 = vor.u32 %v2594, %v2598
    %v2600 = vshrl.u32 %v2528, 16
    %v2602 = vshll.u32 %v2528, 16
    %v2604 = vrot.slane %v2602, 1
    %v2605 = vor.u32 %v2600, %v2604
    %v2606 = vshrl.u32 %v2529, 16
    %v2608 = vshll.u32 %v2529, 16
    %v2610 = vrot.slane %v2608, 1
    %v2611 = vor.u32 %v2606, %v2610
    %v2612 = vshrl.u32 %v2530, 16
    %v2614 = vshll.u32 %v2530, 16
    %v2616 = vrot.slane %v2614, 1
    %v2617 = vor.u32 %v2612, %v2616
    %v2618 = vshrl.u32 %v2531, 16
    %v2620 = vshll.u32 %v2531, 16
    %v2622 = vrot.slane %v2620, 1
    %v2623 = vor.u32 %v2618, %v2622
    %v2624 = vshrl.u32 %v2532, 16
    %v2626 = vshll.u32 %v2532, 16
    %v2628 = vrot.slane %v2626, 1
    %v2629 = vor.u32 %v2624, %v2628
    %v2630 = vshrl.u32 %v2533, 16
    %v2632 = vshll.u32 %v2533, 16
    %v2634 = vrot.slane %v2632, 1
    %v2635 = vor.u32 %v2630, %v2634
    %2636 = vrot.lane.b32.xlu0 %v2539, 64
    %v2637 = vpop.permute.xlu0 %2636
    %2638 = vrot.lane.b32.xlu0 %v2545, 64
    %v2639 = vpop.permute.xlu0 %2638
    %2640 = vrot.lane.b32.xlu0 %v2551, 64
    %v2641 = vpop.permute.xlu0 %2640
    %2642 = vrot.lane.b32.xlu0 %v2557, 64
    %v2643 = vpop.permute.xlu0 %2642
    %2644 = vrot.lane.b32.xlu0 %v2563, 64
    %v2645 = vpop.permute.xlu0 %2644
    %2646 = vrot.lane.b32.xlu0 %v2569, 64
    %v2647 = vpop.permute.xlu0 %2646
    %2648 = vrot.lane.b32.xlu0 %v2575, 64
    %v2649 = vpop.permute.xlu0 %2648
    %2650 = vrot.lane.b32.xlu0 %v2581, 64
    %v2651 = vpop.permute.xlu0 %2650
    %2652 = vrot.lane.b32.xlu0 %v2587, 64
    %v2653 = vpop.permute.xlu0 %2652
    %2654 = vrot.lane.b32.xlu0 %v2593, 64
    %v2655 = vpop.permute.xlu0 %2654
    %2656 = vrot.lane.b32.xlu0 %v2599, 64
    %v2657 = vpop.permute.xlu0 %2656
    %2658 = vrot.lane.b32.xlu0 %v2605, 64
    %v2659 = vpop.permute.xlu0 %2658
    %2660 = vrot.lane.b32.xlu0 %v2611, 64
    %v2661 = vpop.permute.xlu0 %2660
    %2662 = vrot.lane.b32.xlu0 %v2617, 64
    %v2663 = vpop.permute.xlu0 %2662
    %2664 = vrot.lane.b32.xlu0 %v2623, 64
    %v2665 = vpop.permute.xlu0 %2664
    %2666 = vrot.lane.b32.xlu0 %v2629, 64
    %v2667 = vpop.permute.xlu0 %2666
    %2668 = vrot.lane.b32.xlu0 %v2635, 64
    %v2669 = vpop.permute.xlu0 %2668
    %v2687 = vrot.slane %v2517, 1
    %v2688 = vrot.slane %v2518, 1
    %v2689 = vrot.slane %v2519, 1
    %v2690 = vrot.slane %v2520, 1
    %v2691 = vrot.slane %v2521, 1
    %v2692 = vrot.slane %v2522, 1
    %v2693 = vrot.slane %v2523, 1
    %v2694 = vrot.slane %v2524, 1
    %v2695 = vrot.slane %v2525, 1
    %v2696 = vrot.slane %v2526, 1
    %v2697 = vrot.slane %v2527, 1
    %v2698 = vrot.slane %v2528, 1
    %v2699 = vrot.slane %v2529, 1
    %v2700 = vrot.slane %v2530, 1
    %v2701 = vrot.slane %v2531, 1
    %v2702 = vrot.slane %v2532, 1
    %v2703 = vrot.slane %v2533, 1
    %v2704 = vrot.slane %v2534, 1
    %v2705 = vrot.slane %v2536, 2
    %v2706 = vor.u32 %v2704, %v2705
    %v2707 = vrot.slane %v2540, 1
    %v2708 = vrot.slane %v2542, 2
    %v2709 = vor.u32 %v2707, %v2708
    %v2710 = vrot.slane %v2546, 1
    %v2711 = vrot.slane %v2548, 2
    %v2712 = vor.u32 %v2710, %v2711
    %v2713 = vrot.slane %v2552, 1
    %v2714 = vrot.slane %v2554, 2
    %v2715 = vor.u32 %v2713, %v2714
    %v2716 = vrot.slane %v2558, 1
    %v2717 = vrot.slane %v2560, 2
    %v2718 = vor.u32 %v2716, %v2717
    %v2719 = vrot.slane %v2564, 1
    %v2720 = vrot.slane %v2566, 2
    %v2721 = vor.u32 %v2719, %v2720
    %v2722 = vrot.slane %v2570, 1
    %v2723 = vrot.slane %v2572, 2
    %v2724 = vor.u32 %v2722, %v2723
    %v2725 = vrot.slane %v2576, 1
    %v2726 = vrot.slane %v2578, 2
    %v2727 = vor.u32 %v2725, %v2726
    %v2728 = vrot.slane %v2582, 1
    %v2729 = vrot.slane %v2584, 2
    %v2730 = vor.u32 %v2728, %v2729
    %v2731 = vrot.slane %v2588, 1
    %v2732 = vrot.slane %v2590, 2
    %v2733 = vor.u32 %v2731, %v2732
    %v2734 = vrot.slane %v2594, 1
    %v2735 = vrot.slane %v2596, 2
    %v2736 = vor.u32 %v2734, %v2735
    %v2737 = vrot.slane %v2600, 1
    %v2738 = vrot.slane %v2602, 2
    %v2739 = vor.u32 %v2737, %v2738
    %v2740 = vrot.slane %v2606, 1
    %v2741 = vrot.slane %v2608, 2
    %v2742 = vor.u32 %v2740, %v2741
    %v2743 = vrot.slane %v2612, 1
    %v2744 = vrot.slane %v2614, 2
    %v2745 = vor.u32 %v2743, %v2744
    %v2746 = vrot.slane %v2618, 1
    %v2747 = vrot.slane %v2620, 2
    %v2748 = vor.u32 %v2746, %v2747
    %v2749 = vrot.slane %v2624, 1
    %v2750 = vrot.slane %v2626, 2
    %v2751 = vor.u32 %v2749, %v2750
    %v2752 = vrot.slane %v2630, 1
    %v2753 = vrot.slane %v2632, 2
    %v2754 = vor.u32 %v2752, %v2753
    %2755 = vrot.lane.b32.xlu0 %v2706, 64
    %v2756 = vpop.permute.xlu0 %2755
    %2757 = vrot.lane.b32.xlu0 %v2709, 64
    %v2758 = vpop.permute.xlu0 %2757
    %2759 = vrot.lane.b32.xlu0 %v2712, 64
    %v2760 = vpop.permute.xlu0 %2759
    %2761 = vrot.lane.b32.xlu0 %v2715, 64
    %v2762 = vpop.permute.xlu0 %2761
    %2763 = vrot.lane.b32.xlu0 %v2718, 64
    %v2764 = vpop.permute.xlu0 %2763
    %2765 = vrot.lane.b32.xlu0 %v2721, 64
    %v2766 = vpop.permute.xlu0 %2765
    %2767 = vrot.lane.b32.xlu0 %v2724, 64
    %v2768 = vpop.permute.xlu0 %2767
    %2769 = vrot.lane.b32.xlu0 %v2727, 64
    %v2770 = vpop.permute.xlu0 %2769
    %2771 = vrot.lane.b32.xlu0 %v2730, 64
    %v2772 = vpop.permute.xlu0 %2771
    %2773 = vrot.lane.b32.xlu0 %v2733, 64
    %v2774 = vpop.permute.xlu0 %2773
    %2775 = vrot.lane.b32.xlu0 %v2736, 64
    %v2776 = vpop.permute.xlu0 %2775
    %2777 = vrot.lane.b32.xlu0 %v2739, 64
    %v2778 = vpop.permute.xlu0 %2777
    %2779 = vrot.lane.b32.xlu0 %v2742, 64
    %v2780 = vpop.permute.xlu0 %2779
    %2781 = vrot.lane.b32.xlu0 %v2745, 64
    %v2782 = vpop.permute.xlu0 %2781
    %2783 = vrot.lane.b32.xlu0 %v2748, 64
    %v2784 = vpop.permute.xlu0 %2783
    %2785 = vrot.lane.b32.xlu0 %v2751, 64
    %v2786 = vpop.permute.xlu0 %2785
    %2787 = vrot.lane.b32.xlu0 %v2754, 64
    %v2788 = vpop.permute.xlu0 %2787
    %v2789 = vrot.slane %v2517, 2
    %v2790 = vrot.slane %v2518, 2
    %v2791 = vrot.slane %v2519, 2
    %v2792 = vrot.slane %v2520, 2
    %v2793 = vrot.slane %v2521, 2
    %v2794 = vrot.slane %v2522, 2
    %v2795 = vrot.slane %v2523, 2
    %v2796 = vrot.slane %v2524, 2
    %v2797 = vrot.slane %v2525, 2
    %v2798 = vrot.slane %v2526, 2
    %v2799 = vrot.slane %v2527, 2
    %v2800 = vrot.slane %v2528, 2
    %v2801 = vrot.slane %v2529, 2
    %v2802 = vrot.slane %v2530, 2
    %v2803 = vrot.slane %v2531, 2
    %v2804 = vrot.slane %v2532, 2
    %v2805 = vrot.slane %v2533, 2
    %v2807 = vsel %vm597, %v2517, %v2637
    %v2809 = vsel %vm597, %v2518, %v2639
    %v2811 = vsel %vm597, %v2519, %v2641
    %v2813 = vsel %vm597, %v2520, %v2643
    %v2815 = vsel %vm597, %v2521, %v2645
    %v2817 = vsel %vm597, %v2522, %v2647
    %v2819 = vsel %vm597, %v2523, %v2649
    %v2821 = vsel %vm597, %v2524, %v2651
    %v2823 = vsel %vm597, %v2525, %v2653
    %v2825 = vsel %vm597, %v2526, %v2655
    %v2827 = vsel %vm597, %v2527, %v2657
    %v2829 = vsel %vm597, %v2528, %v2659
    %v2831 = vsel %vm597, %v2529, %v2661
    %v2833 = vsel %vm597, %v2530, %v2663
    %v2835 = vsel %vm597, %v2531, %v2665
    %v2837 = vsel %vm597, %v2532, %v2667
    %v2839 = vsel %vm597, %v2533, %v2669
    %v2842 = vsel %vm597, %v2687, %v2756
    %v2845 = vsel %vm597, %v2688, %v2758
    %v2848 = vsel %vm597, %v2689, %v2760
    %v2851 = vsel %vm597, %v2690, %v2762
    %v2854 = vsel %vm597, %v2691, %v2764
    %v2857 = vsel %vm597, %v2692, %v2766
    %v2860 = vsel %vm597, %v2693, %v2768
    %v2863 = vsel %vm597, %v2694, %v2770
    %v2866 = vsel %vm597, %v2695, %v2772
    %v2869 = vsel %vm597, %v2696, %v2774
    %v2872 = vsel %vm597, %v2697, %v2776
    %v2875 = vsel %vm597, %v2698, %v2778
    %v2878 = vsel %vm597, %v2699, %v2780
    %v2881 = vsel %vm597, %v2700, %v2782
    %v2884 = vsel %vm597, %v2701, %v2784
    %v2887 = vsel %vm597, %v2702, %v2786
    %v2890 = vsel %vm597, %v2703, %v2788
    %v2917 = vunpack.c.l.b16 %v2807
    %v2918 = vunpack.c.l.b16 %v2842
    %v2919 = vunpack.c.l.b16 %v2789
    %v2920 = vunpack.c.l.b16 %v2809
    %v2921 = vunpack.c.l.b16 %v2845
    %v2922 = vunpack.c.l.b16 %v2790
    %v2923 = vunpack.c.l.b16 %v2811
    %v2924 = vunpack.c.l.b16 %v2848
    %v2925 = vunpack.c.l.b16 %v2791
    %v2926 = vunpack.c.l.b16 %v2813
    %v2927 = vunpack.c.l.b16 %v2851
    %v2928 = vunpack.c.l.b16 %v2792
    %v2929 = vunpack.c.l.b16 %v2815
    %v2930 = vunpack.c.l.b16 %v2854
    %v2931 = vunpack.c.l.b16 %v2793
    %v2932 = vunpack.c.l.b16 %v2817
    %v2933 = vunpack.c.l.b16 %v2857
    %v2934 = vunpack.c.l.b16 %v2794
    %v2935 = vunpack.c.l.b16 %v2819
    %v2936 = vunpack.c.l.b16 %v2860
    %v2937 = vunpack.c.l.b16 %v2795
    %v2938 = vunpack.c.l.b16 %v2825
    %v2939 = vunpack.c.l.b16 %v2869
    %v2940 = vunpack.c.l.b16 %v2798
    %v2941 = vunpack.c.l.b16 %v2827
    %v2942 = vunpack.c.l.b16 %v2872
    %v2943 = vunpack.c.l.b16 %v2799
    %v2944 = vunpack.c.l.b16 %v2829
    %v2945 = vunpack.c.l.b16 %v2875
    %v2946 = vunpack.c.l.b16 %v2800
    %v2947 = vunpack.c.l.b16 %v2831
    %v2948 = vunpack.c.l.b16 %v2878
    %v2949 = vunpack.c.l.b16 %v2801
    %v2950 = vunpack.c.l.b16 %v2833
    %v2951 = vunpack.c.l.b16 %v2881
    %v2952 = vunpack.c.l.b16 %v2802
    %v2953 = vunpack.c.l.b16 %v2835
    %v2954 = vunpack.c.l.b16 %v2884
    %v2955 = vunpack.c.l.b16 %v2803
    %v2956 = vld [vmem:[%s3] sm:$0xf]
    %v2957 = vld [vmem:[%s3 + $0x4] sm:$0xf]
    %v2958 = vld [vmem:[%s3 + $0x8] sm:$0xf]
    %v2959 = vld [vmem:[%s3 + $0xc] sm:$0xf]
    %v2960 = vld [vmem:[%s3 + $0x10] sm:$0xf]
    %v2961 = vld [vmem:[%s3 + $0x14] sm:$0xf]
    %v2962 = vld [vmem:[%s3 + $0x18] sm:$0xf]
    %v2963 = vld [vmem:[%s3 + $0x1c] sm:$0xf]
    %v2964 = vld [vmem:[%s3 + $0x20] sm:$0xf]
    %v2965 = vld [vmem:[%s3 + $0x24] sm:$0xf]
    %v2966 = vld [vmem:[%s3 + $0x28] sm:$0xf]
    %v2967 = vld [vmem:[%s3 + $0x2c] sm:$0xf]
    %v2968 = vld [vmem:[%s3 + $0x30] sm:$0xf]
    %v2969 = vld [vmem:[%s3 + $0x34] sm:$0xf]
    %v2970 = vld [vmem:[%s3 + $0x38] sm:$0xf]
    %v2971 = vld [vmem:[%s3 + $0x3c] sm:$0xf]
    %v2972 = vld [vmem:[%s3 + $0x40] sm:$0xf]
    %v2973 = vld [vmem:[%s3 + $0x44] sm:$0xf]
    %v2974 = vld [vmem:[%s3 + $0x48] sm:$0xf]
    %v2975 = vld [vmem:[%s3 + $0x4c] sm:$0xf]
    %v2976 = vld [vmem:[%s3 + $0x50] sm:$0xf]
    %v2977 = vld [vmem:[%s3 + $0x54] sm:$0xf]
    %v2978 = vld [vmem:[%s3 + $0x58] sm:$0xf]
    %v2979 = vld [vmem:[%s3 + $0x5c] sm:$0xf]
    %v2980 = vld [vmem:[%s3 + $0x60] sm:$0xf]
    %v2981 = vld [vmem:[%s3 + $0x64] sm:$0xf]
    %v2982 = vld [vmem:[%s3 + $0x68] sm:$0xf]
    %v2983 = vld [vmem:[%s3 + $0x6c] sm:$0xf]
    %v2984 = vld [vmem:[%s3 + $0x70] sm:$0xf]
    %v2985 = vld [vmem:[%s3 + $0x74] sm:$0xf]
    %v2986 = vld [vmem:[%s3 + $0x78] sm:$0xf]
    %v2987 = vld [vmem:[%s3 + $0x7c] sm:$0xf]
    %v2988 = vld [vmem:[%s3 + $0x80] sm:$0xf]
    %v2989 = vld [vmem:[%s3 + $0x84] sm:$0xf]
    %v2990 = vld [vmem:[%s3 + $0x88] sm:$0xf]
    %v2991 = vld [vmem:[%s3 + $0x8c] sm:$0xf]
    %v2992 = vld [vmem:[%s3 + $0x90] sm:$0xf]
    %v2993 = vld [vmem:[%s3 + $0x94] sm:$0xf]
    %v2994 = vld [vmem:[%s3 + $0x98] sm:$0xf]
    %v2995 = vld [vmem:[%s3 + $0x9c] sm:$0xf]
    %v3000 = vunpack.c.l.b16 %v2821
    %v3001 = vunpack.c.l.b16 %v2863
    %v3002 = vunpack.c.l.b16 %v2796
    %v3003 = vunpack.c.l.b16 %v2837
    %v3004 = vunpack.c.l.b16 %v2887
    %v3005 = vunpack.c.l.b16 %v2804
    %s3006 = scalar_lea.vmem %s3, 160
    %v3007 = vld [vmem:[%s3006] sm:$0xf]
    %v3008 = vld [vmem:[%s3006 + $0x4] sm:$0xf]
    %v3009 = vld [vmem:[%s3006 + $0x8] sm:$0xf]
    %v3010 = vld [vmem:[%s3006 + $0xc] sm:$0xf]
    %v3011 = vld [vmem:[%s3006 + $0x10] sm:$0xf]
    %v3012 = vld [vmem:[%s3006 + $0x14] sm:$0xf]
    %v3013 = vld [vmem:[%s3006 + $0x18] sm:$0xf]
    %v3014 = vld [vmem:[%s3006 + $0x1c] sm:$0xf]
    %v3015 = vld [vmem:[%s3006 + $0x20] sm:$0xf]
    %v3016 = vld [vmem:[%s3006 + $0x24] sm:$0xf]
    %v3017 = vld [vmem:[%s3006 + $0x28] sm:$0xf]
    %v3018 = vld [vmem:[%s3006 + $0x2c] sm:$0xf]
    %v3019 = vld [vmem:[%s3006 + $0x30] sm:$0xf]
    %v3020 = vld [vmem:[%s3006 + $0x34] sm:$0xf]
    %v3021 = vld [vmem:[%s3006 + $0x38] sm:$0xf]
    %v3022 = vld [vmem:[%s3006 + $0x3c] sm:$0xf]
    %v3023 = vld [vmem:[%s3006 + $0x40] sm:$0xf]
    %v3024 = vld [vmem:[%s3006 + $0x44] sm:$0xf]
    %v3025 = vld [vmem:[%s3006 + $0x48] sm:$0xf]
    %v3026 = vld [vmem:[%s3006 + $0x4c] sm:$0xf]
    %v3027 = vld [vmem:[%s3006 + $0x50] sm:$0xf]
    %v3028 = vld [vmem:[%s3006 + $0x54] sm:$0xf]
    %v3029 = vld [vmem:[%s3006 + $0x58] sm:$0xf]
    %v3030 = vld [vmem:[%s3006 + $0x5c] sm:$0xf]
    %v3031 = vld [vmem:[%s3006 + $0x60] sm:$0xf]
    %v3032 = vld [vmem:[%s3006 + $0x64] sm:$0xf]
    %v3033 = vld [vmem:[%s3006 + $0x68] sm:$0xf]
    %v3034 = vld [vmem:[%s3006 + $0x6c] sm:$0xf]
    %v3035 = vld [vmem:[%s3006 + $0x70] sm:$0xf]
    %v3036 = vld [vmem:[%s3006 + $0x74] sm:$0xf]
    %v3037 = vld [vmem:[%s3006 + $0x78] sm:$0xf]
    %v3038 = vld [vmem:[%s3006 + $0x7c] sm:$0xf]
    %v3039 = vld [vmem:[%s3006 + $0x80] sm:$0xf]
    %v3040 = vld [vmem:[%s3006 + $0x84] sm:$0xf]
    %v3041 = vld [vmem:[%s3006 + $0x88] sm:$0xf]
    %v3042 = vld [vmem:[%s3006 + $0x8c] sm:$0xf]
    %v3043 = vld [vmem:[%s3006 + $0x90] sm:$0xf]
    %v3044 = vld [vmem:[%s3006 + $0x94] sm:$0xf]
    %v3045 = vld [vmem:[%s3006 + $0x98] sm:$0xf]
    %v3046 = vld [vmem:[%s3006 + $0x9c] sm:$0xf]
    %v3047 = vpack.c.b16 %v2920, %v2917
    %v3048 = vpack.c.b16 %v2921, %v2918
    %v3049 = vpack.c.b16 %v2922, %v2919
    %v3050 = vpack.c.b16 %v2926, %v2923
    %v3051 = vpack.c.b16 %v2927, %v2924
    %v3052 = vpack.c.b16 %v2928, %v2925
    %v3053 = vpack.c.b16 %v2932, %v2929
    %v3054 = vpack.c.b16 %v2933, %v2930
    %v3055 = vpack.c.b16 %v2934, %v2931
    %v3056 = vpack.c.b16 %v3000, %v2935
    %v3057 = vpack.c.b16 %v3001, %v2936
    %v3058 = vpack.c.b16 %v3002, %v2937
    %v3059 = vpack.c.b16 %v2938, %v2917
    %v3060 = vpack.c.b16 %v2939, %v2918
    %v3061 = vpack.c.b16 %v2940, %v2919
    %v3062 = vpack.c.b16 %v2944, %v2941
    %v3063 = vpack.c.b16 %v2945, %v2942
    %v3064 = vpack.c.b16 %v2946, %v2943
    %v3065 = vpack.c.b16 %v2950, %v2947
    %v3066 = vpack.c.b16 %v2951, %v2948
    %v3067 = vpack.c.b16 %v2952, %v2949
    %v3068 = vpack.c.b16 %v3003, %v2953
    %v3069 = vpack.c.b16 %v3004, %v2954
    %v3070 = vpack.c.b16 %v3005, %v2955
    %v3127 = vunpack.c.l.b16 %v3007
    %v3128 = vunpack.c.l.b16 %v3008
    %v3129 = vunpack.c.l.b16 %v3009
    %v3130 = vunpack.c.l.b16 %v3010
    %v3131 = vunpack.c.l.b16 %v3011
    %v3132 = vunpack.c.l.b16 %v3012
    %v3133 = vunpack.c.l.b16 %v3013
    %v3134 = vunpack.c.l.b16 %v3014
    %v3135 = vunpack.c.l.b16 %v3015
    %v3136 = vunpack.c.l.b16 %v3016
    %v3137 = vunpack.c.l.b16 %v3017
    %v3138 = vunpack.c.l.b16 %v3018
    %v3139 = vunpack.c.l.b16 %v3019
    %v3140 = vunpack.c.l.b16 %v3020
    %v3141 = vunpack.c.l.b16 %v3021
    %v3142 = vunpack.c.l.b16 %v3022
    %v3143 = vunpack.c.l.b16 %v3023
    %v3144 = vunpack.c.l.b16 %v3024
    %v3145 = vunpack.c.l.b16 %v3025
    %v3146 = vunpack.c.l.b16 %v3026
    %v3147 = vunpack.c.l.b16 %v3027
    %v3148 = vunpack.c.l.b16 %v3028
    %v3149 = vunpack.c.l.b16 %v3029
    %v3150 = vunpack.c.l.b16 %v3030
    %v3151 = vunpack.c.l.b16 %v3031
    %v3152 = vunpack.c.l.b16 %v3032
    %v3153 = vunpack.c.l.b16 %v3033
    %v3154 = vunpack.c.l.b16 %v3034
    %v3155 = vunpack.c.l.b16 %v3035
    %v3156 = vunpack.c.l.b16 %v3036
    %v3157 = vunpack.c.l.b16 %v3037
    %v3158 = vunpack.c.l.b16 %v3038
    %v3159 = vunpack.c.l.b16 %v3039
    %v3160 = vunpack.c.l.b16 %v3040
    %v3161 = vunpack.c.l.b16 %v3041
    %v3162 = vunpack.c.l.b16 %v3042
    %v3163 = vunpack.c.l.b16 %v3043
    %v3164 = vunpack.c.l.b16 %v3044
    %v3165 = vunpack.c.l.b16 %v3045
    %v3166 = vunpack.c.l.b16 %v3046
    %v3167 = vpack.c.b16 %v3128, %v3127
    %v3168 = vpack.c.b16 %v3130, %v3129
    %v3169 = vpack.c.b16 %v3132, %v3131
    %v3170 = vpack.c.b16 %v3134, %v3133
    %v3171 = vpack.c.b16 %v3136, %v3135
    %v3172 = vpack.c.b16 %v3138, %v3137
    %v3173 = vpack.c.b16 %v3140, %v3139
    %v3174 = vpack.c.b16 %v3142, %v3141
    %v3175 = vpack.c.b16 %v3144, %v3143
    %v3176 = vpack.c.b16 %v3146, %v3145
    %v3177 = vpack.c.b16 %v3148, %v3147
    %v3178 = vpack.c.b16 %v3150, %v3149
    %v3179 = vpack.c.b16 %v3152, %v3151
    %v3180 = vpack.c.b16 %v3154, %v3153
    %v3181 = vpack.c.b16 %v3156, %v3155
    %v3182 = vpack.c.b16 %v3158, %v3157
    %v3183 = vpack.c.b16 %v3160, %v3159
    %v3184 = vpack.c.b16 %v3162, %v3161
    %v3185 = vpack.c.b16 %v3164, %v3163
    %v3186 = vpack.c.b16 %v3166, %v3165
    %v3208 = vsel %vm597, %v3049, 0
    %v3211 = vsel %vm597, %v3052, 0
    %v3214 = vsel %vm597, %v3055, 0
    %v3217 = vsel %vm597, %v3058, 0
    %v3220 = vsel %vm597, %v3061, 0
    %v3223 = vsel %vm597, %v3064, 0
    %v3226 = vsel %vm597, %v3067, 0
    %v3229 = vsel %vm597, %v3070, 0
    %3231 = vmatpush.bf16.msra.mxu0 %v3174
    %3232 = vmatpush.bf16.msra.mxu0 %v3173
    %3233 = vmatpush.bf16.msra.mxu0 %v3172
    %3234 = vmatpush.bf16.msra.mxu0 %v3171
    %3235 = vmatpush.bf16.msra.mxu0 %v3170
    %3236 = vmatpush.bf16.msra.mxu0 %v3169
    %3237 = vmatpush.bf16.msra.mxu0 %v3168
    %3238 = vmatpush.bf16.msra.mxu0 %v3167
    %3239 = vmatmul.bf16.gmra.mxu0 %v3047
    %v3240 = vpop.f32.mrf.mxu0
    %v3241 = vadd.f32 0.0, %v3240
    %v3242 = vpop.f32.mrf.mxu0
    %v3243 = vadd.f32 0.0, %v3242
    %3244 = vmatmul.bf16.gmra.mxu0 %v3050
    %v3245 = vpop.f32.mrf.mxu0
    %v3246 = vadd.f32 0.0, %v3245
    %v3247 = vpop.f32.mrf.mxu0
    %v3248 = vadd.f32 0.0, %v3247
    %3249 = vmatmul.bf16.gmra.mxu0 %v3053
    %v3250 = vpop.f32.mrf.mxu0
    %v3251 = vadd.f32 0.0, %v3250
    %v3252 = vpop.f32.mrf.mxu0
    %v3253 = vadd.f32 0.0, %v3252
    %3254 = vmatmul.bf16.gmra.mxu0 %v3056
    %v3255 = vpop.f32.mrf.mxu0
    %v3256 = vadd.f32 0.0, %v3255
    %v3257 = vpop.f32.mrf.mxu0
    %v3258 = vadd.f32 0.0, %v3257
    %3259 = vmatmul.bf16.gmra.mxu0 %v3059
    %v3260 = vpop.f32.mrf.mxu0
    %v3261 = vadd.f32 0.0, %v3260
    %v3262 = vpop.f32.mrf.mxu0
    %v3263 = vadd.f32 0.0, %v3262
    %3264 = vmatmul.bf16.gmra.mxu0 %v3062
    %v3265 = vpop.f32.mrf.mxu0
    %v3266 = vadd.f32 0.0, %v3265
    %v3267 = vpop.f32.mrf.mxu0
    %v3268 = vadd.f32 0.0, %v3267
    %3269 = vmatmul.bf16.gmra.mxu0 %v3065
    %v3270 = vpop.f32.mrf.mxu0
    %v3271 = vadd.f32 0.0, %v3270
    %v3272 = vpop.f32.mrf.mxu0
    %v3273 = vadd.f32 0.0, %v3272
    %3274 = vmatmul.bf16.gmra.mxu0 %v3068
    %v3275 = vpop.f32.mrf.mxu0
    %v3276 = vadd.f32 0.0, %v3275
    %v3277 = vpop.f32.mrf.mxu0
    %v3278 = vadd.f32 0.0, %v3277
    %3279 = vdwg.mxu0
    %3280 = vmatpush.bf16.msra.mxu0 %v3182
    %3281 = vmatpush.bf16.msra.mxu0 %v3181
    %3282 = vmatpush.bf16.msra.mxu0 %v3180
    %3283 = vmatpush.bf16.msra.mxu0 %v3179
    %3284 = vmatpush.bf16.msra.mxu0 %v3178
    %3285 = vmatpush.bf16.msra.mxu0 %v3177
    %3286 = vmatpush.bf16.msra.mxu0 %v3176
    %3287 = vmatpush.bf16.msra.mxu0 %v3175
    %3288 = vmatmul.bf16.gmra.mxu0 %v3048
    %v3289 = vpop.f32.mrf.mxu0
    %v3290 = vadd.f32 %v3241, %v3289
    %v3291 = vpop.f32.mrf.mxu0
    %v3292 = vadd.f32 %v3243, %v3291
    %3293 = vmatmul.bf16.gmra.mxu0 %v3051
    %v3294 = vpop.f32.mrf.mxu0
    %v3295 = vadd.f32 %v3246, %v3294
    %v3296 = vpop.f32.mrf.mxu0
    %v3297 = vadd.f32 %v3248, %v3296
    %3298 = vmatmul.bf16.gmra.mxu0 %v3054
    %v3299 = vpop.f32.mrf.mxu0
    %v3300 = vadd.f32 %v3251, %v3299
    %v3301 = vpop.f32.mrf.mxu0
    %v3302 = vadd.f32 %v3253, %v3301
    %3303 = vmatmul.bf16.gmra.mxu0 %v3057
    %v3304 = vpop.f32.mrf.mxu0
    %v3305 = vadd.f32 %v3256, %v3304
    %v3306 = vpop.f32.mrf.mxu0
    %v3307 = vadd.f32 %v3258, %v3306
    %3308 = vmatmul.bf16.gmra.mxu0 %v3060
    %v3309 = vpop.f32.mrf.mxu0
    %v3310 = vadd.f32 %v3261, %v3309
    %v3311 = vpop.f32.mrf.mxu0
    %v3312 = vadd.f32 %v3263, %v3311
    %3313 = vmatmul.bf16.gmra.mxu0 %v3063
    %v3314 = vpop.f32.mrf.mxu0
    %v3315 = vadd.f32 %v3266, %v3314
    %v3316 = vpop.f32.mrf.mxu0
    %v3317 = vadd.f32 %v3268, %v3316
    %3318 = vmatmul.bf16.gmra.mxu0 %v3066
    %v3319 = vpop.f32.mrf.mxu0
    %v3320 = vadd.f32 %v3271, %v3319
    %v3321 = vpop.f32.mrf.mxu0
    %v3322 = vadd.f32 %v3273, %v3321
    %3323 = vmatmul.bf16.gmra.mxu0 %v3069
    %v3324 = vpop.f32.mrf.mxu0
    %v3325 = vadd.f32 %v3276, %v3324
    %v3326 = vpop.f32.mrf.mxu0
    %v3327 = vadd.f32 %v3278, %v3326
    %3328 = vdwg.mxu0
    %3329 = vmatpush.bf16.msra.mxu0 0
    %3330 = vmatpush.bf16.msra.mxu0 0
    %3331 = vmatpush.bf16.msra.mxu0 0
    %3332 = vmatpush.bf16.msra.mxu0 0
    %3333 = vmatpush.bf16.msra.mxu0 %v3186
    %3334 = vmatpush.bf16.msra.mxu0 %v3185
    %3335 = vmatpush.bf16.msra.mxu0 %v3184
    %3336 = vmatpush.bf16.msra.mxu0 %v3183
    %3337 = vmatmul.bf16.gmra.mxu0 %v3208
    %v3338 = vpop.f32.mrf.mxu0
    %v3339 = vadd.f32 %v3290, %v3338
    %v3340 = vpop.f32.mrf.mxu0
    %v3341 = vadd.f32 %v3292, %v3340
    %3342 = vmatmul.bf16.gmra.mxu0 %v3211
    %v3343 = vpop.f32.mrf.mxu0
    %v3344 = vadd.f32 %v3295, %v3343
    %v3345 = vpop.f32.mrf.mxu0
    %v3346 = vadd.f32 %v3297, %v3345
    %3347 = vmatmul.bf16.gmra.mxu0 %v3214
    %v3348 = vpop.f32.mrf.mxu0
    %v3349 = vadd.f32 %v3300, %v3348
    %v3350 = vpop.f32.mrf.mxu0
    %v3351 = vadd.f32 %v3302, %v3350
    %3352 = vmatmul.bf16.gmra.mxu0 %v3217
    %v3353 = vpop.f32.mrf.mxu0
    %v3354 = vadd.f32 %v3305, %v3353
    %v3355 = vpop.f32.mrf.mxu0
    %v3356 = vadd.f32 %v3307, %v3355
    %3357 = vmatmul.bf16.gmra.mxu0 %v3220
    %v3358 = vpop.f32.mrf.mxu0
    %v3359 = vadd.f32 %v3310, %v3358
    %v3360 = vpop.f32.mrf.mxu0
    %v3361 = vadd.f32 %v3312, %v3360
    %3362 = vmatmul.bf16.gmra.mxu0 %v3223
    %v3363 = vpop.f32.mrf.mxu0
    %v3364 = vadd.f32 %v3315, %v3363
    %v3365 = vpop.f32.mrf.mxu0
    %v3366 = vadd.f32 %v3317, %v3365
    %3367 = vmatmul.bf16.gmra.mxu0 %v3226
    %v3368 = vpop.f32.mrf.mxu0
    %v3369 = vadd.f32 %v3320, %v3368
    %v3370 = vpop.f32.mrf.mxu0
    %v3371 = vadd.f32 %v3322, %v3370
    %3372 = vmatmul.bf16.gmra.mxu0 %v3229
    %v3373 = vpop.f32.mrf.mxu0
    %v3374 = vadd.f32 %v3325, %v3373
    %v3375 = vpop.f32.mrf.mxu0
    %v3376 = vadd.f32 %v3327, %v3375
    %3377 = vdwg.mxu0
    %v3378 = vpack.c.b16 %v2917, %v2917
    %v3379 = vpack.c.b16 %v2918, %v2918
    %v3380 = vpack.c.b16 %v2919, %v2919
    %v3381 = vpack.c.b16 %v2923, %v2920
    %v3382 = vpack.c.b16 %v2924, %v2921
    %v3383 = vpack.c.b16 %v2925, %v2922
    %v3384 = vpack.c.b16 %v2929, %v2926
    %v3385 = vpack.c.b16 %v2930, %v2927
    %v3386 = vpack.c.b16 %v2931, %v2928
    %v3387 = vpack.c.b16 %v2935, %v2932
    %v3388 = vpack.c.b16 %v2936, %v2933
    %v3389 = vpack.c.b16 %v2937, %v2934
    %v3390 = vpack.c.b16 %v2941, %v2938
    %v3391 = vpack.c.b16 %v2942, %v2939
    %v3392 = vpack.c.b16 %v2943, %v2940
    %v3393 = vpack.c.b16 %v2947, %v2944
    %v3394 = vpack.c.b16 %v2948, %v2945
    %v3395 = vpack.c.b16 %v2949, %v2946
    %v3396 = vpack.c.b16 %v2953, %v2950
    %v3397 = vpack.c.b16 %v2954, %v2951
    %v3398 = vpack.c.b16 %v2955, %v2952
    %v3453 = vunpack.c.l.b16 %v2956
    %v3454 = vunpack.c.l.b16 %v2957
    %v3455 = vunpack.c.l.b16 %v2958
    %v3456 = vunpack.c.l.b16 %v2959
    %v3457 = vunpack.c.l.b16 %v2960
    %v3458 = vunpack.c.l.b16 %v2961
    %v3459 = vunpack.c.l.b16 %v2962
    %v3460 = vunpack.c.l.b16 %v2963
    %v3461 = vunpack.c.l.b16 %v2964
    %v3462 = vunpack.c.l.b16 %v2965
    %v3463 = vunpack.c.l.b16 %v2966
    %v3464 = vunpack.c.l.b16 %v2967
    %v3465 = vunpack.c.l.b16 %v2968
    %v3466 = vunpack.c.l.b16 %v2969
    %v3467 = vunpack.c.l.b16 %v2970
    %v3468 = vunpack.c.l.b16 %v2971
    %v3469 = vunpack.c.l.b16 %v2972
    %v3470 = vunpack.c.l.b16 %v2973
    %v3471 = vunpack.c.l.b16 %v2974
    %v3472 = vunpack.c.l.b16 %v2975
    %v3473 = vunpack.c.l.b16 %v2976
    %v3474 = vunpack.c.l.b16 %v2977
    %v3475 = vunpack.c.l.b16 %v2978
    %v3476 = vunpack.c.l.b16 %v2979
    %v3477 = vunpack.c.l.b16 %v2980
    %v3478 = vunpack.c.l.b16 %v2981
    %v3479 = vunpack.c.l.b16 %v2982
    %v3480 = vunpack.c.l.b16 %v2983
    %v3481 = vunpack.c.l.b16 %v2984
    %v3482 = vunpack.c.l.b16 %v2985
    %v3483 = vunpack.c.l.b16 %v2986
    %v3484 = vunpack.c.l.b16 %v2987
    %v3485 = vunpack.c.l.b16 %v2988
    %v3486 = vunpack.c.l.b16 %v2989
    %v3487 = vunpack.c.l.b16 %v2990
    %v3488 = vunpack.c.l.b16 %v2991
    %v3489 = vunpack.c.l.b16 %v2992
    %v3490 = vunpack.c.l.b16 %v2993
    %v3491 = vunpack.c.l.b16 %v2994
    %v3492 = vunpack.c.l.b16 %v2995
    %v3493 = vpack.c.b16 %v3454, %v3453
    %v3494 = vpack.c.b16 %v3456, %v3455
    %v3495 = vpack.c.b16 %v3458, %v3457
    %v3496 = vpack.c.b16 %v3460, %v3459
    %v3497 = vpack.c.b16 %v3462, %v3461
    %v3498 = vpack.c.b16 %v3464, %v3463
    %v3499 = vpack.c.b16 %v3466, %v3465
    %v3500 = vpack.c.b16 %v3468, %v3467
    %v3501 = vpack.c.b16 %v3470, %v3469
    %v3502 = vpack.c.b16 %v3472, %v3471
    %v3503 = vpack.c.b16 %v3474, %v3473
    %v3504 = vpack.c.b16 %v3476, %v3475
    %v3505 = vpack.c.b16 %v3478, %v3477
    %v3506 = vpack.c.b16 %v3480, %v3479
    %v3507 = vpack.c.b16 %v3482, %v3481
    %v3508 = vpack.c.b16 %v3484, %v3483
    %v3509 = vpack.c.b16 %v3486, %v3485
    %v3510 = vpack.c.b16 %v3488, %v3487
    %v3511 = vpack.c.b16 %v3490, %v3489
    %v3512 = vpack.c.b16 %v3492, %v3491
    %v3534 = vsel %vm597, %v3380, 0
    %v3537 = vsel %vm597, %v3383, 0
    %v3540 = vsel %vm597, %v3386, 0
    %v3543 = vsel %vm597, %v3389, 0
    %v3546 = vsel %vm597, %v3392, 0
    %v3549 = vsel %vm597, %v3395, 0
    %v3552 = vsel %vm597, %v3398, 0
    %3554 = vmatpush.bf16.msra.mxu0 %v3500
    %3555 = vmatpush.bf16.msra.mxu0 %v3499
    %3556 = vmatpush.bf16.msra.mxu0 %v3498
    %3557 = vmatpush.bf16.msra.mxu0 %v3497
    %3558 = vmatpush.bf16.msra.mxu0 %v3496
    %3559 = vmatpush.bf16.msra.mxu0 %v3495
    %3560 = vmatpush.bf16.msra.mxu0 %v3494
    %3561 = vmatpush.bf16.msra.mxu0 %v3493
    %3562 = vmatmul.bf16.gmra.mxu0 %v3378
    %v3563 = vpop.f32.mrf.mxu0
    %v3564 = vadd.f32 %v3339, %v3563
    %v3565 = vpop.f32.mrf.mxu0
    %v3566 = vadd.f32 %v3341, %v3565
    %3567 = vmatmul.bf16.gmra.mxu0 %v3381
    %v3568 = vpop.f32.mrf.mxu0
    %v3569 = vadd.f32 %v3344, %v3568
    %v3570 = vpop.f32.mrf.mxu0
    %v3571 = vadd.f32 %v3346, %v3570
    %3572 = vmatmul.bf16.gmra.mxu0 %v3384
    %v3573 = vpop.f32.mrf.mxu0
    %v3574 = vadd.f32 %v3349, %v3573
    %v3575 = vpop.f32.mrf.mxu0
    %v3576 = vadd.f32 %v3351, %v3575
    %3577 = vmatmul.bf16.gmra.mxu0 %v3387
    %v3578 = vpop.f32.mrf.mxu0
    %v3579 = vadd.f32 %v3354, %v3578
    %v3580 = vpop.f32.mrf.mxu0
    %v3581 = vadd.f32 %v3356, %v3580
    %3582 = vmatmul.bf16.gmra.mxu0 %v3378
    %v3583 = vpop.f32.mrf.mxu0
    %v3584 = vadd.f32 %v3359, %v3583
    %v3585 = vpop.f32.mrf.mxu0
    %v3586 = vadd.f32 %v3361, %v3585
    %3587 = vmatmul.bf16.gmra.mxu0 %v3390
    %v3588 = vpop.f32.mrf.mxu0
    %v3589 = vadd.f32 %v3364, %v3588
    %v3590 = vpop.f32.mrf.mxu0
    %v3591 = vadd.f32 %v3366, %v3590
    %3592 = vmatmul.bf16.gmra.mxu0 %v3393
    %v3593 = vpop.f32.mrf.mxu0
    %v3594 = vadd.f32 %v3369, %v3593
    %v3595 = vpop.f32.mrf.mxu0
    %v3596 = vadd.f32 %v3371, %v3595
    %3597 = vmatmul.bf16.gmra.mxu0 %v3396
    %v3598 = vpop.f32.mrf.mxu0
    %v3599 = vadd.f32 %v3374, %v3598
    %v3600 = vpop.f32.mrf.mxu0
    %v3601 = vadd.f32 %v3376, %v3600
    %3602 = vdwg.mxu0
    %3603 = vmatpush.bf16.msra.mxu0 %v3508
    %3604 = vmatpush.bf16.msra.mxu0 %v3507
    %3605 = vmatpush.bf16.msra.mxu0 %v3506
    %3606 = vmatpush.bf16.msra.mxu0 %v3505
    %3607 = vmatpush.bf16.msra.mxu0 %v3504
    %3608 = vmatpush.bf16.msra.mxu0 %v3503
    %3609 = vmatpush.bf16.msra.mxu0 %v3502
    %3610 = vmatpush.bf16.msra.mxu0 %v3501
    %3611 = vmatmul.bf16.gmra.mxu0 %v3379
    %v3612 = vpop.f32.mrf.mxu0
    %v3613 = vadd.f32 %v3564, %v3612
    %v3614 = vpop.f32.mrf.mxu0
    %v3615 = vadd.f32 %v3566, %v3614
    %3616 = vmatmul.bf16.gmra.mxu0 %v3382
    %v3617 = vpop.f32.mrf.mxu0
    %v3618 = vadd.f32 %v3569, %v3617
    %v3619 = vpop.f32.mrf.mxu0
    %v3620 = vadd.f32 %v3571, %v3619
    %3621 = vmatmul.bf16.gmra.mxu0 %v3385
    %v3622 = vpop.f32.mrf.mxu0
    %v3623 = vadd.f32 %v3574, %v3622
    %v3624 = vpop.f32.mrf.mxu0
    %v3625 = vadd.f32 %v3576, %v3624
    %3626 = vmatmul.bf16.gmra.mxu0 %v3388
    %v3627 = vpop.f32.mrf.mxu0
    %v3628 = vadd.f32 %v3579, %v3627
    %v3629 = vpop.f32.mrf.mxu0
    %v3630 = vadd.f32 %v3581, %v3629
    %3631 = vmatmul.bf16.gmra.mxu0 %v3379
    %v3632 = vpop.f32.mrf.mxu0
    %v3633 = vadd.f32 %v3584, %v3632
    %v3634 = vpop.f32.mrf.mxu0
    %v3635 = vadd.f32 %v3586, %v3634
    %3636 = vmatmul.bf16.gmra.mxu0 %v3391
    %v3637 = vpop.f32.mrf.mxu0
    %v3638 = vadd.f32 %v3589, %v3637
    %v3639 = vpop.f32.mrf.mxu0
    %v3640 = vadd.f32 %v3591, %v3639
    %3641 = vmatmul.bf16.gmra.mxu0 %v3394
    %v3642 = vpop.f32.mrf.mxu0
    %v3643 = vadd.f32 %v3594, %v3642
    %v3644 = vpop.f32.mrf.mxu0
    %v3645 = vadd.f32 %v3596, %v3644
    %3646 = vmatmul.bf16.gmra.mxu0 %v3397
    %v3647 = vpop.f32.mrf.mxu0
    %v3648 = vadd.f32 %v3599, %v3647
    %v3649 = vpop.f32.mrf.mxu0
    %v3650 = vadd.f32 %v3601, %v3649
    %3651 = vdwg.mxu0
    %3652 = vmatpush.bf16.msra.mxu0 0
    %3653 = vmatpush.bf16.msra.mxu0 0
    %3654 = vmatpush.bf16.msra.mxu0 0
    %3655 = vmatpush.bf16.msra.mxu0 0
    %3656 = vmatpush.bf16.msra.mxu0 %v3512
    %3657 = vmatpush.bf16.msra.mxu0 %v3511
    %3658 = vmatpush.bf16.msra.mxu0 %v3510
    %3659 = vmatpush.bf16.msra.mxu0 %v3509
    %3660 = vmatmul.bf16.gmra.mxu0 %v3534
    %v3661 = vpop.f32.mrf.mxu0
    %v3662 = vadd.f32 %v3613, %v3661
    %v3663 = vpop.f32.mrf.mxu0
    %v3664 = vadd.f32 %v3615, %v3663
    %3665 = vmatmul.bf16.gmra.mxu0 %v3537
    %v3666 = vpop.f32.mrf.mxu0
    %v3667 = vadd.f32 %v3618, %v3666
    %v3668 = vpop.f32.mrf.mxu0
    %v3669 = vadd.f32 %v3620, %v3668
    %3670 = vmatmul.bf16.gmra.mxu0 %v3540
    %v3671 = vpop.f32.mrf.mxu0
    %v3672 = vadd.f32 %v3623, %v3671
    %v3673 = vpop.f32.mrf.mxu0
    %v3674 = vadd.f32 %v3625, %v3673
    %3675 = vmatmul.bf16.gmra.mxu0 %v3543
    %v3676 = vpop.f32.mrf.mxu0
    %v3677 = vadd.f32 %v3628, %v3676
    %v3678 = vpop.f32.mrf.mxu0
    %v3679 = vadd.f32 %v3630, %v3678
    %3680 = vmatmul.bf16.gmra.mxu0 %v3534
    %v3681 = vpop.f32.mrf.mxu0
    %v3682 = vadd.f32 %v3633, %v3681
    %v3683 = vpop.f32.mrf.mxu0
    %v3684 = vadd.f32 %v3635, %v3683
    %3685 = vmatmul.bf16.gmra.mxu0 %v3546
    %v3686 = vpop.f32.mrf.mxu0
    %v3687 = vadd.f32 %v3638, %v3686
    %v3688 = vpop.f32.mrf.mxu0
    %v3689 = vadd.f32 %v3640, %v3688
    %3690 = vmatmul.bf16.gmra.mxu0 %v3549
    %v3691 = vpop.f32.mrf.mxu0
    %v3692 = vadd.f32 %v3643, %v3691
    %v3693 = vpop.f32.mrf.mxu0
    %v3694 = vadd.f32 %v3645, %v3693
    %3695 = vmatmul.bf16.gmra.mxu0 %v3552
    %v3696 = vpop.f32.mrf.mxu0
    %v3697 = vadd.f32 %v3648, %v3696
    %v3698 = vpop.f32.mrf.mxu0
    %v3699 = vadd.f32 %v3650, %v3698
    %3700 = vdwg.mxu0
    %v3705 = vunpack.c.l.b16 %v2823
    %v3706 = vunpack.c.l.b16 %v2866
    %v3707 = vunpack.c.l.b16 %v2797
    %v3708 = vunpack.c.l.b16 %v2839
    %v3709 = vunpack.c.l.b16 %v2890
    %v3710 = vunpack.c.l.b16 %v2805
    %s3711 = scalar_lea.vmem %s3, 320
    %v3712 = vld [vmem:[%s3711] sm:$0xf]
    %v3713 = vld [vmem:[%s3711 + $0x4] sm:$0xf]
    %v3714 = vld [vmem:[%s3711 + $0x8] sm:$0xf]
    %v3715 = vld [vmem:[%s3711 + $0xc] sm:$0xf]
    %v3716 = vld [vmem:[%s3711 + $0x10] sm:$0xf]
    %v3717 = vld [vmem:[%s3711 + $0x14] sm:$0xf]
    %v3718 = vld [vmem:[%s3711 + $0x18] sm:$0xf]
    %v3719 = vld [vmem:[%s3711 + $0x1c] sm:$0xf]
    %v3720 = vld [vmem:[%s3711 + $0x20] sm:$0xf]
    %v3721 = vld [vmem:[%s3711 + $0x24] sm:$0xf]
    %v3722 = vld [vmem:[%s3711 + $0x28] sm:$0xf]
    %v3723 = vld [vmem:[%s3711 + $0x2c] sm:$0xf]
    %v3724 = vld [vmem:[%s3711 + $0x30] sm:$0xf]
    %v3725 = vld [vmem:[%s3711 + $0x34] sm:$0xf]
    %v3726 = vld [vmem:[%s3711 + $0x38] sm:$0xf]
    %v3727 = vld [vmem:[%s3711 + $0x3c] sm:$0xf]
    %v3728 = vld [vmem:[%s3711 + $0x40] sm:$0xf]
    %v3729 = vld [vmem:[%s3711 + $0x44] sm:$0xf]
    %v3730 = vld [vmem:[%s3711 + $0x48] sm:$0xf]
    %v3731 = vld [vmem:[%s3711 + $0x4c] sm:$0xf]
    %v3732 = vld [vmem:[%s3711 + $0x50] sm:$0xf]
    %v3733 = vld [vmem:[%s3711 + $0x54] sm:$0xf]
    %v3734 = vld [vmem:[%s3711 + $0x58] sm:$0xf]
    %v3735 = vld [vmem:[%s3711 + $0x5c] sm:$0xf]
    %v3736 = vld [vmem:[%s3711 + $0x60] sm:$0xf]
    %v3737 = vld [vmem:[%s3711 + $0x64] sm:$0xf]
    %v3738 = vld [vmem:[%s3711 + $0x68] sm:$0xf]
    %v3739 = vld [vmem:[%s3711 + $0x6c] sm:$0xf]
    %v3740 = vld [vmem:[%s3711 + $0x70] sm:$0xf]
    %v3741 = vld [vmem:[%s3711 + $0x74] sm:$0xf]
    %v3742 = vld [vmem:[%s3711 + $0x78] sm:$0xf]
    %v3743 = vld [vmem:[%s3711 + $0x7c] sm:$0xf]
    %v3744 = vld [vmem:[%s3711 + $0x80] sm:$0xf]
    %v3745 = vld [vmem:[%s3711 + $0x84] sm:$0xf]
    %v3746 = vld [vmem:[%s3711 + $0x88] sm:$0xf]
    %v3747 = vld [vmem:[%s3711 + $0x8c] sm:$0xf]
    %v3748 = vld [vmem:[%s3711 + $0x90] sm:$0xf]
    %v3749 = vld [vmem:[%s3711 + $0x94] sm:$0xf]
    %v3750 = vld [vmem:[%s3711 + $0x98] sm:$0xf]
    %v3751 = vld [vmem:[%s3711 + $0x9c] sm:$0xf]
    %v3752 = vpack.c.b16 %v3705, %v3000
    %v3753 = vpack.c.b16 %v3706, %v3001
    %v3754 = vpack.c.b16 %v3707, %v3002
    %v3755 = vpack.c.b16 %v3708, %v3003
    %v3756 = vpack.c.b16 %v3709, %v3004
    %v3757 = vpack.c.b16 %v3710, %v3005
    %v3802 = vunpack.c.l.b16 %v3712
    %v3803 = vunpack.c.l.b16 %v3713
    %v3804 = vunpack.c.l.b16 %v3714
    %v3805 = vunpack.c.l.b16 %v3715
    %v3806 = vunpack.c.l.b16 %v3716
    %v3807 = vunpack.c.l.b16 %v3717
    %v3808 = vunpack.c.l.b16 %v3718
    %v3809 = vunpack.c.l.b16 %v3719
    %v3810 = vunpack.c.l.b16 %v3720
    %v3811 = vunpack.c.l.b16 %v3721
    %v3812 = vunpack.c.l.b16 %v3722
    %v3813 = vunpack.c.l.b16 %v3723
    %v3814 = vunpack.c.l.b16 %v3724
    %v3815 = vunpack.c.l.b16 %v3725
    %v3816 = vunpack.c.l.b16 %v3726
    %v3817 = vunpack.c.l.b16 %v3727
    %v3818 = vunpack.c.l.b16 %v3728
    %v3819 = vunpack.c.l.b16 %v3729
    %v3820 = vunpack.c.l.b16 %v3730
    %v3821 = vunpack.c.l.b16 %v3731
    %v3822 = vunpack.c.l.b16 %v3732
    %v3823 = vunpack.c.l.b16 %v3733
    %v3824 = vunpack.c.l.b16 %v3734
    %v3825 = vunpack.c.l.b16 %v3735
    %v3826 = vunpack.c.l.b16 %v3736
    %v3827 = vunpack.c.l.b16 %v3737
    %v3828 = vunpack.c.l.b16 %v3738
    %v3829 = vunpack.c.l.b16 %v3739
    %v3830 = vunpack.c.l.b16 %v3740
    %v3831 = vunpack.c.l.b16 %v3741
    %v3832 = vunpack.c.l.b16 %v3742
    %v3833 = vunpack.c.l.b16 %v3743
    %v3834 = vunpack.c.l.b16 %v3744
    %v3835 = vunpack.c.l.b16 %v3745
    %v3836 = vunpack.c.l.b16 %v3746
    %v3837 = vunpack.c.l.b16 %v3747
    %v3838 = vunpack.c.l.b16 %v3748
    %v3839 = vunpack.c.l.b16 %v3749
    %v3840 = vunpack.c.l.b16 %v3750
    %v3841 = vunpack.c.l.b16 %v3751
    %v3842 = vpack.c.b16 %v3803, %v3802
    %v3843 = vpack.c.b16 %v3805, %v3804
    %v3844 = vpack.c.b16 %v3807, %v3806
    %v3845 = vpack.c.b16 %v3809, %v3808
    %v3846 = vpack.c.b16 %v3811, %v3810
    %v3847 = vpack.c.b16 %v3813, %v3812
    %v3848 = vpack.c.b16 %v3815, %v3814
    %v3849 = vpack.c.b16 %v3817, %v3816
    %v3850 = vpack.c.b16 %v3819, %v3818
    %v3851 = vpack.c.b16 %v3821, %v3820
    %v3852 = vpack.c.b16 %v3823, %v3822
    %v3853 = vpack.c.b16 %v3825, %v3824
    %v3854 = vpack.c.b16 %v3827, %v3826
    %v3855 = vpack.c.b16 %v3829, %v3828
    %v3856 = vpack.c.b16 %v3831, %v3830
    %v3857 = vpack.c.b16 %v3833, %v3832
    %v3858 = vpack.c.b16 %v3835, %v3834
    %v3859 = vpack.c.b16 %v3837, %v3836
    %v3860 = vpack.c.b16 %v3839, %v3838
    %v3861 = vpack.c.b16 %v3841, %v3840
    %v3883 = vsel %vm597, %v3754, 0
    %v3886 = vsel %vm597, %v3757, 0
    %3888 = vmatpush.bf16.msra.mxu0 %v3849
    %3889 = vmatpush.bf16.msra.mxu0 %v3848
    %3890 = vmatpush.bf16.msra.mxu0 %v3847
    %3891 = vmatpush.bf16.msra.mxu0 %v3846
    %3892 = vmatpush.bf16.msra.mxu0 %v3845
    %3893 = vmatpush.bf16.msra.mxu0 %v3844
    %3894 = vmatpush.bf16.msra.mxu0 %v3843
    %3895 = vmatpush.bf16.msra.mxu0 %v3842
    %3896 = vmatmul.bf16.gmra.mxu0 %v3381
    %v3897 = vpop.f32.mrf.mxu0
    %v3898 = vadd.f32 0.0, %v3897
    %v3899 = vpop.f32.mrf.mxu0
    %v3900 = vadd.f32 0.0, %v3899
    %3901 = vmatmul.bf16.gmra.mxu0 %v3384
    %v3902 = vpop.f32.mrf.mxu0
    %v3903 = vadd.f32 0.0, %v3902
    %v3904 = vpop.f32.mrf.mxu0
    %v3905 = vadd.f32 0.0, %v3904
    %3906 = vmatmul.bf16.gmra.mxu0 %v3387
    %v3907 = vpop.f32.mrf.mxu0
    %v3908 = vadd.f32 0.0, %v3907
    %v3909 = vpop.f32.mrf.mxu0
    %v3910 = vadd.f32 0.0, %v3909
    %3911 = vmatmul.bf16.gmra.mxu0 %v3752
    %v3912 = vpop.f32.mrf.mxu0
    %v3913 = vadd.f32 0.0, %v3912
    %v3914 = vpop.f32.mrf.mxu0
    %v3915 = vadd.f32 0.0, %v3914
    %3916 = vmatmul.bf16.gmra.mxu0 %v3390
    %v3917 = vpop.f32.mrf.mxu0
    %v3918 = vadd.f32 0.0, %v3917
    %v3919 = vpop.f32.mrf.mxu0
    %v3920 = vadd.f32 0.0, %v3919
    %3921 = vmatmul.bf16.gmra.mxu0 %v3393
    %v3922 = vpop.f32.mrf.mxu0
    %v3923 = vadd.f32 0.0, %v3922
    %v3924 = vpop.f32.mrf.mxu0
    %v3925 = vadd.f32 0.0, %v3924
    %3926 = vmatmul.bf16.gmra.mxu0 %v3396
    %v3927 = vpop.f32.mrf.mxu0
    %v3928 = vadd.f32 0.0, %v3927
    %v3929 = vpop.f32.mrf.mxu0
    %v3930 = vadd.f32 0.0, %v3929
    %3931 = vmatmul.bf16.gmra.mxu0 %v3755
    %v3932 = vpop.f32.mrf.mxu0
    %v3933 = vadd.f32 0.0, %v3932
    %v3934 = vpop.f32.mrf.mxu0
    %v3935 = vadd.f32 0.0, %v3934
    %3936 = vdwg.mxu0
    %3937 = vmatpush.bf16.msra.mxu0 %v3857
    %3938 = vmatpush.bf16.msra.mxu0 %v3856
    %3939 = vmatpush.bf16.msra.mxu0 %v3855
    %3940 = vmatpush.bf16.msra.mxu0 %v3854
    %3941 = vmatpush.bf16.msra.mxu0 %v3853
    %3942 = vmatpush.bf16.msra.mxu0 %v3852
    %3943 = vmatpush.bf16.msra.mxu0 %v3851
    %3944 = vmatpush.bf16.msra.mxu0 %v3850
    %3945 = vmatmul.bf16.gmra.mxu0 %v3382
    %v3946 = vpop.f32.mrf.mxu0
    %v3947 = vadd.f32 %v3898, %v3946
    %v3948 = vpop.f32.mrf.mxu0
    %v3949 = vadd.f32 %v3900, %v3948
    %3950 = vmatmul.bf16.gmra.mxu0 %v3385
    %v3951 = vpop.f32.mrf.mxu0
    %v3952 = vadd.f32 %v3903, %v3951
    %v3953 = vpop.f32.mrf.mxu0
    %v3954 = vadd.f32 %v3905, %v3953
    %3955 = vmatmul.bf16.gmra.mxu0 %v3388
    %v3956 = vpop.f32.mrf.mxu0
    %v3957 = vadd.f32 %v3908, %v3956
    %v3958 = vpop.f32.mrf.mxu0
    %v3959 = vadd.f32 %v3910, %v3958
    %3960 = vmatmul.bf16.gmra.mxu0 %v3753
    %v3961 = vpop.f32.mrf.mxu0
    %v3962 = vadd.f32 %v3913, %v3961
    %v3963 = vpop.f32.mrf.mxu0
    %v3964 = vadd.f32 %v3915, %v3963
    %3965 = vmatmul.bf16.gmra.mxu0 %v3391
    %v3966 = vpop.f32.mrf.mxu0
    %v3967 = vadd.f32 %v3918, %v3966
    %v3968 = vpop.f32.mrf.mxu0
    %v3969 = vadd.f32 %v3920, %v3968
    %3970 = vmatmul.bf16.gmra.mxu0 %v3394
    %v3971 = vpop.f32.mrf.mxu0
    %v3972 = vadd.f32 %v3923, %v3971
    %v3973 = vpop.f32.mrf.mxu0
    %v3974 = vadd.f32 %v3925, %v3973
    %3975 = vmatmul.bf16.gmra.mxu0 %v3397
    %v3976 = vpop.f32.mrf.mxu0
    %v3977 = vadd.f32 %v3928, %v3976
    %v3978 = vpop.f32.mrf.mxu0
    %v3979 = vadd.f32 %v3930, %v3978
    %3980 = vmatmul.bf16.gmra.mxu0 %v3756
    %v3981 = vpop.f32.mrf.mxu0
    %v3982 = vadd.f32 %v3933, %v3981
    %v3983 = vpop.f32.mrf.mxu0
    %v3984 = vadd.f32 %v3935, %v3983
    %3985 = vdwg.mxu0
    %3986 = vmatpush.bf16.msra.mxu0 0
    %3987 = vmatpush.bf16.msra.mxu0 0
    %3988 = vmatpush.bf16.msra.mxu0 0
    %3989 = vmatpush.bf16.msra.mxu0 0
    %3990 = vmatpush.bf16.msra.mxu0 %v3861
    %3991 = vmatpush.bf16.msra.mxu0 %v3860
    %3992 = vmatpush.bf16.msra.mxu0 %v3859
    %3993 = vmatpush.bf16.msra.mxu0 %v3858
    %3994 = vmatmul.bf16.gmra.mxu0 %v3537
    %v3995 = vpop.f32.mrf.mxu0
    %v3996 = vadd.f32 %v3947, %v3995
    %v3997 = vpop.f32.mrf.mxu0
    %v3998 = vadd.f32 %v3949, %v3997
    %3999 = vmatmul.bf16.gmra.mxu0 %v3540
    %v4000 = vpop.f32.mrf.mxu0
    %v4001 = vadd.f32 %v3952, %v4000
    %v4002 = vpop.f32.mrf.mxu0
    %v4003 = vadd.f32 %v3954, %v4002
    %4004 = vmatmul.bf16.gmra.mxu0 %v3543
    %v4005 = vpop.f32.mrf.mxu0
    %v4006 = vadd.f32 %v3957, %v4005
    %v4007 = vpop.f32.mrf.mxu0
    %v4008 = vadd.f32 %v3959, %v4007
    %4009 = vmatmul.bf16.gmra.mxu0 %v3883
    %v4010 = vpop.f32.mrf.mxu0
    %v4011 = vadd.f32 %v3962, %v4010
    %v4012 = vpop.f32.mrf.mxu0
    %v4013 = vadd.f32 %v3964, %v4012
    %4014 = vmatmul.bf16.gmra.mxu0 %v3546
    %v4015 = vpop.f32.mrf.mxu0
    %v4016 = vadd.f32 %v3967, %v4015
    %v4017 = vpop.f32.mrf.mxu0
    %v4018 = vadd.f32 %v3969, %v4017
    %4019 = vmatmul.bf16.gmra.mxu0 %v3549
    %v4020 = vpop.f32.mrf.mxu0
    %v4021 = vadd.f32 %v3972, %v4020
    %v4022 = vpop.f32.mrf.mxu0
    %v4023 = vadd.f32 %v3974, %v4022
    %4024 = vmatmul.bf16.gmra.mxu0 %v3552
    %v4025 = vpop.f32.mrf.mxu0
    %v4026 = vadd.f32 %v3977, %v4025
    %v4027 = vpop.f32.mrf.mxu0
    %v4028 = vadd.f32 %v3979, %v4027
    %4029 = vmatmul.bf16.gmra.mxu0 %v3886
    %v4030 = vpop.f32.mrf.mxu0
    %v4031 = vadd.f32 %v3982, %v4030
    %v4032 = vpop.f32.mrf.mxu0
    %v4033 = vadd.f32 %v3984, %v4032
    %4034 = vdwg.mxu0
    %v4035 = vadd.f32 %v3662, %v3996
    %v4036 = vadd.f32 %v3664, %v3998
    %v4037 = vadd.f32 %v3667, %v4001
    %v4038 = vadd.f32 %v3669, %v4003
    %v4039 = vadd.f32 %v3672, %v4006
    %v4040 = vadd.f32 %v3674, %v4008
    %v4041 = vadd.f32 %v3677, %v4011
    %v4042 = vadd.f32 %v3679, %v4013
    %v4043 = vadd.f32 %v3682, %v4016
    %v4044 = vadd.f32 %v3684, %v4018
    %v4045 = vadd.f32 %v3687, %v4021
    %v4046 = vadd.f32 %v3689, %v4023
    %v4047 = vadd.f32 %v3692, %v4026
    %v4048 = vadd.f32 %v3694, %v4028
    %v4049 = vadd.f32 %v3697, %v4031
    %v4050 = vadd.f32 %v3699, %v4033
    %s4051 = scalar_lea.vmem %s3, 480
    %v4052 = vld [vmem:[%s4051] sm:$0xf]
    %v4053 = vld [vmem:[%s4051 + $0x4] sm:$0xf]
    %v4054 = vld [vmem:[%s4051 + $0x8] sm:$0xf]
    %v4055 = vld [vmem:[%s4051 + $0xc] sm:$0xf]
    %v4056 = vld [vmem:[%s4051 + $0x10] sm:$0xf]
    %v4057 = vld [vmem:[%s4051 + $0x14] sm:$0xf]
    %v4058 = vld [vmem:[%s4051 + $0x18] sm:$0xf]
    %v4059 = vld [vmem:[%s4051 + $0x1c] sm:$0xf]
    %v4060 = vld [vmem:[%s4051 + $0x20] sm:$0xf]
    %v4061 = vld [vmem:[%s4051 + $0x24] sm:$0xf]
    %v4062 = vld [vmem:[%s4051 + $0x28] sm:$0xf]
    %v4063 = vld [vmem:[%s4051 + $0x2c] sm:$0xf]
    %v4064 = vld [vmem:[%s4051 + $0x30] sm:$0xf]
    %v4065 = vld [vmem:[%s4051 + $0x34] sm:$0xf]
    %v4066 = vld [vmem:[%s4051 + $0x38] sm:$0xf]
    %v4067 = vld [vmem:[%s4051 + $0x3c] sm:$0xf]
    %v4068 = vld [vmem:[%s4051 + $0x40] sm:$0xf]
    %v4069 = vld [vmem:[%s4051 + $0x44] sm:$0xf]
    %v4070 = vld [vmem:[%s4051 + $0x48] sm:$0xf]
    %v4071 = vld [vmem:[%s4051 + $0x4c] sm:$0xf]
    %v4072 = vld [vmem:[%s4051 + $0x50] sm:$0xf]
    %v4073 = vld [vmem:[%s4051 + $0x54] sm:$0xf]
    %v4074 = vld [vmem:[%s4051 + $0x58] sm:$0xf]
    %v4075 = vld [vmem:[%s4051 + $0x5c] sm:$0xf]
    %v4076 = vld [vmem:[%s4051 + $0x60] sm:$0xf]
    %v4077 = vld [vmem:[%s4051 + $0x64] sm:$0xf]
    %v4078 = vld [vmem:[%s4051 + $0x68] sm:$0xf]
    %v4079 = vld [vmem:[%s4051 + $0x6c] sm:$0xf]
    %v4080 = vld [vmem:[%s4051 + $0x70] sm:$0xf]
    %v4081 = vld [vmem:[%s4051 + $0x74] sm:$0xf]
    %v4082 = vld [vmem:[%s4051 + $0x78] sm:$0xf]
    %v4083 = vld [vmem:[%s4051 + $0x7c] sm:$0xf]
    %v4084 = vld [vmem:[%s4051 + $0x80] sm:$0xf]
    %v4085 = vld [vmem:[%s4051 + $0x84] sm:$0xf]
    %v4086 = vld [vmem:[%s4051 + $0x88] sm:$0xf]
    %v4087 = vld [vmem:[%s4051 + $0x8c] sm:$0xf]
    %v4088 = vld [vmem:[%s4051 + $0x90] sm:$0xf]
    %v4089 = vld [vmem:[%s4051 + $0x94] sm:$0xf]
    %v4090 = vld [vmem:[%s4051 + $0x98] sm:$0xf]
    %v4091 = vld [vmem:[%s4051 + $0x9c] sm:$0xf]
    %v4092 = vpack.c.b16 %v2917, %v3705
    %v4093 = vpack.c.b16 %v2918, %v3706
    %v4094 = vpack.c.b16 %v2919, %v3707
    %v4095 = vpack.c.b16 %v2917, %v3708
    %v4096 = vpack.c.b16 %v2918, %v3709
    %v4097 = vpack.c.b16 %v2919, %v3710
    %v4142 = vunpack.c.l.b16 %v4052
    %v4143 = vunpack.c.l.b16 %v4053
    %v4144 = vunpack.c.l.b16 %v4054
    %v4145 = vunpack.c.l.b16 %v4055
    %v4146 = vunpack.c.l.b16 %v4056
    %v4147 = vunpack.c.l.b16 %v4057
    %v4148 = vunpack.c.l.b16 %v4058
    %v4149 = vunpack.c.l.b16 %v4059
    %v4150 = vunpack.c.l.b16 %v4060
    %v4151 = vunpack.c.l.b16 %v4061
    %v4152 = vunpack.c.l.b16 %v4062
    %v4153 = vunpack.c.l.b16 %v4063
    %v4154 = vunpack.c.l.b16 %v4064
    %v4155 = vunpack.c.l.b16 %v4065
    %v4156 = vunpack.c.l.b16 %v4066
    %v4157 = vunpack.c.l.b16 %v4067
    %v4158 = vunpack.c.l.b16 %v4068
    %v4159 = vunpack.c.l.b16 %v4069
    %v4160 = vunpack.c.l.b16 %v4070
    %v4161 = vunpack.c.l.b16 %v4071
    %v4162 = vunpack.c.l.b16 %v4072
    %v4163 = vunpack.c.l.b16 %v4073
    %v4164 = vunpack.c.l.b16 %v4074
    %v4165 = vunpack.c.l.b16 %v4075
    %v4166 = vunpack.c.l.b16 %v4076
    %v4167 = vunpack.c.l.b16 %v4077
    %v4168 = vunpack.c.l.b16 %v4078
    %v4169 = vunpack.c.l.b16 %v4079
    %v4170 = vunpack.c.l.b16 %v4080
    %v4171 = vunpack.c.l.b16 %v4081
    %v4172 = vunpack.c.l.b16 %v4082
    %v4173 = vunpack.c.l.b16 %v4083
    %v4174 = vunpack.c.l.b16 %v4084
    %v4175 = vunpack.c.l.b16 %v4085
    %v4176 = vunpack.c.l.b16 %v4086
    %v4177 = vunpack.c.l.b16 %v4087
    %v4178 = vunpack.c.l.b16 %v4088
    %v4179 = vunpack.c.l.b16 %v4089
    %v4180 = vunpack.c.l.b16 %v4090
    %v4181 = vunpack.c.l.b16 %v4091
    %v4182 = vpack.c.b16 %v4143, %v4142
    %v4183 = vpack.c.b16 %v4145, %v4144
    %v4184 = vpack.c.b16 %v4147, %v4146
    %v4185 = vpack.c.b16 %v4149, %v4148
    %v4186 = vpack.c.b16 %v4151, %v4150
    %v4187 = vpack.c.b16 %v4153, %v4152
    %v4188 = vpack.c.b16 %v4155, %v4154
    %v4189 = vpack.c.b16 %v4157, %v4156
    %v4190 = vpack.c.b16 %v4159, %v4158
    %v4191 = vpack.c.b16 %v4161, %v4160
    %v4192 = vpack.c.b16 %v4163, %v4162
    %v4193 = vpack.c.b16 %v4165, %v4164
    %v4194 = vpack.c.b16 %v4167, %v4166
    %v4195 = vpack.c.b16 %v4169, %v4168
    %v4196 = vpack.c.b16 %v4171, %v4170
    %v4197 = vpack.c.b16 %v4173, %v4172
    %v4198 = vpack.c.b16 %v4175, %v4174
    %v4199 = vpack.c.b16 %v4177, %v4176
    %v4200 = vpack.c.b16 %v4179, %v4178
    %v4201 = vpack.c.b16 %v4181, %v4180
    %v4223 = vsel %vm597, %v4094, 0
    %v4226 = vsel %vm597, %v4097, 0
    %4228 = vmatpush.bf16.msra.mxu0 %v4189
    %4229 = vmatpush.bf16.msra.mxu0 %v4188
    %4230 = vmatpush.bf16.msra.mxu0 %v4187
    %4231 = vmatpush.bf16.msra.mxu0 %v4186
    %4232 = vmatpush.bf16.msra.mxu0 %v4185
    %4233 = vmatpush.bf16.msra.mxu0 %v4184
    %4234 = vmatpush.bf16.msra.mxu0 %v4183
    %4235 = vmatpush.bf16.msra.mxu0 %v4182
    %4236 = vmatmul.bf16.gmra.mxu0 %v3050
    %v4237 = vpop.f32.mrf.mxu0
    %v4238 = vadd.f32 0.0, %v4237
    %v4239 = vpop.f32.mrf.mxu0
    %v4240 = vadd.f32 0.0, %v4239
    %4241 = vmatmul.bf16.gmra.mxu0 %v3053
    %v4242 = vpop.f32.mrf.mxu0
    %v4243 = vadd.f32 0.0, %v4242
    %v4244 = vpop.f32.mrf.mxu0
    %v4245 = vadd.f32 0.0, %v4244
    %4246 = vmatmul.bf16.gmra.mxu0 %v3056
    %v4247 = vpop.f32.mrf.mxu0
    %v4248 = vadd.f32 0.0, %v4247
    %v4249 = vpop.f32.mrf.mxu0
    %v4250 = vadd.f32 0.0, %v4249
    %4251 = vmatmul.bf16.gmra.mxu0 %v4092
    %v4252 = vpop.f32.mrf.mxu0
    %v4253 = vadd.f32 0.0, %v4252
    %v4254 = vpop.f32.mrf.mxu0
    %v4255 = vadd.f32 0.0, %v4254
    %4256 = vmatmul.bf16.gmra.mxu0 %v3062
    %v4257 = vpop.f32.mrf.mxu0
    %v4258 = vadd.f32 0.0, %v4257
    %v4259 = vpop.f32.mrf.mxu0
    %v4260 = vadd.f32 0.0, %v4259
    %4261 = vmatmul.bf16.gmra.mxu0 %v3065
    %v4262 = vpop.f32.mrf.mxu0
    %v4263 = vadd.f32 0.0, %v4262
    %v4264 = vpop.f32.mrf.mxu0
    %v4265 = vadd.f32 0.0, %v4264
    %4266 = vmatmul.bf16.gmra.mxu0 %v3068
    %v4267 = vpop.f32.mrf.mxu0
    %v4268 = vadd.f32 0.0, %v4267
    %v4269 = vpop.f32.mrf.mxu0
    %v4270 = vadd.f32 0.0, %v4269
    %4271 = vmatmul.bf16.gmra.mxu0 %v4095
    %v4272 = vpop.f32.mrf.mxu0
    %v4273 = vadd.f32 0.0, %v4272
    %v4274 = vpop.f32.mrf.mxu0
    %v4275 = vadd.f32 0.0, %v4274
    %4276 = vdwg.mxu0
    %4277 = vmatpush.bf16.msra.mxu0 %v4197
    %4278 = vmatpush.bf16.msra.mxu0 %v4196
    %4279 = vmatpush.bf16.msra.mxu0 %v4195
    %4280 = vmatpush.bf16.msra.mxu0 %v4194
    %4281 = vmatpush.bf16.msra.mxu0 %v4193
    %4282 = vmatpush.bf16.msra.mxu0 %v4192
    %4283 = vmatpush.bf16.msra.mxu0 %v4191
    %4284 = vmatpush.bf16.msra.mxu0 %v4190
    %4285 = vmatmul.bf16.gmra.mxu0 %v3051
    %v4286 = vpop.f32.mrf.mxu0
    %v4287 = vadd.f32 %v4238, %v4286
    %v4288 = vpop.f32.mrf.mxu0
    %v4289 = vadd.f32 %v4240, %v4288
    %4290 = vmatmul.bf16.gmra.mxu0 %v3054
    %v4291 = vpop.f32.mrf.mxu0
    %v4292 = vadd.f32 %v4243, %v4291
    %v4293 = vpop.f32.mrf.mxu0
    %v4294 = vadd.f32 %v4245, %v4293
    %4295 = vmatmul.bf16.gmra.mxu0 %v3057
    %v4296 = vpop.f32.mrf.mxu0
    %v4297 = vadd.f32 %v4248, %v4296
    %v4298 = vpop.f32.mrf.mxu0
    %v4299 = vadd.f32 %v4250, %v4298
    %4300 = vmatmul.bf16.gmra.mxu0 %v4093
    %v4301 = vpop.f32.mrf.mxu0
    %v4302 = vadd.f32 %v4253, %v4301
    %v4303 = vpop.f32.mrf.mxu0
    %v4304 = vadd.f32 %v4255, %v4303
    %4305 = vmatmul.bf16.gmra.mxu0 %v3063
    %v4306 = vpop.f32.mrf.mxu0
    %v4307 = vadd.f32 %v4258, %v4306
    %v4308 = vpop.f32.mrf.mxu0
    %v4309 = vadd.f32 %v4260, %v4308
    %4310 = vmatmul.bf16.gmra.mxu0 %v3066
    %v4311 = vpop.f32.mrf.mxu0
    %v4312 = vadd.f32 %v4263, %v4311
    %v4313 = vpop.f32.mrf.mxu0
    %v4314 = vadd.f32 %v4265, %v4313
    %4315 = vmatmul.bf16.gmra.mxu0 %v3069
    %v4316 = vpop.f32.mrf.mxu0
    %v4317 = vadd.f32 %v4268, %v4316
    %v4318 = vpop.f32.mrf.mxu0
    %v4319 = vadd.f32 %v4270, %v4318
    %4320 = vmatmul.bf16.gmra.mxu0 %v4096
    %v4321 = vpop.f32.mrf.mxu0
    %v4322 = vadd.f32 %v4273, %v4321
    %v4323 = vpop.f32.mrf.mxu0
    %v4324 = vadd.f32 %v4275, %v4323
    %4325 = vdwg.mxu0
    %4326 = vmatpush.bf16.msra.mxu0 0
    %4327 = vmatpush.bf16.msra.mxu0 0
    %4328 = vmatpush.bf16.msra.mxu0 0
    %4329 = vmatpush.bf16.msra.mxu0 0
    %4330 = vmatpush.bf16.msra.mxu0 %v4201
    %4331 = vmatpush.bf16.msra.mxu0 %v4200
    %4332 = vmatpush.bf16.msra.mxu0 %v4199
    %4333 = vmatpush.bf16.msra.mxu0 %v4198
    %4334 = vmatmul.bf16.gmra.mxu0 %v3211
    %v4335 = vpop.f32.mrf.mxu0
    %v4336 = vadd.f32 %v4287, %v4335
    %v4337 = vpop.f32.mrf.mxu0
    %v4338 = vadd.f32 %v4289, %v4337
    %4339 = vmatmul.bf16.gmra.mxu0 %v3214
    %v4340 = vpop.f32.mrf.mxu0
    %v4341 = vadd.f32 %v4292, %v4340
    %v4342 = vpop.f32.mrf.mxu0
    %v4343 = vadd.f32 %v4294, %v4342
    %4344 = vmatmul.bf16.gmra.mxu0 %v3217
    %v4345 = vpop.f32.mrf.mxu0
    %v4346 = vadd.f32 %v4297, %v4345
    %v4347 = vpop.f32.mrf.mxu0
    %v4348 = vadd.f32 %v4299, %v4347
    %4349 = vmatmul.bf16.gmra.mxu0 %v4223
    %v4350 = vpop.f32.mrf.mxu0
    %v4351 = vadd.f32 %v4302, %v4350
    %v4352 = vpop.f32.mrf.mxu0
    %v4353 = vadd.f32 %v4304, %v4352
    %4354 = vmatmul.bf16.gmra.mxu0 %v3223
    %v4355 = vpop.f32.mrf.mxu0
    %v4356 = vadd.f32 %v4307, %v4355
    %v4357 = vpop.f32.mrf.mxu0
    %v4358 = vadd.f32 %v4309, %v4357
    %4359 = vmatmul.bf16.gmra.mxu0 %v3226
    %v4360 = vpop.f32.mrf.mxu0
    %v4361 = vadd.f32 %v4312, %v4360
    %v4362 = vpop.f32.mrf.mxu0
    %v4363 = vadd.f32 %v4314, %v4362
    %4364 = vmatmul.bf16.gmra.mxu0 %v3229
    %v4365 = vpop.f32.mrf.mxu0
    %v4366 = vadd.f32 %v4317, %v4365
    %v4367 = vpop.f32.mrf.mxu0
    %v4368 = vadd.f32 %v4319, %v4367
    %4369 = vmatmul.bf16.gmra.mxu0 %v4226
    %v4370 = vpop.f32.mrf.mxu0
    %v4371 = vadd.f32 %v4322, %v4370
    %v4372 = vpop.f32.mrf.mxu0
    %v4373 = vadd.f32 %v4324, %v4372
    %4374 = vdwg.mxu0
    %v4375 = vadd.f32 %v4035, %v4336
    %v4376 = vadd.f32 %v4036, %v4338
    %v4377 = vadd.f32 %v4037, %v4341
    %v4378 = vadd.f32 %v4038, %v4343
    %v4379 = vadd.f32 %v4039, %v4346
    %v4380 = vadd.f32 %v4040, %v4348
    %v4381 = vadd.f32 %v4041, %v4351
    %v4382 = vadd.f32 %v4042, %v4353
    %v4383 = vadd.f32 %v4043, %v4356
    %v4384 = vadd.f32 %v4044, %v4358
    %v4385 = vadd.f32 %v4045, %v4361
    %v4386 = vadd.f32 %v4046, %v4363
    %v4387 = vadd.f32 %v4047, %v4366
    %v4388 = vadd.f32 %v4048, %v4368
    %v4389 = vadd.f32 %v4049, %v4371
    %v4390 = vadd.f32 %v4050, %v4373
    %s4391 = scalar_lea.vmem %s3, 640
    %v4392 = vld [vmem:[%s4391] sm:$0xf]
    %v4393 = vld [vmem:[%s4391 + $0x4] sm:$0xf]
    %v4394 = vld [vmem:[%s4391 + $0x8] sm:$0xf]
    %v4395 = vld [vmem:[%s4391 + $0xc] sm:$0xf]
    %v4396 = vld [vmem:[%s4391 + $0x10] sm:$0xf]
    %v4397 = vld [vmem:[%s4391 + $0x14] sm:$0xf]
    %v4398 = vld [vmem:[%s4391 + $0x18] sm:$0xf]
    %v4399 = vld [vmem:[%s4391 + $0x1c] sm:$0xf]
    %v4400 = vld [vmem:[%s4391 + $0x20] sm:$0xf]
    %v4401 = vld [vmem:[%s4391 + $0x24] sm:$0xf]
    %v4402 = vld [vmem:[%s4391 + $0x28] sm:$0xf]
    %v4403 = vld [vmem:[%s4391 + $0x2c] sm:$0xf]
    %v4404 = vld [vmem:[%s4391 + $0x30] sm:$0xf]
    %v4405 = vld [vmem:[%s4391 + $0x34] sm:$0xf]
    %v4406 = vld [vmem:[%s4391 + $0x38] sm:$0xf]
    %v4407 = vld [vmem:[%s4391 + $0x3c] sm:$0xf]
    %v4408 = vld [vmem:[%s4391 + $0x40] sm:$0xf]
    %v4409 = vld [vmem:[%s4391 + $0x44] sm:$0xf]
    %v4410 = vld [vmem:[%s4391 + $0x48] sm:$0xf]
    %v4411 = vld [vmem:[%s4391 + $0x4c] sm:$0xf]
    %v4412 = vld [vmem:[%s4391 + $0x50] sm:$0xf]
    %v4413 = vld [vmem:[%s4391 + $0x54] sm:$0xf]
    %v4414 = vld [vmem:[%s4391 + $0x58] sm:$0xf]
    %v4415 = vld [vmem:[%s4391 + $0x5c] sm:$0xf]
    %v4416 = vld [vmem:[%s4391 + $0x60] sm:$0xf]
    %v4417 = vld [vmem:[%s4391 + $0x64] sm:$0xf]
    %v4418 = vld [vmem:[%s4391 + $0x68] sm:$0xf]
    %v4419 = vld [vmem:[%s4391 + $0x6c] sm:$0xf]
    %v4420 = vld [vmem:[%s4391 + $0x70] sm:$0xf]
    %v4421 = vld [vmem:[%s4391 + $0x74] sm:$0xf]
    %v4422 = vld [vmem:[%s4391 + $0x78] sm:$0xf]
    %v4423 = vld [vmem:[%s4391 + $0x7c] sm:$0xf]
    %v4424 = vld [vmem:[%s4391 + $0x80] sm:$0xf]
    %v4425 = vld [vmem:[%s4391 + $0x84] sm:$0xf]
    %v4426 = vld [vmem:[%s4391 + $0x88] sm:$0xf]
    %v4427 = vld [vmem:[%s4391 + $0x8c] sm:$0xf]
    %v4428 = vld [vmem:[%s4391 + $0x90] sm:$0xf]
    %v4429 = vld [vmem:[%s4391 + $0x94] sm:$0xf]
    %v4430 = vld [vmem:[%s4391 + $0x98] sm:$0xf]
    %v4431 = vld [vmem:[%s4391 + $0x9c] sm:$0xf]
    %v4472 = vunpack.c.l.b16 %v4392
    %v4473 = vunpack.c.l.b16 %v4393
    %v4474 = vunpack.c.l.b16 %v4394
    %v4475 = vunpack.c.l.b16 %v4395
    %v4476 = vunpack.c.l.b16 %v4396
    %v4477 = vunpack.c.l.b16 %v4397
    %v4478 = vunpack.c.l.b16 %v4398
    %v4479 = vunpack.c.l.b16 %v4399
    %v4480 = vunpack.c.l.b16 %v4400
    %v4481 = vunpack.c.l.b16 %v4401
    %v4482 = vunpack.c.l.b16 %v4402
    %v4483 = vunpack.c.l.b16 %v4403
    %v4484 = vunpack.c.l.b16 %v4404
    %v4485 = vunpack.c.l.b16 %v4405
    %v4486 = vunpack.c.l.b16 %v4406
    %v4487 = vunpack.c.l.b16 %v4407
    %v4488 = vunpack.c.l.b16 %v4408
    %v4489 = vunpack.c.l.b16 %v4409
    %v4490 = vunpack.c.l.b16 %v4410
    %v4491 = vunpack.c.l.b16 %v4411
    %v4492 = vunpack.c.l.b16 %v4412
    %v4493 = vunpack.c.l.b16 %v4413
    %v4494 = vunpack.c.l.b16 %v4414
    %v4495 = vunpack.c.l.b16 %v4415
    %v4496 = vunpack.c.l.b16 %v4416
    %v4497 = vunpack.c.l.b16 %v4417
    %v4498 = vunpack.c.l.b16 %v4418
    %v4499 = vunpack.c.l.b16 %v4419
    %v4500 = vunpack.c.l.b16 %v4420
    %v4501 = vunpack.c.l.b16 %v4421
    %v4502 = vunpack.c.l.b16 %v4422
    %v4503 = vunpack.c.l.b16 %v4423
    %v4504 = vunpack.c.l.b16 %v4424
    %v4505 = vunpack.c.l.b16 %v4425
    %v4506 = vunpack.c.l.b16 %v4426
    %v4507 = vunpack.c.l.b16 %v4427
    %v4508 = vunpack.c.l.b16 %v4428
    %v4509 = vunpack.c.l.b16 %v4429
    %v4510 = vunpack.c.l.b16 %v4430
    %v4511 = vunpack.c.l.b16 %v4431
    %v4512 = vpack.c.b16 %v4473, %v4472
    %v4513 = vpack.c.b16 %v4475, %v4474
    %v4514 = vpack.c.b16 %v4477, %v4476
    %v4515 = vpack.c.b16 %v4479, %v4478
    %v4516 = vpack.c.b16 %v4481, %v4480
    %v4517 = vpack.c.b16 %v4483, %v4482
    %v4518 = vpack.c.b16 %v4485, %v4484
    %v4519 = vpack.c.b16 %v4487, %v4486
    %v4520 = vpack.c.b16 %v4489, %v4488
    %v4521 = vpack.c.b16 %v4491, %v4490
    %v4522 = vpack.c.b16 %v4493, %v4492
    %v4523 = vpack.c.b16 %v4495, %v4494
    %v4524 = vpack.c.b16 %v4497, %v4496
    %v4525 = vpack.c.b16 %v4499, %v4498
    %v4526 = vpack.c.b16 %v4501, %v4500
    %v4527 = vpack.c.b16 %v4503, %v4502
    %v4528 = vpack.c.b16 %v4505, %v4504
    %v4529 = vpack.c.b16 %v4507, %v4506
    %v4530 = vpack.c.b16 %v4509, %v4508
    %v4531 = vpack.c.b16 %v4511, %v4510
    %4552 = vmatpush.bf16.msra.mxu0 %v4519
    %4553 = vmatpush.bf16.msra.mxu0 %v4518
    %4554 = vmatpush.bf16.msra.mxu0 %v4517
    %4555 = vmatpush.bf16.msra.mxu0 %v4516
    %4556 = vmatpush.bf16.msra.mxu0 %v4515
    %4557 = vmatpush.bf16.msra.mxu0 %v4514
    %4558 = vmatpush.bf16.msra.mxu0 %v4513
    %4559 = vmatpush.bf16.msra.mxu0 %v4512
    %4560 = vmatmul.bf16.gmra.mxu0 %v3384
    %v4561 = vpop.f32.mrf.mxu0
    %v4562 = vadd.f32 0.0, %v4561
    %v4563 = vpop.f32.mrf.mxu0
    %v4564 = vadd.f32 0.0, %v4563
    %4565 = vmatmul.bf16.gmra.mxu0 %v3387
    %v4566 = vpop.f32.mrf.mxu0
    %v4567 = vadd.f32 0.0, %v4566
    %v4568 = vpop.f32.mrf.mxu0
    %v4569 = vadd.f32 0.0, %v4568
    %4570 = vmatmul.bf16.gmra.mxu0 %v3752
    %v4571 = vpop.f32.mrf.mxu0
    %v4572 = vadd.f32 0.0, %v4571
    %v4573 = vpop.f32.mrf.mxu0
    %v4574 = vadd.f32 0.0, %v4573
    %4575 = vmatmul.bf16.gmra.mxu0 %v3378
    %v4576 = vpop.f32.mrf.mxu0
    %v4577 = vadd.f32 0.0, %v4576
    %v4578 = vpop.f32.mrf.mxu0
    %v4579 = vadd.f32 0.0, %v4578
    %4580 = vmatmul.bf16.gmra.mxu0 %v3393
    %v4581 = vpop.f32.mrf.mxu0
    %v4582 = vadd.f32 0.0, %v4581
    %v4583 = vpop.f32.mrf.mxu0
    %v4584 = vadd.f32 0.0, %v4583
    %4585 = vmatmul.bf16.gmra.mxu0 %v3396
    %v4586 = vpop.f32.mrf.mxu0
    %v4587 = vadd.f32 0.0, %v4586
    %v4588 = vpop.f32.mrf.mxu0
    %v4589 = vadd.f32 0.0, %v4588
    %4590 = vmatmul.bf16.gmra.mxu0 %v3755
    %v4591 = vpop.f32.mrf.mxu0
    %v4592 = vadd.f32 0.0, %v4591
    %v4593 = vpop.f32.mrf.mxu0
    %v4594 = vadd.f32 0.0, %v4593
    %4595 = vmatmul.bf16.gmra.mxu0 %v3378
    %v4596 = vpop.f32.mrf.mxu0
    %v4597 = vadd.f32 0.0, %v4596
    %v4598 = vpop.f32.mrf.mxu0
    %v4599 = vadd.f32 0.0, %v4598
    %4600 = vdwg.mxu0
    %4601 = vmatpush.bf16.msra.mxu0 %v4527
    %4602 = vmatpush.bf16.msra.mxu0 %v4526
    %4603 = vmatpush.bf16.msra.mxu0 %v4525
    %4604 = vmatpush.bf16.msra.mxu0 %v4524
    %4605 = vmatpush.bf16.msra.mxu0 %v4523
    %4606 = vmatpush.bf16.msra.mxu0 %v4522
    %4607 = vmatpush.bf16.msra.mxu0 %v4521
    %4608 = vmatpush.bf16.msra.mxu0 %v4520
    %4609 = vmatmul.bf16.gmra.mxu0 %v3385
    %v4610 = vpop.f32.mrf.mxu0
    %v4611 = vadd.f32 %v4562, %v4610
    %v4612 = vpop.f32.mrf.mxu0
    %v4613 = vadd.f32 %v4564, %v4612
    %4614 = vmatmul.bf16.gmra.mxu0 %v3388
    %v4615 = vpop.f32.mrf.mxu0
    %v4616 = vadd.f32 %v4567, %v4615
    %v4617 = vpop.f32.mrf.mxu0
    %v4618 = vadd.f32 %v4569, %v4617
    %4619 = vmatmul.bf16.gmra.mxu0 %v3753
    %v4620 = vpop.f32.mrf.mxu0
    %v4621 = vadd.f32 %v4572, %v4620
    %v4622 = vpop.f32.mrf.mxu0
    %v4623 = vadd.f32 %v4574, %v4622
    %4624 = vmatmul.bf16.gmra.mxu0 %v3379
    %v4625 = vpop.f32.mrf.mxu0
    %v4626 = vadd.f32 %v4577, %v4625
    %v4627 = vpop.f32.mrf.mxu0
    %v4628 = vadd.f32 %v4579, %v4627
    %4629 = vmatmul.bf16.gmra.mxu0 %v3394
    %v4630 = vpop.f32.mrf.mxu0
    %v4631 = vadd.f32 %v4582, %v4630
    %v4632 = vpop.f32.mrf.mxu0
    %v4633 = vadd.f32 %v4584, %v4632
    %4634 = vmatmul.bf16.gmra.mxu0 %v3397
    %v4635 = vpop.f32.mrf.mxu0
    %v4636 = vadd.f32 %v4587, %v4635
    %v4637 = vpop.f32.mrf.mxu0
    %v4638 = vadd.f32 %v4589, %v4637
    %4639 = vmatmul.bf16.gmra.mxu0 %v3756
    %v4640 = vpop.f32.mrf.mxu0
    %v4641 = vadd.f32 %v4592, %v4640
    %v4642 = vpop.f32.mrf.mxu0
    %v4643 = vadd.f32 %v4594, %v4642
    %4644 = vmatmul.bf16.gmra.mxu0 %v3379
    %v4645 = vpop.f32.mrf.mxu0
    %v4646 = vadd.f32 %v4597, %v4645
    %v4647 = vpop.f32.mrf.mxu0
    %v4648 = vadd.f32 %v4599, %v4647
    %4649 = vdwg.mxu0
    %4650 = vmatpush.bf16.msra.mxu0 0
    %4651 = vmatpush.bf16.msra.mxu0 0
    %4652 = vmatpush.bf16.msra.mxu0 0
    %4653 = vmatpush.bf16.msra.mxu0 0
    %4654 = vmatpush.bf16.msra.mxu0 %v4531
    %4655 = vmatpush.bf16.msra.mxu0 %v4530
    %4656 = vmatpush.bf16.msra.mxu0 %v4529
    %4657 = vmatpush.bf16.msra.mxu0 %v4528
    %4658 = vmatmul.bf16.gmra.mxu0 %v3540
    %v4659 = vpop.f32.mrf.mxu0
    %v4660 = vadd.f32 %v4611, %v4659
    %v4661 = vpop.f32.mrf.mxu0
    %v4662 = vadd.f32 %v4613, %v4661
    %4663 = vmatmul.bf16.gmra.mxu0 %v3543
    %v4664 = vpop.f32.mrf.mxu0
    %v4665 = vadd.f32 %v4616, %v4664
    %v4666 = vpop.f32.mrf.mxu0
    %v4667 = vadd.f32 %v4618, %v4666
    %4668 = vmatmul.bf16.gmra.mxu0 %v3883
    %v4669 = vpop.f32.mrf.mxu0
    %v4670 = vadd.f32 %v4621, %v4669
    %v4671 = vpop.f32.mrf.mxu0
    %v4672 = vadd.f32 %v4623, %v4671
    %4673 = vmatmul.bf16.gmra.mxu0 %v3534
    %v4674 = vpop.f32.mrf.mxu0
    %v4675 = vadd.f32 %v4626, %v4674
    %v4676 = vpop.f32.mrf.mxu0
    %v4677 = vadd.f32 %v4628, %v4676
    %4678 = vmatmul.bf16.gmra.mxu0 %v3549
    %v4679 = vpop.f32.mrf.mxu0
    %v4680 = vadd.f32 %v4631, %v4679
    %v4681 = vpop.f32.mrf.mxu0
    %v4682 = vadd.f32 %v4633, %v4681
    %4683 = vmatmul.bf16.gmra.mxu0 %v3552
    %v4684 = vpop.f32.mrf.mxu0
    %v4685 = vadd.f32 %v4636, %v4684
    %v4686 = vpop.f32.mrf.mxu0
    %v4687 = vadd.f32 %v4638, %v4686
    %4688 = vmatmul.bf16.gmra.mxu0 %v3886
    %v4689 = vpop.f32.mrf.mxu0
    %v4690 = vadd.f32 %v4641, %v4689
    %v4691 = vpop.f32.mrf.mxu0
    %v4692 = vadd.f32 %v4643, %v4691
    %4693 = vmatmul.bf16.gmra.mxu0 %v3534
    %v4694 = vpop.f32.mrf.mxu0
    %v4695 = vadd.f32 %v4646, %v4694
    %v4696 = vpop.f32.mrf.mxu0
    %v4697 = vadd.f32 %v4648, %v4696
    %4698 = vdwg.mxu0
    %v4699 = vadd.f32 %v4375, %v4660
    %v4700 = vadd.f32 %v4376, %v4662
    %v4701 = vadd.f32 %v4377, %v4665
    %v4702 = vadd.f32 %v4378, %v4667
    %v4703 = vadd.f32 %v4379, %v4670
    %v4704 = vadd.f32 %v4380, %v4672
    %v4705 = vadd.f32 %v4381, %v4675
    %v4706 = vadd.f32 %v4382, %v4677
    %v4707 = vadd.f32 %v4383, %v4680
    %v4708 = vadd.f32 %v4384, %v4682
    %v4709 = vadd.f32 %v4385, %v4685
    %v4710 = vadd.f32 %v4386, %v4687
    %v4711 = vadd.f32 %v4387, %v4690
    %v4712 = vadd.f32 %v4388, %v4692
    %v4713 = vadd.f32 %v4389, %v4695
    %v4714 = vadd.f32 %v4390, %v4697
    %v4715 = vld [vmem:[%s4] sm:$0x1]
    %v4717 = vperm.slane %v4715, 0
    %v4719 = vadd.f32 %v4699, %v4717
    %v4720 = vadd.f32 %v4700, %v4717
    %v4721 = vadd.f32 %v4701, %v4717
    %v4722 = vadd.f32 %v4702, %v4717
    %v4723 = vadd.f32 %v4703, %v4717
    %v4724 = vadd.f32 %v4704, %v4717
    %v4725 = vadd.f32 %v4705, %v4717
    %v4726 = vadd.f32 %v4706, %v4717
    %v4727 = vadd.f32 %v4707, %v4717
    %v4728 = vadd.f32 %v4708, %v4717
    %v4729 = vadd.f32 %v4709, %v4717
    %v4730 = vadd.f32 %v4710, %v4717
    %v4731 = vadd.f32 %v4711, %v4717
    %v4732 = vadd.f32 %v4712, %v4717
    %v4733 = vadd.f32 %v4713, %v4717
    %v4734 = vadd.f32 %v4714, %v4717
    %v4735 = vmax.f32 %v4719, 0.0
    %v4736 = vmax.f32 %v4720, 0.0
    %v4737 = vmax.f32 %v4721, 0.0
    %v4738 = vmax.f32 %v4722, 0.0
    %v4739 = vmax.f32 %v4723, 0.0
    %v4740 = vmax.f32 %v4724, 0.0
    %v4741 = vmax.f32 %v4725, 0.0
    %v4742 = vmax.f32 %v4726, 0.0
    %v4743 = vmax.f32 %v4727, 0.0
    %v4744 = vmax.f32 %v4728, 0.0
    %v4745 = vmax.f32 %v4729, 0.0
    %v4746 = vmax.f32 %v4730, 0.0
    %v4747 = vmax.f32 %v4731, 0.0
    %v4748 = vmax.f32 %v4732, 0.0
    %v4749 = vmax.f32 %v4733, 0.0
    %v4750 = vmax.f32 %v4734, 0.0
    %v4751 = vmax.f32 %v4735, %v4736
    %v4752 = vmax.f32 %v4737, %v4738
    %v4753 = vmax.f32 %v4739, %v4740
    %v4754 = vmax.f32 %v4741, %v4742
    %v4755 = vmax.f32 %v4743, %v4744
    %v4756 = vmax.f32 %v4745, %v4746
    %v4757 = vmax.f32 %v4747, %v4748
    %v4758 = vmax.f32 %v4749, %v4750
    %v4767 = vrot.slane %v4751, 2
    %v4768 = vrot.slane %v4751, 4
    %v4769 = vrot.slane %v4751, 6
    %v4770 = vrot.slane %v4752, 2
    %v4771 = vrot.slane %v4752, 4
    %v4772 = vrot.slane %v4752, 6
    %v4773 = vrot.slane %v4753, 2
    %v4774 = vrot.slane %v4753, 4
    %v4775 = vrot.slane %v4753, 6
    %v4776 = vrot.slane %v4754, 2
    %v4777 = vrot.slane %v4754, 4
    %v4778 = vrot.slane %v4754, 6
    %v4779 = vrot.slane %v4755, 2
    %v4780 = vrot.slane %v4755, 4
    %v4781 = vrot.slane %v4755, 6
    %v4782 = vrot.slane %v4756, 2
    %v4783 = vrot.slane %v4756, 4
    %v4784 = vrot.slane %v4756, 6
    %v4785 = vrot.slane %v4757, 2
    %v4786 = vrot.slane %v4757, 4
    %v4787 = vrot.slane %v4757, 6
    %v4788 = vrot.slane %v4758, 2
    %v4789 = vrot.slane %v4758, 4
    %v4790 = vrot.slane %v4758, 6
    %vm4815 = vcmask 1041408
    %v4816 = vsel %vm4815, %v4751, -inf
    %v4817 = vrot.slane %v4816, 4
    %v4818 = vmax.f32 %v4816, %v4817
    %v4819 = vrot.slane %v4818, 2
    %v4820 = vmax.f32 %v4818, %v4819
    %v4821 = vrot.slane %v4820, 1
    %v4822 = vmax.f32 %v4820, %v4821
    %v4823 = vsel %vm4815, %v4767, -inf
    %v4824 = vrot.slane %v4823, 4
    %v4825 = vmax.f32 %v4823, %v4824
    %v4826 = vrot.slane %v4825, 2
    %v4827 = vmax.f32 %v4825, %v4826
    %v4828 = vrot.slane %v4827, 1
    %v4829 = vmax.f32 %v4827, %v4828
    %v4830 = vsel %vm4815, %v4768, -inf
    %v4831 = vrot.slane %v4830, 4
    %v4832 = vmax.f32 %v4830, %v4831
    %v4833 = vrot.slane %v4832, 2
    %v4834 = vmax.f32 %v4832, %v4833
    %v4835 = vrot.slane %v4834, 1
    %v4836 = vmax.f32 %v4834, %v4835
    %v4837 = vsel %vm4815, %v4769, -inf
    %v4838 = vrot.slane %v4837, 4
    %v4839 = vmax.f32 %v4837, %v4838
    %v4840 = vrot.slane %v4839, 2
    %v4841 = vmax.f32 %v4839, %v4840
    %v4842 = vrot.slane %v4841, 1
    %v4843 = vmax.f32 %v4841, %v4842
    %v4844 = vsel %vm4815, %v4752, -inf
    %v4845 = vrot.slane %v4844, 4
    %v4846 = vmax.f32 %v4844, %v4845
    %v4847 = vrot.slane %v4846, 2
    %v4848 = vmax.f32 %v4846, %v4847
    %v4849 = vrot.slane %v4848, 1
    %v4850 = vmax.f32 %v4848, %v4849
    %v4851 = vsel %vm4815, %v4770, -inf
    %v4852 = vrot.slane %v4851, 4
    %v4853 = vmax.f32 %v4851, %v4852
    %v4854 = vrot.slane %v4853, 2
    %v4855 = vmax.f32 %v4853, %v4854
    %v4856 = vrot.slane %v4855, 1
    %v4857 = vmax.f32 %v4855, %v4856
    %v4858 = vsel %vm4815, %v4771, -inf
    %v4859 = vrot.slane %v4858, 4
    %v4860 = vmax.f32 %v4858, %v4859
    %v4861 = vrot.slane %v4860, 2
    %v4862 = vmax.f32 %v4860, %v4861
    %v4863 = vrot.slane %v4862, 1
    %v4864 = vmax.f32 %v4862, %v4863
    %v4865 = vsel %vm4815, %v4772, -inf
    %v4866 = vrot.slane %v4865, 4
    %v4867 = vmax.f32 %v4865, %v4866
    %v4868 = vrot.slane %v4867, 2
    %v4869 = vmax.f32 %v4867, %v4868
    %v4870 = vrot.slane %v4869, 1
    %v4871 = vmax.f32 %v4869, %v4870
    %v4872 = vsel %vm4815, %v4753, -inf
    %v4873 = vrot.slane %v4872, 4
    %v4874 = vmax.f32 %v4872, %v4873
    %v4875 = vrot.slane %v4874, 2
    %v4876 = vmax.f32 %v4874, %v4875
    %v4877 = vrot.slane %v4876, 1
    %v4878 = vmax.f32 %v4876, %v4877
    %v4879 = vsel %vm4815, %v4773, -inf
    %v4880 = vrot.slane %v4879, 4
    %v4881 = vmax.f32 %v4879, %v4880
    %v4882 = vrot.slane %v4881, 2
    %v4883 = vmax.f32 %v4881, %v4882
    %v4884 = vrot.slane %v4883, 1
    %v4885 = vmax.f32 %v4883, %v4884
    %v4886 = vsel %vm4815, %v4774, -inf
    %v4887 = vrot.slane %v4886, 4
    %v4888 = vmax.f32 %v4886, %v4887
    %v4889 = vrot.slane %v4888, 2
    %v4890 = vmax.f32 %v4888, %v4889
    %v4891 = vrot.slane %v4890, 1
    %v4892 = vmax.f32 %v4890, %v4891
    %v4893 = vsel %vm4815, %v4775, -inf
    %v4894 = vrot.slane %v4893, 4
    %v4895 = vmax.f32 %v4893, %v4894
    %v4896 = vrot.slane %v4895, 2
    %v4897 = vmax.f32 %v4895, %v4896
    %v4898 = vrot.slane %v4897, 1
    %v4899 = vmax.f32 %v4897, %v4898
    %v4900 = vsel %vm4815, %v4754, -inf
    %v4901 = vrot.slane %v4900, 4
    %v4902 = vmax.f32 %v4900, %v4901
    %v4903 = vrot.slane %v4902, 2
    %v4904 = vmax.f32 %v4902, %v4903
    %v4905 = vrot.slane %v4904, 1
    %v4906 = vmax.f32 %v4904, %v4905
    %v4907 = vsel %vm4815, %v4776, -inf
    %v4908 = vrot.slane %v4907, 4
    %v4909 = vmax.f32 %v4907, %v4908
    %v4910 = vrot.slane %v4909, 2
    %v4911 = vmax.f32 %v4909, %v4910
    %v4912 = vrot.slane %v4911, 1
    %v4913 = vmax.f32 %v4911, %v4912
    %v4914 = vsel %vm4815, %v4777, -inf
    %v4915 = vrot.slane %v4914, 4
    %v4916 = vmax.f32 %v4914, %v4915
    %v4917 = vrot.slane %v4916, 2
    %v4918 = vmax.f32 %v4916, %v4917
    %v4919 = vrot.slane %v4918, 1
    %v4920 = vmax.f32 %v4918, %v4919
    %v4921 = vsel %vm4815, %v4778, -inf
    %v4922 = vrot.slane %v4921, 4
    %v4923 = vmax.f32 %v4921, %v4922
    %v4924 = vrot.slane %v4923, 2
    %v4925 = vmax.f32 %v4923, %v4924
    %v4926 = vrot.slane %v4925, 1
    %v4927 = vmax.f32 %v4925, %v4926
    %v4928 = vsel %vm4815, %v4755, -inf
    %v4929 = vrot.slane %v4928, 4
    %v4930 = vmax.f32 %v4928, %v4929
    %v4931 = vrot.slane %v4930, 2
    %v4932 = vmax.f32 %v4930, %v4931
    %v4933 = vrot.slane %v4932, 1
    %v4934 = vmax.f32 %v4932, %v4933
    %v4935 = vsel %vm4815, %v4779, -inf
    %v4936 = vrot.slane %v4935, 4
    %v4937 = vmax.f32 %v4935, %v4936
    %v4938 = vrot.slane %v4937, 2
    %v4939 = vmax.f32 %v4937, %v4938
    %v4940 = vrot.slane %v4939, 1
    %v4941 = vmax.f32 %v4939, %v4940
    %v4942 = vsel %vm4815, %v4780, -inf
    %v4943 = vrot.slane %v4942, 4
    %v4944 = vmax.f32 %v4942, %v4943
    %v4945 = vrot.slane %v4944, 2
    %v4946 = vmax.f32 %v4944, %v4945
    %v4947 = vrot.slane %v4946, 1
    %v4948 = vmax.f32 %v4946, %v4947
    %v4949 = vsel %vm4815, %v4781, -inf
    %v4950 = vrot.slane %v4949, 4
    %v4951 = vmax.f32 %v4949, %v4950
    %v4952 = vrot.slane %v4951, 2
    %v4953 = vmax.f32 %v4951, %v4952
    %v4954 = vrot.slane %v4953, 1
    %v4955 = vmax.f32 %v4953, %v4954
    %v4956 = vsel %vm4815, %v4756, -inf
    %v4957 = vrot.slane %v4956, 4
    %v4958 = vmax.f32 %v4956, %v4957
    %v4959 = vrot.slane %v4958, 2
    %v4960 = vmax.f32 %v4958, %v4959
    %v4961 = vrot.slane %v4960, 1
    %v4962 = vmax.f32 %v4960, %v4961
    %v4963 = vsel %vm4815, %v4782, -inf
    %v4964 = vrot.slane %v4963, 4
    %v4965 = vmax.f32 %v4963, %v4964
    %v4966 = vrot.slane %v4965, 2
    %v4967 = vmax.f32 %v4965, %v4966
    %v4968 = vrot.slane %v4967, 1
    %v4969 = vmax.f32 %v4967, %v4968
    %v4970 = vsel %vm4815, %v4783, -inf
    %v4971 = vrot.slane %v4970, 4
    %v4972 = vmax.f32 %v4970, %v4971
    %v4973 = vrot.slane %v4972, 2
    %v4974 = vmax.f32 %v4972, %v4973
    %v4975 = vrot.slane %v4974, 1
    %v4976 = vmax.f32 %v4974, %v4975
    %v4977 = vsel %vm4815, %v4784, -inf
    %v4978 = vrot.slane %v4977, 4
    %v4979 = vmax.f32 %v4977, %v4978
    %v4980 = vrot.slane %v4979, 2
    %v4981 = vmax.f32 %v4979, %v4980
    %v4982 = vrot.slane %v4981, 1
    %v4983 = vmax.f32 %v4981, %v4982
    %v4984 = vsel %vm4815, %v4757, -inf
    %v4985 = vrot.slane %v4984, 4
    %v4986 = vmax.f32 %v4984, %v4985
    %v4987 = vrot.slane %v4986, 2
    %v4988 = vmax.f32 %v4986, %v4987
    %v4989 = vrot.slane %v4988, 1
    %v4990 = vmax.f32 %v4988, %v4989
    %v4991 = vsel %vm4815, %v4785, -inf
    %v4992 = vrot.slane %v4991, 4
    %v4993 = vmax.f32 %v4991, %v4992
    %v4994 = vrot.slane %v4993, 2
    %v4995 = vmax.f32 %v4993, %v4994
    %v4996 = vrot.slane %v4995, 1
    %v4997 = vmax.f32 %v4995, %v4996
    %v4998 = vsel %vm4815, %v4786, -inf
    %v4999 = vrot.slane %v4998, 4
    %v5000 = vmax.f32 %v4998, %v4999
    %v5001 = vrot.slane %v5000, 2
    %v5002 = vmax.f32 %v5000, %v5001
    %v5003 = vrot.slane %v5002, 1
    %v5004 = vmax.f32 %v5002, %v5003
    %v5005 = vsel %vm4815, %v4787, -inf
    %v5006 = vrot.slane %v5005, 4
    %v5007 = vmax.f32 %v5005, %v5006
    %v5008 = vrot.slane %v5007, 2
    %v5009 = vmax.f32 %v5007, %v5008
    %v5010 = vrot.slane %v5009, 1
    %v5011 = vmax.f32 %v5009, %v5010
    %v5012 = vsel %vm4815, %v4758, -inf
    %v5013 = vrot.slane %v5012, 4
    %v5014 = vmax.f32 %v5012, %v5013
    %v5015 = vrot.slane %v5014, 2
    %v5016 = vmax.f32 %v5014, %v5015
    %v5017 = vrot.slane %v5016, 1
    %v5018 = vmax.f32 %v5016, %v5017
    %v5019 = vsel %vm4815, %v4788, -inf
    %v5020 = vrot.slane %v5019, 4
    %v5021 = vmax.f32 %v5019, %v5020
    %v5022 = vrot.slane %v5021, 2
    %v5023 = vmax.f32 %v5021, %v5022
    %v5024 = vrot.slane %v5023, 1
    %v5025 = vmax.f32 %v5023, %v5024
    %v5026 = vsel %vm4815, %v4789, -inf
    %v5027 = vrot.slane %v5026, 4
    %v5028 = vmax.f32 %v5026, %v5027
    %v5029 = vrot.slane %v5028, 2
    %v5030 = vmax.f32 %v5028, %v5029
    %v5031 = vrot.slane %v5030, 1
    %v5032 = vmax.f32 %v5030, %v5031
    %v5033 = vsel %vm4815, %v4790, -inf
    %v5034 = vrot.slane %v5033, 4
    %v5035 = vmax.f32 %v5033, %v5034
    %v5036 = vrot.slane %v5035, 2
    %v5037 = vmax.f32 %v5035, %v5036
    %v5038 = vrot.slane %v5037, 1
    %v5039 = vmax.f32 %v5037, %v5038
    %v5040 = vpack.c.bf16 %v4822, %v4822
    %v5041 = vpack.c.bf16 %v4829, %v4829
    %v5042 = vpack.c.bf16 %v4836, %v4836
    %v5043 = vpack.c.bf16 %v4843, %v4843
    %v5044 = vpack.c.bf16 %v4850, %v4850
    %v5045 = vpack.c.bf16 %v4857, %v4857
    %v5046 = vpack.c.bf16 %v4864, %v4864
    %v5047 = vpack.c.bf16 %v4871, %v4871
    %v5048 = vpack.c.bf16 %v4878, %v4878
    %v5049 = vpack.c.bf16 %v4885, %v4885
    %v5050 = vpack.c.bf16 %v4892, %v4892
    %v5051 = vpack.c.bf16 %v4899, %v4899
    %v5052 = vpack.c.bf16 %v4906, %v4906
    %v5053 = vpack.c.bf16 %v4913, %v4913
    %v5054 = vpack.c.bf16 %v4920, %v4920
    %v5055 = vpack.c.bf16 %v4927, %v4927
    %v5056 = vpack.c.bf16 %v4934, %v4934
    %v5057 = vpack.c.bf16 %v4941, %v4941
    %v5058 = vpack.c.bf16 %v4948, %v4948
    %v5059 = vpack.c.bf16 %v4955, %v4955
    %v5060 = vpack.c.bf16 %v4962, %v4962
    %v5061 = vpack.c.bf16 %v4969, %v4969
    %v5062 = vpack.c.bf16 %v4976, %v4976
    %v5063 = vpack.c.bf16 %v4983, %v4983
    %v5064 = vpack.c.bf16 %v4990, %v4990
    %v5065 = vpack.c.bf16 %v4997, %v4997
    %v5066 = vpack.c.bf16 %v5004, %v5004
    %v5067 = vpack.c.bf16 %v5011, %v5011
    %v5068 = vpack.c.bf16 %v5018, %v5018
    %v5069 = vpack.c.bf16 %v5025, %v5025
    %v5070 = vpack.c.bf16 %v5032, %v5032
    %v5071 = vpack.c.bf16 %v5039, %v5039
    %v5104 = vperm.slane %v5040, 0
    %v5105 = vperm.slane %v5041, 0
    %v5106 = vperm.slane %v5042, 0
    %v5107 = vperm.slane %v5043, 0
    %v5108 = vperm.slane %v5044, 0
    %v5109 = vperm.slane %v5045, 0
    %v5110 = vperm.slane %v5046, 0
    %v5111 = vperm.slane %v5047, 0
    %v5112 = vperm.slane %v5048, 0
    %v5113 = vperm.slane %v5049, 0
    %v5114 = vperm.slane %v5050, 0
    %v5115 = vperm.slane %v5051, 0
    %v5116 = vperm.slane %v5052, 0
    %v5117 = vperm.slane %v5053, 0
    %v5118 = vperm.slane %v5054, 0
    %v5119 = vperm.slane %v5055, 0
    %v5120 = vperm.slane %v5056, 0
    %v5121 = vperm.slane %v5057, 0
    %v5122 = vperm.slane %v5058, 0
    %v5123 = vperm.slane %v5059, 0
    %v5124 = vperm.slane %v5060, 0
    %v5125 = vperm.slane %v5061, 0
    %v5126 = vperm.slane %v5062, 0
    %v5127 = vperm.slane %v5063, 0
    %v5128 = vperm.slane %v5064, 0
    %v5129 = vperm.slane %v5065, 0
    %v5130 = vperm.slane %v5066, 0
    %v5131 = vperm.slane %v5067, 0
    %v5132 = vperm.slane %v5068, 0
    %v5133 = vperm.slane %v5069, 0
    %v5134 = vperm.slane %v5070, 0
    %v5135 = vperm.slane %v5071, 0
    %v5136 = vunpack.c.l.b16 %v5104
    %v5137 = vunpack.c.l.b16 %v5105
    %v5138 = vunpack.c.l.b16 %v5106
    %v5139 = vunpack.c.l.b16 %v5107
    %v5140 = vunpack.c.l.b16 %v5108
    %v5141 = vunpack.c.l.b16 %v5109
    %v5142 = vunpack.c.l.b16 %v5110
    %v5143 = vunpack.c.l.b16 %v5111
    %v5144 = vunpack.c.l.b16 %v5112
    %v5145 = vunpack.c.l.b16 %v5113
    %v5146 = vunpack.c.l.b16 %v5114
    %v5147 = vunpack.c.l.b16 %v5115
    %v5148 = vunpack.c.l.b16 %v5116
    %v5149 = vunpack.c.l.b16 %v5117
    %v5150 = vunpack.c.l.b16 %v5118
    %v5151 = vunpack.c.l.b16 %v5119
    %v5152 = vunpack.c.l.b16 %v5120
    %v5153 = vunpack.c.l.b16 %v5121
    %v5154 = vunpack.c.l.b16 %v5122
    %v5155 = vunpack.c.l.b16 %v5123
    %v5156 = vunpack.c.l.b16 %v5124
    %v5157 = vunpack.c.l.b16 %v5125
    %v5158 = vunpack.c.l.b16 %v5126
    %v5159 = vunpack.c.l.b16 %v5127
    %v5160 = vunpack.c.l.b16 %v5128
    %v5161 = vunpack.c.l.b16 %v5129
    %v5162 = vunpack.c.l.b16 %v5130
    %v5163 = vunpack.c.l.b16 %v5131
    %v5164 = vunpack.c.l.b16 %v5132
    %v5165 = vunpack.c.l.b16 %v5133
    %v5166 = vunpack.c.l.b16 %v5134
    %v5167 = vunpack.c.l.b16 %v5135
    %v5168 = vsel %vm2327, %v5137, %v5136
    %v5169 = vsel %vm2329, %v5138, %v5168
    %v5170 = vsel %vm2331, %v5139, %v5169
    %v5171 = vsel %vm2327, %v5141, %v5140
    %v5172 = vsel %vm2329, %v5142, %v5171
    %v5173 = vsel %vm2331, %v5143, %v5172
    %v5174 = vsel %vm2327, %v5145, %v5144
    %v5175 = vsel %vm2329, %v5146, %v5174
    %v5176 = vsel %vm2331, %v5147, %v5175
    %v5177 = vsel %vm2327, %v5149, %v5148
    %v5178 = vsel %vm2329, %v5150, %v5177
    %v5179 = vsel %vm2331, %v5151, %v5178
    %v5180 = vsel %vm2327, %v5153, %v5152
    %v5181 = vsel %vm2329, %v5154, %v5180
    %v5182 = vsel %vm2331, %v5155, %v5181
    %v5183 = vsel %vm2327, %v5157, %v5156
    %v5184 = vsel %vm2329, %v5158, %v5183
    %v5185 = vsel %vm2331, %v5159, %v5184
    %v5186 = vsel %vm2327, %v5161, %v5160
    %v5187 = vsel %vm2329, %v5162, %v5186
    %v5188 = vsel %vm2331, %v5163, %v5187
    %v5189 = vsel %vm2327, %v5165, %v5164
    %v5190 = vsel %vm2329, %v5166, %v5189
    %v5191 = vsel %vm2331, %v5167, %v5190
    %v5192 = vpack.c.b16 %v5170, %v5170
    %v5193 = vpack.c.b16 %v5173, %v5173
    %v5194 = vpack.c.b16 %v5176, %v5176
    %v5195 = vpack.c.b16 %v5179, %v5179
    %v5196 = vpack.c.b16 %v5182, %v5182
    %v5197 = vpack.c.b16 %v5185, %v5185
    %v5198 = vpack.c.b16 %v5188, %v5188
    %v5199 = vpack.c.b16 %v5191, %v5191
    %v5200 = vrot.slane %v5192, 7
    %v5201 = vrot.slane %v5193, 7
    %v5202 = vrot.slane %v5194, 7
    %v5203 = vrot.slane %v5195, 7
    %v5204 = vrot.slane %v5196, 7
    %v5205 = vrot.slane %v5197, 7
    %v5206 = vrot.slane %v5198, 7
    %v5207 = vrot.slane %v5199, 7
    %v5209 = vsel %vm2480, 0, %v5200
    %v5211 = vsel %vm2480, 0, %v5201
    %v5213 = vsel %vm2480, 0, %v5202
    %v5215 = vsel %vm2480, 0, %v5203
    %v5217 = vsel %vm2480, 0, %v5204
    %v5219 = vsel %vm2480, 0, %v5205
    %v5221 = vsel %vm2480, 0, %v5206
    %v5223 = vsel %vm2480, 0, %v5207
    %vm5224 = vcmask 1042432
    %v5225 = vsel %vm5224, %v2483, 0
    %v5226 = vsel %vm5224, %v5209, 0
    %v5227 = vsel %vm5224, %v5211, 0
    %v5228 = vsel %vm5224, %v5213, 0
    %v5229 = vsel %vm5224, %v5215, 0
    %v5230 = vsel %vm5224, %v5217, 0
    %v5231 = vsel %vm5224, %v5219, 0
    %v5232 = vsel %vm5224, %v5221, 0
    %v5233 = vsel %vm5224, %v5223, 0
    %v5234 = vshrl.u32 %v5225, 16
    %v5236 = vshll.u32 %v5225, 16
    %v5238 = vrot.slane %v5236, 1
    %v5239 = vor.u32 %v5234, %v5238
    %v5240 = vshrl.u32 %v5226, 16
    %v5242 = vshll.u32 %v5226, 16
    %v5244 = vrot.slane %v5242, 1
    %v5245 = vor.u32 %v5240, %v5244
    %v5246 = vshrl.u32 %v5227, 16
    %v5248 = vshll.u32 %v5227, 16
    %v5250 = vrot.slane %v5248, 1
    %v5251 = vor.u32 %v5246, %v5250
    %v5252 = vshrl.u32 %v5228, 16
    %v5254 = vshll.u32 %v5228, 16
    %v5256 = vrot.slane %v5254, 1
    %v5257 = vor.u32 %v5252, %v5256
    %v5258 = vshrl.u32 %v5229, 16
    %v5260 = vshll.u32 %v5229, 16
    %v5262 = vrot.slane %v5260, 1
    %v5263 = vor.u32 %v5258, %v5262
    %v5264 = vshrl.u32 %v5230, 16
    %v5266 = vshll.u32 %v5230, 16
    %v5268 = vrot.slane %v5266, 1
    %v5269 = vor.u32 %v5264, %v5268
    %v5270 = vshrl.u32 %v5231, 16
    %v5272 = vshll.u32 %v5231, 16
    %v5274 = vrot.slane %v5272, 1
    %v5275 = vor.u32 %v5270, %v5274
    %v5276 = vshrl.u32 %v5232, 16
    %v5278 = vshll.u32 %v5232, 16
    %v5280 = vrot.slane %v5278, 1
    %v5281 = vor.u32 %v5276, %v5280
    %v5282 = vshrl.u32 %v5233, 16
    %v5284 = vshll.u32 %v5233, 16
    %v5286 = vrot.slane %v5284, 1
    %v5287 = vor.u32 %v5282, %v5286
    %v5297 = vrot.slane %v5225, 1
    %v5298 = vrot.slane %v5226, 1
    %v5299 = vrot.slane %v5227, 1
    %v5300 = vrot.slane %v5228, 1
    %v5301 = vrot.slane %v5229, 1
    %v5302 = vrot.slane %v5230, 1
    %v5303 = vrot.slane %v5231, 1
    %v5304 = vrot.slane %v5232, 1
    %v5305 = vrot.slane %v5233, 1
    %v5306 = vrot.slane %v5234, 1
    %v5307 = vrot.slane %v5236, 2
    %v5308 = vor.u32 %v5306, %v5307
    %v5309 = vrot.slane %v5240, 1
    %v5310 = vrot.slane %v5242, 2
    %v5311 = vor.u32 %v5309, %v5310
    %v5312 = vrot.slane %v5246, 1
    %v5313 = vrot.slane %v5248, 2
    %v5314 = vor.u32 %v5312, %v5313
    %v5315 = vrot.slane %v5252, 1
    %v5316 = vrot.slane %v5254, 2
    %v5317 = vor.u32 %v5315, %v5316
    %v5318 = vrot.slane %v5258, 1
    %v5319 = vrot.slane %v5260, 2
    %v5320 = vor.u32 %v5318, %v5319
    %v5321 = vrot.slane %v5264, 1
    %v5322 = vrot.slane %v5266, 2
    %v5323 = vor.u32 %v5321, %v5322
    %v5324 = vrot.slane %v5270, 1
    %v5325 = vrot.slane %v5272, 2
    %v5326 = vor.u32 %v5324, %v5325
    %v5327 = vrot.slane %v5276, 1
    %v5328 = vrot.slane %v5278, 2
    %v5329 = vor.u32 %v5327, %v5328
    %v5330 = vrot.slane %v5282, 1
    %v5331 = vrot.slane %v5284, 2
    %v5332 = vor.u32 %v5330, %v5331
    %v5333 = vrot.slane %v5225, 2
    %v5334 = vrot.slane %v5226, 2
    %v5335 = vrot.slane %v5227, 2
    %v5336 = vrot.slane %v5228, 2
    %v5337 = vrot.slane %v5229, 2
    %v5338 = vrot.slane %v5230, 2
    %v5339 = vrot.slane %v5231, 2
    %v5340 = vrot.slane %v5232, 2
    %v5341 = vrot.slane %v5233, 2
    %v5342 = vrot.slane %v5239, 6
    %v5343 = vrot.slane %v5297, 4
    %v5344 = vrot.slane %v5308, 2
    %v5345 = vrot.slane %v5245, 6
    %v5346 = vrot.slane %v5298, 4
    %v5347 = vrot.slane %v5311, 2
    %v5348 = vrot.slane %v5251, 6
    %v5349 = vrot.slane %v5299, 4
    %v5350 = vrot.slane %v5314, 2
    %v5351 = vrot.slane %v5269, 6
    %v5352 = vrot.slane %v5302, 4
    %v5353 = vrot.slane %v5323, 2
    %v5354 = vrot.slane %v5275, 6
    %v5355 = vrot.slane %v5303, 4
    %v5356 = vrot.slane %v5326, 2
    %v5358 = vsel %vm4815, %v5225, %v5342
    %vm5359 = vcmask 1045508
    %v5362 = vsel %vm5359, %v5343, %v5344
    %vm5363 = vcmask 1043456
    %v5364 = vsel %vm5363, %v5358, %v5362
    %v5366 = vsel %vm4815, %v5226, %v5345
    %v5369 = vsel %vm5359, %v5346, %v5347
    %v5370 = vsel %vm5363, %v5366, %v5369
    %v5372 = vsel %vm4815, %v5227, %v5348
    %v5375 = vsel %vm5359, %v5349, %v5350
    %v5376 = vsel %vm5363, %v5372, %v5375
    %v5378 = vsel %vm4815, %v5230, %v5351
    %v5381 = vsel %vm5359, %v5352, %v5353
    %v5382 = vsel %vm5363, %v5378, %v5381
    %v5384 = vsel %vm4815, %v5231, %v5354
    %v5387 = vsel %vm5359, %v5355, %v5356
    %v5388 = vsel %vm5363, %v5384, %v5387
    %v5389 = vld [vmem:[%s5] sm:$0xf]
    %v5390 = vld [vmem:[%s5 + $0x4] sm:$0xf]
    %v5391 = vld [vmem:[%s5 + $0x8] sm:$0xf]
    %v5392 = vld [vmem:[%s5 + $0xc] sm:$0xf]
    %v5393 = vld [vmem:[%s5 + $0x10] sm:$0xf]
    %v5394 = vld [vmem:[%s5 + $0x14] sm:$0xf]
    %v5395 = vld [vmem:[%s5 + $0x18] sm:$0xf]
    %v5396 = vld [vmem:[%s5 + $0x1c] sm:$0xf]
    %v5397 = vld [vmem:[%s5 + $0x20] sm:$0xf]
    %v5398 = vld [vmem:[%s5 + $0x24] sm:$0xf]
    %v5399 = vld [vmem:[%s5 + $0x28] sm:$0xf]
    %v5400 = vld [vmem:[%s5 + $0x2c] sm:$0xf]
    %v5401 = vld [vmem:[%s5 + $0x30] sm:$0xf]
    %v5402 = vld [vmem:[%s5 + $0x34] sm:$0xf]
    %v5403 = vld [vmem:[%s5 + $0x38] sm:$0xf]
    %v5404 = vld [vmem:[%s5 + $0x3c] sm:$0xf]
    %v5405 = vld [vmem:[%s5 + $0x40] sm:$0xf]
    %v5406 = vld [vmem:[%s5 + $0x44] sm:$0xf]
    %v5407 = vld [vmem:[%s5 + $0x48] sm:$0xf]
    %v5408 = vld [vmem:[%s5 + $0x4c] sm:$0xf]
    %v5409 = vld [vmem:[%s5 + $0x50] sm:$0xf]
    %v5410 = vld [vmem:[%s5 + $0x54] sm:$0xf]
    %v5411 = vld [vmem:[%s5 + $0x58] sm:$0xf]
    %v5412 = vld [vmem:[%s5 + $0x5c] sm:$0xf]
    %v5413 = vld [vmem:[%s5 + $0x60] sm:$0xf]
    %v5414 = vld [vmem:[%s5 + $0x64] sm:$0xf]
    %v5415 = vld [vmem:[%s5 + $0x68] sm:$0xf]
    %v5416 = vld [vmem:[%s5 + $0x6c] sm:$0xf]
    %v5417 = vld [vmem:[%s5 + $0x70] sm:$0xf]
    %v5418 = vld [vmem:[%s5 + $0x74] sm:$0xf]
    %v5419 = vld [vmem:[%s5 + $0x78] sm:$0xf]
    %v5420 = vld [vmem:[%s5 + $0x7c] sm:$0xf]
    %v5421 = vld [vmem:[%s5 + $0x80] sm:$0xf]
    %v5422 = vld [vmem:[%s5 + $0x84] sm:$0xf]
    %v5423 = vld [vmem:[%s5 + $0x88] sm:$0xf]
    %v5424 = vld [vmem:[%s5 + $0x8c] sm:$0xf]
    %v5425 = vld [vmem:[%s5 + $0x90] sm:$0xf]
    %v5426 = vld [vmem:[%s5 + $0x94] sm:$0xf]
    %v5427 = vld [vmem:[%s5 + $0x98] sm:$0xf]
    %v5428 = vld [vmem:[%s5 + $0x9c] sm:$0xf]
    %v5429 = vld [vmem:[%s5 + $0xa0] sm:$0xf]
    %v5430 = vld [vmem:[%s5 + $0xa4] sm:$0xf]
    %v5431 = vld [vmem:[%s5 + $0xa8] sm:$0xf]
    %v5432 = vld [vmem:[%s5 + $0xac] sm:$0xf]
    %v5433 = vld [vmem:[%s5 + $0xb0] sm:$0xf]
    %v5434 = vld [vmem:[%s5 + $0xb4] sm:$0xf]
    %v5435 = vld [vmem:[%s5 + $0xb8] sm:$0xf]
    %v5436 = vld [vmem:[%s5 + $0xbc] sm:$0xf]
    %v5437 = vld [vmem:[%s5 + $0xc0] sm:$0xf]
    %v5438 = vld [vmem:[%s5 + $0xc4] sm:$0xf]
    %v5439 = vld [vmem:[%s5 + $0xc8] sm:$0xf]
    %v5440 = vld [vmem:[%s5 + $0xcc] sm:$0xf]
    %v5441 = vld [vmem:[%s5 + $0xd0] sm:$0xf]
    %v5442 = vld [vmem:[%s5 + $0xd4] sm:$0xf]
    %v5443 = vld [vmem:[%s5 + $0xd8] sm:$0xf]
    %v5444 = vld [vmem:[%s5 + $0xdc] sm:$0xf]
    %v5445 = vld [vmem:[%s5 + $0xe0] sm:$0xf]
    %v5446 = vld [vmem:[%s5 + $0xe4] sm:$0xf]
    %v5447 = vld [vmem:[%s5 + $0xe8] sm:$0xf]
    %v5448 = vld [vmem:[%s5 + $0xec] sm:$0xf]
    %v5449 = vld [vmem:[%s5 + $0xf0] sm:$0xf]
    %v5450 = vld [vmem:[%s5 + $0xf4] sm:$0xf]
    %v5451 = vld [vmem:[%s5 + $0xf8] sm:$0xf]
    %v5452 = vld [vmem:[%s5 + $0xfc] sm:$0xf]
    %v5453 = vld [vmem:[%s5 + $0x100] sm:$0xf]
    %v5454 = vld [vmem:[%s5 + $0x104] sm:$0xf]
    %v5455 = vld [vmem:[%s5 + $0x108] sm:$0xf]
    %v5456 = vld [vmem:[%s5 + $0x10c] sm:$0xf]
    %v5457 = vld [vmem:[%s5 + $0x110] sm:$0xf]
    %v5458 = vld [vmem:[%s5 + $0x114] sm:$0xf]
    %v5459 = vld [vmem:[%s5 + $0x118] sm:$0xf]
    %v5460 = vld [vmem:[%s5 + $0x11c] sm:$0xf]
    %v5461 = vld [vmem:[%s5 + $0x120] sm:$0xf]
    %v5462 = vld [vmem:[%s5 + $0x124] sm:$0xf]
    %v5463 = vld [vmem:[%s5 + $0x128] sm:$0xf]
    %v5464 = vld [vmem:[%s5 + $0x12c] sm:$0xf]
    %v5465 = vld [vmem:[%s5 + $0x130] sm:$0xf]
    %v5466 = vld [vmem:[%s5 + $0x134] sm:$0xf]
    %v5467 = vld [vmem:[%s5 + $0x138] sm:$0xf]
    %v5468 = vld [vmem:[%s5 + $0x13c] sm:$0xf]
    %v5469 = vrot.slane %v5257, 6
    %v5470 = vrot.slane %v5300, 4
    %v5471 = vrot.slane %v5317, 2
    %v5472 = vrot.slane %v5281, 6
    %v5473 = vrot.slane %v5304, 4
    %v5474 = vrot.slane %v5329, 2
    %v5476 = vsel %vm4815, %v5228, %v5469
    %v5479 = vsel %vm5359, %v5470, %v5471
    %v5480 = vsel %vm5363, %v5476, %v5479
    %v5482 = vsel %vm4815, %v5232, %v5472
    %v5485 = vsel %vm5359, %v5473, %v5474
    %v5486 = vsel %vm5363, %v5482, %v5485
    %s5487 = scalar_lea.vmem %s5, 320
    %v5488 = vld [vmem:[%s5487] sm:$0xf]
    %v5489 = vld [vmem:[%s5487 + $0x4] sm:$0xf]
    %v5490 = vld [vmem:[%s5487 + $0x8] sm:$0xf]
    %v5491 = vld [vmem:[%s5487 + $0xc] sm:$0xf]
    %v5492 = vld [vmem:[%s5487 + $0x10] sm:$0xf]
    %v5493 = vld [vmem:[%s5487 + $0x14] sm:$0xf]
    %v5494 = vld [vmem:[%s5487 + $0x18] sm:$0xf]
    %v5495 = vld [vmem:[%s5487 + $0x1c] sm:$0xf]
    %v5496 = vld [vmem:[%s5487 + $0x20] sm:$0xf]
    %v5497 = vld [vmem:[%s5487 + $0x24] sm:$0xf]
    %v5498 = vld [vmem:[%s5487 + $0x28] sm:$0xf]
    %v5499 = vld [vmem:[%s5487 + $0x2c] sm:$0xf]
    %v5500 = vld [vmem:[%s5487 + $0x30] sm:$0xf]
    %v5501 = vld [vmem:[%s5487 + $0x34] sm:$0xf]
    %v5502 = vld [vmem:[%s5487 + $0x38] sm:$0xf]
    %v5503 = vld [vmem:[%s5487 + $0x3c] sm:$0xf]
    %v5504 = vld [vmem:[%s5487 + $0x40] sm:$0xf]
    %v5505 = vld [vmem:[%s5487 + $0x44] sm:$0xf]
    %v5506 = vld [vmem:[%s5487 + $0x48] sm:$0xf]
    %v5507 = vld [vmem:[%s5487 + $0x4c] sm:$0xf]
    %v5508 = vld [vmem:[%s5487 + $0x50] sm:$0xf]
    %v5509 = vld [vmem:[%s5487 + $0x54] sm:$0xf]
    %v5510 = vld [vmem:[%s5487 + $0x58] sm:$0xf]
    %v5511 = vld [vmem:[%s5487 + $0x5c] sm:$0xf]
    %v5512 = vld [vmem:[%s5487 + $0x60] sm:$0xf]
    %v5513 = vld [vmem:[%s5487 + $0x64] sm:$0xf]
    %v5514 = vld [vmem:[%s5487 + $0x68] sm:$0xf]
    %v5515 = vld [vmem:[%s5487 + $0x6c] sm:$0xf]
    %v5516 = vld [vmem:[%s5487 + $0x70] sm:$0xf]
    %v5517 = vld [vmem:[%s5487 + $0x74] sm:$0xf]
    %v5518 = vld [vmem:[%s5487 + $0x78] sm:$0xf]
    %v5519 = vld [vmem:[%s5487 + $0x7c] sm:$0xf]
    %v5520 = vld [vmem:[%s5487 + $0x80] sm:$0xf]
    %v5521 = vld [vmem:[%s5487 + $0x84] sm:$0xf]
    %v5522 = vld [vmem:[%s5487 + $0x88] sm:$0xf]
    %v5523 = vld [vmem:[%s5487 + $0x8c] sm:$0xf]
    %v5524 = vld [vmem:[%s5487 + $0x90] sm:$0xf]
    %v5525 = vld [vmem:[%s5487 + $0x94] sm:$0xf]
    %v5526 = vld [vmem:[%s5487 + $0x98] sm:$0xf]
    %v5527 = vld [vmem:[%s5487 + $0x9c] sm:$0xf]
    %v5528 = vld [vmem:[%s5487 + $0xa0] sm:$0xf]
    %v5529 = vld [vmem:[%s5487 + $0xa4] sm:$0xf]
    %v5530 = vld [vmem:[%s5487 + $0xa8] sm:$0xf]
    %v5531 = vld [vmem:[%s5487 + $0xac] sm:$0xf]
    %v5532 = vld [vmem:[%s5487 + $0xb0] sm:$0xf]
    %v5533 = vld [vmem:[%s5487 + $0xb4] sm:$0xf]
    %v5534 = vld [vmem:[%s5487 + $0xb8] sm:$0xf]
    %v5535 = vld [vmem:[%s5487 + $0xbc] sm:$0xf]
    %v5536 = vld [vmem:[%s5487 + $0xc0] sm:$0xf]
    %v5537 = vld [vmem:[%s5487 + $0xc4] sm:$0xf]
    %v5538 = vld [vmem:[%s5487 + $0xc8] sm:$0xf]
    %v5539 = vld [vmem:[%s5487 + $0xcc] sm:$0xf]
    %v5540 = vld [vmem:[%s5487 + $0xd0] sm:$0xf]
    %v5541 = vld [vmem:[%s5487 + $0xd4] sm:$0xf]
    %v5542 = vld [vmem:[%s5487 + $0xd8] sm:$0xf]
    %v5543 = vld [vmem:[%s5487 + $0xdc] sm:$0xf]
    %v5544 = vld [vmem:[%s5487 + $0xe0] sm:$0xf]
    %v5545 = vld [vmem:[%s5487 + $0xe4] sm:$0xf]
    %v5546 = vld [vmem:[%s5487 + $0xe8] sm:$0xf]
    %v5547 = vld [vmem:[%s5487 + $0xec] sm:$0xf]
    %v5548 = vld [vmem:[%s5487 + $0xf0] sm:$0xf]
    %v5549 = vld [vmem:[%s5487 + $0xf4] sm:$0xf]
    %v5550 = vld [vmem:[%s5487 + $0xf8] sm:$0xf]
    %v5551 = vld [vmem:[%s5487 + $0xfc] sm:$0xf]
    %v5552 = vld [vmem:[%s5487 + $0x100] sm:$0xf]
    %v5553 = vld [vmem:[%s5487 + $0x104] sm:$0xf]
    %v5554 = vld [vmem:[%s5487 + $0x108] sm:$0xf]
    %v5555 = vld [vmem:[%s5487 + $0x10c] sm:$0xf]
    %v5556 = vld [vmem:[%s5487 + $0x110] sm:$0xf]
    %v5557 = vld [vmem:[%s5487 + $0x114] sm:$0xf]
    %v5558 = vld [vmem:[%s5487 + $0x118] sm:$0xf]
    %v5559 = vld [vmem:[%s5487 + $0x11c] sm:$0xf]
    %v5560 = vld [vmem:[%s5487 + $0x120] sm:$0xf]
    %v5561 = vld [vmem:[%s5487 + $0x124] sm:$0xf]
    %v5562 = vld [vmem:[%s5487 + $0x128] sm:$0xf]
    %v5563 = vld [vmem:[%s5487 + $0x12c] sm:$0xf]
    %v5564 = vld [vmem:[%s5487 + $0x130] sm:$0xf]
    %v5565 = vld [vmem:[%s5487 + $0x134] sm:$0xf]
    %v5566 = vld [vmem:[%s5487 + $0x138] sm:$0xf]
    %v5567 = vld [vmem:[%s5487 + $0x13c] sm:$0xf]
    %5568 = vst [vmem:[#allocation1] ss:$4 sm:$0xff] %v5364
    %s5569 = scalar_lea.vmem [#allocation1], 1
    %5570 = vst [vmem:[%s5569] ss:$4 sm:$0xff] %v5370
    %s5571 = scalar_lea.vmem [#allocation1], 2
    %5572 = vst [vmem:[%s5571] ss:$4 sm:$0xff] %v5376
    %s5573 = scalar_lea.vmem [#allocation1], 3
    %5574 = vst [vmem:[%s5573] ss:$4 sm:$0xff] %v5480
    %s5576 = scalar_lea.vmem [#allocation1], 32
    %5577 = vst [vmem:[%s5576] ss:$4 sm:$0xff] %v5333
    %s5579 = scalar_lea.vmem [#allocation1], 33
    %5580 = vst [vmem:[%s5579] ss:$4 sm:$0xff] %v5334
    %s5582 = scalar_lea.vmem [#allocation1], 34
    %5583 = vst [vmem:[%s5582] ss:$4 sm:$0xff] %v5335
    %s5585 = scalar_lea.vmem [#allocation1], 35
    %5586 = vst [vmem:[%s5585] ss:$4 sm:$0xff] %v5336
    %v5587 = vld.sshfl [vmem:[#allocation1] sm:$0xff pattern:$0x73625140]
    %v5588 = vld.sshfl [vmem:[#allocation1 + $0x8] sm:$0xff pattern:$0x73625140]
    %v5589 = vld.sshfl [vmem:[#allocation1 + $0x10] sm:$0xff pattern:$0x73625140]
    %v5590 = vld.sshfl [vmem:[#allocation1 + $0x18] sm:$0xff pattern:$0x73625140]
    %v5591 = vld.sshfl [vmem:[#allocation1 + $0x20] sm:$0xff pattern:$0x73625140]
    %5592 = vst [vmem:[#allocation1] ss:$4 sm:$0xff] %v5364
    %5593 = vst [vmem:[%s5569] ss:$4 sm:$0xff] %v5382
    %5594 = vst [vmem:[%s5571] ss:$4 sm:$0xff] %v5388
    %5595 = vst [vmem:[%s5573] ss:$4 sm:$0xff] %v5486
    %5596 = vst [vmem:[%s5576] ss:$4 sm:$0xff] %v5333
    %5598 = vst [vmem:[%s5579] ss:$4 sm:$0xff] %v5338
    %5600 = vst [vmem:[%s5582] ss:$4 sm:$0xff] %v5339
    %5602 = vst [vmem:[%s5585] ss:$4 sm:$0xff] %v5340
    %v5603 = vld.sshfl [vmem:[#allocation1] sm:$0xff pattern:$0x73625140]
    %v5604 = vld.sshfl [vmem:[#allocation1 + $0x8] sm:$0xff pattern:$0x73625140]
    %v5605 = vld.sshfl [vmem:[#allocation1 + $0x10] sm:$0xff pattern:$0x73625140]
    %v5606 = vld.sshfl [vmem:[#allocation1 + $0x18] sm:$0xff pattern:$0x73625140]
    %v5607 = vld.sshfl [vmem:[#allocation1 + $0x20] sm:$0xff pattern:$0x73625140]
    %v5698 = vunpack.c.l.b16 %v5488
    %v5699 = vunpack.c.l.b16 %v5489
    %v5700 = vunpack.c.l.b16 %v5490
    %v5701 = vunpack.c.l.b16 %v5491
    %v5702 = vunpack.c.l.b16 %v5492
    %v5703 = vunpack.c.l.b16 %v5493
    %v5704 = vunpack.c.l.b16 %v5494
    %v5705 = vunpack.c.l.b16 %v5495
    %v5706 = vunpack.c.l.b16 %v5496
    %v5707 = vunpack.c.l.b16 %v5497
    %v5708 = vunpack.c.l.b16 %v5498
    %v5709 = vunpack.c.l.b16 %v5499
    %v5710 = vunpack.c.l.b16 %v5500
    %v5711 = vunpack.c.l.b16 %v5501
    %v5712 = vunpack.c.l.b16 %v5502
    %v5713 = vunpack.c.l.b16 %v5503
    %v5714 = vunpack.c.l.b16 %v5504
    %v5715 = vunpack.c.l.b16 %v5505
    %v5716 = vunpack.c.l.b16 %v5506
    %v5717 = vunpack.c.l.b16 %v5507
    %v5718 = vunpack.c.l.b16 %v5508
    %v5719 = vunpack.c.l.b16 %v5509
    %v5720 = vunpack.c.l.b16 %v5510
    %v5721 = vunpack.c.l.b16 %v5511
    %v5722 = vunpack.c.l.b16 %v5512
    %v5723 = vunpack.c.l.b16 %v5513
    %v5724 = vunpack.c.l.b16 %v5514
    %v5725 = vunpack.c.l.b16 %v5515
    %v5726 = vunpack.c.l.b16 %v5516
    %v5727 = vunpack.c.l.b16 %v5517
    %v5728 = vunpack.c.l.b16 %v5518
    %v5729 = vunpack.c.l.b16 %v5519
    %v5730 = vunpack.c.l.b16 %v5520
    %v5731 = vunpack.c.l.b16 %v5521
    %v5732 = vunpack.c.l.b16 %v5522
    %v5733 = vunpack.c.l.b16 %v5523
    %v5734 = vunpack.c.l.b16 %v5524
    %v5735 = vunpack.c.l.b16 %v5525
    %v5736 = vunpack.c.l.b16 %v5526
    %v5737 = vunpack.c.l.b16 %v5527
    %v5738 = vunpack.c.l.b16 %v5528
    %v5739 = vunpack.c.l.b16 %v5529
    %v5740 = vunpack.c.l.b16 %v5530
    %v5741 = vunpack.c.l.b16 %v5531
    %v5742 = vunpack.c.l.b16 %v5532
    %v5743 = vunpack.c.l.b16 %v5533
    %v5744 = vunpack.c.l.b16 %v5534
    %v5745 = vunpack.c.l.b16 %v5535
    %v5746 = vunpack.c.l.b16 %v5536
    %v5747 = vunpack.c.l.b16 %v5537
    %v5748 = vunpack.c.l.b16 %v5538
    %v5749 = vunpack.c.l.b16 %v5539
    %v5750 = vunpack.c.l.b16 %v5540
    %v5751 = vunpack.c.l.b16 %v5541
    %v5752 = vunpack.c.l.b16 %v5542
    %v5753 = vunpack.c.l.b16 %v5543
    %v5754 = vunpack.c.l.b16 %v5544
    %v5755 = vunpack.c.l.b16 %v5545
    %v5756 = vunpack.c.l.b16 %v5546
    %v5757 = vunpack.c.l.b16 %v5547
    %v5758 = vunpack.c.l.b16 %v5548
    %v5759 = vunpack.c.l.b16 %v5549
    %v5760 = vunpack.c.l.b16 %v5550
    %v5761 = vunpack.c.l.b16 %v5551
    %v5762 = vunpack.c.l.b16 %v5552
    %v5763 = vunpack.c.l.b16 %v5553
    %v5764 = vunpack.c.l.b16 %v5554
    %v5765 = vunpack.c.l.b16 %v5555
    %v5766 = vunpack.c.l.b16 %v5556
    %v5767 = vunpack.c.l.b16 %v5557
    %v5768 = vunpack.c.l.b16 %v5558
    %v5769 = vunpack.c.l.b16 %v5559
    %v5770 = vunpack.c.l.b16 %v5560
    %v5771 = vunpack.c.l.b16 %v5561
    %v5772 = vunpack.c.l.b16 %v5562
    %v5773 = vunpack.c.l.b16 %v5563
    %v5774 = vunpack.c.l.b16 %v5564
    %v5775 = vunpack.c.l.b16 %v5565
    %v5776 = vunpack.c.l.b16 %v5566
    %v5777 = vunpack.c.l.b16 %v5567
    %v5778 = vpack.c.b16 %v5699, %v5698
    %v5779 = vpack.c.b16 %v5701, %v5700
    %v5780 = vpack.c.b16 %v5703, %v5702
    %v5781 = vpack.c.b16 %v5705, %v5704
    %v5782 = vpack.c.b16 %v5707, %v5706
    %v5783 = vpack.c.b16 %v5709, %v5708
    %v5784 = vpack.c.b16 %v5711, %v5710
    %v5785 = vpack.c.b16 %v5713, %v5712
    %v5786 = vpack.c.b16 %v5715, %v5714
    %v5787 = vpack.c.b16 %v5717, %v5716
    %v5788 = vpack.c.b16 %v5719, %v5718
    %v5789 = vpack.c.b16 %v5721, %v5720
    %v5790 = vpack.c.b16 %v5723, %v5722
    %v5791 = vpack.c.b16 %v5725, %v5724
    %v5792 = vpack.c.b16 %v5727, %v5726
    %v5793 = vpack.c.b16 %v5729, %v5728
    %v5794 = vpack.c.b16 %v5731, %v5730
    %v5795 = vpack.c.b16 %v5733, %v5732
    %v5796 = vpack.c.b16 %v5735, %v5734
    %v5797 = vpack.c.b16 %v5737, %v5736
    %v5798 = vpack.c.b16 %v5739, %v5738
    %v5799 = vpack.c.b16 %v5741, %v5740
    %v5800 = vpack.c.b16 %v5743, %v5742
    %v5801 = vpack.c.b16 %v5745, %v5744
    %v5802 = vpack.c.b16 %v5747, %v5746
    %v5803 = vpack.c.b16 %v5749, %v5748
    %v5804 = vpack.c.b16 %v5751, %v5750
    %v5805 = vpack.c.b16 %v5753, %v5752
    %v5806 = vpack.c.b16 %v5755, %v5754
    %v5807 = vpack.c.b16 %v5757, %v5756
    %v5808 = vpack.c.b16 %v5759, %v5758
    %v5809 = vpack.c.b16 %v5761, %v5760
    %v5810 = vpack.c.b16 %v5763, %v5762
    %v5811 = vpack.c.b16 %v5765, %v5764
    %v5812 = vpack.c.b16 %v5767, %v5766
    %v5813 = vpack.c.b16 %v5769, %v5768
    %v5814 = vpack.c.b16 %v5771, %v5770
    %v5815 = vpack.c.b16 %v5773, %v5772
    %v5816 = vpack.c.b16 %v5775, %v5774
    %v5817 = vpack.c.b16 %v5777, %v5776
    %5858 = vmatpush.bf16.msra.mxu0 %v5785
    %5859 = vmatpush.bf16.msra.mxu0 %v5784
    %5860 = vmatpush.bf16.msra.mxu0 %v5783
    %5861 = vmatpush.bf16.msra.mxu0 %v5782
    %5862 = vmatpush.bf16.msra.mxu0 %v5781
    %5863 = vmatpush.bf16.msra.mxu0 %v5780
    %5864 = vmatpush.bf16.msra.mxu0 %v5779
    %5865 = vmatpush.bf16.msra.mxu0 %v5778
    %5866 = vmatmul.bf16.gmra.mxu0 %v5587
    %v5867 = vpop.f32.mrf.mxu0
    %v5868 = vadd.f32 0.0, %v5867
    %v5869 = vpop.f32.mrf.mxu0
    %v5870 = vadd.f32 0.0, %v5869
    %5871 = vmatmul.bf16.gmra.mxu0 %v5603
    %v5872 = vpop.f32.mrf.mxu0
    %v5873 = vadd.f32 0.0, %v5872
    %v5874 = vpop.f32.mrf.mxu0
    %v5875 = vadd.f32 0.0, %v5874
    %5876 = vdwg.mxu0
    %5877 = vmatpush.bf16.msra.mxu0 %v5793
    %5878 = vmatpush.bf16.msra.mxu0 %v5792
    %5879 = vmatpush.bf16.msra.mxu0 %v5791
    %5880 = vmatpush.bf16.msra.mxu0 %v5790
    %5881 = vmatpush.bf16.msra.mxu0 %v5789
    %5882 = vmatpush.bf16.msra.mxu0 %v5788
    %5883 = vmatpush.bf16.msra.mxu0 %v5787
    %5884 = vmatpush.bf16.msra.mxu0 %v5786
    %5885 = vmatmul.bf16.gmra.mxu0 %v5588
    %v5886 = vpop.f32.mrf.mxu0
    %v5887 = vadd.f32 %v5868, %v5886
    %v5888 = vpop.f32.mrf.mxu0
    %v5889 = vadd.f32 %v5870, %v5888
    %5890 = vmatmul.bf16.gmra.mxu0 %v5604
    %v5891 = vpop.f32.mrf.mxu0
    %v5892 = vadd.f32 %v5873, %v5891
    %v5893 = vpop.f32.mrf.mxu0
    %v5894 = vadd.f32 %v5875, %v5893
    %5895 = vdwg.mxu0
    %5896 = vmatpush.bf16.msra.mxu0 %v5801
    %5897 = vmatpush.bf16.msra.mxu0 %v5800
    %5898 = vmatpush.bf16.msra.mxu0 %v5799
    %5899 = vmatpush.bf16.msra.mxu0 %v5798
    %5900 = vmatpush.bf16.msra.mxu0 %v5797
    %5901 = vmatpush.bf16.msra.mxu0 %v5796
    %5902 = vmatpush.bf16.msra.mxu0 %v5795
    %5903 = vmatpush.bf16.msra.mxu0 %v5794
    %5904 = vmatmul.bf16.gmra.mxu0 %v5589
    %v5905 = vpop.f32.mrf.mxu0
    %v5906 = vadd.f32 %v5887, %v5905
    %v5907 = vpop.f32.mrf.mxu0
    %v5908 = vadd.f32 %v5889, %v5907
    %5909 = vmatmul.bf16.gmra.mxu0 %v5605
    %v5910 = vpop.f32.mrf.mxu0
    %v5911 = vadd.f32 %v5892, %v5910
    %v5912 = vpop.f32.mrf.mxu0
    %v5913 = vadd.f32 %v5894, %v5912
    %5914 = vdwg.mxu0
    %5915 = vmatpush.bf16.msra.mxu0 %v5809
    %5916 = vmatpush.bf16.msra.mxu0 %v5808
    %5917 = vmatpush.bf16.msra.mxu0 %v5807
    %5918 = vmatpush.bf16.msra.mxu0 %v5806
    %5919 = vmatpush.bf16.msra.mxu0 %v5805
    %5920 = vmatpush.bf16.msra.mxu0 %v5804
    %5921 = vmatpush.bf16.msra.mxu0 %v5803
    %5922 = vmatpush.bf16.msra.mxu0 %v5802
    %5923 = vmatmul.bf16.gmra.mxu0 %v5590
    %v5924 = vpop.f32.mrf.mxu0
    %v5925 = vadd.f32 %v5906, %v5924
    %v5926 = vpop.f32.mrf.mxu0
    %v5927 = vadd.f32 %v5908, %v5926
    %5928 = vmatmul.bf16.gmra.mxu0 %v5606
    %v5929 = vpop.f32.mrf.mxu0
    %v5930 = vadd.f32 %v5911, %v5929
    %v5931 = vpop.f32.mrf.mxu0
    %v5932 = vadd.f32 %v5913, %v5931
    %5933 = vdwg.mxu0
    %5934 = vmatpush.bf16.msra.mxu0 %v5817
    %5935 = vmatpush.bf16.msra.mxu0 %v5816
    %5936 = vmatpush.bf16.msra.mxu0 %v5815
    %5937 = vmatpush.bf16.msra.mxu0 %v5814
    %5938 = vmatpush.bf16.msra.mxu0 %v5813
    %5939 = vmatpush.bf16.msra.mxu0 %v5812
    %5940 = vmatpush.bf16.msra.mxu0 %v5811
    %5941 = vmatpush.bf16.msra.mxu0 %v5810
    %5942 = vmatmul.bf16.gmra.mxu0 %v5591
    %v5943 = vpop.f32.mrf.mxu0
    %v5944 = vadd.f32 %v5925, %v5943
    %v5945 = vpop.f32.mrf.mxu0
    %v5946 = vadd.f32 %v5927, %v5945
    %5947 = vmatmul.bf16.gmra.mxu0 %v5607
    %v5948 = vpop.f32.mrf.mxu0
    %v5949 = vadd.f32 %v5930, %v5948
    %v5950 = vpop.f32.mrf.mxu0
    %v5951 = vadd.f32 %v5932, %v5950
    %5952 = vdwg.mxu0
    %5953 = vst [vmem:[#allocation1] ss:$4 sm:$0xff] %v5364
    %s5954 = scalar_lea.vmem [#allocation1], 1
    %5955 = vst [vmem:[%s5954] ss:$4 sm:$0xff] %v5364
    %s5956 = scalar_lea.vmem [#allocation1], 2
    %5957 = vst [vmem:[%s5956] ss:$4 sm:$0xff] %v5370
    %s5958 = scalar_lea.vmem [#allocation1], 3
    %5959 = vst [vmem:[%s5958] ss:$4 sm:$0xff] %v5376
    %s5960 = scalar_lea.vmem [#allocation1], 32
    %5961 = vst [vmem:[%s5960] ss:$4 sm:$0xff] %v5333
    %s5962 = scalar_lea.vmem [#allocation1], 33
    %5963 = vst [vmem:[%s5962] ss:$4 sm:$0xff] %v5333
    %s5964 = scalar_lea.vmem [#allocation1], 34
    %5965 = vst [vmem:[%s5964] ss:$4 sm:$0xff] %v5334
    %s5966 = scalar_lea.vmem [#allocation1], 35
    %5967 = vst [vmem:[%s5966] ss:$4 sm:$0xff] %v5335
    %v5968 = vld.sshfl [vmem:[#allocation1] sm:$0xff pattern:$0x73625140]
    %v5969 = vld.sshfl [vmem:[#allocation1 + $0x8] sm:$0xff pattern:$0x73625140]
    %v5970 = vld.sshfl [vmem:[#allocation1 + $0x10] sm:$0xff pattern:$0x73625140]
    %v5971 = vld.sshfl [vmem:[#allocation1 + $0x18] sm:$0xff pattern:$0x73625140]
    %v5972 = vld.sshfl [vmem:[#allocation1 + $0x20] sm:$0xff pattern:$0x73625140]
    %5973 = vst [vmem:[#allocation1] ss:$4 sm:$0xff] %v5364
    %5974 = vst [vmem:[%s5954] ss:$4 sm:$0xff] %v5364
    %5975 = vst [vmem:[%s5956] ss:$4 sm:$0xff] %v5382
    %5976 = vst [vmem:[%s5958] ss:$4 sm:$0xff] %v5388
    %5977 = vst [vmem:[%s5960] ss:$4 sm:$0xff] %v5333
    %5978 = vst [vmem:[%s5962] ss:$4 sm:$0xff] %v5333
    %5979 = vst [vmem:[%s5964] ss:$4 sm:$0xff] %v5338
    %5980 = vst [vmem:[%s5966] ss:$4 sm:$0xff] %v5339
    %v5981 = vld.sshfl [vmem:[#allocation1] sm:$0xff pattern:$0x73625140]
    %v5982 = vld.sshfl [vmem:[#allocation1 + $0x8] sm:$0xff pattern:$0x73625140]
    %v5983 = vld.sshfl [vmem:[#allocation1 + $0x10] sm:$0xff pattern:$0x73625140]
    %v5984 = vld.sshfl [vmem:[#allocation1 + $0x18] sm:$0xff pattern:$0x73625140]
    %v5985 = vld.sshfl [vmem:[#allocation1 + $0x20] sm:$0xff pattern:$0x73625140]
    %v6076 = vunpack.c.l.b16 %v5389
    %v6077 = vunpack.c.l.b16 %v5390
    %v6078 = vunpack.c.l.b16 %v5391
    %v6079 = vunpack.c.l.b16 %v5392
    %v6080 = vunpack.c.l.b16 %v5393
    %v6081 = vunpack.c.l.b16 %v5394
    %v6082 = vunpack.c.l.b16 %v5395
    %v6083 = vunpack.c.l.b16 %v5396
    %v6084 = vunpack.c.l.b16 %v5397
    %v6085 = vunpack.c.l.b16 %v5398
    %v6086 = vunpack.c.l.b16 %v5399
    %v6087 = vunpack.c.l.b16 %v5400
    %v6088 = vunpack.c.l.b16 %v5401
    %v6089 = vunpack.c.l.b16 %v5402
    %v6090 = vunpack.c.l.b16 %v5403
    %v6091 = vunpack.c.l.b16 %v5404
    %v6092 = vunpack.c.l.b16 %v5405
    %v6093 = vunpack.c.l.b16 %v5406
    %v6094 = vunpack.c.l.b16 %v5407
    %v6095 = vunpack.c.l.b16 %v5408
    %v6096 = vunpack.c.l.b16 %v5409
    %v6097 = vunpack.c.l.b16 %v5410
    %v6098 = vunpack.c.l.b16 %v5411
    %v6099 = vunpack.c.l.b16 %v5412
    %v6100 = vunpack.c.l.b16 %v5413
    %v6101 = vunpack.c.l.b16 %v5414
    %v6102 = vunpack.c.l.b16 %v5415
    %v6103 = vunpack.c.l.b16 %v5416
    %v6104 = vunpack.c.l.b16 %v5417
    %v6105 = vunpack.c.l.b16 %v5418
    %v6106 = vunpack.c.l.b16 %v5419
    %v6107 = vunpack.c.l.b16 %v5420
    %v6108 = vunpack.c.l.b16 %v5421
    %v6109 = vunpack.c.l.b16 %v5422
    %v6110 = vunpack.c.l.b16 %v5423
    %v6111 = vunpack.c.l.b16 %v5424
    %v6112 = vunpack.c.l.b16 %v5425
    %v6113 = vunpack.c.l.b16 %v5426
    %v6114 = vunpack.c.l.b16 %v5427
    %v6115 = vunpack.c.l.b16 %v5428
    %v6116 = vunpack.c.l.b16 %v5429
    %v6117 = vunpack.c.l.b16 %v5430
    %v6118 = vunpack.c.l.b16 %v5431
    %v6119 = vunpack.c.l.b16 %v5432
    %v6120 = vunpack.c.l.b16 %v5433
    %v6121 = vunpack.c.l.b16 %v5434
    %v6122 = vunpack.c.l.b16 %v5435
    %v6123 = vunpack.c.l.b16 %v5436
    %v6124 = vunpack.c.l.b16 %v5437
    %v6125 = vunpack.c.l.b16 %v5438
    %v6126 = vunpack.c.l.b16 %v5439
    %v6127 = vunpack.c.l.b16 %v5440
    %v6128 = vunpack.c.l.b16 %v5441
    %v6129 = vunpack.c.l.b16 %v5442
    %v6130 = vunpack.c.l.b16 %v5443
    %v6131 = vunpack.c.l.b16 %v5444
    %v6132 = vunpack.c.l.b16 %v5445
    %v6133 = vunpack.c.l.b16 %v5446
    %v6134 = vunpack.c.l.b16 %v5447
    %v6135 = vunpack.c.l.b16 %v5448
    %v6136 = vunpack.c.l.b16 %v5449
    %v6137 = vunpack.c.l.b16 %v5450
    %v6138 = vunpack.c.l.b16 %v5451
    %v6139 = vunpack.c.l.b16 %v5452
    %v6140 = vunpack.c.l.b16 %v5453
    %v6141 = vunpack.c.l.b16 %v5454
    %v6142 = vunpack.c.l.b16 %v5455
    %v6143 = vunpack.c.l.b16 %v5456
    %v6144 = vunpack.c.l.b16 %v5457
    %v6145 = vunpack.c.l.b16 %v5458
    %v6146 = vunpack.c.l.b16 %v5459
    %v6147 = vunpack.c.l.b16 %v5460
    %v6148 = vunpack.c.l.b16 %v5461
    %v6149 = vunpack.c.l.b16 %v5462
    %v6150 = vunpack.c.l.b16 %v5463
    %v6151 = vunpack.c.l.b16 %v5464
    %v6152 = vunpack.c.l.b16 %v5465
    %v6153 = vunpack.c.l.b16 %v5466
    %v6154 = vunpack.c.l.b16 %v5467
    %v6155 = vunpack.c.l.b16 %v5468
    %v6156 = vpack.c.b16 %v6077, %v6076
    %v6157 = vpack.c.b16 %v6079, %v6078
    %v6158 = vpack.c.b16 %v6081, %v6080
    %v6159 = vpack.c.b16 %v6083, %v6082
    %v6160 = vpack.c.b16 %v6085, %v6084
    %v6161 = vpack.c.b16 %v6087, %v6086
    %v6162 = vpack.c.b16 %v6089, %v6088
    %v6163 = vpack.c.b16 %v6091, %v6090
    %v6164 = vpack.c.b16 %v6093, %v6092
    %v6165 = vpack.c.b16 %v6095, %v6094
    %v6166 = vpack.c.b16 %v6097, %v6096
    %v6167 = vpack.c.b16 %v6099, %v6098
    %v6168 = vpack.c.b16 %v6101, %v6100
    %v6169 = vpack.c.b16 %v6103, %v6102
    %v6170 = vpack.c.b16 %v6105, %v6104
    %v6171 = vpack.c.b16 %v6107, %v6106
    %v6172 = vpack.c.b16 %v6109, %v6108
    %v6173 = vpack.c.b16 %v6111, %v6110
    %v6174 = vpack.c.b16 %v6113, %v6112
    %v6175 = vpack.c.b16 %v6115, %v6114
    %v6176 = vpack.c.b16 %v6117, %v6116
    %v6177 = vpack.c.b16 %v6119, %v6118
    %v6178 = vpack.c.b16 %v6121, %v6120
    %v6179 = vpack.c.b16 %v6123, %v6122
    %v6180 = vpack.c.b16 %v6125, %v6124
    %v6181 = vpack.c.b16 %v6127, %v6126
    %v6182 = vpack.c.b16 %v6129, %v6128
    %v6183 = vpack.c.b16 %v6131, %v6130
    %v6184 = vpack.c.b16 %v6133, %v6132
    %v6185 = vpack.c.b16 %v6135, %v6134
    %v6186 = vpack.c.b16 %v6137, %v6136
    %v6187 = vpack.c.b16 %v6139, %v6138
    %v6188 = vpack.c.b16 %v6141, %v6140
    %v6189 = vpack.c.b16 %v6143, %v6142
    %v6190 = vpack.c.b16 %v6145, %v6144
    %v6191 = vpack.c.b16 %v6147, %v6146
    %v6192 = vpack.c.b16 %v6149, %v6148
    %v6193 = vpack.c.b16 %v6151, %v6150
    %v6194 = vpack.c.b16 %v6153, %v6152
    %v6195 = vpack.c.b16 %v6155, %v6154
    %6236 = vmatpush.bf16.msra.mxu0 %v6163
    %6237 = vmatpush.bf16.msra.mxu0 %v6162
    %6238 = vmatpush.bf16.msra.mxu0 %v6161
    %6239 = vmatpush.bf16.msra.mxu0 %v6160
    %6240 = vmatpush.bf16.msra.mxu0 %v6159
    %6241 = vmatpush.bf16.msra.mxu0 %v6158
    %6242 = vmatpush.bf16.msra.mxu0 %v6157
    %6243 = vmatpush.bf16.msra.mxu0 %v6156
    %6244 = vmatmul.bf16.gmra.mxu0 %v5968
    %v6245 = vpop.f32.mrf.mxu0
    %v6246 = vadd.f32 %v5944, %v6245
    %v6247 = vpop.f32.mrf.mxu0
    %v6248 = vadd.f32 %v5946, %v6247
    %6249 = vmatmul.bf16.gmra.mxu0 %v5981
    %v6250 = vpop.f32.mrf.mxu0
    %v6251 = vadd.f32 %v5949, %v6250
    %v6252 = vpop.f32.mrf.mxu0
    %v6253 = vadd.f32 %v5951, %v6252
    %6254 = vdwg.mxu0
    %6255 = vmatpush.bf16.msra.mxu0 %v6171
    %6256 = vmatpush.bf16.msra.mxu0 %v6170
    %6257 = vmatpush.bf16.msra.mxu0 %v6169
    %6258 = vmatpush.bf16.msra.mxu0 %v6168
    %6259 = vmatpush.bf16.msra.mxu0 %v6167
    %6260 = vmatpush.bf16.msra.mxu0 %v6166
    %6261 = vmatpush.bf16.msra.mxu0 %v6165
    %6262 = vmatpush.bf16.msra.mxu0 %v6164
    %6263 = vmatmul.bf16.gmra.mxu0 %v5969
    %v6264 = vpop.f32.mrf.mxu0
    %v6265 = vadd.f32 %v6246, %v6264
    %v6266 = vpop.f32.mrf.mxu0
    %v6267 = vadd.f32 %v6248, %v6266
    %6268 = vmatmul.bf16.gmra.mxu0 %v5982
    %v6269 = vpop.f32.mrf.mxu0
    %v6270 = vadd.f32 %v6251, %v6269
    %v6271 = vpop.f32.mrf.mxu0
    %v6272 = vadd.f32 %v6253, %v6271
    %6273 = vdwg.mxu0
    %6274 = vmatpush.bf16.msra.mxu0 %v6179
    %6275 = vmatpush.bf16.msra.mxu0 %v6178
    %6276 = vmatpush.bf16.msra.mxu0 %v6177
    %6277 = vmatpush.bf16.msra.mxu0 %v6176
    %6278 = vmatpush.bf16.msra.mxu0 %v6175
    %6279 = vmatpush.bf16.msra.mxu0 %v6174
    %6280 = vmatpush.bf16.msra.mxu0 %v6173
    %6281 = vmatpush.bf16.msra.mxu0 %v6172
    %6282 = vmatmul.bf16.gmra.mxu0 %v5970
    %v6283 = vpop.f32.mrf.mxu0
    %v6284 = vadd.f32 %v6265, %v6283
    %v6285 = vpop.f32.mrf.mxu0
    %v6286 = vadd.f32 %v6267, %v6285
    %6287 = vmatmul.bf16.gmra.mxu0 %v5983
    %v6288 = vpop.f32.mrf.mxu0
    %v6289 = vadd.f32 %v6270, %v6288
    %v6290 = vpop.f32.mrf.mxu0
    %v6291 = vadd.f32 %v6272, %v6290
    %6292 = vdwg.mxu0
    %6293 = vmatpush.bf16.msra.mxu0 %v6187
    %6294 = vmatpush.bf16.msra.mxu0 %v6186
    %6295 = vmatpush.bf16.msra.mxu0 %v6185
    %6296 = vmatpush.bf16.msra.mxu0 %v6184
    %6297 = vmatpush.bf16.msra.mxu0 %v6183
    %6298 = vmatpush.bf16.msra.mxu0 %v6182
    %6299 = vmatpush.bf16.msra.mxu0 %v6181
    %6300 = vmatpush.bf16.msra.mxu0 %v6180
    %6301 = vmatmul.bf16.gmra.mxu0 %v5971
    %v6302 = vpop.f32.mrf.mxu0
    %v6303 = vadd.f32 %v6284, %v6302
    %v6304 = vpop.f32.mrf.mxu0
    %v6305 = vadd.f32 %v6286, %v6304
    %6306 = vmatmul.bf16.gmra.mxu0 %v5984
    %v6307 = vpop.f32.mrf.mxu0
    %v6308 = vadd.f32 %v6289, %v6307
    %v6309 = vpop.f32.mrf.mxu0
    %v6310 = vadd.f32 %v6291, %v6309
    %6311 = vdwg.mxu0
    %6312 = vmatpush.bf16.msra.mxu0 %v6195
    %6313 = vmatpush.bf16.msra.mxu0 %v6194
    %6314 = vmatpush.bf16.msra.mxu0 %v6193
    %6315 = vmatpush.bf16.msra.mxu0 %v6192
    %6316 = vmatpush.bf16.msra.mxu0 %v6191
    %6317 = vmatpush.bf16.msra.mxu0 %v6190
    %6318 = vmatpush.bf16.msra.mxu0 %v6189
    %6319 = vmatpush.bf16.msra.mxu0 %v6188
    %6320 = vmatmul.bf16.gmra.mxu0 %v5972
    %v6321 = vpop.f32.mrf.mxu0
    %v6322 = vadd.f32 %v6303, %v6321
    %v6323 = vpop.f32.mrf.mxu0
    %v6324 = vadd.f32 %v6305, %v6323
    %6325 = vmatmul.bf16.gmra.mxu0 %v5985
    %v6326 = vpop.f32.mrf.mxu0
    %v6327 = vadd.f32 %v6308, %v6326
    %v6328 = vpop.f32.mrf.mxu0
    %v6329 = vadd.f32 %v6310, %v6328
    %6330 = vdwg.mxu0
    %v6331 = vrot.slane %v5263, 6
    %v6332 = vrot.slane %v5301, 4
    %v6333 = vrot.slane %v5320, 2
    %v6334 = vrot.slane %v5287, 6
    %v6335 = vrot.slane %v5305, 4
    %v6336 = vrot.slane %v5332, 2
    %v6338 = vsel %vm4815, %v5229, %v6331
    %v6341 = vsel %vm5359, %v6332, %v6333
    %v6342 = vsel %vm5363, %v6338, %v6341
    %v6344 = vsel %vm4815, %v5233, %v6334
    %v6347 = vsel %vm5359, %v6335, %v6336
    %v6348 = vsel %vm5363, %v6344, %v6347
    %s6349 = scalar_lea.vmem %s5, 640
    %v6350 = vld [vmem:[%s6349] sm:$0xf]
    %v6351 = vld [vmem:[%s6349 + $0x4] sm:$0xf]
    %v6352 = vld [vmem:[%s6349 + $0x8] sm:$0xf]
    %v6353 = vld [vmem:[%s6349 + $0xc] sm:$0xf]
    %v6354 = vld [vmem:[%s6349 + $0x10] sm:$0xf]
    %v6355 = vld [vmem:[%s6349 + $0x14] sm:$0xf]
    %v6356 = vld [vmem:[%s6349 + $0x18] sm:$0xf]
    %v6357 = vld [vmem:[%s6349 + $0x1c] sm:$0xf]
    %v6358 = vld [vmem:[%s6349 + $0x20] sm:$0xf]
    %v6359 = vld [vmem:[%s6349 + $0x24] sm:$0xf]
    %v6360 = vld [vmem:[%s6349 + $0x28] sm:$0xf]
    %v6361 = vld [vmem:[%s6349 + $0x2c] sm:$0xf]
    %v6362 = vld [vmem:[%s6349 + $0x30] sm:$0xf]
    %v6363 = vld [vmem:[%s6349 + $0x34] sm:$0xf]
    %v6364 = vld [vmem:[%s6349 + $0x38] sm:$0xf]
    %v6365 = vld [vmem:[%s6349 + $0x3c] sm:$0xf]
    %v6366 = vld [vmem:[%s6349 + $0x40] sm:$0xf]
    %v6367 = vld [vmem:[%s6349 + $0x44] sm:$0xf]
    %v6368 = vld [vmem:[%s6349 + $0x48] sm:$0xf]
    %v6369 = vld [vmem:[%s6349 + $0x4c] sm:$0xf]
    %v6370 = vld [vmem:[%s6349 + $0x50] sm:$0xf]
    %v6371 = vld [vmem:[%s6349 + $0x54] sm:$0xf]
    %v6372 = vld [vmem:[%s6349 + $0x58] sm:$0xf]
    %v6373 = vld [vmem:[%s6349 + $0x5c] sm:$0xf]
    %v6374 = vld [vmem:[%s6349 + $0x60] sm:$0xf]
    %v6375 = vld [vmem:[%s6349 + $0x64] sm:$0xf]
    %v6376 = vld [vmem:[%s6349 + $0x68] sm:$0xf]
    %v6377 = vld [vmem:[%s6349 + $0x6c] sm:$0xf]
    %v6378 = vld [vmem:[%s6349 + $0x70] sm:$0xf]
    %v6379 = vld [vmem:[%s6349 + $0x74] sm:$0xf]
    %v6380 = vld [vmem:[%s6349 + $0x78] sm:$0xf]
    %v6381 = vld [vmem:[%s6349 + $0x7c] sm:$0xf]
    %v6382 = vld [vmem:[%s6349 + $0x80] sm:$0xf]
    %v6383 = vld [vmem:[%s6349 + $0x84] sm:$0xf]
    %v6384 = vld [vmem:[%s6349 + $0x88] sm:$0xf]
    %v6385 = vld [vmem:[%s6349 + $0x8c] sm:$0xf]
    %v6386 = vld [vmem:[%s6349 + $0x90] sm:$0xf]
    %v6387 = vld [vmem:[%s6349 + $0x94] sm:$0xf]
    %v6388 = vld [vmem:[%s6349 + $0x98] sm:$0xf]
    %v6389 = vld [vmem:[%s6349 + $0x9c] sm:$0xf]
    %v6390 = vld [vmem:[%s6349 + $0xa0] sm:$0xf]
    %v6391 = vld [vmem:[%s6349 + $0xa4] sm:$0xf]
    %v6392 = vld [vmem:[%s6349 + $0xa8] sm:$0xf]
    %v6393 = vld [vmem:[%s6349 + $0xac] sm:$0xf]
    %v6394 = vld [vmem:[%s6349 + $0xb0] sm:$0xf]
    %v6395 = vld [vmem:[%s6349 + $0xb4] sm:$0xf]
    %v6396 = vld [vmem:[%s6349 + $0xb8] sm:$0xf]
    %v6397 = vld [vmem:[%s6349 + $0xbc] sm:$0xf]
    %v6398 = vld [vmem:[%s6349 + $0xc0] sm:$0xf]
    %v6399 = vld [vmem:[%s6349 + $0xc4] sm:$0xf]
    %v6400 = vld [vmem:[%s6349 + $0xc8] sm:$0xf]
    %v6401 = vld [vmem:[%s6349 + $0xcc] sm:$0xf]
    %v6402 = vld [vmem:[%s6349 + $0xd0] sm:$0xf]
    %v6403 = vld [vmem:[%s6349 + $0xd4] sm:$0xf]
    %v6404 = vld [vmem:[%s6349 + $0xd8] sm:$0xf]
    %v6405 = vld [vmem:[%s6349 + $0xdc] sm:$0xf]
    %v6406 = vld [vmem:[%s6349 + $0xe0] sm:$0xf]
    %v6407 = vld [vmem:[%s6349 + $0xe4] sm:$0xf]
    %v6408 = vld [vmem:[%s6349 + $0xe8] sm:$0xf]
    %v6409 = vld [vmem:[%s6349 + $0xec] sm:$0xf]
    %v6410 = vld [vmem:[%s6349 + $0xf0] sm:$0xf]
    %v6411 = vld [vmem:[%s6349 + $0xf4] sm:$0xf]
    %v6412 = vld [vmem:[%s6349 + $0xf8] sm:$0xf]
    %v6413 = vld [vmem:[%s6349 + $0xfc] sm:$0xf]
    %v6414 = vld [vmem:[%s6349 + $0x100] sm:$0xf]
    %v6415 = vld [vmem:[%s6349 + $0x104] sm:$0xf]
    %v6416 = vld [vmem:[%s6349 + $0x108] sm:$0xf]
    %v6417 = vld [vmem:[%s6349 + $0x10c] sm:$0xf]
    %v6418 = vld [vmem:[%s6349 + $0x110] sm:$0xf]
    %v6419 = vld [vmem:[%s6349 + $0x114] sm:$0xf]
    %v6420 = vld [vmem:[%s6349 + $0x118] sm:$0xf]
    %v6421 = vld [vmem:[%s6349 + $0x11c] sm:$0xf]
    %v6422 = vld [vmem:[%s6349 + $0x120] sm:$0xf]
    %v6423 = vld [vmem:[%s6349 + $0x124] sm:$0xf]
    %v6424 = vld [vmem:[%s6349 + $0x128] sm:$0xf]
    %v6425 = vld [vmem:[%s6349 + $0x12c] sm:$0xf]
    %v6426 = vld [vmem:[%s6349 + $0x130] sm:$0xf]
    %v6427 = vld [vmem:[%s6349 + $0x134] sm:$0xf]
    %v6428 = vld [vmem:[%s6349 + $0x138] sm:$0xf]
    %v6429 = vld [vmem:[%s6349 + $0x13c] sm:$0xf]
    %6430 = vst [vmem:[#allocation1] ss:$4 sm:$0xff] %v5370
    %s6431 = scalar_lea.vmem [#allocation1], 1
    %6432 = vst [vmem:[%s6431] ss:$4 sm:$0xff] %v5376
    %s6433 = scalar_lea.vmem [#allocation1], 2
    %6434 = vst [vmem:[%s6433] ss:$4 sm:$0xff] %v5480
    %s6435 = scalar_lea.vmem [#allocation1], 3
    %6436 = vst [vmem:[%s6435] ss:$4 sm:$0xff] %v6342
    %s6437 = scalar_lea.vmem [#allocation1], 32
    %6438 = vst [vmem:[%s6437] ss:$4 sm:$0xff] %v5334
    %s6439 = scalar_lea.vmem [#allocation1], 33
    %6440 = vst [vmem:[%s6439] ss:$4 sm:$0xff] %v5335
    %s6441 = scalar_lea.vmem [#allocation1], 34
    %6442 = vst [vmem:[%s6441] ss:$4 sm:$0xff] %v5336
    %s6444 = scalar_lea.vmem [#allocation1], 35
    %6445 = vst [vmem:[%s6444] ss:$4 sm:$0xff] %v5337
    %v6446 = vld.sshfl [vmem:[#allocation1] sm:$0xff pattern:$0x73625140]
    %v6447 = vld.sshfl [vmem:[#allocation1 + $0x8] sm:$0xff pattern:$0x73625140]
    %v6448 = vld.sshfl [vmem:[#allocation1 + $0x10] sm:$0xff pattern:$0x73625140]
    %v6449 = vld.sshfl [vmem:[#allocation1 + $0x18] sm:$0xff pattern:$0x73625140]
    %v6450 = vld.sshfl [vmem:[#allocation1 + $0x20] sm:$0xff pattern:$0x73625140]
    %6451 = vst [vmem:[#allocation1] ss:$4 sm:$0xff] %v5382
    %6452 = vst [vmem:[%s6431] ss:$4 sm:$0xff] %v5388
    %6453 = vst [vmem:[%s6433] ss:$4 sm:$0xff] %v5486
    %6454 = vst [vmem:[%s6435] ss:$4 sm:$0xff] %v6348
    %6455 = vst [vmem:[%s6437] ss:$4 sm:$0xff] %v5338
    %6456 = vst [vmem:[%s6439] ss:$4 sm:$0xff] %v5339
    %6457 = vst [vmem:[%s6441] ss:$4 sm:$0xff] %v5340
    %6459 = vst [vmem:[%s6444] ss:$4 sm:$0xff] %v5341
    %v6460 = vld.sshfl [vmem:[#allocation1] sm:$0xff pattern:$0x73625140]
    %v6461 = vld.sshfl [vmem:[#allocation1 + $0x8] sm:$0xff pattern:$0x73625140]
    %v6462 = vld.sshfl [vmem:[#allocation1 + $0x10] sm:$0xff pattern:$0x73625140]
    %v6463 = vld.sshfl [vmem:[#allocation1 + $0x18] sm:$0xff pattern:$0x73625140]
    %v6464 = vld.sshfl [vmem:[#allocation1 + $0x20] sm:$0xff pattern:$0x73625140]
    %v6555 = vunpack.c.l.b16 %v6350
    %v6556 = vunpack.c.l.b16 %v6351
    %v6557 = vunpack.c.l.b16 %v6352
    %v6558 = vunpack.c.l.b16 %v6353
    %v6559 = vunpack.c.l.b16 %v6354
    %v6560 = vunpack.c.l.b16 %v6355
    %v6561 = vunpack.c.l.b16 %v6356
    %v6562 = vunpack.c.l.b16 %v6357
    %v6563 = vunpack.c.l.b16 %v6358
    %v6564 = vunpack.c.l.b16 %v6359
    %v6565 = vunpack.c.l.b16 %v6360
    %v6566 = vunpack.c.l.b16 %v6361
    %v6567 = vunpack.c.l.b16 %v6362
    %v6568 = vunpack.c.l.b16 %v6363
    %v6569 = vunpack.c.l.b16 %v6364
    %v6570 = vunpack.c.l.b16 %v6365
    %v6571 = vunpack.c.l.b16 %v6366
    %v6572 = vunpack.c.l.b16 %v6367
    %v6573 = vunpack.c.l.b16 %v6368
    %v6574 = vunpack.c.l.b16 %v6369
    %v6575 = vunpack.c.l.b16 %v6370
    %v6576 = vunpack.c.l.b16 %v6371
    %v6577 = vunpack.c.l.b16 %v6372
    %v6578 = vunpack.c.l.b16 %v6373
    %v6579 = vunpack.c.l.b16 %v6374
    %v6580 = vunpack.c.l.b16 %v6375
    %v6581 = vunpack.c.l.b16 %v6376
    %v6582 = vunpack.c.l.b16 %v6377
    %v6583 = vunpack.c.l.b16 %v6378
    %v6584 = vunpack.c.l.b16 %v6379
    %v6585 = vunpack.c.l.b16 %v6380
    %v6586 = vunpack.c.l.b16 %v6381
    %v6587 = vunpack.c.l.b16 %v6382
    %v6588 = vunpack.c.l.b16 %v6383
    %v6589 = vunpack.c.l.b16 %v6384
    %v6590 = vunpack.c.l.b16 %v6385
    %v6591 = vunpack.c.l.b16 %v6386
    %v6592 = vunpack.c.l.b16 %v6387
    %v6593 = vunpack.c.l.b16 %v6388
    %v6594 = vunpack.c.l.b16 %v6389
    %v6595 = vunpack.c.l.b16 %v6390
    %v6596 = vunpack.c.l.b16 %v6391
    %v6597 = vunpack.c.l.b16 %v6392
    %v6598 = vunpack.c.l.b16 %v6393
    %v6599 = vunpack.c.l.b16 %v6394
    %v6600 = vunpack.c.l.b16 %v6395
    %v6601 = vunpack.c.l.b16 %v6396
    %v6602 = vunpack.c.l.b16 %v6397
    %v6603 = vunpack.c.l.b16 %v6398
    %v6604 = vunpack.c.l.b16 %v6399
    %v6605 = vunpack.c.l.b16 %v6400
    %v6606 = vunpack.c.l.b16 %v6401
    %v6607 = vunpack.c.l.b16 %v6402
    %v6608 = vunpack.c.l.b16 %v6403
    %v6609 = vunpack.c.l.b16 %v6404
    %v6610 = vunpack.c.l.b16 %v6405
    %v6611 = vunpack.c.l.b16 %v6406
    %v6612 = vunpack.c.l.b16 %v6407
    %v6613 = vunpack.c.l.b16 %v6408
    %v6614 = vunpack.c.l.b16 %v6409
    %v6615 = vunpack.c.l.b16 %v6410
    %v6616 = vunpack.c.l.b16 %v6411
    %v6617 = vunpack.c.l.b16 %v6412
    %v6618 = vunpack.c.l.b16 %v6413
    %v6619 = vunpack.c.l.b16 %v6414
    %v6620 = vunpack.c.l.b16 %v6415
    %v6621 = vunpack.c.l.b16 %v6416
    %v6622 = vunpack.c.l.b16 %v6417
    %v6623 = vunpack.c.l.b16 %v6418
    %v6624 = vunpack.c.l.b16 %v6419
    %v6625 = vunpack.c.l.b16 %v6420
    %v6626 = vunpack.c.l.b16 %v6421
    %v6627 = vunpack.c.l.b16 %v6422
    %v6628 = vunpack.c.l.b16 %v6423
    %v6629 = vunpack.c.l.b16 %v6424
    %v6630 = vunpack.c.l.b16 %v6425
    %v6631 = vunpack.c.l.b16 %v6426
    %v6632 = vunpack.c.l.b16 %v6427
    %v6633 = vunpack.c.l.b16 %v6428
    %v6634 = vunpack.c.l.b16 %v6429
    %v6635 = vpack.c.b16 %v6556, %v6555
    %v6636 = vpack.c.b16 %v6558, %v6557
    %v6637 = vpack.c.b16 %v6560, %v6559
    %v6638 = vpack.c.b16 %v6562, %v6561
    %v6639 = vpack.c.b16 %v6564, %v6563
    %v6640 = vpack.c.b16 %v6566, %v6565
    %v6641 = vpack.c.b16 %v6568, %v6567
    %v6642 = vpack.c.b16 %v6570, %v6569
    %v6643 = vpack.c.b16 %v6572, %v6571
    %v6644 = vpack.c.b16 %v6574, %v6573
    %v6645 = vpack.c.b16 %v6576, %v6575
    %v6646 = vpack.c.b16 %v6578, %v6577
    %v6647 = vpack.c.b16 %v6580, %v6579
    %v6648 = vpack.c.b16 %v6582, %v6581
    %v6649 = vpack.c.b16 %v6584, %v6583
    %v6650 = vpack.c.b16 %v6586, %v6585
    %v6651 = vpack.c.b16 %v6588, %v6587
    %v6652 = vpack.c.b16 %v6590, %v6589
    %v6653 = vpack.c.b16 %v6592, %v6591
    %v6654 = vpack.c.b16 %v6594, %v6593
    %v6655 = vpack.c.b16 %v6596, %v6595
    %v6656 = vpack.c.b16 %v6598, %v6597
    %v6657 = vpack.c.b16 %v6600, %v6599
    %v6658 = vpack.c.b16 %v6602, %v6601
    %v6659 = vpack.c.b16 %v6604, %v6603
    %v6660 = vpack.c.b16 %v6606, %v6605
    %v6661 = vpack.c.b16 %v6608, %v6607
    %v6662 = vpack.c.b16 %v6610, %v6609
    %v6663 = vpack.c.b16 %v6612, %v6611
    %v6664 = vpack.c.b16 %v6614, %v6613
    %v6665 = vpack.c.b16 %v6616, %v6615
    %v6666 = vpack.c.b16 %v6618, %v6617
    %v6667 = vpack.c.b16 %v6620, %v6619
    %v6668 = vpack.c.b16 %v6622, %v6621
    %v6669 = vpack.c.b16 %v6624, %v6623
    %v6670 = vpack.c.b16 %v6626, %v6625
    %v6671 = vpack.c.b16 %v6628, %v6627
    %v6672 = vpack.c.b16 %v6630, %v6629
    %v6673 = vpack.c.b16 %v6632, %v6631
    %v6674 = vpack.c.b16 %v6634, %v6633
    %6715 = vmatpush.bf16.msra.mxu0 %v6642
    %6716 = vmatpush.bf16.msra.mxu0 %v6641
    %6717 = vmatpush.bf16.msra.mxu0 %v6640
    %6718 = vmatpush.bf16.msra.mxu0 %v6639
    %6719 = vmatpush.bf16.msra.mxu0 %v6638
    %6720 = vmatpush.bf16.msra.mxu0 %v6637
    %6721 = vmatpush.bf16.msra.mxu0 %v6636
    %6722 = vmatpush.bf16.msra.mxu0 %v6635
    %6723 = vmatmul.bf16.gmra.mxu0 %v6446
    %v6724 = vpop.f32.mrf.mxu0
    %v6725 = vadd.f32 0.0, %v6724
    %v6726 = vpop.f32.mrf.mxu0
    %v6727 = vadd.f32 0.0, %v6726
    %6728 = vmatmul.bf16.gmra.mxu0 %v6460
    %v6729 = vpop.f32.mrf.mxu0
    %v6730 = vadd.f32 0.0, %v6729
    %v6731 = vpop.f32.mrf.mxu0
    %v6732 = vadd.f32 0.0, %v6731
    %6733 = vdwg.mxu0
    %6734 = vmatpush.bf16.msra.mxu0 %v6650
    %6735 = vmatpush.bf16.msra.mxu0 %v6649
    %6736 = vmatpush.bf16.msra.mxu0 %v6648
    %6737 = vmatpush.bf16.msra.mxu0 %v6647
    %6738 = vmatpush.bf16.msra.mxu0 %v6646
    %6739 = vmatpush.bf16.msra.mxu0 %v6645
    %6740 = vmatpush.bf16.msra.mxu0 %v6644
    %6741 = vmatpush.bf16.msra.mxu0 %v6643
    %6742 = vmatmul.bf16.gmra.mxu0 %v6447
    %v6743 = vpop.f32.mrf.mxu0
    %v6744 = vadd.f32 %v6725, %v6743
    %v6745 = vpop.f32.mrf.mxu0
    %v6746 = vadd.f32 %v6727, %v6745
    %6747 = vmatmul.bf16.gmra.mxu0 %v6461
    %v6748 = vpop.f32.mrf.mxu0
    %v6749 = vadd.f32 %v6730, %v6748
    %v6750 = vpop.f32.mrf.mxu0
    %v6751 = vadd.f32 %v6732, %v6750
    %6752 = vdwg.mxu0
    %6753 = vmatpush.bf16.msra.mxu0 %v6658
    %6754 = vmatpush.bf16.msra.mxu0 %v6657
    %6755 = vmatpush.bf16.msra.mxu0 %v6656
    %6756 = vmatpush.bf16.msra.mxu0 %v6655
    %6757 = vmatpush.bf16.msra.mxu0 %v6654
    %6758 = vmatpush.bf16.msra.mxu0 %v6653
    %6759 = vmatpush.bf16.msra.mxu0 %v6652
    %6760 = vmatpush.bf16.msra.mxu0 %v6651
    %6761 = vmatmul.bf16.gmra.mxu0 %v6448
    %v6762 = vpop.f32.mrf.mxu0
    %v6763 = vadd.f32 %v6744, %v6762
    %v6764 = vpop.f32.mrf.mxu0
    %v6765 = vadd.f32 %v6746, %v6764
    %6766 = vmatmul.bf16.gmra.mxu0 %v6462
    %v6767 = vpop.f32.mrf.mxu0
    %v6768 = vadd.f32 %v6749, %v6767
    %v6769 = vpop.f32.mrf.mxu0
    %v6770 = vadd.f32 %v6751, %v6769
    %6771 = vdwg.mxu0
    %6772 = vmatpush.bf16.msra.mxu0 %v6666
    %6773 = vmatpush.bf16.msra.mxu0 %v6665
    %6774 = vmatpush.bf16.msra.mxu0 %v6664
    %6775 = vmatpush.bf16.msra.mxu0 %v6663
    %6776 = vmatpush.bf16.msra.mxu0 %v6662
    %6777 = vmatpush.bf16.msra.mxu0 %v6661
    %6778 = vmatpush.bf16.msra.mxu0 %v6660
    %6779 = vmatpush.bf16.msra.mxu0 %v6659
    %6780 = vmatmul.bf16.gmra.mxu0 %v6449
    %v6781 = vpop.f32.mrf.mxu0
    %v6782 = vadd.f32 %v6763, %v6781
    %v6783 = vpop.f32.mrf.mxu0
    %v6784 = vadd.f32 %v6765, %v6783
    %6785 = vmatmul.bf16.gmra.mxu0 %v6463
    %v6786 = vpop.f32.mrf.mxu0
    %v6787 = vadd.f32 %v6768, %v6786
    %v6788 = vpop.f32.mrf.mxu0
    %v6789 = vadd.f32 %v6770, %v6788
    %6790 = vdwg.mxu0
    %6791 = vmatpush.bf16.msra.mxu0 %v6674
    %6792 = vmatpush.bf16.msra.mxu0 %v6673
    %6793 = vmatpush.bf16.msra.mxu0 %v6672
    %6794 = vmatpush.bf16.msra.mxu0 %v6671
    %6795 = vmatpush.bf16.msra.mxu0 %v6670
    %6796 = vmatpush.bf16.msra.mxu0 %v6669
    %6797 = vmatpush.bf16.msra.mxu0 %v6668
    %6798 = vmatpush.bf16.msra.mxu0 %v6667
    %6799 = vmatmul.bf16.gmra.mxu0 %v6450
    %v6800 = vpop.f32.mrf.mxu0
    %v6801 = vadd.f32 %v6782, %v6800
    %v6802 = vpop.f32.mrf.mxu0
    %v6803 = vadd.f32 %v6784, %v6802
    %6804 = vmatmul.bf16.gmra.mxu0 %v6464
    %v6805 = vpop.f32.mrf.mxu0
    %v6806 = vadd.f32 %v6787, %v6805
    %v6807 = vpop.f32.mrf.mxu0
    %v6808 = vadd.f32 %v6789, %v6807
    %6809 = vdwg.mxu0
    %v6810 = vadd.f32 %v6322, %v6801
    %v6811 = vadd.f32 %v6324, %v6803
    %v6812 = vadd.f32 %v6327, %v6806
    %v6813 = vadd.f32 %v6329, %v6808
    %s6814 = scalar_lea.vmem %s5, 960
    %v6815 = vld [vmem:[%s6814] sm:$0xf]
    %v6816 = vld [vmem:[%s6814 + $0x4] sm:$0xf]
    %v6817 = vld [vmem:[%s6814 + $0x8] sm:$0xf]
    %v6818 = vld [vmem:[%s6814 + $0xc] sm:$0xf]
    %v6819 = vld [vmem:[%s6814 + $0x10] sm:$0xf]
    %v6820 = vld [vmem:[%s6814 + $0x14] sm:$0xf]
    %v6821 = vld [vmem:[%s6814 + $0x18] sm:$0xf]
    %v6822 = vld [vmem:[%s6814 + $0x1c] sm:$0xf]
    %v6823 = vld [vmem:[%s6814 + $0x20] sm:$0xf]
    %v6824 = vld [vmem:[%s6814 + $0x24] sm:$0xf]
    %v6825 = vld [vmem:[%s6814 + $0x28] sm:$0xf]
    %v6826 = vld [vmem:[%s6814 + $0x2c] sm:$0xf]
    %v6827 = vld [vmem:[%s6814 + $0x30] sm:$0xf]
    %v6828 = vld [vmem:[%s6814 + $0x34] sm:$0xf]
    %v6829 = vld [vmem:[%s6814 + $0x38] sm:$0xf]
    %v6830 = vld [vmem:[%s6814 + $0x3c] sm:$0xf]
    %v6831 = vld [vmem:[%s6814 + $0x40] sm:$0xf]
    %v6832 = vld [vmem:[%s6814 + $0x44] sm:$0xf]
    %v6833 = vld [vmem:[%s6814 + $0x48] sm:$0xf]
    %v6834 = vld [vmem:[%s6814 + $0x4c] sm:$0xf]
    %v6835 = vld [vmem:[%s6814 + $0x50] sm:$0xf]
    %v6836 = vld [vmem:[%s6814 + $0x54] sm:$0xf]
    %v6837 = vld [vmem:[%s6814 + $0x58] sm:$0xf]
    %v6838 = vld [vmem:[%s6814 + $0x5c] sm:$0xf]
    %v6839 = vld [vmem:[%s6814 + $0x60] sm:$0xf]
    %v6840 = vld [vmem:[%s6814 + $0x64] sm:$0xf]
    %v6841 = vld [vmem:[%s6814 + $0x68] sm:$0xf]
    %v6842 = vld [vmem:[%s6814 + $0x6c] sm:$0xf]
    %v6843 = vld [vmem:[%s6814 + $0x70] sm:$0xf]
    %v6844 = vld [vmem:[%s6814 + $0x74] sm:$0xf]
    %v6845 = vld [vmem:[%s6814 + $0x78] sm:$0xf]
    %v6846 = vld [vmem:[%s6814 + $0x7c] sm:$0xf]
    %v6847 = vld [vmem:[%s6814 + $0x80] sm:$0xf]
    %v6848 = vld [vmem:[%s6814 + $0x84] sm:$0xf]
    %v6849 = vld [vmem:[%s6814 + $0x88] sm:$0xf]
    %v6850 = vld [vmem:[%s6814 + $0x8c] sm:$0xf]
    %v6851 = vld [vmem:[%s6814 + $0x90] sm:$0xf]
    %v6852 = vld [vmem:[%s6814 + $0x94] sm:$0xf]
    %v6853 = vld [vmem:[%s6814 + $0x98] sm:$0xf]
    %v6854 = vld [vmem:[%s6814 + $0x9c] sm:$0xf]
    %v6855 = vld [vmem:[%s6814 + $0xa0] sm:$0xf]
    %v6856 = vld [vmem:[%s6814 + $0xa4] sm:$0xf]
    %v6857 = vld [vmem:[%s6814 + $0xa8] sm:$0xf]
    %v6858 = vld [vmem:[%s6814 + $0xac] sm:$0xf]
    %v6859 = vld [vmem:[%s6814 + $0xb0] sm:$0xf]
    %v6860 = vld [vmem:[%s6814 + $0xb4] sm:$0xf]
    %v6861 = vld [vmem:[%s6814 + $0xb8] sm:$0xf]
    %v6862 = vld [vmem:[%s6814 + $0xbc] sm:$0xf]
    %v6863 = vld [vmem:[%s6814 + $0xc0] sm:$0xf]
    %v6864 = vld [vmem:[%s6814 + $0xc4] sm:$0xf]
    %v6865 = vld [vmem:[%s6814 + $0xc8] sm:$0xf]
    %v6866 = vld [vmem:[%s6814 + $0xcc] sm:$0xf]
    %v6867 = vld [vmem:[%s6814 + $0xd0] sm:$0xf]
    %v6868 = vld [vmem:[%s6814 + $0xd4] sm:$0xf]
    %v6869 = vld [vmem:[%s6814 + $0xd8] sm:$0xf]
    %v6870 = vld [vmem:[%s6814 + $0xdc] sm:$0xf]
    %v6871 = vld [vmem:[%s6814 + $0xe0] sm:$0xf]
    %v6872 = vld [vmem:[%s6814 + $0xe4] sm:$0xf]
    %v6873 = vld [vmem:[%s6814 + $0xe8] sm:$0xf]
    %v6874 = vld [vmem:[%s6814 + $0xec] sm:$0xf]
    %v6875 = vld [vmem:[%s6814 + $0xf0] sm:$0xf]
    %v6876 = vld [vmem:[%s6814 + $0xf4] sm:$0xf]
    %v6877 = vld [vmem:[%s6814 + $0xf8] sm:$0xf]
    %v6878 = vld [vmem:[%s6814 + $0xfc] sm:$0xf]
    %v6879 = vld [vmem:[%s6814 + $0x100] sm:$0xf]
    %v6880 = vld [vmem:[%s6814 + $0x104] sm:$0xf]
    %v6881 = vld [vmem:[%s6814 + $0x108] sm:$0xf]
    %v6882 = vld [vmem:[%s6814 + $0x10c] sm:$0xf]
    %v6883 = vld [vmem:[%s6814 + $0x110] sm:$0xf]
    %v6884 = vld [vmem:[%s6814 + $0x114] sm:$0xf]
    %v6885 = vld [vmem:[%s6814 + $0x118] sm:$0xf]
    %v6886 = vld [vmem:[%s6814 + $0x11c] sm:$0xf]
    %v6887 = vld [vmem:[%s6814 + $0x120] sm:$0xf]
    %v6888 = vld [vmem:[%s6814 + $0x124] sm:$0xf]
    %v6889 = vld [vmem:[%s6814 + $0x128] sm:$0xf]
    %v6890 = vld [vmem:[%s6814 + $0x12c] sm:$0xf]
    %v6891 = vld [vmem:[%s6814 + $0x130] sm:$0xf]
    %v6892 = vld [vmem:[%s6814 + $0x134] sm:$0xf]
    %v6893 = vld [vmem:[%s6814 + $0x138] sm:$0xf]
    %v6894 = vld [vmem:[%s6814 + $0x13c] sm:$0xf]
    %6895 = vst [vmem:[#allocation1] ss:$4 sm:$0xff] %v5376
    %s6896 = scalar_lea.vmem [#allocation1], 1
    %6897 = vst [vmem:[%s6896] ss:$4 sm:$0xff] %v5480
    %s6898 = scalar_lea.vmem [#allocation1], 2
    %6899 = vst [vmem:[%s6898] ss:$4 sm:$0xff] %v6342
    %s6900 = scalar_lea.vmem [#allocation1], 3
    %6901 = vst [vmem:[%s6900] ss:$4 sm:$0xff] %v5364
    %s6902 = scalar_lea.vmem [#allocation1], 32
    %6903 = vst [vmem:[%s6902] ss:$4 sm:$0xff] %v5335
    %s6904 = scalar_lea.vmem [#allocation1], 33
    %6905 = vst [vmem:[%s6904] ss:$4 sm:$0xff] %v5336
    %s6906 = scalar_lea.vmem [#allocation1], 34
    %6907 = vst [vmem:[%s6906] ss:$4 sm:$0xff] %v5337
    %s6908 = scalar_lea.vmem [#allocation1], 35
    %6909 = vst [vmem:[%s6908] ss:$4 sm:$0xff] %v5333
    %v6910 = vld.sshfl [vmem:[#allocation1] sm:$0xff pattern:$0x73625140]
    %v6911 = vld.sshfl [vmem:[#allocation1 + $0x8] sm:$0xff pattern:$0x73625140]
    %v6912 = vld.sshfl [vmem:[#allocation1 + $0x10] sm:$0xff pattern:$0x73625140]
    %v6913 = vld.sshfl [vmem:[#allocation1 + $0x18] sm:$0xff pattern:$0x73625140]
    %v6914 = vld.sshfl [vmem:[#allocation1 + $0x20] sm:$0xff pattern:$0x73625140]
    %6915 = vst [vmem:[#allocation1] ss:$4 sm:$0xff] %v5388
    %6916 = vst [vmem:[%s6896] ss:$4 sm:$0xff] %v5486
    %6917 = vst [vmem:[%s6898] ss:$4 sm:$0xff] %v6348
    %6918 = vst [vmem:[%s6900] ss:$4 sm:$0xff] %v5364
    %6919 = vst [vmem:[%s6902] ss:$4 sm:$0xff] %v5339
    %6920 = vst [vmem:[%s6904] ss:$4 sm:$0xff] %v5340
    %6921 = vst [vmem:[%s6906] ss:$4 sm:$0xff] %v5341
    %6922 = vst [vmem:[%s6908] ss:$4 sm:$0xff] %v5333
    %v6923 = vld.sshfl [vmem:[#allocation1] sm:$0xff pattern:$0x73625140]
    %v6924 = vld.sshfl [vmem:[#allocation1 + $0x8] sm:$0xff pattern:$0x73625140]
    %v6925 = vld.sshfl [vmem:[#allocation1 + $0x10] sm:$0xff pattern:$0x73625140]
    %v6926 = vld.sshfl [vmem:[#allocation1 + $0x18] sm:$0xff pattern:$0x73625140]
    %v6927 = vld.sshfl [vmem:[#allocation1 + $0x20] sm:$0xff pattern:$0x73625140]
    %v7018 = vunpack.c.l.b16 %v6815
    %v7019 = vunpack.c.l.b16 %v6816
    %v7020 = vunpack.c.l.b16 %v6817
    %v7021 = vunpack.c.l.b16 %v6818
    %v7022 = vunpack.c.l.b16 %v6819
    %v7023 = vunpack.c.l.b16 %v6820
    %v7024 = vunpack.c.l.b16 %v6821
    %v7025 = vunpack.c.l.b16 %v6822
    %v7026 = vunpack.c.l.b16 %v6823
    %v7027 = vunpack.c.l.b16 %v6824
    %v7028 = vunpack.c.l.b16 %v6825
    %v7029 = vunpack.c.l.b16 %v6826
    %v7030 = vunpack.c.l.b16 %v6827
    %v7031 = vunpack.c.l.b16 %v6828
    %v7032 = vunpack.c.l.b16 %v6829
    %v7033 = vunpack.c.l.b16 %v6830
    %v7034 = vunpack.c.l.b16 %v6831
    %v7035 = vunpack.c.l.b16 %v6832
    %v7036 = vunpack.c.l.b16 %v6833
    %v7037 = vunpack.c.l.b16 %v6834
    %v7038 = vunpack.c.l.b16 %v6835
    %v7039 = vunpack.c.l.b16 %v6836
    %v7040 = vunpack.c.l.b16 %v6837
    %v7041 = vunpack.c.l.b16 %v6838
    %v7042 = vunpack.c.l.b16 %v6839
    %v7043 = vunpack.c.l.b16 %v6840
    %v7044 = vunpack.c.l.b16 %v6841
    %v7045 = vunpack.c.l.b16 %v6842
    %v7046 = vunpack.c.l.b16 %v6843
    %v7047 = vunpack.c.l.b16 %v6844
    %v7048 = vunpack.c.l.b16 %v6845
    %v7049 = vunpack.c.l.b16 %v6846
    %v7050 = vunpack.c.l.b16 %v6847
    %v7051 = vunpack.c.l.b16 %v6848
    %v7052 = vunpack.c.l.b16 %v6849
    %v7053 = vunpack.c.l.b16 %v6850
    %v7054 = vunpack.c.l.b16 %v6851
    %v7055 = vunpack.c.l.b16 %v6852
    %v7056 = vunpack.c.l.b16 %v6853
    %v7057 = vunpack.c.l.b16 %v6854
    %v7058 = vunpack.c.l.b16 %v6855
    %v7059 = vunpack.c.l.b16 %v6856
    %v7060 = vunpack.c.l.b16 %v6857
    %v7061 = vunpack.c.l.b16 %v6858
    %v7062 = vunpack.c.l.b16 %v6859
    %v7063 = vunpack.c.l.b16 %v6860
    %v7064 = vunpack.c.l.b16 %v6861
    %v7065 = vunpack.c.l.b16 %v6862
    %v7066 = vunpack.c.l.b16 %v6863
    %v7067 = vunpack.c.l.b16 %v6864
    %v7068 = vunpack.c.l.b16 %v6865
    %v7069 = vunpack.c.l.b16 %v6866
    %v7070 = vunpack.c.l.b16 %v6867
    %v7071 = vunpack.c.l.b16 %v6868
    %v7072 = vunpack.c.l.b16 %v6869
    %v7073 = vunpack.c.l.b16 %v6870
    %v7074 = vunpack.c.l.b16 %v6871
    %v7075 = vunpack.c.l.b16 %v6872
    %v7076 = vunpack.c.l.b16 %v6873
    %v7077 = vunpack.c.l.b16 %v6874
    %v7078 = vunpack.c.l.b16 %v6875
    %v7079 = vunpack.c.l.b16 %v6876
    %v7080 = vunpack.c.l.b16 %v6877
    %v7081 = vunpack.c.l.b16 %v6878
    %v7082 = vunpack.c.l.b16 %v6879
    %v7083 = vunpack.c.l.b16 %v6880
    %v7084 = vunpack.c.l.b16 %v6881
    %v7085 = vunpack.c.l.b16 %v6882
    %v7086 = vunpack.c.l.b16 %v6883
    %v7087 = vunpack.c.l.b16 %v6884
    %v7088 = vunpack.c.l.b16 %v6885
    %v7089 = vunpack.c.l.b16 %v6886
    %v7090 = vunpack.c.l.b16 %v6887
    %v7091 = vunpack.c.l.b16 %v6888
    %v7092 = vunpack.c.l.b16 %v6889
    %v7093 = vunpack.c.l.b16 %v6890
    %v7094 = vunpack.c.l.b16 %v6891
    %v7095 = vunpack.c.l.b16 %v6892
    %v7096 = vunpack.c.l.b16 %v6893
    %v7097 = vunpack.c.l.b16 %v6894
    %v7098 = vpack.c.b16 %v7019, %v7018
    %v7099 = vpack.c.b16 %v7021, %v7020
    %v7100 = vpack.c.b16 %v7023, %v7022
    %v7101 = vpack.c.b16 %v7025, %v7024
    %v7102 = vpack.c.b16 %v7027, %v7026
    %v7103 = vpack.c.b16 %v7029, %v7028
    %v7104 = vpack.c.b16 %v7031, %v7030
    %v7105 = vpack.c.b16 %v7033, %v7032
    %v7106 = vpack.c.b16 %v7035, %v7034
    %v7107 = vpack.c.b16 %v7037, %v7036
    %v7108 = vpack.c.b16 %v7039, %v7038
    %v7109 = vpack.c.b16 %v7041, %v7040
    %v7110 = vpack.c.b16 %v7043, %v7042
    %v7111 = vpack.c.b16 %v7045, %v7044
    %v7112 = vpack.c.b16 %v7047, %v7046
    %v7113 = vpack.c.b16 %v7049, %v7048
    %v7114 = vpack.c.b16 %v7051, %v7050
    %v7115 = vpack.c.b16 %v7053, %v7052
    %v7116 = vpack.c.b16 %v7055, %v7054
    %v7117 = vpack.c.b16 %v7057, %v7056
    %v7118 = vpack.c.b16 %v7059, %v7058
    %v7119 = vpack.c.b16 %v7061, %v7060
    %v7120 = vpack.c.b16 %v7063, %v7062
    %v7121 = vpack.c.b16 %v7065, %v7064
    %v7122 = vpack.c.b16 %v7067, %v7066
    %v7123 = vpack.c.b16 %v7069, %v7068
    %v7124 = vpack.c.b16 %v7071, %v7070
    %v7125 = vpack.c.b16 %v7073, %v7072
    %v7126 = vpack.c.b16 %v7075, %v7074
    %v7127 = vpack.c.b16 %v7077, %v7076
    %v7128 = vpack.c.b16 %v7079, %v7078
    %v7129 = vpack.c.b16 %v7081, %v7080
    %v7130 = vpack.c.b16 %v7083, %v7082
    %v7131 = vpack.c.b16 %v7085, %v7084
    %v7132 = vpack.c.b16 %v7087, %v7086
    %v7133 = vpack.c.b16 %v7089, %v7088
    %v7134 = vpack.c.b16 %v7091, %v7090
    %v7135 = vpack.c.b16 %v7093, %v7092
    %v7136 = vpack.c.b16 %v7095, %v7094
    %v7137 = vpack.c.b16 %v7097, %v7096
    %7178 = vmatpush.bf16.msra.mxu0 %v7105
    %7179 = vmatpush.bf16.msra.mxu0 %v7104
    %7180 = vmatpush.bf16.msra.mxu0 %v7103
    %7181 = vmatpush.bf16.msra.mxu0 %v7102
    %7182 = vmatpush.bf16.msra.mxu0 %v7101
    %7183 = vmatpush.bf16.msra.mxu0 %v7100
    %7184 = vmatpush.bf16.msra.mxu0 %v7099
    %7185 = vmatpush.bf16.msra.mxu0 %v7098
    %7186 = vmatmul.bf16.gmra.mxu0 %v6910
    %v7187 = vpop.f32.mrf.mxu0
    %v7188 = vadd.f32 0.0, %v7187
    %v7189 = vpop.f32.mrf.mxu0
    %v7190 = vadd.f32 0.0, %v7189
    %7191 = vmatmul.bf16.gmra.mxu0 %v6923
    %v7192 = vpop.f32.mrf.mxu0
    %v7193 = vadd.f32 0.0, %v7192
    %v7194 = vpop.f32.mrf.mxu0
    %v7195 = vadd.f32 0.0, %v7194
    %7196 = vdwg.mxu0
    %7197 = vmatpush.bf16.msra.mxu0 %v7113
    %7198 = vmatpush.bf16.msra.mxu0 %v7112
    %7199 = vmatpush.bf16.msra.mxu0 %v7111
    %7200 = vmatpush.bf16.msra.mxu0 %v7110
    %7201 = vmatpush.bf16.msra.mxu0 %v7109
    %7202 = vmatpush.bf16.msra.mxu0 %v7108
    %7203 = vmatpush.bf16.msra.mxu0 %v7107
    %7204 = vmatpush.bf16.msra.mxu0 %v7106
    %7205 = vmatmul.bf16.gmra.mxu0 %v6911
    %v7206 = vpop.f32.mrf.mxu0
    %v7207 = vadd.f32 %v7188, %v7206
    %v7208 = vpop.f32.mrf.mxu0
    %v7209 = vadd.f32 %v7190, %v7208
    %7210 = vmatmul.bf16.gmra.mxu0 %v6924
    %v7211 = vpop.f32.mrf.mxu0
    %v7212 = vadd.f32 %v7193, %v7211
    %v7213 = vpop.f32.mrf.mxu0
    %v7214 = vadd.f32 %v7195, %v7213
    %7215 = vdwg.mxu0
    %7216 = vmatpush.bf16.msra.mxu0 %v7121
    %7217 = vmatpush.bf16.msra.mxu0 %v7120
    %7218 = vmatpush.bf16.msra.mxu0 %v7119
    %7219 = vmatpush.bf16.msra.mxu0 %v7118
    %7220 = vmatpush.bf16.msra.mxu0 %v7117
    %7221 = vmatpush.bf16.msra.mxu0 %v7116
    %7222 = vmatpush.bf16.msra.mxu0 %v7115
    %7223 = vmatpush.bf16.msra.mxu0 %v7114
    %7224 = vmatmul.bf16.gmra.mxu0 %v6912
    %v7225 = vpop.f32.mrf.mxu0
    %v7226 = vadd.f32 %v7207, %v7225
    %v7227 = vpop.f32.mrf.mxu0
    %v7228 = vadd.f32 %v7209, %v7227
    %7229 = vmatmul.bf16.gmra.mxu0 %v6925
    %v7230 = vpop.f32.mrf.mxu0
    %v7231 = vadd.f32 %v7212, %v7230
    %v7232 = vpop.f32.mrf.mxu0
    %v7233 = vadd.f32 %v7214, %v7232
    %7234 = vdwg.mxu0
    %7235 = vmatpush.bf16.msra.mxu0 %v7129
    %7236 = vmatpush.bf16.msra.mxu0 %v7128
    %7237 = vmatpush.bf16.msra.mxu0 %v7127
    %7238 = vmatpush.bf16.msra.mxu0 %v7126
    %7239 = vmatpush.bf16.msra.mxu0 %v7125
    %7240 = vmatpush.bf16.msra.mxu0 %v7124
    %7241 = vmatpush.bf16.msra.mxu0 %v7123
    %7242 = vmatpush.bf16.msra.mxu0 %v7122
    %7243 = vmatmul.bf16.gmra.mxu0 %v6913
    %v7244 = vpop.f32.mrf.mxu0
    %v7245 = vadd.f32 %v7226, %v7244
    %v7246 = vpop.f32.mrf.mxu0
    %v7247 = vadd.f32 %v7228, %v7246
    %7248 = vmatmul.bf16.gmra.mxu0 %v6926
    %v7249 = vpop.f32.mrf.mxu0
    %v7250 = vadd.f32 %v7231, %v7249
    %v7251 = vpop.f32.mrf.mxu0
    %v7252 = vadd.f32 %v7233, %v7251
    %7253 = vdwg.mxu0
    %7254 = vmatpush.bf16.msra.mxu0 %v7137
    %7255 = vmatpush.bf16.msra.mxu0 %v7136
    %7256 = vmatpush.bf16.msra.mxu0 %v7135
    %7257 = vmatpush.bf16.msra.mxu0 %v7134
    %7258 = vmatpush.bf16.msra.mxu0 %v7133
    %7259 = vmatpush.bf16.msra.mxu0 %v7132
    %7260 = vmatpush.bf16.msra.mxu0 %v7131
    %7261 = vmatpush.bf16.msra.mxu0 %v7130
    %7262 = vmatmul.bf16.gmra.mxu0 %v6914
    %v7263 = vpop.f32.mrf.mxu0
    %v7264 = vadd.f32 %v7245, %v7263
    %v7265 = vpop.f32.mrf.mxu0
    %v7266 = vadd.f32 %v7247, %v7265
    %7267 = vmatmul.bf16.gmra.mxu0 %v6927
    %v7268 = vpop.f32.mrf.mxu0
    %v7269 = vadd.f32 %v7250, %v7268
    %v7270 = vpop.f32.mrf.mxu0
    %v7271 = vadd.f32 %v7252, %v7270
    %7272 = vdwg.mxu0
    %v7273 = vadd.f32 %v6810, %v7264
    %v7274 = vadd.f32 %v6811, %v7266
    %v7275 = vadd.f32 %v6812, %v7269
    %v7276 = vadd.f32 %v6813, %v7271
    %s7277 = scalar_lea.vmem %s5, 1280
    %v7278 = vld [vmem:[%s7277] sm:$0xf]
    %v7279 = vld [vmem:[%s7277 + $0x4] sm:$0xf]
    %v7280 = vld [vmem:[%s7277 + $0x8] sm:$0xf]
    %v7281 = vld [vmem:[%s7277 + $0xc] sm:$0xf]
    %v7282 = vld [vmem:[%s7277 + $0x10] sm:$0xf]
    %v7283 = vld [vmem:[%s7277 + $0x14] sm:$0xf]
    %v7284 = vld [vmem:[%s7277 + $0x18] sm:$0xf]
    %v7285 = vld [vmem:[%s7277 + $0x1c] sm:$0xf]
    %v7286 = vld [vmem:[%s7277 + $0x20] sm:$0xf]
    %v7287 = vld [vmem:[%s7277 + $0x24] sm:$0xf]
    %v7288 = vld [vmem:[%s7277 + $0x28] sm:$0xf]
    %v7289 = vld [vmem:[%s7277 + $0x2c] sm:$0xf]
    %v7290 = vld [vmem:[%s7277 + $0x30] sm:$0xf]
    %v7291 = vld [vmem:[%s7277 + $0x34] sm:$0xf]
    %v7292 = vld [vmem:[%s7277 + $0x38] sm:$0xf]
    %v7293 = vld [vmem:[%s7277 + $0x3c] sm:$0xf]
    %v7294 = vld [vmem:[%s7277 + $0x40] sm:$0xf]
    %v7295 = vld [vmem:[%s7277 + $0x44] sm:$0xf]
    %v7296 = vld [vmem:[%s7277 + $0x48] sm:$0xf]
    %v7297 = vld [vmem:[%s7277 + $0x4c] sm:$0xf]
    %v7298 = vld [vmem:[%s7277 + $0x50] sm:$0xf]
    %v7299 = vld [vmem:[%s7277 + $0x54] sm:$0xf]
    %v7300 = vld [vmem:[%s7277 + $0x58] sm:$0xf]
    %v7301 = vld [vmem:[%s7277 + $0x5c] sm:$0xf]
    %v7302 = vld [vmem:[%s7277 + $0x60] sm:$0xf]
    %v7303 = vld [vmem:[%s7277 + $0x64] sm:$0xf]
    %v7304 = vld [vmem:[%s7277 + $0x68] sm:$0xf]
    %v7305 = vld [vmem:[%s7277 + $0x6c] sm:$0xf]
    %v7306 = vld [vmem:[%s7277 + $0x70] sm:$0xf]
    %v7307 = vld [vmem:[%s7277 + $0x74] sm:$0xf]
    %v7308 = vld [vmem:[%s7277 + $0x78] sm:$0xf]
    %v7309 = vld [vmem:[%s7277 + $0x7c] sm:$0xf]
    %v7310 = vld [vmem:[%s7277 + $0x80] sm:$0xf]
    %v7311 = vld [vmem:[%s7277 + $0x84] sm:$0xf]
    %v7312 = vld [vmem:[%s7277 + $0x88] sm:$0xf]
    %v7313 = vld [vmem:[%s7277 + $0x8c] sm:$0xf]
    %v7314 = vld [vmem:[%s7277 + $0x90] sm:$0xf]
    %v7315 = vld [vmem:[%s7277 + $0x94] sm:$0xf]
    %v7316 = vld [vmem:[%s7277 + $0x98] sm:$0xf]
    %v7317 = vld [vmem:[%s7277 + $0x9c] sm:$0xf]
    %v7318 = vld [vmem:[%s7277 + $0xa0] sm:$0xf]
    %v7319 = vld [vmem:[%s7277 + $0xa4] sm:$0xf]
    %v7320 = vld [vmem:[%s7277 + $0xa8] sm:$0xf]
    %v7321 = vld [vmem:[%s7277 + $0xac] sm:$0xf]
    %v7322 = vld [vmem:[%s7277 + $0xb0] sm:$0xf]
    %v7323 = vld [vmem:[%s7277 + $0xb4] sm:$0xf]
    %v7324 = vld [vmem:[%s7277 + $0xb8] sm:$0xf]
    %v7325 = vld [vmem:[%s7277 + $0xbc] sm:$0xf]
    %v7326 = vld [vmem:[%s7277 + $0xc0] sm:$0xf]
    %v7327 = vld [vmem:[%s7277 + $0xc4] sm:$0xf]
    %v7328 = vld [vmem:[%s7277 + $0xc8] sm:$0xf]
    %v7329 = vld [vmem:[%s7277 + $0xcc] sm:$0xf]
    %v7330 = vld [vmem:[%s7277 + $0xd0] sm:$0xf]
    %v7331 = vld [vmem:[%s7277 + $0xd4] sm:$0xf]
    %v7332 = vld [vmem:[%s7277 + $0xd8] sm:$0xf]
    %v7333 = vld [vmem:[%s7277 + $0xdc] sm:$0xf]
    %v7334 = vld [vmem:[%s7277 + $0xe0] sm:$0xf]
    %v7335 = vld [vmem:[%s7277 + $0xe4] sm:$0xf]
    %v7336 = vld [vmem:[%s7277 + $0xe8] sm:$0xf]
    %v7337 = vld [vmem:[%s7277 + $0xec] sm:$0xf]
    %v7338 = vld [vmem:[%s7277 + $0xf0] sm:$0xf]
    %v7339 = vld [vmem:[%s7277 + $0xf4] sm:$0xf]
    %v7340 = vld [vmem:[%s7277 + $0xf8] sm:$0xf]
    %v7341 = vld [vmem:[%s7277 + $0xfc] sm:$0xf]
    %v7342 = vld [vmem:[%s7277 + $0x100] sm:$0xf]
    %v7343 = vld [vmem:[%s7277 + $0x104] sm:$0xf]
    %v7344 = vld [vmem:[%s7277 + $0x108] sm:$0xf]
    %v7345 = vld [vmem:[%s7277 + $0x10c] sm:$0xf]
    %v7346 = vld [vmem:[%s7277 + $0x110] sm:$0xf]
    %v7347 = vld [vmem:[%s7277 + $0x114] sm:$0xf]
    %v7348 = vld [vmem:[%s7277 + $0x118] sm:$0xf]
    %v7349 = vld [vmem:[%s7277 + $0x11c] sm:$0xf]
    %v7350 = vld [vmem:[%s7277 + $0x120] sm:$0xf]
    %v7351 = vld [vmem:[%s7277 + $0x124] sm:$0xf]
    %v7352 = vld [vmem:[%s7277 + $0x128] sm:$0xf]
    %v7353 = vld [vmem:[%s7277 + $0x12c] sm:$0xf]
    %v7354 = vld [vmem:[%s7277 + $0x130] sm:$0xf]
    %v7355 = vld [vmem:[%s7277 + $0x134] sm:$0xf]
    %v7356 = vld [vmem:[%s7277 + $0x138] sm:$0xf]
    %v7357 = vld [vmem:[%s7277 + $0x13c] sm:$0xf]
    %7358 = vst [vmem:[#allocation1] ss:$4 sm:$0xff] %v5480
    %s7359 = scalar_lea.vmem [#allocation1], 1
    %7360 = vst [vmem:[%s7359] ss:$4 sm:$0xff] %v6342
    %s7361 = scalar_lea.vmem [#allocation1], 2
    %7362 = vst [vmem:[%s7361] ss:$4 sm:$0xff] %v5364
    %s7363 = scalar_lea.vmem [#allocation1], 3
    %7364 = vst [vmem:[%s7363] ss:$4 sm:$0xff] %v5364
    %s7365 = scalar_lea.vmem [#allocation1], 32
    %7366 = vst [vmem:[%s7365] ss:$4 sm:$0xff] %v5336
    %s7367 = scalar_lea.vmem [#allocation1], 33
    %7368 = vst [vmem:[%s7367] ss:$4 sm:$0xff] %v5337
    %s7369 = scalar_lea.vmem [#allocation1], 34
    %7370 = vst [vmem:[%s7369] ss:$4 sm:$0xff] %v5333
    %s7371 = scalar_lea.vmem [#allocation1], 35
    %7372 = vst [vmem:[%s7371] ss:$4 sm:$0xff] %v5333
    %v7373 = vld.sshfl [vmem:[#allocation1] sm:$0xff pattern:$0x73625140]
    %v7374 = vld.sshfl [vmem:[#allocation1 + $0x8] sm:$0xff pattern:$0x73625140]
    %v7375 = vld.sshfl [vmem:[#allocation1 + $0x10] sm:$0xff pattern:$0x73625140]
    %v7376 = vld.sshfl [vmem:[#allocation1 + $0x18] sm:$0xff pattern:$0x73625140]
    %v7377 = vld.sshfl [vmem:[#allocation1 + $0x20] sm:$0xff pattern:$0x73625140]
    %7378 = vst [vmem:[#allocation1] ss:$4 sm:$0xff] %v5486
    %7379 = vst [vmem:[%s7359] ss:$4 sm:$0xff] %v6348
    %7380 = vst [vmem:[%s7361] ss:$4 sm:$0xff] %v5364
    %7381 = vst [vmem:[%s7363] ss:$4 sm:$0xff] %v5364
    %7382 = vst [vmem:[%s7365] ss:$4 sm:$0xff] %v5340
    %7383 = vst [vmem:[%s7367] ss:$4 sm:$0xff] %v5341
    %7384 = vst [vmem:[%s7369] ss:$4 sm:$0xff] %v5333
    %7385 = vst [vmem:[%s7371] ss:$4 sm:$0xff] %v5333
    %v7386 = vld.sshfl [vmem:[#allocation1] sm:$0xff pattern:$0x73625140]
    %v7387 = vld.sshfl [vmem:[#allocation1 + $0x8] sm:$0xff pattern:$0x73625140]
    %v7388 = vld.sshfl [vmem:[#allocation1 + $0x10] sm:$0xff pattern:$0x73625140]
    %v7389 = vld.sshfl [vmem:[#allocation1 + $0x18] sm:$0xff pattern:$0x73625140]
    %v7390 = vld.sshfl [vmem:[#allocation1 + $0x20] sm:$0xff pattern:$0x73625140]
    %v7481 = vunpack.c.l.b16 %v7278
    %v7482 = vunpack.c.l.b16 %v7279
    %v7483 = vunpack.c.l.b16 %v7280
    %v7484 = vunpack.c.l.b16 %v7281
    %v7485 = vunpack.c.l.b16 %v7282
    %v7486 = vunpack.c.l.b16 %v7283
    %v7487 = vunpack.c.l.b16 %v7284
    %v7488 = vunpack.c.l.b16 %v7285
    %v7489 = vunpack.c.l.b16 %v7286
    %v7490 = vunpack.c.l.b16 %v7287
    %v7491 = vunpack.c.l.b16 %v7288
    %v7492 = vunpack.c.l.b16 %v7289
    %v7493 = vunpack.c.l.b16 %v7290
    %v7494 = vunpack.c.l.b16 %v7291
    %v7495 = vunpack.c.l.b16 %v7292
    %v7496 = vunpack.c.l.b16 %v7293
    %v7497 = vunpack.c.l.b16 %v7294
    %v7498 = vunpack.c.l.b16 %v7295
    %v7499 = vunpack.c.l.b16 %v7296
    %v7500 = vunpack.c.l.b16 %v7297
    %v7501 = vunpack.c.l.b16 %v7298
    %v7502 = vunpack.c.l.b16 %v7299
    %v7503 = vunpack.c.l.b16 %v7300
    %v7504 = vunpack.c.l.b16 %v7301
    %v7505 = vunpack.c.l.b16 %v7302
    %v7506 = vunpack.c.l.b16 %v7303
    %v7507 = vunpack.c.l.b16 %v7304
    %v7508 = vunpack.c.l.b16 %v7305
    %v7509 = vunpack.c.l.b16 %v7306
    %v7510 = vunpack.c.l.b16 %v7307
    %v7511 = vunpack.c.l.b16 %v7308
    %v7512 = vunpack.c.l.b16 %v7309
    %v7513 = vunpack.c.l.b16 %v7310
    %v7514 = vunpack.c.l.b16 %v7311
    %v7515 = vunpack.c.l.b16 %v7312
    %v7516 = vunpack.c.l.b16 %v7313
    %v7517 = vunpack.c.l.b16 %v7314
    %v7518 = vunpack.c.l.b16 %v7315
    %v7519 = vunpack.c.l.b16 %v7316
    %v7520 = vunpack.c.l.b16 %v7317
    %v7521 = vunpack.c.l.b16 %v7318
    %v7522 = vunpack.c.l.b16 %v7319
    %v7523 = vunpack.c.l.b16 %v7320
    %v7524 = vunpack.c.l.b16 %v7321
    %v7525 = vunpack.c.l.b16 %v7322
    %v7526 = vunpack.c.l.b16 %v7323
    %v7527 = vunpack.c.l.b16 %v7324
    %v7528 = vunpack.c.l.b16 %v7325
    %v7529 = vunpack.c.l.b16 %v7326
    %v7530 = vunpack.c.l.b16 %v7327
    %v7531 = vunpack.c.l.b16 %v7328
    %v7532 = vunpack.c.l.b16 %v7329
    %v7533 = vunpack.c.l.b16 %v7330
    %v7534 = vunpack.c.l.b16 %v7331
    %v7535 = vunpack.c.l.b16 %v7332
    %v7536 = vunpack.c.l.b16 %v7333
    %v7537 = vunpack.c.l.b16 %v7334
    %v7538 = vunpack.c.l.b16 %v7335
    %v7539 = vunpack.c.l.b16 %v7336
    %v7540 = vunpack.c.l.b16 %v7337
    %v7541 = vunpack.c.l.b16 %v7338
    %v7542 = vunpack.c.l.b16 %v7339
    %v7543 = vunpack.c.l.b16 %v7340
    %v7544 = vunpack.c.l.b16 %v7341
    %v7545 = vunpack.c.l.b16 %v7342
    %v7546 = vunpack.c.l.b16 %v7343
    %v7547 = vunpack.c.l.b16 %v7344
    %v7548 = vunpack.c.l.b16 %v7345
    %v7549 = vunpack.c.l.b16 %v7346
    %v7550 = vunpack.c.l.b16 %v7347
    %v7551 = vunpack.c.l.b16 %v7348
    %v7552 = vunpack.c.l.b16 %v7349
    %v7553 = vunpack.c.l.b16 %v7350
    %v7554 = vunpack.c.l.b16 %v7351
    %v7555 = vunpack.c.l.b16 %v7352
    %v7556 = vunpack.c.l.b16 %v7353
    %v7557 = vunpack.c.l.b16 %v7354
    %v7558 = vunpack.c.l.b16 %v7355
    %v7559 = vunpack.c.l.b16 %v7356
    %v7560 = vunpack.c.l.b16 %v7357
    %v7561 = vpack.c.b16 %v7482, %v7481
    %v7562 = vpack.c.b16 %v7484, %v7483
    %v7563 = vpack.c.b16 %v7486, %v7485
    %v7564 = vpack.c.b16 %v7488, %v7487
    %v7565 = vpack.c.b16 %v7490, %v7489
    %v7566 = vpack.c.b16 %v7492, %v7491
    %v7567 = vpack.c.b16 %v7494, %v7493
    %v7568 = vpack.c.b16 %v7496, %v7495
    %v7569 = vpack.c.b16 %v7498, %v7497
    %v7570 = vpack.c.b16 %v7500, %v7499
    %v7571 = vpack.c.b16 %v7502, %v7501
    %v7572 = vpack.c.b16 %v7504, %v7503
    %v7573 = vpack.c.b16 %v7506, %v7505
    %v7574 = vpack.c.b16 %v7508, %v7507
    %v7575 = vpack.c.b16 %v7510, %v7509
    %v7576 = vpack.c.b16 %v7512, %v7511
    %v7577 = vpack.c.b16 %v7514, %v7513
    %v7578 = vpack.c.b16 %v7516, %v7515
    %v7579 = vpack.c.b16 %v7518, %v7517
    %v7580 = vpack.c.b16 %v7520, %v7519
    %v7581 = vpack.c.b16 %v7522, %v7521
    %v7582 = vpack.c.b16 %v7524, %v7523
    %v7583 = vpack.c.b16 %v7526, %v7525
    %v7584 = vpack.c.b16 %v7528, %v7527
    %v7585 = vpack.c.b16 %v7530, %v7529
    %v7586 = vpack.c.b16 %v7532, %v7531
    %v7587 = vpack.c.b16 %v7534, %v7533
    %v7588 = vpack.c.b16 %v7536, %v7535
    %v7589 = vpack.c.b16 %v7538, %v7537
    %v7590 = vpack.c.b16 %v7540, %v7539
    %v7591 = vpack.c.b16 %v7542, %v7541
    %v7592 = vpack.c.b16 %v7544, %v7543
    %v7593 = vpack.c.b16 %v7546, %v7545
    %v7594 = vpack.c.b16 %v7548, %v7547
    %v7595 = vpack.c.b16 %v7550, %v7549
    %v7596 = vpack.c.b16 %v7552, %v7551
    %v7597 = vpack.c.b16 %v7554, %v7553
    %v7598 = vpack.c.b16 %v7556, %v7555
    %v7599 = vpack.c.b16 %v7558, %v7557
    %v7600 = vpack.c.b16 %v7560, %v7559
    %7641 = vmatpush.bf16.msra.mxu0 %v7568
    %7642 = vmatpush.bf16.msra.mxu0 %v7567
    %7643 = vmatpush.bf16.msra.mxu0 %v7566
    %7644 = vmatpush.bf16.msra.mxu0 %v7565
    %7645 = vmatpush.bf16.msra.mxu0 %v7564
    %7646 = vmatpush.bf16.msra.mxu0 %v7563
    %7647 = vmatpush.bf16.msra.mxu0 %v7562
    %7648 = vmatpush.bf16.msra.mxu0 %v7561
    %7649 = vmatmul.bf16.gmra.mxu0 %v7373
    %v7650 = vpop.f32.mrf.mxu0
    %v7651 = vadd.f32 0.0, %v7650
    %v7652 = vpop.f32.mrf.mxu0
    %v7653 = vadd.f32 0.0, %v7652
    %7654 = vmatmul.bf16.gmra.mxu0 %v7386
    %v7655 = vpop.f32.mrf.mxu0
    %v7656 = vadd.f32 0.0, %v7655
    %v7657 = vpop.f32.mrf.mxu0
    %v7658 = vadd.f32 0.0, %v7657
    %7659 = vdwg.mxu0
    %7660 = vmatpush.bf16.msra.mxu0 %v7576
    %7661 = vmatpush.bf16.msra.mxu0 %v7575
    %7662 = vmatpush.bf16.msra.mxu0 %v7574
    %7663 = vmatpush.bf16.msra.mxu0 %v7573
    %7664 = vmatpush.bf16.msra.mxu0 %v7572
    %7665 = vmatpush.bf16.msra.mxu0 %v7571
    %7666 = vmatpush.bf16.msra.mxu0 %v7570
    %7667 = vmatpush.bf16.msra.mxu0 %v7569
    %7668 = vmatmul.bf16.gmra.mxu0 %v7374
    %v7669 = vpop.f32.mrf.mxu0
    %v7670 = vadd.f32 %v7651, %v7669
    %v7671 = vpop.f32.mrf.mxu0
    %v7672 = vadd.f32 %v7653, %v7671
    %7673 = vmatmul.bf16.gmra.mxu0 %v7387
    %v7674 = vpop.f32.mrf.mxu0
    %v7675 = vadd.f32 %v7656, %v7674
    %v7676 = vpop.f32.mrf.mxu0
    %v7677 = vadd.f32 %v7658, %v7676
    %7678 = vdwg.mxu0
    %7679 = vmatpush.bf16.msra.mxu0 %v7584
    %7680 = vmatpush.bf16.msra.mxu0 %v7583
    %7681 = vmatpush.bf16.msra.mxu0 %v7582
    %7682 = vmatpush.bf16.msra.mxu0 %v7581
    %7683 = vmatpush.bf16.msra.mxu0 %v7580
    %7684 = vmatpush.bf16.msra.mxu0 %v7579
    %7685 = vmatpush.bf16.msra.mxu0 %v7578
    %7686 = vmatpush.bf16.msra.mxu0 %v7577
    %7687 = vmatmul.bf16.gmra.mxu0 %v7375
    %v7688 = vpop.f32.mrf.mxu0
    %v7689 = vadd.f32 %v7670, %v7688
    %v7690 = vpop.f32.mrf.mxu0
    %v7691 = vadd.f32 %v7672, %v7690
    %7692 = vmatmul.bf16.gmra.mxu0 %v7388
    %v7693 = vpop.f32.mrf.mxu0
    %v7694 = vadd.f32 %v7675, %v7693
    %v7695 = vpop.f32.mrf.mxu0
    %v7696 = vadd.f32 %v7677, %v7695
    %7697 = vdwg.mxu0
    %7698 = vmatpush.bf16.msra.mxu0 %v7592
    %7699 = vmatpush.bf16.msra.mxu0 %v7591
    %7700 = vmatpush.bf16.msra.mxu0 %v7590
    %7701 = vmatpush.bf16.msra.mxu0 %v7589
    %7702 = vmatpush.bf16.msra.mxu0 %v7588
    %7703 = vmatpush.bf16.msra.mxu0 %v7587
    %7704 = vmatpush.bf16.msra.mxu0 %v7586
    %7705 = vmatpush.bf16.msra.mxu0 %v7585
    %7706 = vmatmul.bf16.gmra.mxu0 %v7376
    %v7707 = vpop.f32.mrf.mxu0
    %v7708 = vadd.f32 %v7689, %v7707
    %v7709 = vpop.f32.mrf.mxu0
    %v7710 = vadd.f32 %v7691, %v7709
    %7711 = vmatmul.bf16.gmra.mxu0 %v7389
    %v7712 = vpop.f32.mrf.mxu0
    %v7713 = vadd.f32 %v7694, %v7712
    %v7714 = vpop.f32.mrf.mxu0
    %v7715 = vadd.f32 %v7696, %v7714
    %7716 = vdwg.mxu0
    %7717 = vmatpush.bf16.msra.mxu0 %v7600
    %7718 = vmatpush.bf16.msra.mxu0 %v7599
    %7719 = vmatpush.bf16.msra.mxu0 %v7598
    %7720 = vmatpush.bf16.msra.mxu0 %v7597
    %7721 = vmatpush.bf16.msra.mxu0 %v7596
    %7722 = vmatpush.bf16.msra.mxu0 %v7595
    %7723 = vmatpush.bf16.msra.mxu0 %v7594
    %7724 = vmatpush.bf16.msra.mxu0 %v7593
    %7725 = vmatmul.bf16.gmra.mxu0 %v7377
    %v7726 = vpop.f32.mrf.mxu0
    %v7727 = vadd.f32 %v7708, %v7726
    %v7728 = vpop.f32.mrf.mxu0
    %v7729 = vadd.f32 %v7710, %v7728
    %7730 = vmatmul.bf16.gmra.mxu0 %v7390
    %v7731 = vpop.f32.mrf.mxu0
    %v7732 = vadd.f32 %v7713, %v7731
    %v7733 = vpop.f32.mrf.mxu0
    %v7734 = vadd.f32 %v7715, %v7733
    %7735 = vdwg.mxu0
    %v7736 = vadd.f32 %v7273, %v7727
    %v7737 = vadd.f32 %v7274, %v7729
    %v7738 = vadd.f32 %v7275, %v7732
    %v7739 = vadd.f32 %v7276, %v7734
    %v7740 = vld [vmem:[%s6] sm:$0x1]
    %v7742 = vperm.slane %v7740, 0
    %v7744 = vadd.f32 %v7736, %v7742
    %v7745 = vadd.f32 %v7737, %v7742
    %v7746 = vadd.f32 %v7738, %v7742
    %v7747 = vadd.f32 %v7739, %v7742
    %v7748 = vmax.f32 %v7744, 0.0
    %v7749 = vmax.f32 %v7745, 0.0
    %v7750 = vmax.f32 %v7746, 0.0
    %v7751 = vmax.f32 %v7747, 0.0
    %v7756 = vrot.slane %v7748, 4
    %v7757 = vrot.slane %v7749, 4
    %v7758 = vrot.slane %v7750, 4
    %v7759 = vrot.slane %v7751, 4
    %v7764 = vsel %vm5363, %v7748, -inf
    %v7765 = vsel %vm5363, %v7756, -inf
    %v7766 = vmax.f32 %v7764, %v7765
    %v7767 = vsel %vm5363, %v7749, -inf
    %v7768 = vsel %vm5363, %v7757, -inf
    %v7769 = vmax.f32 %v7767, %v7768
    %v7770 = vsel %vm5363, %v7750, -inf
    %v7771 = vsel %vm5363, %v7758, -inf
    %v7772 = vmax.f32 %v7770, %v7771
    %v7773 = vsel %vm5363, %v7751, -inf
    %v7774 = vsel %vm5363, %v7759, -inf
    %v7775 = vmax.f32 %v7773, %v7774
    %v7780 = vrot.slane %v7766, 2
    %v7781 = vrot.slane %v7769, 2
    %v7782 = vrot.slane %v7772, 2
    %v7783 = vrot.slane %v7775, 2
    %v7784 = vsel %vm4815, %v7766, %v7780
    %vm7785 = vcmask 1043458
    %v7786 = vsel %vm7785, %v7766, %v7780
    %v7787 = vrot.slane %v7786, 2
    %v7788 = vsel %vm4815, %v7769, %v7781
    %v7789 = vsel %vm7785, %v7769, %v7781
    %v7790 = vrot.slane %v7789, 2
    %v7791 = vsel %vm4815, %v7772, %v7782
    %v7792 = vsel %vm7785, %v7772, %v7782
    %v7793 = vrot.slane %v7792, 2
    %v7794 = vsel %vm4815, %v7775, %v7783
    %v7795 = vsel %vm7785, %v7775, %v7783
    %v7796 = vrot.slane %v7795, 2
    %v7805 = vsel %vm4815, %v7784, -inf
    %v7806 = vrot.slane %v7805, 4
    %v7807 = vmax.f32 %v7805, %v7806
    %v7808 = vrot.slane %v7807, 2
    %v7809 = vmax.f32 %v7807, %v7808
    %v7810 = vrot.slane %v7809, 1
    %v7811 = vmax.f32 %v7809, %v7810
    %v7812 = vsel %vm4815, %v7787, -inf
    %v7813 = vrot.slane %v7812, 4
    %v7814 = vmax.f32 %v7812, %v7813
    %v7815 = vrot.slane %v7814, 2
    %v7816 = vmax.f32 %v7814, %v7815
    %v7817 = vrot.slane %v7816, 1
    %v7818 = vmax.f32 %v7816, %v7817
    %v7819 = vsel %vm4815, %v7788, -inf
    %v7820 = vrot.slane %v7819, 4
    %v7821 = vmax.f32 %v7819, %v7820
    %v7822 = vrot.slane %v7821, 2
    %v7823 = vmax.f32 %v7821, %v7822
    %v7824 = vrot.slane %v7823, 1
    %v7825 = vmax.f32 %v7823, %v7824
    %v7826 = vsel %vm4815, %v7790, -inf
    %v7827 = vrot.slane %v7826, 4
    %v7828 = vmax.f32 %v7826, %v7827
    %v7829 = vrot.slane %v7828, 2
    %v7830 = vmax.f32 %v7828, %v7829
    %v7831 = vrot.slane %v7830, 1
    %v7832 = vmax.f32 %v7830, %v7831
    %v7833 = vsel %vm4815, %v7791, -inf
    %v7834 = vrot.slane %v7833, 4
    %v7835 = vmax.f32 %v7833, %v7834
    %v7836 = vrot.slane %v7835, 2
    %v7837 = vmax.f32 %v7835, %v7836
    %v7838 = vrot.slane %v7837, 1
    %v7839 = vmax.f32 %v7837, %v7838
    %v7840 = vsel %vm4815, %v7793, -inf
    %v7841 = vrot.slane %v7840, 4
    %v7842 = vmax.f32 %v7840, %v7841
    %v7843 = vrot.slane %v7842, 2
    %v7844 = vmax.f32 %v7842, %v7843
    %v7845 = vrot.slane %v7844, 1
    %v7846 = vmax.f32 %v7844, %v7845
    %v7847 = vsel %vm4815, %v7794, -inf
    %v7848 = vrot.slane %v7847, 4
    %v7849 = vmax.f32 %v7847, %v7848
    %v7850 = vrot.slane %v7849, 2
    %v7851 = vmax.f32 %v7849, %v7850
    %v7852 = vrot.slane %v7851, 1
    %v7853 = vmax.f32 %v7851, %v7852
    %v7854 = vsel %vm4815, %v7796, -inf
    %v7855 = vrot.slane %v7854, 4
    %v7856 = vmax.f32 %v7854, %v7855
    %v7857 = vrot.slane %v7856, 2
    %v7858 = vmax.f32 %v7856, %v7857
    %v7859 = vrot.slane %v7858, 1
    %v7860 = vmax.f32 %v7858, %v7859
    %v7861 = vpack.c.bf16 %v7811, %v7811
    %v7862 = vpack.c.bf16 %v7818, %v7818
    %v7863 = vpack.c.bf16 %v7825, %v7825
    %v7864 = vpack.c.bf16 %v7832, %v7832
    %v7865 = vpack.c.bf16 %v7839, %v7839
    %v7866 = vpack.c.bf16 %v7846, %v7846
    %v7867 = vpack.c.bf16 %v7853, %v7853
    %v7868 = vpack.c.bf16 %v7860, %v7860
    %v7877 = vperm.slane %v7861, 0
    %v7878 = vperm.slane %v7862, 0
    %v7879 = vperm.slane %v7863, 0
    %v7880 = vperm.slane %v7864, 0
    %v7881 = vperm.slane %v7865, 0
    %v7882 = vperm.slane %v7866, 0
    %v7883 = vperm.slane %v7867, 0
    %v7884 = vperm.slane %v7868, 0
    %v7885 = vunpack.c.l.b16 %v7877
    %v7886 = vunpack.c.l.b16 %v7878
    %v7887 = vunpack.c.l.b16 %v7879
    %v7888 = vunpack.c.l.b16 %v7880
    %v7889 = vunpack.c.l.b16 %v7881
    %v7890 = vunpack.c.l.b16 %v7882
    %v7891 = vunpack.c.l.b16 %v7883
    %v7892 = vunpack.c.l.b16 %v7884
    %v7893 = vsel %vm2327, %v7886, %v7885
    %v7894 = vsel %vm2327, %v7888, %v7887
    %v7895 = vsel %vm2327, %v7890, %v7889
    %v7896 = vsel %vm2327, %v7892, %v7891
    %v7897 = vpack.c.b16 %v7893, %v7893
    %v7898 = vpack.c.b16 %v7894, %v7894
    %v7899 = vpack.c.b16 %v7895, %v7895
    %v7900 = vpack.c.b16 %v7896, %v7896
    %v7901 = vrot.slane %v7897, 7
    %v7902 = vrot.slane %v7898, 7
    %v7903 = vrot.slane %v7899, 7
    %v7904 = vrot.slane %v7900, 7
    %v7906 = vsel %vm2480, 0, %v7901
    %v7908 = vsel %vm2480, 0, %v7902
    %v7910 = vsel %vm2480, 0, %v7903
    %v7912 = vsel %vm2480, 0, %v7904
    %v7913 = vsel %vm4815, %v2483, 0
    %v7914 = vsel %vm4815, %v7906, 0
    %v7915 = vsel %vm4815, %v7908, 0
    %v7916 = vsel %vm4815, %v7910, 0
    %v7917 = vsel %vm4815, %v7912, 0
    %v7918 = vshrl.u32 %v7913, 16
    %v7920 = vshll.u32 %v7913, 16
    %v7922 = vrot.slane %v7920, 1
    %v7923 = vor.u32 %v7918, %v7922
    %v7924 = vshrl.u32 %v7914, 16
    %v7926 = vshll.u32 %v7914, 16
    %v7928 = vrot.slane %v7926, 1
    %v7929 = vor.u32 %v7924, %v7928
    %v7930 = vshrl.u32 %v7915, 16
    %v7932 = vshll.u32 %v7915, 16
    %v7934 = vrot.slane %v7932, 1
    %v7935 = vor.u32 %v7930, %v7934
    %v7936 = vshrl.u32 %v7916, 16
    %v7938 = vshll.u32 %v7916, 16
    %v7940 = vrot.slane %v7938, 1
    %v7941 = vor.u32 %v7936, %v7940
    %v7942 = vshrl.u32 %v7917, 16
    %v7944 = vshll.u32 %v7917, 16
    %v7946 = vrot.slane %v7944, 1
    %v7947 = vor.u32 %v7942, %v7946
    %v7953 = vrot.slane %v7913, 1
    %v7954 = vrot.slane %v7914, 1
    %v7955 = vrot.slane %v7915, 1
    %v7956 = vrot.slane %v7916, 1
    %v7957 = vrot.slane %v7917, 1
    %v7958 = vrot.slane %v7918, 1
    %v7959 = vrot.slane %v7920, 2
    %v7960 = vor.u32 %v7958, %v7959
    %v7961 = vrot.slane %v7924, 1
    %v7962 = vrot.slane %v7926, 2
    %v7963 = vor.u32 %v7961, %v7962
    %v7964 = vrot.slane %v7930, 1
    %v7965 = vrot.slane %v7932, 2
    %v7966 = vor.u32 %v7964, %v7965
    %v7967 = vrot.slane %v7936, 1
    %v7968 = vrot.slane %v7938, 2
    %v7969 = vor.u32 %v7967, %v7968
    %v7970 = vrot.slane %v7942, 1
    %v7971 = vrot.slane %v7944, 2
    %v7972 = vor.u32 %v7970, %v7971
    %v7973 = vrot.slane %v7913, 2
    %v7974 = vrot.slane %v7914, 2
    %v7975 = vrot.slane %v7915, 2
    %v7976 = vrot.slane %v7916, 2
    %v7977 = vrot.slane %v7917, 2
    %v7978 = vrot.slane %v7923, 7
    %v7979 = vrot.slane %v7953, 6
    %v7980 = vrot.slane %v7960, 5
    %v7981 = vrot.slane %v7973, 4
    %v7983 = vsel %vm2480, %v7913, %v7978
    %v7985 = vsel %vm4815, %v7983, %v7979
    %v7988 = vsel %vm2331, %v7980, %v7981
    %v7989 = vsel %vm5224, %v7985, %v7988
    %v7990 = vld [vmem:[%s7] sm:$0xff]
    %v7991 = vld [vmem:[%s7 + $0x8] sm:$0xff]
    %v7992 = vld [vmem:[%s7 + $0x10] sm:$0xff]
    %v7993 = vld [vmem:[%s7 + $0x18] sm:$0xff]
    %v7994 = vld [vmem:[%s7 + $0x20] sm:$0xff]
    %v7995 = vld [vmem:[%s7 + $0x28] sm:$0xff]
    %v7996 = vld [vmem:[%s7 + $0x30] sm:$0xff]
    %v7997 = vld [vmem:[%s7 + $0x38] sm:$0xff]
    %v7998 = vld [vmem:[%s7 + $0x40] sm:$0xff]
    %v7999 = vld [vmem:[%s7 + $0x48] sm:$0xff]
    %v8000 = vld [vmem:[%s7 + $0x50] sm:$0xff]
    %v8001 = vld [vmem:[%s7 + $0x58] sm:$0xff]
    %v8002 = vld [vmem:[%s7 + $0x60] sm:$0xff]
    %v8003 = vld [vmem:[%s7 + $0x68] sm:$0xff]
    %v8004 = vld [vmem:[%s7 + $0x70] sm:$0xff]
    %v8005 = vld [vmem:[%s7 + $0x78] sm:$0xff]
    %v8006 = vld [vmem:[%s7 + $0x80] sm:$0xff]
    %v8007 = vld [vmem:[%s7 + $0x88] sm:$0xff]
    %v8008 = vld [vmem:[%s7 + $0x90] sm:$0xff]
    %v8009 = vld [vmem:[%s7 + $0x98] sm:$0xff]
    %v8010 = vld [vmem:[%s7 + $0xa0] sm:$0xff]
    %v8011 = vld [vmem:[%s7 + $0xa8] sm:$0xff]
    %v8012 = vld [vmem:[%s7 + $0xb0] sm:$0xff]
    %v8013 = vld [vmem:[%s7 + $0xb8] sm:$0xff]
    %v8014 = vld [vmem:[%s7 + $0xc0] sm:$0xff]
    %v8015 = vld [vmem:[%s7 + $0xc8] sm:$0xff]
    %v8016 = vld [vmem:[%s7 + $0xd0] sm:$0xff]
    %v8017 = vld [vmem:[%s7 + $0xd8] sm:$0xff]
    %v8018 = vld [vmem:[%s7 + $0xe0] sm:$0xff]
    %v8019 = vld [vmem:[%s7 + $0xe8] sm:$0xff]
    %v8020 = vld [vmem:[%s7 + $0xf0] sm:$0xff]
    %v8021 = vld [vmem:[%s7 + $0xf8] sm:$0xff]
    %v8022 = vld [vmem:[%s7 + $0x100] sm:$0xff]
    %v8023 = vld [vmem:[%s7 + $0x108] sm:$0xff]
    %v8024 = vld [vmem:[%s7 + $0x110] sm:$0xff]
    %v8025 = vld [vmem:[%s7 + $0x118] sm:$0xff]
    %v8026 = vld [vmem:[%s7 + $0x120] sm:$0xff]
    %v8027 = vld [vmem:[%s7 + $0x128] sm:$0xff]
    %v8028 = vld [vmem:[%s7 + $0x130] sm:$0xff]
    %v8029 = vld [vmem:[%s7 + $0x138] sm:$0xff]
    %v8030 = vld [vmem:[%s7 + $0x140] sm:$0xff]
    %v8031 = vld [vmem:[%s7 + $0x148] sm:$0xff]
    %v8032 = vld [vmem:[%s7 + $0x150] sm:$0xff]
    %v8033 = vld [vmem:[%s7 + $0x158] sm:$0xff]
    %v8034 = vld [vmem:[%s7 + $0x160] sm:$0xff]
    %v8035 = vld [vmem:[%s7 + $0x168] sm:$0xff]
    %v8036 = vld [vmem:[%s7 + $0x170] sm:$0xff]
    %v8037 = vld [vmem:[%s7 + $0x178] sm:$0xff]
    %v8038 = vld [vmem:[%s7 + $0x180] sm:$0xff]
    %v8039 = vld [vmem:[%s7 + $0x188] sm:$0xff]
    %v8040 = vld [vmem:[%s7 + $0x190] sm:$0xff]
    %v8041 = vld [vmem:[%s7 + $0x198] sm:$0xff]
    %v8042 = vld [vmem:[%s7 + $0x1a0] sm:$0xff]
    %v8043 = vld [vmem:[%s7 + $0x1a8] sm:$0xff]
    %v8044 = vld [vmem:[%s7 + $0x1b0] sm:$0xff]
    %v8045 = vld [vmem:[%s7 + $0x1b8] sm:$0xff]
    %v8046 = vld [vmem:[%s7 + $0x1c0] sm:$0xff]
    %v8047 = vld [vmem:[%s7 + $0x1c8] sm:$0xff]
    %v8048 = vld [vmem:[%s7 + $0x1d0] sm:$0xff]
    %v8049 = vld [vmem:[%s7 + $0x1d8] sm:$0xff]
    %v8050 = vld [vmem:[%s7 + $0x1e0] sm:$0xff]
    %v8051 = vld [vmem:[%s7 + $0x1e8] sm:$0xff]
    %v8052 = vld [vmem:[%s7 + $0x1f0] sm:$0xff]
    %v8053 = vld [vmem:[%s7 + $0x1f8] sm:$0xff]
    %v8054 = vld [vmem:[%s7 + $0x200] sm:$0xff]
    %v8055 = vld [vmem:[%s7 + $0x208] sm:$0xff]
    %v8056 = vld [vmem:[%s7 + $0x210] sm:$0xff]
    %v8057 = vld [vmem:[%s7 + $0x218] sm:$0xff]
    %v8058 = vld [vmem:[%s7 + $0x220] sm:$0xff]
    %v8059 = vld [vmem:[%s7 + $0x228] sm:$0xff]
    %v8060 = vld [vmem:[%s7 + $0x230] sm:$0xff]
    %v8061 = vld [vmem:[%s7 + $0x238] sm:$0xff]
    %v8062 = vld [vmem:[%s7 + $0x240] sm:$0xff]
    %v8063 = vld [vmem:[%s7 + $0x248] sm:$0xff]
    %v8064 = vld [vmem:[%s7 + $0x250] sm:$0xff]
    %v8065 = vld [vmem:[%s7 + $0x258] sm:$0xff]
    %v8066 = vld [vmem:[%s7 + $0x260] sm:$0xff]
    %v8067 = vld [vmem:[%s7 + $0x268] sm:$0xff]
    %v8068 = vld [vmem:[%s7 + $0x270] sm:$0xff]
    %v8069 = vld [vmem:[%s7 + $0x278] sm:$0xff]
    %v8070 = vrot.slane %v7929, 7
    %v8071 = vrot.slane %v7954, 6
    %v8072 = vrot.slane %v7963, 5
    %v8073 = vrot.slane %v7974, 4
    %v8074 = vrot.slane %v7941, 7
    %v8075 = vrot.slane %v7956, 6
    %v8076 = vrot.slane %v7969, 5
    %v8077 = vrot.slane %v7976, 4
    %v8079 = vsel %vm2480, %v7914, %v8070
    %v8081 = vsel %vm4815, %v8079, %v8071
    %v8084 = vsel %vm2331, %v8072, %v8073
    %v8085 = vsel %vm5224, %v8081, %v8084
    %v8087 = vsel %vm2480, %v7916, %v8074
    %v8089 = vsel %vm4815, %v8087, %v8075
    %v8092 = vsel %vm2331, %v8076, %v8077
    %v8093 = vsel %vm5224, %v8089, %v8092
    %s8094 = scalar_lea.vmem %s7, 640
    %v8095 = vld [vmem:[%s8094] sm:$0xff]
    %v8096 = vld [vmem:[%s8094 + $0x8] sm:$0xff]
    %v8097 = vld [vmem:[%s8094 + $0x10] sm:$0xff]
    %v8098 = vld [vmem:[%s8094 + $0x18] sm:$0xff]
    %v8099 = vld [vmem:[%s8094 + $0x20] sm:$0xff]
    %v8100 = vld [vmem:[%s8094 + $0x28] sm:$0xff]
    %v8101 = vld [vmem:[%s8094 + $0x30] sm:$0xff]
    %v8102 = vld [vmem:[%s8094 + $0x38] sm:$0xff]
    %v8103 = vld [vmem:[%s8094 + $0x40] sm:$0xff]
    %v8104 = vld [vmem:[%s8094 + $0x48] sm:$0xff]
    %v8105 = vld [vmem:[%s8094 + $0x50] sm:$0xff]
    %v8106 = vld [vmem:[%s8094 + $0x58] sm:$0xff]
    %v8107 = vld [vmem:[%s8094 + $0x60] sm:$0xff]
    %v8108 = vld [vmem:[%s8094 + $0x68] sm:$0xff]
    %v8109 = vld [vmem:[%s8094 + $0x70] sm:$0xff]
    %v8110 = vld [vmem:[%s8094 + $0x78] sm:$0xff]
    %v8111 = vld [vmem:[%s8094 + $0x80] sm:$0xff]
    %v8112 = vld [vmem:[%s8094 + $0x88] sm:$0xff]
    %v8113 = vld [vmem:[%s8094 + $0x90] sm:$0xff]
    %v8114 = vld [vmem:[%s8094 + $0x98] sm:$0xff]
    %v8115 = vld [vmem:[%s8094 + $0xa0] sm:$0xff]
    %v8116 = vld [vmem:[%s8094 + $0xa8] sm:$0xff]
    %v8117 = vld [vmem:[%s8094 + $0xb0] sm:$0xff]
    %v8118 = vld [vmem:[%s8094 + $0xb8] sm:$0xff]
    %v8119 = vld [vmem:[%s8094 + $0xc0] sm:$0xff]
    %v8120 = vld [vmem:[%s8094 + $0xc8] sm:$0xff]
    %v8121 = vld [vmem:[%s8094 + $0xd0] sm:$0xff]
    %v8122 = vld [vmem:[%s8094 + $0xd8] sm:$0xff]
    %v8123 = vld [vmem:[%s8094 + $0xe0] sm:$0xff]
    %v8124 = vld [vmem:[%s8094 + $0xe8] sm:$0xff]
    %v8125 = vld [vmem:[%s8094 + $0xf0] sm:$0xff]
    %v8126 = vld [vmem:[%s8094 + $0xf8] sm:$0xff]
    %v8127 = vld [vmem:[%s8094 + $0x100] sm:$0xff]
    %v8128 = vld [vmem:[%s8094 + $0x108] sm:$0xff]
    %v8129 = vld [vmem:[%s8094 + $0x110] sm:$0xff]
    %v8130 = vld [vmem:[%s8094 + $0x118] sm:$0xff]
    %v8131 = vld [vmem:[%s8094 + $0x120] sm:$0xff]
    %v8132 = vld [vmem:[%s8094 + $0x128] sm:$0xff]
    %v8133 = vld [vmem:[%s8094 + $0x130] sm:$0xff]
    %v8134 = vld [vmem:[%s8094 + $0x138] sm:$0xff]
    %v8135 = vld [vmem:[%s8094 + $0x140] sm:$0xff]
    %v8136 = vld [vmem:[%s8094 + $0x148] sm:$0xff]
    %v8137 = vld [vmem:[%s8094 + $0x150] sm:$0xff]
    %v8138 = vld [vmem:[%s8094 + $0x158] sm:$0xff]
    %v8139 = vld [vmem:[%s8094 + $0x160] sm:$0xff]
    %v8140 = vld [vmem:[%s8094 + $0x168] sm:$0xff]
    %v8141 = vld [vmem:[%s8094 + $0x170] sm:$0xff]
    %v8142 = vld [vmem:[%s8094 + $0x178] sm:$0xff]
    %v8143 = vld [vmem:[%s8094 + $0x180] sm:$0xff]
    %v8144 = vld [vmem:[%s8094 + $0x188] sm:$0xff]
    %v8145 = vld [vmem:[%s8094 + $0x190] sm:$0xff]
    %v8146 = vld [vmem:[%s8094 + $0x198] sm:$0xff]
    %v8147 = vld [vmem:[%s8094 + $0x1a0] sm:$0xff]
    %v8148 = vld [vmem:[%s8094 + $0x1a8] sm:$0xff]
    %v8149 = vld [vmem:[%s8094 + $0x1b0] sm:$0xff]
    %v8150 = vld [vmem:[%s8094 + $0x1b8] sm:$0xff]
    %v8151 = vld [vmem:[%s8094 + $0x1c0] sm:$0xff]
    %v8152 = vld [vmem:[%s8094 + $0x1c8] sm:$0xff]
    %v8153 = vld [vmem:[%s8094 + $0x1d0] sm:$0xff]
    %v8154 = vld [vmem:[%s8094 + $0x1d8] sm:$0xff]
    %v8155 = vld [vmem:[%s8094 + $0x1e0] sm:$0xff]
    %v8156 = vld [vmem:[%s8094 + $0x1e8] sm:$0xff]
    %v8157 = vld [vmem:[%s8094 + $0x1f0] sm:$0xff]
    %v8158 = vld [vmem:[%s8094 + $0x1f8] sm:$0xff]
    %v8159 = vld [vmem:[%s8094 + $0x200] sm:$0xff]
    %v8160 = vld [vmem:[%s8094 + $0x208] sm:$0xff]
    %v8161 = vld [vmem:[%s8094 + $0x210] sm:$0xff]
    %v8162 = vld [vmem:[%s8094 + $0x218] sm:$0xff]
    %v8163 = vld [vmem:[%s8094 + $0x220] sm:$0xff]
    %v8164 = vld [vmem:[%s8094 + $0x228] sm:$0xff]
    %v8165 = vld [vmem:[%s8094 + $0x230] sm:$0xff]
    %v8166 = vld [vmem:[%s8094 + $0x238] sm:$0xff]
    %v8167 = vld [vmem:[%s8094 + $0x240] sm:$0xff]
    %v8168 = vld [vmem:[%s8094 + $0x248] sm:$0xff]
    %v8169 = vld [vmem:[%s8094 + $0x250] sm:$0xff]
    %v8170 = vld [vmem:[%s8094 + $0x258] sm:$0xff]
    %v8171 = vld [vmem:[%s8094 + $0x260] sm:$0xff]
    %v8172 = vld [vmem:[%s8094 + $0x268] sm:$0xff]
    %v8173 = vld [vmem:[%s8094 + $0x270] sm:$0xff]
    %v8174 = vld [vmem:[%s8094 + $0x278] sm:$0xff]
    %8175 = vst [vmem:[#allocation1] ss:$9 sm:$0xff] %v7989
    %s8176 = scalar_lea.vmem [#allocation1], 1
    %8177 = vst [vmem:[%s8176] ss:$9 sm:$0xff] %v8085
    %s8178 = scalar_lea.vmem [#allocation1], 2
    %8179 = vst [vmem:[%s8178] ss:$9 sm:$0xff] %v7989
    %s8180 = scalar_lea.vmem [#allocation1], 3
    %8181 = vst [vmem:[%s8180] ss:$9 sm:$0xff] %v8093
    %v8182 = vld [vmem:[#allocation1] sm:$0xff]
    %v8183 = vld [vmem:[#allocation1 + $0x9] sm:$0xff]
    %v8184 = vld [vmem:[#allocation1 + $0x12] sm:$0xff]
    %v8185 = vld [vmem:[#allocation1 + $0x1b] sm:$0xff]
    %v8186 = vld [vmem:[#allocation1 + $0x24] sm:$0xff]
    %v8272 = vunpack.c.l.b16 %v8095
    %v8273 = vunpack.c.h.b16 %v8095
    %v8274 = vunpack.c.l.b16 %v8096
    %v8275 = vunpack.c.h.b16 %v8096
    %v8276 = vunpack.c.l.b16 %v8097
    %v8277 = vunpack.c.h.b16 %v8097
    %v8278 = vunpack.c.l.b16 %v8098
    %v8279 = vunpack.c.h.b16 %v8098
    %v8280 = vunpack.c.l.b16 %v8099
    %v8281 = vunpack.c.h.b16 %v8099
    %v8282 = vunpack.c.l.b16 %v8100
    %v8283 = vunpack.c.h.b16 %v8100
    %v8284 = vunpack.c.l.b16 %v8101
    %v8285 = vunpack.c.h.b16 %v8101
    %v8286 = vunpack.c.l.b16 %v8102
    %v8287 = vunpack.c.h.b16 %v8102
    %v8288 = vunpack.c.l.b16 %v8103
    %v8289 = vunpack.c.h.b16 %v8103
    %v8290 = vunpack.c.l.b16 %v8104
    %v8291 = vunpack.c.h.b16 %v8104
    %v8292 = vunpack.c.l.b16 %v8105
    %v8293 = vunpack.c.h.b16 %v8105
    %v8294 = vunpack.c.l.b16 %v8106
    %v8295 = vunpack.c.h.b16 %v8106
    %v8296 = vunpack.c.l.b16 %v8107
    %v8297 = vunpack.c.h.b16 %v8107
    %v8298 = vunpack.c.l.b16 %v8108
    %v8299 = vunpack.c.h.b16 %v8108
    %v8300 = vunpack.c.l.b16 %v8109
    %v8301 = vunpack.c.h.b16 %v8109
    %v8302 = vunpack.c.l.b16 %v8110
    %v8303 = vunpack.c.h.b16 %v8110
    %v8304 = vunpack.c.l.b16 %v8111
    %v8305 = vunpack.c.h.b16 %v8111
    %v8306 = vunpack.c.l.b16 %v8112
    %v8307 = vunpack.c.h.b16 %v8112
    %v8308 = vunpack.c.l.b16 %v8113
    %v8309 = vunpack.c.h.b16 %v8113
    %v8310 = vunpack.c.l.b16 %v8114
    %v8311 = vunpack.c.h.b16 %v8114
    %v8312 = vunpack.c.l.b16 %v8115
    %v8313 = vunpack.c.h.b16 %v8115
    %v8314 = vunpack.c.l.b16 %v8116
    %v8315 = vunpack.c.h.b16 %v8116
    %v8316 = vunpack.c.l.b16 %v8117
    %v8317 = vunpack.c.h.b16 %v8117
    %v8318 = vunpack.c.l.b16 %v8118
    %v8319 = vunpack.c.h.b16 %v8118
    %v8320 = vunpack.c.l.b16 %v8119
    %v8321 = vunpack.c.h.b16 %v8119
    %v8322 = vunpack.c.l.b16 %v8120
    %v8323 = vunpack.c.h.b16 %v8120
    %v8324 = vunpack.c.l.b16 %v8121
    %v8325 = vunpack.c.h.b16 %v8121
    %v8326 = vunpack.c.l.b16 %v8122
    %v8327 = vunpack.c.h.b16 %v8122
    %v8328 = vunpack.c.l.b16 %v8123
    %v8329 = vunpack.c.h.b16 %v8123
    %v8330 = vunpack.c.l.b16 %v8124
    %v8331 = vunpack.c.h.b16 %v8124
    %v8332 = vunpack.c.l.b16 %v8125
    %v8333 = vunpack.c.h.b16 %v8125
    %v8334 = vunpack.c.l.b16 %v8126
    %v8335 = vunpack.c.h.b16 %v8126
    %v8336 = vunpack.c.l.b16 %v8127
    %v8337 = vunpack.c.h.b16 %v8127
    %v8338 = vunpack.c.l.b16 %v8128
    %v8339 = vunpack.c.h.b16 %v8128
    %v8340 = vunpack.c.l.b16 %v8129
    %v8341 = vunpack.c.h.b16 %v8129
    %v8342 = vunpack.c.l.b16 %v8130
    %v8343 = vunpack.c.h.b16 %v8130
    %v8344 = vunpack.c.l.b16 %v8131
    %v8345 = vunpack.c.h.b16 %v8131
    %v8346 = vunpack.c.l.b16 %v8132
    %v8347 = vunpack.c.h.b16 %v8132
    %v8348 = vunpack.c.l.b16 %v8133
    %v8349 = vunpack.c.h.b16 %v8133
    %v8350 = vunpack.c.l.b16 %v8134
    %v8351 = vunpack.c.h.b16 %v8134
    %v8352 = vunpack.c.l.b16 %v8135
    %v8353 = vunpack.c.h.b16 %v8135
    %v8354 = vunpack.c.l.b16 %v8136
    %v8355 = vunpack.c.h.b16 %v8136
    %v8356 = vunpack.c.l.b16 %v8137
    %v8357 = vunpack.c.h.b16 %v8137
    %v8358 = vunpack.c.l.b16 %v8138
    %v8359 = vunpack.c.h.b16 %v8138
    %v8360 = vunpack.c.l.b16 %v8139
    %v8361 = vunpack.c.h.b16 %v8139
    %v8362 = vunpack.c.l.b16 %v8140
    %v8363 = vunpack.c.h.b16 %v8140
    %v8364 = vunpack.c.l.b16 %v8141
    %v8365 = vunpack.c.h.b16 %v8141
    %v8366 = vunpack.c.l.b16 %v8142
    %v8367 = vunpack.c.h.b16 %v8142
    %v8368 = vunpack.c.l.b16 %v8143
    %v8369 = vunpack.c.h.b16 %v8143
    %v8370 = vunpack.c.l.b16 %v8144
    %v8371 = vunpack.c.h.b16 %v8144
    %v8372 = vunpack.c.l.b16 %v8145
    %v8373 = vunpack.c.h.b16 %v8145
    %v8374 = vunpack.c.l.b16 %v8146
    %v8375 = vunpack.c.h.b16 %v8146
    %v8376 = vunpack.c.l.b16 %v8147
    %v8377 = vunpack.c.h.b16 %v8147
    %v8378 = vunpack.c.l.b16 %v8148
    %v8379 = vunpack.c.h.b16 %v8148
    %v8380 = vunpack.c.l.b16 %v8149
    %v8381 = vunpack.c.h.b16 %v8149
    %v8382 = vunpack.c.l.b16 %v8150
    %v8383 = vunpack.c.h.b16 %v8150
    %v8384 = vunpack.c.l.b16 %v8151
    %v8385 = vunpack.c.h.b16 %v8151
    %v8386 = vunpack.c.l.b16 %v8152
    %v8387 = vunpack.c.h.b16 %v8152
    %v8388 = vunpack.c.l.b16 %v8153
    %v8389 = vunpack.c.h.b16 %v8153
    %v8390 = vunpack.c.l.b16 %v8154
    %v8391 = vunpack.c.h.b16 %v8154
    %v8392 = vunpack.c.l.b16 %v8155
    %v8393 = vunpack.c.h.b16 %v8155
    %v8394 = vunpack.c.l.b16 %v8156
    %v8395 = vunpack.c.h.b16 %v8156
    %v8396 = vunpack.c.l.b16 %v8157
    %v8397 = vunpack.c.h.b16 %v8157
    %v8398 = vunpack.c.l.b16 %v8158
    %v8399 = vunpack.c.h.b16 %v8158
    %v8400 = vunpack.c.l.b16 %v8159
    %v8401 = vunpack.c.h.b16 %v8159
    %v8402 = vunpack.c.l.b16 %v8160
    %v8403 = vunpack.c.h.b16 %v8160
    %v8404 = vunpack.c.l.b16 %v8161
    %v8405 = vunpack.c.h.b16 %v8161
    %v8406 = vunpack.c.l.b16 %v8162
    %v8407 = vunpack.c.h.b16 %v8162
    %v8408 = vunpack.c.l.b16 %v8163
    %v8409 = vunpack.c.h.b16 %v8163
    %v8410 = vunpack.c.l.b16 %v8164
    %v8411 = vunpack.c.h.b16 %v8164
    %v8412 = vunpack.c.l.b16 %v8165
    %v8413 = vunpack.c.h.b16 %v8165
    %v8414 = vunpack.c.l.b16 %v8166
    %v8415 = vunpack.c.h.b16 %v8166
    %v8416 = vunpack.c.l.b16 %v8167
    %v8417 = vunpack.c.h.b16 %v8167
    %v8418 = vunpack.c.l.b16 %v8168
    %v8419 = vunpack.c.h.b16 %v8168
    %v8420 = vunpack.c.l.b16 %v8169
    %v8421 = vunpack.c.h.b16 %v8169
    %v8422 = vunpack.c.l.b16 %v8170
    %v8423 = vunpack.c.h.b16 %v8170
    %v8424 = vunpack.c.l.b16 %v8171
    %v8425 = vunpack.c.h.b16 %v8171
    %v8426 = vunpack.c.l.b16 %v8172
    %v8427 = vunpack.c.h.b16 %v8172
    %v8428 = vunpack.c.l.b16 %v8173
    %v8429 = vunpack.c.h.b16 %v8173
    %v8430 = vunpack.c.l.b16 %v8174
    %v8431 = vunpack.c.h.b16 %v8174
    %v8432 = vpack.c.b16 %v8274, %v8272
    %v8433 = vpack.c.b16 %v8275, %v8273
    %v8434 = vpack.c.b16 %v8278, %v8276
    %v8435 = vpack.c.b16 %v8279, %v8277
    %v8436 = vpack.c.b16 %v8282, %v8280
    %v8437 = vpack.c.b16 %v8283, %v8281
    %v8438 = vpack.c.b16 %v8286, %v8284
    %v8439 = vpack.c.b16 %v8287, %v8285
    %v8440 = vpack.c.b16 %v8290, %v8288
    %v8441 = vpack.c.b16 %v8291, %v8289
    %v8442 = vpack.c.b16 %v8294, %v8292
    %v8443 = vpack.c.b16 %v8295, %v8293
    %v8444 = vpack.c.b16 %v8298, %v8296
    %v8445 = vpack.c.b16 %v8299, %v8297
    %v8446 = vpack.c.b16 %v8302, %v8300
    %v8447 = vpack.c.b16 %v8303, %v8301
    %v8448 = vpack.c.b16 %v8306, %v8304
    %v8449 = vpack.c.b16 %v8307, %v8305
    %v8450 = vpack.c.b16 %v8310, %v8308
    %v8451 = vpack.c.b16 %v8311, %v8309
    %v8452 = vpack.c.b16 %v8314, %v8312
    %v8453 = vpack.c.b16 %v8315, %v8313
    %v8454 = vpack.c.b16 %v8318, %v8316
    %v8455 = vpack.c.b16 %v8319, %v8317
    %v8456 = vpack.c.b16 %v8322, %v8320
    %v8457 = vpack.c.b16 %v8323, %v8321
    %v8458 = vpack.c.b16 %v8326, %v8324
    %v8459 = vpack.c.b16 %v8327, %v8325
    %v8460 = vpack.c.b16 %v8330, %v8328
    %v8461 = vpack.c.b16 %v8331, %v8329
    %v8462 = vpack.c.b16 %v8334, %v8332
    %v8463 = vpack.c.b16 %v8335, %v8333
    %v8464 = vpack.c.b16 %v8338, %v8336
    %v8465 = vpack.c.b16 %v8339, %v8337
    %v8466 = vpack.c.b16 %v8342, %v8340
    %v8467 = vpack.c.b16 %v8343, %v8341
    %v8468 = vpack.c.b16 %v8346, %v8344
    %v8469 = vpack.c.b16 %v8347, %v8345
    %v8470 = vpack.c.b16 %v8350, %v8348
    %v8471 = vpack.c.b16 %v8351, %v8349
    %v8472 = vpack.c.b16 %v8354, %v8352
    %v8473 = vpack.c.b16 %v8355, %v8353
    %v8474 = vpack.c.b16 %v8358, %v8356
    %v8475 = vpack.c.b16 %v8359, %v8357
    %v8476 = vpack.c.b16 %v8362, %v8360
    %v8477 = vpack.c.b16 %v8363, %v8361
    %v8478 = vpack.c.b16 %v8366, %v8364
    %v8479 = vpack.c.b16 %v8367, %v8365
    %v8480 = vpack.c.b16 %v8370, %v8368
    %v8481 = vpack.c.b16 %v8371, %v8369
    %v8482 = vpack.c.b16 %v8374, %v8372
    %v8483 = vpack.c.b16 %v8375, %v8373
    %v8484 = vpack.c.b16 %v8378, %v8376
    %v8485 = vpack.c.b16 %v8379, %v8377
    %v8486 = vpack.c.b16 %v8382, %v8380
    %v8487 = vpack.c.b16 %v8383, %v8381
    %v8488 = vpack.c.b16 %v8386, %v8384
    %v8489 = vpack.c.b16 %v8387, %v8385
    %v8490 = vpack.c.b16 %v8390, %v8388
    %v8491 = vpack.c.b16 %v8391, %v8389
    %v8492 = vpack.c.b16 %v8394, %v8392
    %v8493 = vpack.c.b16 %v8395, %v8393
    %v8494 = vpack.c.b16 %v8398, %v8396
    %v8495 = vpack.c.b16 %v8399, %v8397
    %v8496 = vpack.c.b16 %v8402, %v8400
    %v8497 = vpack.c.b16 %v8403, %v8401
    %v8498 = vpack.c.b16 %v8406, %v8404
    %v8499 = vpack.c.b16 %v8407, %v8405
    %v8500 = vpack.c.b16 %v8410, %v8408
    %v8501 = vpack.c.b16 %v8411, %v8409
    %v8502 = vpack.c.b16 %v8414, %v8412
    %v8503 = vpack.c.b16 %v8415, %v8413
    %v8504 = vpack.c.b16 %v8418, %v8416
    %v8505 = vpack.c.b16 %v8419, %v8417
    %v8506 = vpack.c.b16 %v8422, %v8420
    %v8507 = vpack.c.b16 %v8423, %v8421
    %v8508 = vpack.c.b16 %v8426, %v8424
    %v8509 = vpack.c.b16 %v8427, %v8425
    %v8510 = vpack.c.b16 %v8430, %v8428
    %v8511 = vpack.c.b16 %v8431, %v8429
    %8592 = vmatpush.bf16.msra.mxu0 %v8446
    %8593 = vmatpush.bf16.msra.mxu0 %v8444
    %8594 = vmatpush.bf16.msra.mxu0 %v8442
    %8595 = vmatpush.bf16.msra.mxu0 %v8440
    %8596 = vmatpush.bf16.msra.mxu0 %v8438
    %8597 = vmatpush.bf16.msra.mxu0 %v8436
    %8598 = vmatpush.bf16.msra.mxu0 %v8434
    %8599 = vmatpush.bf16.msra.mxu0 %v8432
    %8600 = vmatmul.bf16.gmra.mxu0 %v8182
    %v8601 = vpop.f32.mrf.mxu0
    %v8602 = vadd.f32 0.0, %v8601
    %v8603 = vpop.f32.mrf.mxu0
    %8604 = vdwg.mxu0
    %8605 = vmatpush.bf16.msra.mxu0 %v8462
    %8606 = vmatpush.bf16.msra.mxu0 %v8460
    %8607 = vmatpush.bf16.msra.mxu0 %v8458
    %8608 = vmatpush.bf16.msra.mxu0 %v8456
    %8609 = vmatpush.bf16.msra.mxu0 %v8454
    %8610 = vmatpush.bf16.msra.mxu0 %v8452
    %8611 = vmatpush.bf16.msra.mxu0 %v8450
    %8612 = vmatpush.bf16.msra.mxu0 %v8448
    %8613 = vmatmul.bf16.gmra.mxu0 %v8183
    %v8614 = vpop.f32.mrf.mxu0
    %v8615 = vadd.f32 %v8602, %v8614
    %v8616 = vpop.f32.mrf.mxu0
    %8617 = vdwg.mxu0
    %8618 = vmatpush.bf16.msra.mxu0 %v8478
    %8619 = vmatpush.bf16.msra.mxu0 %v8476
    %8620 = vmatpush.bf16.msra.mxu0 %v8474
    %8621 = vmatpush.bf16.msra.mxu0 %v8472
    %8622 = vmatpush.bf16.msra.mxu0 %v8470
    %8623 = vmatpush.bf16.msra.mxu0 %v8468
    %8624 = vmatpush.bf16.msra.mxu0 %v8466
    %8625 = vmatpush.bf16.msra.mxu0 %v8464
    %8626 = vmatmul.bf16.gmra.mxu0 %v8184
    %v8627 = vpop.f32.mrf.mxu0
    %v8628 = vadd.f32 %v8615, %v8627
    %v8629 = vpop.f32.mrf.mxu0
    %8630 = vdwg.mxu0
    %8631 = vmatpush.bf16.msra.mxu0 %v8494
    %8632 = vmatpush.bf16.msra.mxu0 %v8492
    %8633 = vmatpush.bf16.msra.mxu0 %v8490
    %8634 = vmatpush.bf16.msra.mxu0 %v8488
    %8635 = vmatpush.bf16.msra.mxu0 %v8486
    %8636 = vmatpush.bf16.msra.mxu0 %v8484
    %8637 = vmatpush.bf16.msra.mxu0 %v8482
    %8638 = vmatpush.bf16.msra.mxu0 %v8480
    %8639 = vmatmul.bf16.gmra.mxu0 %v8185
    %v8640 = vpop.f32.mrf.mxu0
    %v8641 = vadd.f32 %v8628, %v8640
    %v8642 = vpop.f32.mrf.mxu0
    %8643 = vdwg.mxu0
    %8644 = vmatpush.bf16.msra.mxu0 %v8510
    %8645 = vmatpush.bf16.msra.mxu0 %v8508
    %8646 = vmatpush.bf16.msra.mxu0 %v8506
    %8647 = vmatpush.bf16.msra.mxu0 %v8504
    %8648 = vmatpush.bf16.msra.mxu0 %v8502
    %8649 = vmatpush.bf16.msra.mxu0 %v8500
    %8650 = vmatpush.bf16.msra.mxu0 %v8498
    %8651 = vmatpush.bf16.msra.mxu0 %v8496
    %8652 = vmatmul.bf16.gmra.mxu0 %v8186
    %v8653 = vpop.f32.mrf.mxu0
    %v8654 = vadd.f32 %v8641, %v8653
    %v8655 = vpop.f32.mrf.mxu0
    %8656 = vdwg.mxu0
    %8657 = vmatpush.bf16.msra.mxu0 %v8447
    %8658 = vmatpush.bf16.msra.mxu0 %v8445
    %8659 = vmatpush.bf16.msra.mxu0 %v8443
    %8660 = vmatpush.bf16.msra.mxu0 %v8441
    %8661 = vmatpush.bf16.msra.mxu0 %v8439
    %8662 = vmatpush.bf16.msra.mxu0 %v8437
    %8663 = vmatpush.bf16.msra.mxu0 %v8435
    %8664 = vmatpush.bf16.msra.mxu0 %v8433
    %8665 = vmatmul.bf16.gmra.mxu0 %v8182
    %v8666 = vpop.f32.mrf.mxu0
    %v8667 = vadd.f32 0.0, %v8666
    %v8668 = vpop.f32.mrf.mxu0
    %8669 = vdwg.mxu0
    %8670 = vmatpush.bf16.msra.mxu0 %v8463
    %8671 = vmatpush.bf16.msra.mxu0 %v8461
    %8672 = vmatpush.bf16.msra.mxu0 %v8459
    %8673 = vmatpush.bf16.msra.mxu0 %v8457
    %8674 = vmatpush.bf16.msra.mxu0 %v8455
    %8675 = vmatpush.bf16.msra.mxu0 %v8453
    %8676 = vmatpush.bf16.msra.mxu0 %v8451
    %8677 = vmatpush.bf16.msra.mxu0 %v8449
    %8678 = vmatmul.bf16.gmra.mxu0 %v8183
    %v8679 = vpop.f32.mrf.mxu0
    %v8680 = vadd.f32 %v8667, %v8679
    %v8681 = vpop.f32.mrf.mxu0
    %8682 = vdwg.mxu0
    %8683 = vmatpush.bf16.msra.mxu0 %v8479
    %8684 = vmatpush.bf16.msra.mxu0 %v8477
    %8685 = vmatpush.bf16.msra.mxu0 %v8475
    %8686 = vmatpush.bf16.msra.mxu0 %v8473
    %8687 = vmatpush.bf16.msra.mxu0 %v8471
    %8688 = vmatpush.bf16.msra.mxu0 %v8469
    %8689 = vmatpush.bf16.msra.mxu0 %v8467
    %8690 = vmatpush.bf16.msra.mxu0 %v8465
    %8691 = vmatmul.bf16.gmra.mxu0 %v8184
    %v8692 = vpop.f32.mrf.mxu0
    %v8693 = vadd.f32 %v8680, %v8692
    %v8694 = vpop.f32.mrf.mxu0
    %8695 = vdwg.mxu0
    %8696 = vmatpush.bf16.msra.mxu0 %v8495
    %8697 = vmatpush.bf16.msra.mxu0 %v8493
    %8698 = vmatpush.bf16.msra.mxu0 %v8491
    %8699 = vmatpush.bf16.msra.mxu0 %v8489
    %8700 = vmatpush.bf16.msra.mxu0 %v8487
    %8701 = vmatpush.bf16.msra.mxu0 %v8485
    %8702 = vmatpush.bf16.msra.mxu0 %v8483
    %8703 = vmatpush.bf16.msra.mxu0 %v8481
    %8704 = vmatmul.bf16.gmra.mxu0 %v8185
    %v8705 = vpop.f32.mrf.mxu0
    %v8706 = vadd.f32 %v8693, %v8705
    %v8707 = vpop.f32.mrf.mxu0
    %8708 = vdwg.mxu0
    %8709 = vmatpush.bf16.msra.mxu0 %v8511
    %8710 = vmatpush.bf16.msra.mxu0 %v8509
    %8711 = vmatpush.bf16.msra.mxu0 %v8507
    %8712 = vmatpush.bf16.msra.mxu0 %v8505
    %8713 = vmatpush.bf16.msra.mxu0 %v8503
    %8714 = vmatpush.bf16.msra.mxu0 %v8501
    %8715 = vmatpush.bf16.msra.mxu0 %v8499
    %8716 = vmatpush.bf16.msra.mxu0 %v8497
    %8717 = vmatmul.bf16.gmra.mxu0 %v8186
    %v8718 = vpop.f32.mrf.mxu0
    %v8719 = vadd.f32 %v8706, %v8718
    %v8720 = vpop.f32.mrf.mxu0
    %8721 = vdwg.mxu0
    %8722 = vst [vmem:[#allocation1] ss:$9 sm:$0xff] %v7989
    %s8723 = scalar_lea.vmem [#allocation1], 1
    %8724 = vst [vmem:[%s8723] ss:$9 sm:$0xff] %v7989
    %s8725 = scalar_lea.vmem [#allocation1], 2
    %8726 = vst [vmem:[%s8725] ss:$9 sm:$0xff] %v7989
    %s8727 = scalar_lea.vmem [#allocation1], 3
    %8728 = vst [vmem:[%s8727] ss:$9 sm:$0xff] %v7989
    %v8729 = vld [vmem:[#allocation1] sm:$0xff]
    %v8730 = vld [vmem:[#allocation1 + $0x9] sm:$0xff]
    %v8731 = vld [vmem:[#allocation1 + $0x12] sm:$0xff]
    %v8732 = vld [vmem:[#allocation1 + $0x1b] sm:$0xff]
    %v8733 = vld [vmem:[#allocation1 + $0x24] sm:$0xff]
    %v8819 = vunpack.c.l.b16 %v7990
    %v8820 = vunpack.c.h.b16 %v7990
    %v8821 = vunpack.c.l.b16 %v7991
    %v8822 = vunpack.c.h.b16 %v7991
    %v8823 = vunpack.c.l.b16 %v7992
    %v8824 = vunpack.c.h.b16 %v7992
    %v8825 = vunpack.c.l.b16 %v7993
    %v8826 = vunpack.c.h.b16 %v7993
    %v8827 = vunpack.c.l.b16 %v7994
    %v8828 = vunpack.c.h.b16 %v7994
    %v8829 = vunpack.c.l.b16 %v7995
    %v8830 = vunpack.c.h.b16 %v7995
    %v8831 = vunpack.c.l.b16 %v7996
    %v8832 = vunpack.c.h.b16 %v7996
    %v8833 = vunpack.c.l.b16 %v7997
    %v8834 = vunpack.c.h.b16 %v7997
    %v8835 = vunpack.c.l.b16 %v7998
    %v8836 = vunpack.c.h.b16 %v7998
    %v8837 = vunpack.c.l.b16 %v7999
    %v8838 = vunpack.c.h.b16 %v7999
    %v8839 = vunpack.c.l.b16 %v8000
    %v8840 = vunpack.c.h.b16 %v8000
    %v8841 = vunpack.c.l.b16 %v8001
    %v8842 = vunpack.c.h.b16 %v8001
    %v8843 = vunpack.c.l.b16 %v8002
    %v8844 = vunpack.c.h.b16 %v8002
    %v8845 = vunpack.c.l.b16 %v8003
    %v8846 = vunpack.c.h.b16 %v8003
    %v8847 = vunpack.c.l.b16 %v8004
    %v8848 = vunpack.c.h.b16 %v8004
    %v8849 = vunpack.c.l.b16 %v8005
    %v8850 = vunpack.c.h.b16 %v8005
    %v8851 = vunpack.c.l.b16 %v8006
    %v8852 = vunpack.c.h.b16 %v8006
    %v8853 = vunpack.c.l.b16 %v8007
    %v8854 = vunpack.c.h.b16 %v8007
    %v8855 = vunpack.c.l.b16 %v8008
    %v8856 = vunpack.c.h.b16 %v8008
    %v8857 = vunpack.c.l.b16 %v8009
    %v8858 = vunpack.c.h.b16 %v8009
    %v8859 = vunpack.c.l.b16 %v8010
    %v8860 = vunpack.c.h.b16 %v8010
    %v8861 = vunpack.c.l.b16 %v8011
    %v8862 = vunpack.c.h.b16 %v8011
    %v8863 = vunpack.c.l.b16 %v8012
    %v8864 = vunpack.c.h.b16 %v8012
    %v8865 = vunpack.c.l.b16 %v8013
    %v8866 = vunpack.c.h.b16 %v8013
    %v8867 = vunpack.c.l.b16 %v8014
    %v8868 = vunpack.c.h.b16 %v8014
    %v8869 = vunpack.c.l.b16 %v8015
    %v8870 = vunpack.c.h.b16 %v8015
    %v8871 = vunpack.c.l.b16 %v8016
    %v8872 = vunpack.c.h.b16 %v8016
    %v8873 = vunpack.c.l.b16 %v8017
    %v8874 = vunpack.c.h.b16 %v8017
    %v8875 = vunpack.c.l.b16 %v8018
    %v8876 = vunpack.c.h.b16 %v8018
    %v8877 = vunpack.c.l.b16 %v8019
    %v8878 = vunpack.c.h.b16 %v8019
    %v8879 = vunpack.c.l.b16 %v8020
    %v8880 = vunpack.c.h.b16 %v8020
    %v8881 = vunpack.c.l.b16 %v8021
    %v8882 = vunpack.c.h.b16 %v8021
    %v8883 = vunpack.c.l.b16 %v8022
    %v8884 = vunpack.c.h.b16 %v8022
    %v8885 = vunpack.c.l.b16 %v8023
    %v8886 = vunpack.c.h.b16 %v8023
    %v8887 = vunpack.c.l.b16 %v8024
    %v8888 = vunpack.c.h.b16 %v8024
    %v8889 = vunpack.c.l.b16 %v8025
    %v8890 = vunpack.c.h.b16 %v8025
    %v8891 = vunpack.c.l.b16 %v8026
    %v8892 = vunpack.c.h.b16 %v8026
    %v8893 = vunpack.c.l.b16 %v8027
    %v8894 = vunpack.c.h.b16 %v8027
    %v8895 = vunpack.c.l.b16 %v8028
    %v8896 = vunpack.c.h.b16 %v8028
    %v8897 = vunpack.c.l.b16 %v8029
    %v8898 = vunpack.c.h.b16 %v8029
    %v8899 = vunpack.c.l.b16 %v8030
    %v8900 = vunpack.c.h.b16 %v8030
    %v8901 = vunpack.c.l.b16 %v8031
    %v8902 = vunpack.c.h.b16 %v8031
    %v8903 = vunpack.c.l.b16 %v8032
    %v8904 = vunpack.c.h.b16 %v8032
    %v8905 = vunpack.c.l.b16 %v8033
    %v8906 = vunpack.c.h.b16 %v8033
    %v8907 = vunpack.c.l.b16 %v8034
    %v8908 = vunpack.c.h.b16 %v8034
    %v8909 = vunpack.c.l.b16 %v8035
    %v8910 = vunpack.c.h.b16 %v8035
    %v8911 = vunpack.c.l.b16 %v8036
    %v8912 = vunpack.c.h.b16 %v8036
    %v8913 = vunpack.c.l.b16 %v8037
    %v8914 = vunpack.c.h.b16 %v8037
    %v8915 = vunpack.c.l.b16 %v8038
    %v8916 = vunpack.c.h.b16 %v8038
    %v8917 = vunpack.c.l.b16 %v8039
    %v8918 = vunpack.c.h.b16 %v8039
    %v8919 = vunpack.c.l.b16 %v8040
    %v8920 = vunpack.c.h.b16 %v8040
    %v8921 = vunpack.c.l.b16 %v8041
    %v8922 = vunpack.c.h.b16 %v8041
    %v8923 = vunpack.c.l.b16 %v8042
    %v8924 = vunpack.c.h.b16 %v8042
    %v8925 = vunpack.c.l.b16 %v8043
    %v8926 = vunpack.c.h.b16 %v8043
    %v8927 = vunpack.c.l.b16 %v8044
    %v8928 = vunpack.c.h.b16 %v8044
    %v8929 = vunpack.c.l.b16 %v8045
    %v8930 = vunpack.c.h.b16 %v8045
    %v8931 = vunpack.c.l.b16 %v8046
    %v8932 = vunpack.c.h.b16 %v8046
    %v8933 = vunpack.c.l.b16 %v8047
    %v8934 = vunpack.c.h.b16 %v8047
    %v8935 = vunpack.c.l.b16 %v8048
    %v8936 = vunpack.c.h.b16 %v8048
    %v8937 = vunpack.c.l.b16 %v8049
    %v8938 = vunpack.c.h.b16 %v8049
    %v8939 = vunpack.c.l.b16 %v8050
    %v8940 = vunpack.c.h.b16 %v8050
    %v8941 = vunpack.c.l.b16 %v8051
    %v8942 = vunpack.c.h.b16 %v8051
    %v8943 = vunpack.c.l.b16 %v8052
    %v8944 = vunpack.c.h.b16 %v8052
    %v8945 = vunpack.c.l.b16 %v8053
    %v8946 = vunpack.c.h.b16 %v8053
    %v8947 = vunpack.c.l.b16 %v8054
    %v8948 = vunpack.c.h.b16 %v8054
    %v8949 = vunpack.c.l.b16 %v8055
    %v8950 = vunpack.c.h.b16 %v8055
    %v8951 = vunpack.c.l.b16 %v8056
    %v8952 = vunpack.c.h.b16 %v8056
    %v8953 = vunpack.c.l.b16 %v8057
    %v8954 = vunpack.c.h.b16 %v8057
    %v8955 = vunpack.c.l.b16 %v8058
    %v8956 = vunpack.c.h.b16 %v8058
    %v8957 = vunpack.c.l.b16 %v8059
    %v8958 = vunpack.c.h.b16 %v8059
    %v8959 = vunpack.c.l.b16 %v8060
    %v8960 = vunpack.c.h.b16 %v8060
    %v8961 = vunpack.c.l.b16 %v8061
    %v8962 = vunpack.c.h.b16 %v8061
    %v8963 = vunpack.c.l.b16 %v8062
    %v8964 = vunpack.c.h.b16 %v8062
    %v8965 = vunpack.c.l.b16 %v8063
    %v8966 = vunpack.c.h.b16 %v8063
    %v8967 = vunpack.c.l.b16 %v8064
    %v8968 = vunpack.c.h.b16 %v8064
    %v8969 = vunpack.c.l.b16 %v8065
    %v8970 = vunpack.c.h.b16 %v8065
    %v8971 = vunpack.c.l.b16 %v8066
    %v8972 = vunpack.c.h.b16 %v8066
    %v8973 = vunpack.c.l.b16 %v8067
    %v8974 = vunpack.c.h.b16 %v8067
    %v8975 = vunpack.c.l.b16 %v8068
    %v8976 = vunpack.c.h.b16 %v8068
    %v8977 = vunpack.c.l.b16 %v8069
    %v8978 = vunpack.c.h.b16 %v8069
    %v8979 = vpack.c.b16 %v8821, %v8819
    %v8980 = vpack.c.b16 %v8822, %v8820
    %v8981 = vpack.c.b16 %v8825, %v8823
    %v8982 = vpack.c.b16 %v8826, %v8824
    %v8983 = vpack.c.b16 %v8829, %v8827
    %v8984 = vpack.c.b16 %v8830, %v8828
    %v8985 = vpack.c.b16 %v8833, %v8831
    %v8986 = vpack.c.b16 %v8834, %v8832
    %v8987 = vpack.c.b16 %v8837, %v8835
    %v8988 = vpack.c.b16 %v8838, %v8836
    %v8989 = vpack.c.b16 %v8841, %v8839
    %v8990 = vpack.c.b16 %v8842, %v8840
    %v8991 = vpack.c.b16 %v8845, %v8843
    %v8992 = vpack.c.b16 %v8846, %v8844
    %v8993 = vpack.c.b16 %v8849, %v8847
    %v8994 = vpack.c.b16 %v8850, %v8848
    %v8995 = vpack.c.b16 %v8853, %v8851
    %v8996 = vpack.c.b16 %v8854, %v8852
    %v8997 = vpack.c.b16 %v8857, %v8855
    %v8998 = vpack.c.b16 %v8858, %v8856
    %v8999 = vpack.c.b16 %v8861, %v8859
    %v9000 = vpack.c.b16 %v8862, %v8860
    %v9001 = vpack.c.b16 %v8865, %v8863
    %v9002 = vpack.c.b16 %v8866, %v8864
    %v9003 = vpack.c.b16 %v8869, %v8867
    %v9004 = vpack.c.b16 %v8870, %v8868
    %v9005 = vpack.c.b16 %v8873, %v8871
    %v9006 = vpack.c.b16 %v8874, %v8872
    %v9007 = vpack.c.b16 %v8877, %v8875
    %v9008 = vpack.c.b16 %v8878, %v8876
    %v9009 = vpack.c.b16 %v8881, %v8879
    %v9010 = vpack.c.b16 %v8882, %v8880
    %v9011 = vpack.c.b16 %v8885, %v8883
    %v9012 = vpack.c.b16 %v8886, %v8884
    %v9013 = vpack.c.b16 %v8889, %v8887
    %v9014 = vpack.c.b16 %v8890, %v8888
    %v9015 = vpack.c.b16 %v8893, %v8891
    %v9016 = vpack.c.b16 %v8894, %v8892
    %v9017 = vpack.c.b16 %v8897, %v8895
    %v9018 = vpack.c.b16 %v8898, %v8896
    %v9019 = vpack.c.b16 %v8901, %v8899
    %v9020 = vpack.c.b16 %v8902, %v8900
    %v9021 = vpack.c.b16 %v8905, %v8903
    %v9022 = vpack.c.b16 %v8906, %v8904
    %v9023 = vpack.c.b16 %v8909, %v8907
    %v9024 = vpack.c.b16 %v8910, %v8908
    %v9025 = vpack.c.b16 %v8913, %v8911
    %v9026 = vpack.c.b16 %v8914, %v8912
    %v9027 = vpack.c.b16 %v8917, %v8915
    %v9028 = vpack.c.b16 %v8918, %v8916
    %v9029 = vpack.c.b16 %v8921, %v8919
    %v9030 = vpack.c.b16 %v8922, %v8920
    %v9031 = vpack.c.b16 %v8925, %v8923
    %v9032 = vpack.c.b16 %v8926, %v8924
    %v9033 = vpack.c.b16 %v8929, %v8927
    %v9034 = vpack.c.b16 %v8930, %v8928
    %v9035 = vpack.c.b16 %v8933, %v8931
    %v9036 = vpack.c.b16 %v8934, %v8932
    %v9037 = vpack.c.b16 %v8937, %v8935
    %v9038 = vpack.c.b16 %v8938, %v8936
    %v9039 = vpack.c.b16 %v8941, %v8939
    %v9040 = vpack.c.b16 %v8942, %v8940
    %v9041 = vpack.c.b16 %v8945, %v8943
    %v9042 = vpack.c.b16 %v8946, %v8944
    %v9043 = vpack.c.b16 %v8949, %v8947
    %v9044 = vpack.c.b16 %v8950, %v8948
    %v9045 = vpack.c.b16 %v8953, %v8951
    %v9046 = vpack.c.b16 %v8954, %v8952
    %v9047 = vpack.c.b16 %v8957, %v8955
    %v9048 = vpack.c.b16 %v8958, %v8956
    %v9049 = vpack.c.b16 %v8961, %v8959
    %v9050 = vpack.c.b16 %v8962, %v8960
    %v9051 = vpack.c.b16 %v8965, %v8963
    %v9052 = vpack.c.b16 %v8966, %v8964
    %v9053 = vpack.c.b16 %v8969, %v8967
    %v9054 = vpack.c.b16 %v8970, %v8968
    %v9055 = vpack.c.b16 %v8973, %v8971
    %v9056 = vpack.c.b16 %v8974, %v8972
    %v9057 = vpack.c.b16 %v8977, %v8975
    %v9058 = vpack.c.b16 %v8978, %v8976
    %9139 = vmatpush.bf16.msra.mxu0 %v8993
    %9140 = vmatpush.bf16.msra.mxu0 %v8991
    %9141 = vmatpush.bf16.msra.mxu0 %v8989
    %9142 = vmatpush.bf16.msra.mxu0 %v8987
    %9143 = vmatpush.bf16.msra.mxu0 %v8985
    %9144 = vmatpush.bf16.msra.mxu0 %v8983
    %9145 = vmatpush.bf16.msra.mxu0 %v8981
    %9146 = vmatpush.bf16.msra.mxu0 %v8979
    %9147 = vmatmul.bf16.gmra.mxu0 %v8729
    %v9148 = vpop.f32.mrf.mxu0
    %v9149 = vadd.f32 %v8654, %v9148
    %v9150 = vpop.f32.mrf.mxu0
    %9151 = vdwg.mxu0
    %9152 = vmatpush.bf16.msra.mxu0 %v9009
    %9153 = vmatpush.bf16.msra.mxu0 %v9007
    %9154 = vmatpush.bf16.msra.mxu0 %v9005
    %9155 = vmatpush.bf16.msra.mxu0 %v9003
    %9156 = vmatpush.bf16.msra.mxu0 %v9001
    %9157 = vmatpush.bf16.msra.mxu0 %v8999
    %9158 = vmatpush.bf16.msra.mxu0 %v8997
    %9159 = vmatpush.bf16.msra.mxu0 %v8995
    %9160 = vmatmul.bf16.gmra.mxu0 %v8730
    %v9161 = vpop.f32.mrf.mxu0
    %v9162 = vadd.f32 %v9149, %v9161
    %v9163 = vpop.f32.mrf.mxu0
    %9164 = vdwg.mxu0
    %9165 = vmatpush.bf16.msra.mxu0 %v9025
    %9166 = vmatpush.bf16.msra.mxu0 %v9023
    %9167 = vmatpush.bf16.msra.mxu0 %v9021
    %9168 = vmatpush.bf16.msra.mxu0 %v9019
    %9169 = vmatpush.bf16.msra.mxu0 %v9017
    %9170 = vmatpush.bf16.msra.mxu0 %v9015
    %9171 = vmatpush.bf16.msra.mxu0 %v9013
    %9172 = vmatpush.bf16.msra.mxu0 %v9011
    %9173 = vmatmul.bf16.gmra.mxu0 %v8731
    %v9174 = vpop.f32.mrf.mxu0
    %v9175 = vadd.f32 %v9162, %v9174
    %v9176 = vpop.f32.mrf.mxu0
    %9177 = vdwg.mxu0
    %9178 = vmatpush.bf16.msra.mxu0 %v9041
    %9179 = vmatpush.bf16.msra.mxu0 %v9039
    %9180 = vmatpush.bf16.msra.mxu0 %v9037
    %9181 = vmatpush.bf16.msra.mxu0 %v9035
    %9182 = vmatpush.bf16.msra.mxu0 %v9033
    %9183 = vmatpush.bf16.msra.mxu0 %v9031
    %9184 = vmatpush.bf16.msra.mxu0 %v9029
    %9185 = vmatpush.bf16.msra.mxu0 %v9027
    %9186 = vmatmul.bf16.gmra.mxu0 %v8732
    %v9187 = vpop.f32.mrf.mxu0
    %v9188 = vadd.f32 %v9175, %v9187
    %v9189 = vpop.f32.mrf.mxu0
    %9190 = vdwg.mxu0
    %9191 = vmatpush.bf16.msra.mxu0 %v9057
    %9192 = vmatpush.bf16.msra.mxu0 %v9055
    %9193 = vmatpush.bf16.msra.mxu0 %v9053
    %9194 = vmatpush.bf16.msra.mxu0 %v9051
    %9195 = vmatpush.bf16.msra.mxu0 %v9049
    %9196 = vmatpush.bf16.msra.mxu0 %v9047
    %9197 = vmatpush.bf16.msra.mxu0 %v9045
    %9198 = vmatpush.bf16.msra.mxu0 %v9043
    %9199 = vmatmul.bf16.gmra.mxu0 %v8733
    %v9200 = vpop.f32.mrf.mxu0
    %v9201 = vadd.f32 %v9188, %v9200
    %v9202 = vpop.f32.mrf.mxu0
    %9203 = vdwg.mxu0
    %9204 = vmatpush.bf16.msra.mxu0 %v8994
    %9205 = vmatpush.bf16.msra.mxu0 %v8992
    %9206 = vmatpush.bf16.msra.mxu0 %v8990
    %9207 = vmatpush.bf16.msra.mxu0 %v8988
    %9208 = vmatpush.bf16.msra.mxu0 %v8986
    %9209 = vmatpush.bf16.msra.mxu0 %v8984
    %9210 = vmatpush.bf16.msra.mxu0 %v8982
    %9211 = vmatpush.bf16.msra.mxu0 %v8980
    %9212 = vmatmul.bf16.gmra.mxu0 %v8729
    %v9213 = vpop.f32.mrf.mxu0
    %v9214 = vadd.f32 %v8719, %v9213
    %v9215 = vpop.f32.mrf.mxu0
    %9216 = vdwg.mxu0
    %9217 = vmatpush.bf16.msra.mxu0 %v9010
    %9218 = vmatpush.bf16.msra.mxu0 %v9008
    %9219 = vmatpush.bf16.msra.mxu0 %v9006
    %9220 = vmatpush.bf16.msra.mxu0 %v9004
    %9221 = vmatpush.bf16.msra.mxu0 %v9002
    %9222 = vmatpush.bf16.msra.mxu0 %v9000
    %9223 = vmatpush.bf16.msra.mxu0 %v8998
    %9224 = vmatpush.bf16.msra.mxu0 %v8996
    %9225 = vmatmul.bf16.gmra.mxu0 %v8730
    %v9226 = vpop.f32.mrf.mxu0
    %v9227 = vadd.f32 %v9214, %v9226
    %v9228 = vpop.f32.mrf.mxu0
    %9229 = vdwg.mxu0
    %9230 = vmatpush.bf16.msra.mxu0 %v9026
    %9231 = vmatpush.bf16.msra.mxu0 %v9024
    %9232 = vmatpush.bf16.msra.mxu0 %v9022
    %9233 = vmatpush.bf16.msra.mxu0 %v9020
    %9234 = vmatpush.bf16.msra.mxu0 %v9018
    %9235 = vmatpush.bf16.msra.mxu0 %v9016
    %9236 = vmatpush.bf16.msra.mxu0 %v9014
    %9237 = vmatpush.bf16.msra.mxu0 %v9012
    %9238 = vmatmul.bf16.gmra.mxu0 %v8731
    %v9239 = vpop.f32.mrf.mxu0
    %v9240 = vadd.f32 %v9227, %v9239
    %v9241 = vpop.f32.mrf.mxu0
    %9242 = vdwg.mxu0
    %9243 = vmatpush.bf16.msra.mxu0 %v9042
    %9244 = vmatpush.bf16.msra.mxu0 %v9040
    %9245 = vmatpush.bf16.msra.mxu0 %v9038
    %9246 = vmatpush.bf16.msra.mxu0 %v9036
    %9247 = vmatpush.bf16.msra.mxu0 %v9034
    %9248 = vmatpush.bf16.msra.mxu0 %v9032
    %9249 = vmatpush.bf16.msra.mxu0 %v9030
    %9250 = vmatpush.bf16.msra.mxu0 %v9028
    %9251 = vmatmul.bf16.gmra.mxu0 %v8732
    %v9252 = vpop.f32.mrf.mxu0
    %v9253 = vadd.f32 %v9240, %v9252
    %v9254 = vpop.f32.mrf.mxu0
    %9255 = vdwg.mxu0
    %9256 = vmatpush.bf16.msra.mxu0 %v9058
    %9257 = vmatpush.bf16.msra.mxu0 %v9056
    %9258 = vmatpush.bf16.msra.mxu0 %v9054
    %9259 = vmatpush.bf16.msra.mxu0 %v9052
    %9260 = vmatpush.bf16.msra.mxu0 %v9050
    %9261 = vmatpush.bf16.msra.mxu0 %v9048
    %9262 = vmatpush.bf16.msra.mxu0 %v9046
    %9263 = vmatpush.bf16.msra.mxu0 %v9044
    %9264 = vmatmul.bf16.gmra.mxu0 %v8733
    %v9265 = vpop.f32.mrf.mxu0
    %v9266 = vadd.f32 %v9253, %v9265
    %v9267 = vpop.f32.mrf.mxu0
    %9268 = vdwg.mxu0
    %v9269 = vrot.slane %v7935, 7
    %v9270 = vrot.slane %v7955, 6
    %v9271 = vrot.slane %v7966, 5
    %v9272 = vrot.slane %v7975, 4
    %v9273 = vrot.slane %v7947, 7
    %v9274 = vrot.slane %v7957, 6
    %v9275 = vrot.slane %v7972, 5
    %v9276 = vrot.slane %v7977, 4
    %v9278 = vsel %vm2480, %v7915, %v9269
    %v9280 = vsel %vm4815, %v9278, %v9270
    %v9283 = vsel %vm2331, %v9271, %v9272
    %v9284 = vsel %vm5224, %v9280, %v9283
    %v9286 = vsel %vm2480, %v7917, %v9273
    %v9288 = vsel %vm4815, %v9286, %v9274
    %v9291 = vsel %vm2331, %v9275, %v9276
    %v9292 = vsel %vm5224, %v9288, %v9291
    %s9293 = scalar_lea.vmem %s7, 1280
    %v9294 = vld [vmem:[%s9293] sm:$0xff]
    %v9295 = vld [vmem:[%s9293 + $0x8] sm:$0xff]
    %v9296 = vld [vmem:[%s9293 + $0x10] sm:$0xff]
    %v9297 = vld [vmem:[%s9293 + $0x18] sm:$0xff]
    %v9298 = vld [vmem:[%s9293 + $0x20] sm:$0xff]
    %v9299 = vld [vmem:[%s9293 + $0x28] sm:$0xff]
    %v9300 = vld [vmem:[%s9293 + $0x30] sm:$0xff]
    %v9301 = vld [vmem:[%s9293 + $0x38] sm:$0xff]
    %v9302 = vld [vmem:[%s9293 + $0x40] sm:$0xff]
    %v9303 = vld [vmem:[%s9293 + $0x48] sm:$0xff]
    %v9304 = vld [vmem:[%s9293 + $0x50] sm:$0xff]
    %v9305 = vld [vmem:[%s9293 + $0x58] sm:$0xff]
    %v9306 = vld [vmem:[%s9293 + $0x60] sm:$0xff]
    %v9307 = vld [vmem:[%s9293 + $0x68] sm:$0xff]
    %v9308 = vld [vmem:[%s9293 + $0x70] sm:$0xff]
    %v9309 = vld [vmem:[%s9293 + $0x78] sm:$0xff]
    %v9310 = vld [vmem:[%s9293 + $0x80] sm:$0xff]
    %v9311 = vld [vmem:[%s9293 + $0x88] sm:$0xff]
    %v9312 = vld [vmem:[%s9293 + $0x90] sm:$0xff]
    %v9313 = vld [vmem:[%s9293 + $0x98] sm:$0xff]
    %v9314 = vld [vmem:[%s9293 + $0xa0] sm:$0xff]
    %v9315 = vld [vmem:[%s9293 + $0xa8] sm:$0xff]
    %v9316 = vld [vmem:[%s9293 + $0xb0] sm:$0xff]
    %v9317 = vld [vmem:[%s9293 + $0xb8] sm:$0xff]
    %v9318 = vld [vmem:[%s9293 + $0xc0] sm:$0xff]
    %v9319 = vld [vmem:[%s9293 + $0xc8] sm:$0xff]
    %v9320 = vld [vmem:[%s9293 + $0xd0] sm:$0xff]
    %v9321 = vld [vmem:[%s9293 + $0xd8] sm:$0xff]
    %v9322 = vld [vmem:[%s9293 + $0xe0] sm:$0xff]
    %v9323 = vld [vmem:[%s9293 + $0xe8] sm:$0xff]
    %v9324 = vld [vmem:[%s9293 + $0xf0] sm:$0xff]
    %v9325 = vld [vmem:[%s9293 + $0xf8] sm:$0xff]
    %v9326 = vld [vmem:[%s9293 + $0x100] sm:$0xff]
    %v9327 = vld [vmem:[%s9293 + $0x108] sm:$0xff]
    %v9328 = vld [vmem:[%s9293 + $0x110] sm:$0xff]
    %v9329 = vld [vmem:[%s9293 + $0x118] sm:$0xff]
    %v9330 = vld [vmem:[%s9293 + $0x120] sm:$0xff]
    %v9331 = vld [vmem:[%s9293 + $0x128] sm:$0xff]
    %v9332 = vld [vmem:[%s9293 + $0x130] sm:$0xff]
    %v9333 = vld [vmem:[%s9293 + $0x138] sm:$0xff]
    %v9334 = vld [vmem:[%s9293 + $0x140] sm:$0xff]
    %v9335 = vld [vmem:[%s9293 + $0x148] sm:$0xff]
    %v9336 = vld [vmem:[%s9293 + $0x150] sm:$0xff]
    %v9337 = vld [vmem:[%s9293 + $0x158] sm:$0xff]
    %v9338 = vld [vmem:[%s9293 + $0x160] sm:$0xff]
    %v9339 = vld [vmem:[%s9293 + $0x168] sm:$0xff]
    %v9340 = vld [vmem:[%s9293 + $0x170] sm:$0xff]
    %v9341 = vld [vmem:[%s9293 + $0x178] sm:$0xff]
    %v9342 = vld [vmem:[%s9293 + $0x180] sm:$0xff]
    %v9343 = vld [vmem:[%s9293 + $0x188] sm:$0xff]
    %v9344 = vld [vmem:[%s9293 + $0x190] sm:$0xff]
    %v9345 = vld [vmem:[%s9293 + $0x198] sm:$0xff]
    %v9346 = vld [vmem:[%s9293 + $0x1a0] sm:$0xff]
    %v9347 = vld [vmem:[%s9293 + $0x1a8] sm:$0xff]
    %v9348 = vld [vmem:[%s9293 + $0x1b0] sm:$0xff]
    %v9349 = vld [vmem:[%s9293 + $0x1b8] sm:$0xff]
    %v9350 = vld [vmem:[%s9293 + $0x1c0] sm:$0xff]
    %v9351 = vld [vmem:[%s9293 + $0x1c8] sm:$0xff]
    %v9352 = vld [vmem:[%s9293 + $0x1d0] sm:$0xff]
    %v9353 = vld [vmem:[%s9293 + $0x1d8] sm:$0xff]
    %v9354 = vld [vmem:[%s9293 + $0x1e0] sm:$0xff]
    %v9355 = vld [vmem:[%s9293 + $0x1e8] sm:$0xff]
    %v9356 = vld [vmem:[%s9293 + $0x1f0] sm:$0xff]
    %v9357 = vld [vmem:[%s9293 + $0x1f8] sm:$0xff]
    %v9358 = vld [vmem:[%s9293 + $0x200] sm:$0xff]
    %v9359 = vld [vmem:[%s9293 + $0x208] sm:$0xff]
    %v9360 = vld [vmem:[%s9293 + $0x210] sm:$0xff]
    %v9361 = vld [vmem:[%s9293 + $0x218] sm:$0xff]
    %v9362 = vld [vmem:[%s9293 + $0x220] sm:$0xff]
    %v9363 = vld [vmem:[%s9293 + $0x228] sm:$0xff]
    %v9364 = vld [vmem:[%s9293 + $0x230] sm:$0xff]
    %v9365 = vld [vmem:[%s9293 + $0x238] sm:$0xff]
    %v9366 = vld [vmem:[%s9293 + $0x240] sm:$0xff]
    %v9367 = vld [vmem:[%s9293 + $0x248] sm:$0xff]
    %v9368 = vld [vmem:[%s9293 + $0x250] sm:$0xff]
    %v9369 = vld [vmem:[%s9293 + $0x258] sm:$0xff]
    %v9370 = vld [vmem:[%s9293 + $0x260] sm:$0xff]
    %v9371 = vld [vmem:[%s9293 + $0x268] sm:$0xff]
    %v9372 = vld [vmem:[%s9293 + $0x270] sm:$0xff]
    %v9373 = vld [vmem:[%s9293 + $0x278] sm:$0xff]
    %9374 = vst [vmem:[#allocation1] ss:$9 sm:$0xff] %v8085
    %s9375 = scalar_lea.vmem [#allocation1], 1
    %9376 = vst [vmem:[%s9375] ss:$9 sm:$0xff] %v9284
    %s9377 = scalar_lea.vmem [#allocation1], 2
    %9378 = vst [vmem:[%s9377] ss:$9 sm:$0xff] %v8093
    %s9379 = scalar_lea.vmem [#allocation1], 3
    %9380 = vst [vmem:[%s9379] ss:$9 sm:$0xff] %v9292
    %v9381 = vld [vmem:[#allocation1] sm:$0xff]
    %v9382 = vld [vmem:[#allocation1 + $0x9] sm:$0xff]
    %v9383 = vld [vmem:[#allocation1 + $0x12] sm:$0xff]
    %v9384 = vld [vmem:[#allocation1 + $0x1b] sm:$0xff]
    %v9385 = vld [vmem:[#allocation1 + $0x24] sm:$0xff]
    %v9471 = vunpack.c.l.b16 %v9294
    %v9472 = vunpack.c.h.b16 %v9294
    %v9473 = vunpack.c.l.b16 %v9295
    %v9474 = vunpack.c.h.b16 %v9295
    %v9475 = vunpack.c.l.b16 %v9296
    %v9476 = vunpack.c.h.b16 %v9296
    %v9477 = vunpack.c.l.b16 %v9297
    %v9478 = vunpack.c.h.b16 %v9297
    %v9479 = vunpack.c.l.b16 %v9298
    %v9480 = vunpack.c.h.b16 %v9298
    %v9481 = vunpack.c.l.b16 %v9299
    %v9482 = vunpack.c.h.b16 %v9299
    %v9483 = vunpack.c.l.b16 %v9300
    %v9484 = vunpack.c.h.b16 %v9300
    %v9485 = vunpack.c.l.b16 %v9301
    %v9486 = vunpack.c.h.b16 %v9301
    %v9487 = vunpack.c.l.b16 %v9302
    %v9488 = vunpack.c.h.b16 %v9302
    %v9489 = vunpack.c.l.b16 %v9303
    %v9490 = vunpack.c.h.b16 %v9303
    %v9491 = vunpack.c.l.b16 %v9304
    %v9492 = vunpack.c.h.b16 %v9304
    %v9493 = vunpack.c.l.b16 %v9305
    %v9494 = vunpack.c.h.b16 %v9305
    %v9495 = vunpack.c.l.b16 %v9306
    %v9496 = vunpack.c.h.b16 %v9306
    %v9497 = vunpack.c.l.b16 %v9307
    %v9498 = vunpack.c.h.b16 %v9307
    %v9499 = vunpack.c.l.b16 %v9308
    %v9500 = vunpack.c.h.b16 %v9308
    %v9501 = vunpack.c.l.b16 %v9309
    %v9502 = vunpack.c.h.b16 %v9309
    %v9503 = vunpack.c.l.b16 %v9310
    %v9504 = vunpack.c.h.b16 %v9310
    %v9505 = vunpack.c.l.b16 %v9311
    %v9506 = vunpack.c.h.b16 %v9311
    %v9507 = vunpack.c.l.b16 %v9312
    %v9508 = vunpack.c.h.b16 %v9312
    %v9509 = vunpack.c.l.b16 %v9313
    %v9510 = vunpack.c.h.b16 %v9313
    %v9511 = vunpack.c.l.b16 %v9314
    %v9512 = vunpack.c.h.b16 %v9314
    %v9513 = vunpack.c.l.b16 %v9315
    %v9514 = vunpack.c.h.b16 %v9315
    %v9515 = vunpack.c.l.b16 %v9316
    %v9516 = vunpack.c.h.b16 %v9316
    %v9517 = vunpack.c.l.b16 %v9317
    %v9518 = vunpack.c.h.b16 %v9317
    %v9519 = vunpack.c.l.b16 %v9318
    %v9520 = vunpack.c.h.b16 %v9318
    %v9521 = vunpack.c.l.b16 %v9319
    %v9522 = vunpack.c.h.b16 %v9319
    %v9523 = vunpack.c.l.b16 %v9320
    %v9524 = vunpack.c.h.b16 %v9320
    %v9525 = vunpack.c.l.b16 %v9321
    %v9526 = vunpack.c.h.b16 %v9321
    %v9527 = vunpack.c.l.b16 %v9322
    %v9528 = vunpack.c.h.b16 %v9322
    %v9529 = vunpack.c.l.b16 %v9323
    %v9530 = vunpack.c.h.b16 %v9323
    %v9531 = vunpack.c.l.b16 %v9324
    %v9532 = vunpack.c.h.b16 %v9324
    %v9533 = vunpack.c.l.b16 %v9325
    %v9534 = vunpack.c.h.b16 %v9325
    %v9535 = vunpack.c.l.b16 %v9326
    %v9536 = vunpack.c.h.b16 %v9326
    %v9537 = vunpack.c.l.b16 %v9327
    %v9538 = vunpack.c.h.b16 %v9327
    %v9539 = vunpack.c.l.b16 %v9328
    %v9540 = vunpack.c.h.b16 %v9328
    %v9541 = vunpack.c.l.b16 %v9329
    %v9542 = vunpack.c.h.b16 %v9329
    %v9543 = vunpack.c.l.b16 %v9330
    %v9544 = vunpack.c.h.b16 %v9330
    %v9545 = vunpack.c.l.b16 %v9331
    %v9546 = vunpack.c.h.b16 %v9331
    %v9547 = vunpack.c.l.b16 %v9332
    %v9548 = vunpack.c.h.b16 %v9332
    %v9549 = vunpack.c.l.b16 %v9333
    %v9550 = vunpack.c.h.b16 %v9333
    %v9551 = vunpack.c.l.b16 %v9334
    %v9552 = vunpack.c.h.b16 %v9334
    %v9553 = vunpack.c.l.b16 %v9335
    %v9554 = vunpack.c.h.b16 %v9335
    %v9555 = vunpack.c.l.b16 %v9336
    %v9556 = vunpack.c.h.b16 %v9336
    %v9557 = vunpack.c.l.b16 %v9337
    %v9558 = vunpack.c.h.b16 %v9337
    %v9559 = vunpack.c.l.b16 %v9338
    %v9560 = vunpack.c.h.b16 %v9338
    %v9561 = vunpack.c.l.b16 %v9339
    %v9562 = vunpack.c.h.b16 %v9339
    %v9563 = vunpack.c.l.b16 %v9340
    %v9564 = vunpack.c.h.b16 %v9340
    %v9565 = vunpack.c.l.b16 %v9341
    %v9566 = vunpack.c.h.b16 %v9341
    %v9567 = vunpack.c.l.b16 %v9342
    %v9568 = vunpack.c.h.b16 %v9342
    %v9569 = vunpack.c.l.b16 %v9343
    %v9570 = vunpack.c.h.b16 %v9343
    %v9571 = vunpack.c.l.b16 %v9344
    %v9572 = vunpack.c.h.b16 %v9344
    %v9573 = vunpack.c.l.b16 %v9345
    %v9574 = vunpack.c.h.b16 %v9345
    %v9575 = vunpack.c.l.b16 %v9346
    %v9576 = vunpack.c.h.b16 %v9346
    %v9577 = vunpack.c.l.b16 %v9347
    %v9578 = vunpack.c.h.b16 %v9347
    %v9579 = vunpack.c.l.b16 %v9348
    %v9580 = vunpack.c.h.b16 %v9348
    %v9581 = vunpack.c.l.b16 %v9349
    %v9582 = vunpack.c.h.b16 %v9349
    %v9583 = vunpack.c.l.b16 %v9350
    %v9584 = vunpack.c.h.b16 %v9350
    %v9585 = vunpack.c.l.b16 %v9351
    %v9586 = vunpack.c.h.b16 %v9351
    %v9587 = vunpack.c.l.b16 %v9352
    %v9588 = vunpack.c.h.b16 %v9352
    %v9589 = vunpack.c.l.b16 %v9353
    %v9590 = vunpack.c.h.b16 %v9353
    %v9591 = vunpack.c.l.b16 %v9354
    %v9592 = vunpack.c.h.b16 %v9354
    %v9593 = vunpack.c.l.b16 %v9355
    %v9594 = vunpack.c.h.b16 %v9355
    %v9595 = vunpack.c.l.b16 %v9356
    %v9596 = vunpack.c.h.b16 %v9356
    %v9597 = vunpack.c.l.b16 %v9357
    %v9598 = vunpack.c.h.b16 %v9357
    %v9599 = vunpack.c.l.b16 %v9358
    %v9600 = vunpack.c.h.b16 %v9358
    %v9601 = vunpack.c.l.b16 %v9359
    %v9602 = vunpack.c.h.b16 %v9359
    %v9603 = vunpack.c.l.b16 %v9360
    %v9604 = vunpack.c.h.b16 %v9360
    %v9605 = vunpack.c.l.b16 %v9361
    %v9606 = vunpack.c.h.b16 %v9361
    %v9607 = vunpack.c.l.b16 %v9362
    %v9608 = vunpack.c.h.b16 %v9362
    %v9609 = vunpack.c.l.b16 %v9363
    %v9610 = vunpack.c.h.b16 %v9363
    %v9611 = vunpack.c.l.b16 %v9364
    %v9612 = vunpack.c.h.b16 %v9364
    %v9613 = vunpack.c.l.b16 %v9365
    %v9614 = vunpack.c.h.b16 %v9365
    %v9615 = vunpack.c.l.b16 %v9366
    %v9616 = vunpack.c.h.b16 %v9366
    %v9617 = vunpack.c.l.b16 %v9367
    %v9618 = vunpack.c.h.b16 %v9367
    %v9619 = vunpack.c.l.b16 %v9368
    %v9620 = vunpack.c.h.b16 %v9368
    %v9621 = vunpack.c.l.b16 %v9369
    %v9622 = vunpack.c.h.b16 %v9369
    %v9623 = vunpack.c.l.b16 %v9370
    %v9624 = vunpack.c.h.b16 %v9370
    %v9625 = vunpack.c.l.b16 %v9371
    %v9626 = vunpack.c.h.b16 %v9371
    %v9627 = vunpack.c.l.b16 %v9372
    %v9628 = vunpack.c.h.b16 %v9372
    %v9629 = vunpack.c.l.b16 %v9373
    %v9630 = vunpack.c.h.b16 %v9373
    %v9631 = vpack.c.b16 %v9473, %v9471
    %v9632 = vpack.c.b16 %v9474, %v9472
    %v9633 = vpack.c.b16 %v9477, %v9475
    %v9634 = vpack.c.b16 %v9478, %v9476
    %v9635 = vpack.c.b16 %v9481, %v9479
    %v9636 = vpack.c.b16 %v9482, %v9480
    %v9637 = vpack.c.b16 %v9485, %v9483
    %v9638 = vpack.c.b16 %v9486, %v9484
    %v9639 = vpack.c.b16 %v9489, %v9487
    %v9640 = vpack.c.b16 %v9490, %v9488
    %v9641 = vpack.c.b16 %v9493, %v9491
    %v9642 = vpack.c.b16 %v9494, %v9492
    %v9643 = vpack.c.b16 %v9497, %v9495
    %v9644 = vpack.c.b16 %v9498, %v9496
    %v9645 = vpack.c.b16 %v9501, %v9499
    %v9646 = vpack.c.b16 %v9502, %v9500
    %v9647 = vpack.c.b16 %v9505, %v9503
    %v9648 = vpack.c.b16 %v9506, %v9504
    %v9649 = vpack.c.b16 %v9509, %v9507
    %v9650 = vpack.c.b16 %v9510, %v9508
    %v9651 = vpack.c.b16 %v9513, %v9511
    %v9652 = vpack.c.b16 %v9514, %v9512
    %v9653 = vpack.c.b16 %v9517, %v9515
    %v9654 = vpack.c.b16 %v9518, %v9516
    %v9655 = vpack.c.b16 %v9521, %v9519
    %v9656 = vpack.c.b16 %v9522, %v9520
    %v9657 = vpack.c.b16 %v9525, %v9523
    %v9658 = vpack.c.b16 %v9526, %v9524
    %v9659 = vpack.c.b16 %v9529, %v9527
    %v9660 = vpack.c.b16 %v9530, %v9528
    %v9661 = vpack.c.b16 %v9533, %v9531
    %v9662 = vpack.c.b16 %v9534, %v9532
    %v9663 = vpack.c.b16 %v9537, %v9535
    %v9664 = vpack.c.b16 %v9538, %v9536
    %v9665 = vpack.c.b16 %v9541, %v9539
    %v9666 = vpack.c.b16 %v9542, %v9540
    %v9667 = vpack.c.b16 %v9545, %v9543
    %v9668 = vpack.c.b16 %v9546, %v9544
    %v9669 = vpack.c.b16 %v9549, %v9547
    %v9670 = vpack.c.b16 %v9550, %v9548
    %v9671 = vpack.c.b16 %v9553, %v9551
    %v9672 = vpack.c.b16 %v9554, %v9552
    %v9673 = vpack.c.b16 %v9557, %v9555
    %v9674 = vpack.c.b16 %v9558, %v9556
    %v9675 = vpack.c.b16 %v9561, %v9559
    %v9676 = vpack.c.b16 %v9562, %v9560
    %v9677 = vpack.c.b16 %v9565, %v9563
    %v9678 = vpack.c.b16 %v9566, %v9564
    %v9679 = vpack.c.b16 %v9569, %v9567
    %v9680 = vpack.c.b16 %v9570, %v9568
    %v9681 = vpack.c.b16 %v9573, %v9571
    %v9682 = vpack.c.b16 %v9574, %v9572
    %v9683 = vpack.c.b16 %v9577, %v9575
    %v9684 = vpack.c.b16 %v9578, %v9576
    %v9685 = vpack.c.b16 %v9581, %v9579
    %v9686 = vpack.c.b16 %v9582, %v9580
    %v9687 = vpack.c.b16 %v9585, %v9583
    %v9688 = vpack.c.b16 %v9586, %v9584
    %v9689 = vpack.c.b16 %v9589, %v9587
    %v9690 = vpack.c.b16 %v9590, %v9588
    %v9691 = vpack.c.b16 %v9593, %v9591
    %v9692 = vpack.c.b16 %v9594, %v9592
    %v9693 = vpack.c.b16 %v9597, %v9595
    %v9694 = vpack.c.b16 %v9598, %v9596
    %v9695 = vpack.c.b16 %v9601, %v9599
    %v9696 = vpack.c.b16 %v9602, %v9600
    %v9697 = vpack.c.b16 %v9605, %v9603
    %v9698 = vpack.c.b16 %v9606, %v9604
    %v9699 = vpack.c.b16 %v9609, %v9607
    %v9700 = vpack.c.b16 %v9610, %v9608
    %v9701 = vpack.c.b16 %v9613, %v9611
    %v9702 = vpack.c.b16 %v9614, %v9612
    %v9703 = vpack.c.b16 %v9617, %v9615
    %v9704 = vpack.c.b16 %v9618, %v9616
    %v9705 = vpack.c.b16 %v9621, %v9619
    %v9706 = vpack.c.b16 %v9622, %v9620
    %v9707 = vpack.c.b16 %v9625, %v9623
    %v9708 = vpack.c.b16 %v9626, %v9624
    %v9709 = vpack.c.b16 %v9629, %v9627
    %v9710 = vpack.c.b16 %v9630, %v9628
    %9791 = vmatpush.bf16.msra.mxu0 %v9645
    %9792 = vmatpush.bf16.msra.mxu0 %v9643
    %9793 = vmatpush.bf16.msra.mxu0 %v9641
    %9794 = vmatpush.bf16.msra.mxu0 %v9639
    %9795 = vmatpush.bf16.msra.mxu0 %v9637
    %9796 = vmatpush.bf16.msra.mxu0 %v9635
    %9797 = vmatpush.bf16.msra.mxu0 %v9633
    %9798 = vmatpush.bf16.msra.mxu0 %v9631
    %9799 = vmatmul.bf16.gmra.mxu0 %v9381
    %v9800 = vpop.f32.mrf.mxu0
    %v9801 = vadd.f32 0.0, %v9800
    %v9802 = vpop.f32.mrf.mxu0
    %9803 = vdwg.mxu0
    %9804 = vmatpush.bf16.msra.mxu0 %v9661
    %9805 = vmatpush.bf16.msra.mxu0 %v9659
    %9806 = vmatpush.bf16.msra.mxu0 %v9657
    %9807 = vmatpush.bf16.msra.mxu0 %v9655
    %9808 = vmatpush.bf16.msra.mxu0 %v9653
    %9809 = vmatpush.bf16.msra.mxu0 %v9651
    %9810 = vmatpush.bf16.msra.mxu0 %v9649
    %9811 = vmatpush.bf16.msra.mxu0 %v9647
    %9812 = vmatmul.bf16.gmra.mxu0 %v9382
    %v9813 = vpop.f32.mrf.mxu0
    %v9814 = vadd.f32 %v9801, %v9813
    %v9815 = vpop.f32.mrf.mxu0
    %9816 = vdwg.mxu0
    %9817 = vmatpush.bf16.msra.mxu0 %v9677
    %9818 = vmatpush.bf16.msra.mxu0 %v9675
    %9819 = vmatpush.bf16.msra.mxu0 %v9673
    %9820 = vmatpush.bf16.msra.mxu0 %v9671
    %9821 = vmatpush.bf16.msra.mxu0 %v9669
    %9822 = vmatpush.bf16.msra.mxu0 %v9667
    %9823 = vmatpush.bf16.msra.mxu0 %v9665
    %9824 = vmatpush.bf16.msra.mxu0 %v9663
    %9825 = vmatmul.bf16.gmra.mxu0 %v9383
    %v9826 = vpop.f32.mrf.mxu0
    %v9827 = vadd.f32 %v9814, %v9826
    %v9828 = vpop.f32.mrf.mxu0
    %9829 = vdwg.mxu0
    %9830 = vmatpush.bf16.msra.mxu0 %v9693
    %9831 = vmatpush.bf16.msra.mxu0 %v9691
    %9832 = vmatpush.bf16.msra.mxu0 %v9689
    %9833 = vmatpush.bf16.msra.mxu0 %v9687
    %9834 = vmatpush.bf16.msra.mxu0 %v9685
    %9835 = vmatpush.bf16.msra.mxu0 %v9683
    %9836 = vmatpush.bf16.msra.mxu0 %v9681
    %9837 = vmatpush.bf16.msra.mxu0 %v9679
    %9838 = vmatmul.bf16.gmra.mxu0 %v9384
    %v9839 = vpop.f32.mrf.mxu0
    %v9840 = vadd.f32 %v9827, %v9839
    %v9841 = vpop.f32.mrf.mxu0
    %9842 = vdwg.mxu0
    %9843 = vmatpush.bf16.msra.mxu0 %v9709
    %9844 = vmatpush.bf16.msra.mxu0 %v9707
    %9845 = vmatpush.bf16.msra.mxu0 %v9705
    %9846 = vmatpush.bf16.msra.mxu0 %v9703
    %9847 = vmatpush.bf16.msra.mxu0 %v9701
    %9848 = vmatpush.bf16.msra.mxu0 %v9699
    %9849 = vmatpush.bf16.msra.mxu0 %v9697
    %9850 = vmatpush.bf16.msra.mxu0 %v9695
    %9851 = vmatmul.bf16.gmra.mxu0 %v9385
    %v9852 = vpop.f32.mrf.mxu0
    %v9853 = vadd.f32 %v9840, %v9852
    %v9854 = vpop.f32.mrf.mxu0
    %9855 = vdwg.mxu0
    %9856 = vmatpush.bf16.msra.mxu0 %v9646
    %9857 = vmatpush.bf16.msra.mxu0 %v9644
    %9858 = vmatpush.bf16.msra.mxu0 %v9642
    %9859 = vmatpush.bf16.msra.mxu0 %v9640
    %9860 = vmatpush.bf16.msra.mxu0 %v9638
    %9861 = vmatpush.bf16.msra.mxu0 %v9636
    %9862 = vmatpush.bf16.msra.mxu0 %v9634
    %9863 = vmatpush.bf16.msra.mxu0 %v9632
    %9864 = vmatmul.bf16.gmra.mxu0 %v9381
    %v9865 = vpop.f32.mrf.mxu0
    %v9866 = vadd.f32 0.0, %v9865
    %v9867 = vpop.f32.mrf.mxu0
    %9868 = vdwg.mxu0
    %9869 = vmatpush.bf16.msra.mxu0 %v9662
    %9870 = vmatpush.bf16.msra.mxu0 %v9660
    %9871 = vmatpush.bf16.msra.mxu0 %v9658
    %9872 = vmatpush.bf16.msra.mxu0 %v9656
    %9873 = vmatpush.bf16.msra.mxu0 %v9654
    %9874 = vmatpush.bf16.msra.mxu0 %v9652
    %9875 = vmatpush.bf16.msra.mxu0 %v9650
    %9876 = vmatpush.bf16.msra.mxu0 %v9648
    %9877 = vmatmul.bf16.gmra.mxu0 %v9382
    %v9878 = vpop.f32.mrf.mxu0
    %v9879 = vadd.f32 %v9866, %v9878
    %v9880 = vpop.f32.mrf.mxu0
    %9881 = vdwg.mxu0
    %9882 = vmatpush.bf16.msra.mxu0 %v9678
    %9883 = vmatpush.bf16.msra.mxu0 %v9676
    %9884 = vmatpush.bf16.msra.mxu0 %v9674
    %9885 = vmatpush.bf16.msra.mxu0 %v9672
    %9886 = vmatpush.bf16.msra.mxu0 %v9670
    %9887 = vmatpush.bf16.msra.mxu0 %v9668
    %9888 = vmatpush.bf16.msra.mxu0 %v9666
    %9889 = vmatpush.bf16.msra.mxu0 %v9664
    %9890 = vmatmul.bf16.gmra.mxu0 %v9383
    %v9891 = vpop.f32.mrf.mxu0
    %v9892 = vadd.f32 %v9879, %v9891
    %v9893 = vpop.f32.mrf.mxu0
    %9894 = vdwg.mxu0
    %9895 = vmatpush.bf16.msra.mxu0 %v9694
    %9896 = vmatpush.bf16.msra.mxu0 %v9692
    %9897 = vmatpush.bf16.msra.mxu0 %v9690
    %9898 = vmatpush.bf16.msra.mxu0 %v9688
    %9899 = vmatpush.bf16.msra.mxu0 %v9686
    %9900 = vmatpush.bf16.msra.mxu0 %v9684
    %9901 = vmatpush.bf16.msra.mxu0 %v9682
    %9902 = vmatpush.bf16.msra.mxu0 %v9680
    %9903 = vmatmul.bf16.gmra.mxu0 %v9384
    %v9904 = vpop.f32.mrf.mxu0
    %v9905 = vadd.f32 %v9892, %v9904
    %v9906 = vpop.f32.mrf.mxu0
    %9907 = vdwg.mxu0
    %9908 = vmatpush.bf16.msra.mxu0 %v9710
    %9909 = vmatpush.bf16.msra.mxu0 %v9708
    %9910 = vmatpush.bf16.msra.mxu0 %v9706
    %9911 = vmatpush.bf16.msra.mxu0 %v9704
    %9912 = vmatpush.bf16.msra.mxu0 %v9702
    %9913 = vmatpush.bf16.msra.mxu0 %v9700
    %9914 = vmatpush.bf16.msra.mxu0 %v9698
    %9915 = vmatpush.bf16.msra.mxu0 %v9696
    %9916 = vmatmul.bf16.gmra.mxu0 %v9385
    %v9917 = vpop.f32.mrf.mxu0
    %v9918 = vadd.f32 %v9905, %v9917
    %v9919 = vpop.f32.mrf.mxu0
    %9920 = vdwg.mxu0
    %v9921 = vadd.f32 %v9201, %v9853
    %v9922 = vadd.f32 %v9266, %v9918
    %s9923 = scalar_lea.vmem %s7, 1920
    %v9924 = vld [vmem:[%s9923] sm:$0xff]
    %v9925 = vld [vmem:[%s9923 + $0x8] sm:$0xff]
    %v9926 = vld [vmem:[%s9923 + $0x10] sm:$0xff]
    %v9927 = vld [vmem:[%s9923 + $0x18] sm:$0xff]
    %v9928 = vld [vmem:[%s9923 + $0x20] sm:$0xff]
    %v9929 = vld [vmem:[%s9923 + $0x28] sm:$0xff]
    %v9930 = vld [vmem:[%s9923 + $0x30] sm:$0xff]
    %v9931 = vld [vmem:[%s9923 + $0x38] sm:$0xff]
    %v9932 = vld [vmem:[%s9923 + $0x40] sm:$0xff]
    %v9933 = vld [vmem:[%s9923 + $0x48] sm:$0xff]
    %v9934 = vld [vmem:[%s9923 + $0x50] sm:$0xff]
    %v9935 = vld [vmem:[%s9923 + $0x58] sm:$0xff]
    %v9936 = vld [vmem:[%s9923 + $0x60] sm:$0xff]
    %v9937 = vld [vmem:[%s9923 + $0x68] sm:$0xff]
    %v9938 = vld [vmem:[%s9923 + $0x70] sm:$0xff]
    %v9939 = vld [vmem:[%s9923 + $0x78] sm:$0xff]
    %v9940 = vld [vmem:[%s9923 + $0x80] sm:$0xff]
    %v9941 = vld [vmem:[%s9923 + $0x88] sm:$0xff]
    %v9942 = vld [vmem:[%s9923 + $0x90] sm:$0xff]
    %v9943 = vld [vmem:[%s9923 + $0x98] sm:$0xff]
    %v9944 = vld [vmem:[%s9923 + $0xa0] sm:$0xff]
    %v9945 = vld [vmem:[%s9923 + $0xa8] sm:$0xff]
    %v9946 = vld [vmem:[%s9923 + $0xb0] sm:$0xff]
    %v9947 = vld [vmem:[%s9923 + $0xb8] sm:$0xff]
    %v9948 = vld [vmem:[%s9923 + $0xc0] sm:$0xff]
    %v9949 = vld [vmem:[%s9923 + $0xc8] sm:$0xff]
    %v9950 = vld [vmem:[%s9923 + $0xd0] sm:$0xff]
    %v9951 = vld [vmem:[%s9923 + $0xd8] sm:$0xff]
    %v9952 = vld [vmem:[%s9923 + $0xe0] sm:$0xff]
    %v9953 = vld [vmem:[%s9923 + $0xe8] sm:$0xff]
    %v9954 = vld [vmem:[%s9923 + $0xf0] sm:$0xff]
    %v9955 = vld [vmem:[%s9923 + $0xf8] sm:$0xff]
    %v9956 = vld [vmem:[%s9923 + $0x100] sm:$0xff]
    %v9957 = vld [vmem:[%s9923 + $0x108] sm:$0xff]
    %v9958 = vld [vmem:[%s9923 + $0x110] sm:$0xff]
    %v9959 = vld [vmem:[%s9923 + $0x118] sm:$0xff]
    %v9960 = vld [vmem:[%s9923 + $0x120] sm:$0xff]
    %v9961 = vld [vmem:[%s9923 + $0x128] sm:$0xff]
    %v9962 = vld [vmem:[%s9923 + $0x130] sm:$0xff]
    %v9963 = vld [vmem:[%s9923 + $0x138] sm:$0xff]
    %v9964 = vld [vmem:[%s9923 + $0x140] sm:$0xff]
    %v9965 = vld [vmem:[%s9923 + $0x148] sm:$0xff]
    %v9966 = vld [vmem:[%s9923 + $0x150] sm:$0xff]
    %v9967 = vld [vmem:[%s9923 + $0x158] sm:$0xff]
    %v9968 = vld [vmem:[%s9923 + $0x160] sm:$0xff]
    %v9969 = vld [vmem:[%s9923 + $0x168] sm:$0xff]
    %v9970 = vld [vmem:[%s9923 + $0x170] sm:$0xff]
    %v9971 = vld [vmem:[%s9923 + $0x178] sm:$0xff]
    %v9972 = vld [vmem:[%s9923 + $0x180] sm:$0xff]
    %v9973 = vld [vmem:[%s9923 + $0x188] sm:$0xff]
    %v9974 = vld [vmem:[%s9923 + $0x190] sm:$0xff]
    %v9975 = vld [vmem:[%s9923 + $0x198] sm:$0xff]
    %v9976 = vld [vmem:[%s9923 + $0x1a0] sm:$0xff]
    %v9977 = vld [vmem:[%s9923 + $0x1a8] sm:$0xff]
    %v9978 = vld [vmem:[%s9923 + $0x1b0] sm:$0xff]
    %v9979 = vld [vmem:[%s9923 + $0x1b8] sm:$0xff]
    %v9980 = vld [vmem:[%s9923 + $0x1c0] sm:$0xff]
    %v9981 = vld [vmem:[%s9923 + $0x1c8] sm:$0xff]
    %v9982 = vld [vmem:[%s9923 + $0x1d0] sm:$0xff]
    %v9983 = vld [vmem:[%s9923 + $0x1d8] sm:$0xff]
    %v9984 = vld [vmem:[%s9923 + $0x1e0] sm:$0xff]
    %v9985 = vld [vmem:[%s9923 + $0x1e8] sm:$0xff]
    %v9986 = vld [vmem:[%s9923 + $0x1f0] sm:$0xff]
    %v9987 = vld [vmem:[%s9923 + $0x1f8] sm:$0xff]
    %v9988 = vld [vmem:[%s9923 + $0x200] sm:$0xff]
    %v9989 = vld [vmem:[%s9923 + $0x208] sm:$0xff]
    %v9990 = vld [vmem:[%s9923 + $0x210] sm:$0xff]
    %v9991 = vld [vmem:[%s9923 + $0x218] sm:$0xff]
    %v9992 = vld [vmem:[%s9923 + $0x220] sm:$0xff]
    %v9993 = vld [vmem:[%s9923 + $0x228] sm:$0xff]
    %v9994 = vld [vmem:[%s9923 + $0x230] sm:$0xff]
    %v9995 = vld [vmem:[%s9923 + $0x238] sm:$0xff]
    %v9996 = vld [vmem:[%s9923 + $0x240] sm:$0xff]
    %v9997 = vld [vmem:[%s9923 + $0x248] sm:$0xff]
    %v9998 = vld [vmem:[%s9923 + $0x250] sm:$0xff]
    %v9999 = vld [vmem:[%s9923 + $0x258] sm:$0xff]
    %v10000 = vld [vmem:[%s9923 + $0x260] sm:$0xff]
    %v10001 = vld [vmem:[%s9923 + $0x268] sm:$0xff]
    %v10002 = vld [vmem:[%s9923 + $0x270] sm:$0xff]
    %v10003 = vld [vmem:[%s9923 + $0x278] sm:$0xff]
    %10004 = vst [vmem:[#allocation1] ss:$9 sm:$0xff] %v9284
    %s10005 = scalar_lea.vmem [#allocation1], 1
    %10006 = vst [vmem:[%s10005] ss:$9 sm:$0xff] %v7989
    %s10007 = scalar_lea.vmem [#allocation1], 2
    %10008 = vst [vmem:[%s10007] ss:$9 sm:$0xff] %v9292
    %s10009 = scalar_lea.vmem [#allocation1], 3
    %10010 = vst [vmem:[%s10009] ss:$9 sm:$0xff] %v7989
    %v10011 = vld [vmem:[#allocation1] sm:$0xff]
    %v10012 = vld [vmem:[#allocation1 + $0x9] sm:$0xff]
    %v10013 = vld [vmem:[#allocation1 + $0x12] sm:$0xff]
    %v10014 = vld [vmem:[#allocation1 + $0x1b] sm:$0xff]
    %v10015 = vld [vmem:[#allocation1 + $0x24] sm:$0xff]
    %v10101 = vunpack.c.l.b16 %v9924
    %v10102 = vunpack.c.h.b16 %v9924
    %v10103 = vunpack.c.l.b16 %v9925
    %v10104 = vunpack.c.h.b16 %v9925
    %v10105 = vunpack.c.l.b16 %v9926
    %v10106 = vunpack.c.h.b16 %v9926
    %v10107 = vunpack.c.l.b16 %v9927
    %v10108 = vunpack.c.h.b16 %v9927
    %v10109 = vunpack.c.l.b16 %v9928
    %v10110 = vunpack.c.h.b16 %v9928
    %v10111 = vunpack.c.l.b16 %v9929
    %v10112 = vunpack.c.h.b16 %v9929
    %v10113 = vunpack.c.l.b16 %v9930
    %v10114 = vunpack.c.h.b16 %v9930
    %v10115 = vunpack.c.l.b16 %v9931
    %v10116 = vunpack.c.h.b16 %v9931
    %v10117 = vunpack.c.l.b16 %v9932
    %v10118 = vunpack.c.h.b16 %v9932
    %v10119 = vunpack.c.l.b16 %v9933
    %v10120 = vunpack.c.h.b16 %v9933
    %v10121 = vunpack.c.l.b16 %v9934
    %v10122 = vunpack.c.h.b16 %v9934
    %v10123 = vunpack.c.l.b16 %v9935
    %v10124 = vunpack.c.h.b16 %v9935
    %v10125 = vunpack.c.l.b16 %v9936
    %v10126 = vunpack.c.h.b16 %v9936
    %v10127 = vunpack.c.l.b16 %v9937
    %v10128 = vunpack.c.h.b16 %v9937
    %v10129 = vunpack.c.l.b16 %v9938
    %v10130 = vunpack.c.h.b16 %v9938
    %v10131 = vunpack.c.l.b16 %v9939
    %v10132 = vunpack.c.h.b16 %v9939
    %v10133 = vunpack.c.l.b16 %v9940
    %v10134 = vunpack.c.h.b16 %v9940
    %v10135 = vunpack.c.l.b16 %v9941
    %v10136 = vunpack.c.h.b16 %v9941
    %v10137 = vunpack.c.l.b16 %v9942
    %v10138 = vunpack.c.h.b16 %v9942
    %v10139 = vunpack.c.l.b16 %v9943
    %v10140 = vunpack.c.h.b16 %v9943
    %v10141 = vunpack.c.l.b16 %v9944
    %v10142 = vunpack.c.h.b16 %v9944
    %v10143 = vunpack.c.l.b16 %v9945
    %v10144 = vunpack.c.h.b16 %v9945
    %v10145 = vunpack.c.l.b16 %v9946
    %v10146 = vunpack.c.h.b16 %v9946
    %v10147 = vunpack.c.l.b16 %v9947
    %v10148 = vunpack.c.h.b16 %v9947
    %v10149 = vunpack.c.l.b16 %v9948
    %v10150 = vunpack.c.h.b16 %v9948
    %v10151 = vunpack.c.l.b16 %v9949
    %v10152 = vunpack.c.h.b16 %v9949
    %v10153 = vunpack.c.l.b16 %v9950
    %v10154 = vunpack.c.h.b16 %v9950
    %v10155 = vunpack.c.l.b16 %v9951
    %v10156 = vunpack.c.h.b16 %v9951
    %v10157 = vunpack.c.l.b16 %v9952
    %v10158 = vunpack.c.h.b16 %v9952
    %v10159 = vunpack.c.l.b16 %v9953
    %v10160 = vunpack.c.h.b16 %v9953
    %v10161 = vunpack.c.l.b16 %v9954
    %v10162 = vunpack.c.h.b16 %v9954
    %v10163 = vunpack.c.l.b16 %v9955
    %v10164 = vunpack.c.h.b16 %v9955
    %v10165 = vunpack.c.l.b16 %v9956
    %v10166 = vunpack.c.h.b16 %v9956
    %v10167 = vunpack.c.l.b16 %v9957
    %v10168 = vunpack.c.h.b16 %v9957
    %v10169 = vunpack.c.l.b16 %v9958
    %v10170 = vunpack.c.h.b16 %v9958
    %v10171 = vunpack.c.l.b16 %v9959
    %v10172 = vunpack.c.h.b16 %v9959
    %v10173 = vunpack.c.l.b16 %v9960
    %v10174 = vunpack.c.h.b16 %v9960
    %v10175 = vunpack.c.l.b16 %v9961
    %v10176 = vunpack.c.h.b16 %v9961
    %v10177 = vunpack.c.l.b16 %v9962
    %v10178 = vunpack.c.h.b16 %v9962
    %v10179 = vunpack.c.l.b16 %v9963
    %v10180 = vunpack.c.h.b16 %v9963
    %v10181 = vunpack.c.l.b16 %v9964
    %v10182 = vunpack.c.h.b16 %v9964
    %v10183 = vunpack.c.l.b16 %v9965
    %v10184 = vunpack.c.h.b16 %v9965
    %v10185 = vunpack.c.l.b16 %v9966
    %v10186 = vunpack.c.h.b16 %v9966
    %v10187 = vunpack.c.l.b16 %v9967
    %v10188 = vunpack.c.h.b16 %v9967
    %v10189 = vunpack.c.l.b16 %v9968
    %v10190 = vunpack.c.h.b16 %v9968
    %v10191 = vunpack.c.l.b16 %v9969
    %v10192 = vunpack.c.h.b16 %v9969
    %v10193 = vunpack.c.l.b16 %v9970
    %v10194 = vunpack.c.h.b16 %v9970
    %v10195 = vunpack.c.l.b16 %v9971
    %v10196 = vunpack.c.h.b16 %v9971
    %v10197 = vunpack.c.l.b16 %v9972
    %v10198 = vunpack.c.h.b16 %v9972
    %v10199 = vunpack.c.l.b16 %v9973
    %v10200 = vunpack.c.h.b16 %v9973
    %v10201 = vunpack.c.l.b16 %v9974
    %v10202 = vunpack.c.h.b16 %v9974
    %v10203 = vunpack.c.l.b16 %v9975
    %v10204 = vunpack.c.h.b16 %v9975
    %v10205 = vunpack.c.l.b16 %v9976
    %v10206 = vunpack.c.h.b16 %v9976
    %v10207 = vunpack.c.l.b16 %v9977
    %v10208 = vunpack.c.h.b16 %v9977
    %v10209 = vunpack.c.l.b16 %v9978
    %v10210 = vunpack.c.h.b16 %v9978
    %v10211 = vunpack.c.l.b16 %v9979
    %v10212 = vunpack.c.h.b16 %v9979
    %v10213 = vunpack.c.l.b16 %v9980
    %v10214 = vunpack.c.h.b16 %v9980
    %v10215 = vunpack.c.l.b16 %v9981
    %v10216 = vunpack.c.h.b16 %v9981
    %v10217 = vunpack.c.l.b16 %v9982
    %v10218 = vunpack.c.h.b16 %v9982
    %v10219 = vunpack.c.l.b16 %v9983
    %v10220 = vunpack.c.h.b16 %v9983
    %v10221 = vunpack.c.l.b16 %v9984
    %v10222 = vunpack.c.h.b16 %v9984
    %v10223 = vunpack.c.l.b16 %v9985
    %v10224 = vunpack.c.h.b16 %v9985
    %v10225 = vunpack.c.l.b16 %v9986
    %v10226 = vunpack.c.h.b16 %v9986
    %v10227 = vunpack.c.l.b16 %v9987
    %v10228 = vunpack.c.h.b16 %v9987
    %v10229 = vunpack.c.l.b16 %v9988
    %v10230 = vunpack.c.h.b16 %v9988
    %v10231 = vunpack.c.l.b16 %v9989
    %v10232 = vunpack.c.h.b16 %v9989
    %v10233 = vunpack.c.l.b16 %v9990
    %v10234 = vunpack.c.h.b16 %v9990
    %v10235 = vunpack.c.l.b16 %v9991
    %v10236 = vunpack.c.h.b16 %v9991
    %v10237 = vunpack.c.l.b16 %v9992
    %v10238 = vunpack.c.h.b16 %v9992
    %v10239 = vunpack.c.l.b16 %v9993
    %v10240 = vunpack.c.h.b16 %v9993
    %v10241 = vunpack.c.l.b16 %v9994
    %v10242 = vunpack.c.h.b16 %v9994
    %v10243 = vunpack.c.l.b16 %v9995
    %v10244 = vunpack.c.h.b16 %v9995
    %v10245 = vunpack.c.l.b16 %v9996
    %v10246 = vunpack.c.h.b16 %v9996
    %v10247 = vunpack.c.l.b16 %v9997
    %v10248 = vunpack.c.h.b16 %v9997
    %v10249 = vunpack.c.l.b16 %v9998
    %v10250 = vunpack.c.h.b16 %v9998
    %v10251 = vunpack.c.l.b16 %v9999
    %v10252 = vunpack.c.h.b16 %v9999
    %v10253 = vunpack.c.l.b16 %v10000
    %v10254 = vunpack.c.h.b16 %v10000
    %v10255 = vunpack.c.l.b16 %v10001
    %v10256 = vunpack.c.h.b16 %v10001
    %v10257 = vunpack.c.l.b16 %v10002
    %v10258 = vunpack.c.h.b16 %v10002
    %v10259 = vunpack.c.l.b16 %v10003
    %v10260 = vunpack.c.h.b16 %v10003
    %v10261 = vpack.c.b16 %v10103, %v10101
    %v10262 = vpack.c.b16 %v10104, %v10102
    %v10263 = vpack.c.b16 %v10107, %v10105
    %v10264 = vpack.c.b16 %v10108, %v10106
    %v10265 = vpack.c.b16 %v10111, %v10109
    %v10266 = vpack.c.b16 %v10112, %v10110
    %v10267 = vpack.c.b16 %v10115, %v10113
    %v10268 = vpack.c.b16 %v10116, %v10114
    %v10269 = vpack.c.b16 %v10119, %v10117
    %v10270 = vpack.c.b16 %v10120, %v10118
    %v10271 = vpack.c.b16 %v10123, %v10121
    %v10272 = vpack.c.b16 %v10124, %v10122
    %v10273 = vpack.c.b16 %v10127, %v10125
    %v10274 = vpack.c.b16 %v10128, %v10126
    %v10275 = vpack.c.b16 %v10131, %v10129
    %v10276 = vpack.c.b16 %v10132, %v10130
    %v10277 = vpack.c.b16 %v10135, %v10133
    %v10278 = vpack.c.b16 %v10136, %v10134
    %v10279 = vpack.c.b16 %v10139, %v10137
    %v10280 = vpack.c.b16 %v10140, %v10138
    %v10281 = vpack.c.b16 %v10143, %v10141
    %v10282 = vpack.c.b16 %v10144, %v10142
    %v10283 = vpack.c.b16 %v10147, %v10145
    %v10284 = vpack.c.b16 %v10148, %v10146
    %v10285 = vpack.c.b16 %v10151, %v10149
    %v10286 = vpack.c.b16 %v10152, %v10150
    %v10287 = vpack.c.b16 %v10155, %v10153
    %v10288 = vpack.c.b16 %v10156, %v10154
    %v10289 = vpack.c.b16 %v10159, %v10157
    %v10290 = vpack.c.b16 %v10160, %v10158
    %v10291 = vpack.c.b16 %v10163, %v10161
    %v10292 = vpack.c.b16 %v10164, %v10162
    %v10293 = vpack.c.b16 %v10167, %v10165
    %v10294 = vpack.c.b16 %v10168, %v10166
    %v10295 = vpack.c.b16 %v10171, %v10169
    %v10296 = vpack.c.b16 %v10172, %v10170
    %v10297 = vpack.c.b16 %v10175, %v10173
    %v10298 = vpack.c.b16 %v10176, %v10174
    %v10299 = vpack.c.b16 %v10179, %v10177
    %v10300 = vpack.c.b16 %v10180, %v10178
    %v10301 = vpack.c.b16 %v10183, %v10181
    %v10302 = vpack.c.b16 %v10184, %v10182
    %v10303 = vpack.c.b16 %v10187, %v10185
    %v10304 = vpack.c.b16 %v10188, %v10186
    %v10305 = vpack.c.b16 %v10191, %v10189
    %v10306 = vpack.c.b16 %v10192, %v10190
    %v10307 = vpack.c.b16 %v10195, %v10193
    %v10308 = vpack.c.b16 %v10196, %v10194
    %v10309 = vpack.c.b16 %v10199, %v10197
    %v10310 = vpack.c.b16 %v10200, %v10198
    %v10311 = vpack.c.b16 %v10203, %v10201
    %v10312 = vpack.c.b16 %v10204, %v10202
    %v10313 = vpack.c.b16 %v10207, %v10205
    %v10314 = vpack.c.b16 %v10208, %v10206
    %v10315 = vpack.c.b16 %v10211, %v10209
    %v10316 = vpack.c.b16 %v10212, %v10210
    %v10317 = vpack.c.b16 %v10215, %v10213
    %v10318 = vpack.c.b16 %v10216, %v10214
    %v10319 = vpack.c.b16 %v10219, %v10217
    %v10320 = vpack.c.b16 %v10220, %v10218
    %v10321 = vpack.c.b16 %v10223, %v10221
    %v10322 = vpack.c.b16 %v10224, %v10222
    %v10323 = vpack.c.b16 %v10227, %v10225
    %v10324 = vpack.c.b16 %v10228, %v10226
    %v10325 = vpack.c.b16 %v10231, %v10229
    %v10326 = vpack.c.b16 %v10232, %v10230
    %v10327 = vpack.c.b16 %v10235, %v10233
    %v10328 = vpack.c.b16 %v10236, %v10234
    %v10329 = vpack.c.b16 %v10239, %v10237
    %v10330 = vpack.c.b16 %v10240, %v10238
    %v10331 = vpack.c.b16 %v10243, %v10241
    %v10332 = vpack.c.b16 %v10244, %v10242
    %v10333 = vpack.c.b16 %v10247, %v10245
    %v10334 = vpack.c.b16 %v10248, %v10246
    %v10335 = vpack.c.b16 %v10251, %v10249
    %v10336 = vpack.c.b16 %v10252, %v10250
    %v10337 = vpack.c.b16 %v10255, %v10253
    %v10338 = vpack.c.b16 %v10256, %v10254
    %v10339 = vpack.c.b16 %v10259, %v10257
    %v10340 = vpack.c.b16 %v10260, %v10258
    %10421 = vmatpush.bf16.msra.mxu0 %v10275
    %10422 = vmatpush.bf16.msra.mxu0 %v10273
    %10423 = vmatpush.bf16.msra.mxu0 %v10271
    %10424 = vmatpush.bf16.msra.mxu0 %v10269
    %10425 = vmatpush.bf16.msra.mxu0 %v10267
    %10426 = vmatpush.bf16.msra.mxu0 %v10265
    %10427 = vmatpush.bf16.msra.mxu0 %v10263
    %10428 = vmatpush.bf16.msra.mxu0 %v10261
    %10429 = vmatmul.bf16.gmra.mxu0 %v10011
    %v10430 = vpop.f32.mrf.mxu0
    %v10431 = vadd.f32 0.0, %v10430
    %v10432 = vpop.f32.mrf.mxu0
    %10433 = vdwg.mxu0
    %10434 = vmatpush.bf16.msra.mxu0 %v10291
    %10435 = vmatpush.bf16.msra.mxu0 %v10289
    %10436 = vmatpush.bf16.msra.mxu0 %v10287
    %10437 = vmatpush.bf16.msra.mxu0 %v10285
    %10438 = vmatpush.bf16.msra.mxu0 %v10283
    %10439 = vmatpush.bf16.msra.mxu0 %v10281
    %10440 = vmatpush.bf16.msra.mxu0 %v10279
    %10441 = vmatpush.bf16.msra.mxu0 %v10277
    %10442 = vmatmul.bf16.gmra.mxu0 %v10012
    %v10443 = vpop.f32.mrf.mxu0
    %v10444 = vadd.f32 %v10431, %v10443
    %v10445 = vpop.f32.mrf.mxu0
    %10446 = vdwg.mxu0
    %10447 = vmatpush.bf16.msra.mxu0 %v10307
    %10448 = vmatpush.bf16.msra.mxu0 %v10305
    %10449 = vmatpush.bf16.msra.mxu0 %v10303
    %10450 = vmatpush.bf16.msra.mxu0 %v10301
    %10451 = vmatpush.bf16.msra.mxu0 %v10299
    %10452 = vmatpush.bf16.msra.mxu0 %v10297
    %10453 = vmatpush.bf16.msra.mxu0 %v10295
    %10454 = vmatpush.bf16.msra.mxu0 %v10293
    %10455 = vmatmul.bf16.gmra.mxu0 %v10013
    %v10456 = vpop.f32.mrf.mxu0
    %v10457 = vadd.f32 %v10444, %v10456
    %v10458 = vpop.f32.mrf.mxu0
    %10459 = vdwg.mxu0
    %10460 = vmatpush.bf16.msra.mxu0 %v10323
    %10461 = vmatpush.bf16.msra.mxu0 %v10321
    %10462 = vmatpush.bf16.msra.mxu0 %v10319
    %10463 = vmatpush.bf16.msra.mxu0 %v10317
    %10464 = vmatpush.bf16.msra.mxu0 %v10315
    %10465 = vmatpush.bf16.msra.mxu0 %v10313
    %10466 = vmatpush.bf16.msra.mxu0 %v10311
    %10467 = vmatpush.bf16.msra.mxu0 %v10309
    %10468 = vmatmul.bf16.gmra.mxu0 %v10014
    %v10469 = vpop.f32.mrf.mxu0
    %v10470 = vadd.f32 %v10457, %v10469
    %v10471 = vpop.f32.mrf.mxu0
    %10472 = vdwg.mxu0
    %10473 = vmatpush.bf16.msra.mxu0 %v10339
    %10474 = vmatpush.bf16.msra.mxu0 %v10337
    %10475 = vmatpush.bf16.msra.mxu0 %v10335
    %10476 = vmatpush.bf16.msra.mxu0 %v10333
    %10477 = vmatpush.bf16.msra.mxu0 %v10331
    %10478 = vmatpush.bf16.msra.mxu0 %v10329
    %10479 = vmatpush.bf16.msra.mxu0 %v10327
    %10480 = vmatpush.bf16.msra.mxu0 %v10325
    %10481 = vmatmul.bf16.gmra.mxu0 %v10015
    %v10482 = vpop.f32.mrf.mxu0
    %v10483 = vadd.f32 %v10470, %v10482
    %v10484 = vpop.f32.mrf.mxu0
    %10485 = vdwg.mxu0
    %10486 = vmatpush.bf16.msra.mxu0 %v10276
    %10487 = vmatpush.bf16.msra.mxu0 %v10274
    %10488 = vmatpush.bf16.msra.mxu0 %v10272
    %10489 = vmatpush.bf16.msra.mxu0 %v10270
    %10490 = vmatpush.bf16.msra.mxu0 %v10268
    %10491 = vmatpush.bf16.msra.mxu0 %v10266
    %10492 = vmatpush.bf16.msra.mxu0 %v10264
    %10493 = vmatpush.bf16.msra.mxu0 %v10262
    %10494 = vmatmul.bf16.gmra.mxu0 %v10011
    %v10495 = vpop.f32.mrf.mxu0
    %v10496 = vadd.f32 0.0, %v10495
    %v10497 = vpop.f32.mrf.mxu0
    %10498 = vdwg.mxu0
    %10499 = vmatpush.bf16.msra.mxu0 %v10292
    %10500 = vmatpush.bf16.msra.mxu0 %v10290
    %10501 = vmatpush.bf16.msra.mxu0 %v10288
    %10502 = vmatpush.bf16.msra.mxu0 %v10286
    %10503 = vmatpush.bf16.msra.mxu0 %v10284
    %10504 = vmatpush.bf16.msra.mxu0 %v10282
    %10505 = vmatpush.bf16.msra.mxu0 %v10280
    %10506 = vmatpush.bf16.msra.mxu0 %v10278
    %10507 = vmatmul.bf16.gmra.mxu0 %v10012
    %v10508 = vpop.f32.mrf.mxu0
    %v10509 = vadd.f32 %v10496, %v10508
    %v10510 = vpop.f32.mrf.mxu0
    %10511 = vdwg.mxu0
    %10512 = vmatpush.bf16.msra.mxu0 %v10308
    %10513 = vmatpush.bf16.msra.mxu0 %v10306
    %10514 = vmatpush.bf16.msra.mxu0 %v10304
    %10515 = vmatpush.bf16.msra.mxu0 %v10302
    %10516 = vmatpush.bf16.msra.mxu0 %v10300
    %10517 = vmatpush.bf16.msra.mxu0 %v10298
    %10518 = vmatpush.bf16.msra.mxu0 %v10296
    %10519 = vmatpush.bf16.msra.mxu0 %v10294
    %10520 = vmatmul.bf16.gmra.mxu0 %v10013
    %v10521 = vpop.f32.mrf.mxu0
    %v10522 = vadd.f32 %v10509, %v10521
    %v10523 = vpop.f32.mrf.mxu0
    %10524 = vdwg.mxu0
    %10525 = vmatpush.bf16.msra.mxu0 %v10324
    %10526 = vmatpush.bf16.msra.mxu0 %v10322
    %10527 = vmatpush.bf16.msra.mxu0 %v10320
    %10528 = vmatpush.bf16.msra.mxu0 %v10318
    %10529 = vmatpush.bf16.msra.mxu0 %v10316
    %10530 = vmatpush.bf16.msra.mxu0 %v10314
    %10531 = vmatpush.bf16.msra.mxu0 %v10312
    %10532 = vmatpush.bf16.msra.mxu0 %v10310
    %10533 = vmatmul.bf16.gmra.mxu0 %v10014
    %v10534 = vpop.f32.mrf.mxu0
    %v10535 = vadd.f32 %v10522, %v10534
    %v10536 = vpop.f32.mrf.mxu0
    %10537 = vdwg.mxu0
    %10538 = vmatpush.bf16.msra.mxu0 %v10340
    %10539 = vmatpush.bf16.msra.mxu0 %v10338
    %10540 = vmatpush.bf16.msra.mxu0 %v10336
    %10541 = vmatpush.bf16.msra.mxu0 %v10334
    %10542 = vmatpush.bf16.msra.mxu0 %v10332
    %10543 = vmatpush.bf16.msra.mxu0 %v10330
    %10544 = vmatpush.bf16.msra.mxu0 %v10328
    %10545 = vmatpush.bf16.msra.mxu0 %v10326
    %10546 = vmatmul.bf16.gmra.mxu0 %v10015
    %v10547 = vpop.f32.mrf.mxu0
    %v10548 = vadd.f32 %v10535, %v10547
    %v10549 = vpop.f32.mrf.mxu0
    %10550 = vdwg.mxu0
    %v10551 = vadd.f32 %v9921, %v10483
    %v10552 = vadd.f32 %v9922, %v10548
    %s10553 = scalar_lea.vmem %s7, 2560
    %v10554 = vld [vmem:[%s10553] sm:$0xff]
    %v10555 = vld [vmem:[%s10553 + $0x8] sm:$0xff]
    %v10556 = vld [vmem:[%s10553 + $0x10] sm:$0xff]
    %v10557 = vld [vmem:[%s10553 + $0x18] sm:$0xff]
    %v10558 = vld [vmem:[%s10553 + $0x20] sm:$0xff]
    %v10559 = vld [vmem:[%s10553 + $0x28] sm:$0xff]
    %v10560 = vld [vmem:[%s10553 + $0x30] sm:$0xff]
    %v10561 = vld [vmem:[%s10553 + $0x38] sm:$0xff]
    %v10562 = vld [vmem:[%s10553 + $0x40] sm:$0xff]
    %v10563 = vld [vmem:[%s10553 + $0x48] sm:$0xff]
    %v10564 = vld [vmem:[%s10553 + $0x50] sm:$0xff]
    %v10565 = vld [vmem:[%s10553 + $0x58] sm:$0xff]
    %v10566 = vld [vmem:[%s10553 + $0x60] sm:$0xff]
    %v10567 = vld [vmem:[%s10553 + $0x68] sm:$0xff]
    %v10568 = vld [vmem:[%s10553 + $0x70] sm:$0xff]
    %v10569 = vld [vmem:[%s10553 + $0x78] sm:$0xff]
    %v10570 = vld [vmem:[%s10553 + $0x80] sm:$0xff]
    %v10571 = vld [vmem:[%s10553 + $0x88] sm:$0xff]
    %v10572 = vld [vmem:[%s10553 + $0x90] sm:$0xff]
    %v10573 = vld [vmem:[%s10553 + $0x98] sm:$0xff]
    %v10574 = vld [vmem:[%s10553 + $0xa0] sm:$0xff]
    %v10575 = vld [vmem:[%s10553 + $0xa8] sm:$0xff]
    %v10576 = vld [vmem:[%s10553 + $0xb0] sm:$0xff]
    %v10577 = vld [vmem:[%s10553 + $0xb8] sm:$0xff]
    %v10578 = vld [vmem:[%s10553 + $0xc0] sm:$0xff]
    %v10579 = vld [vmem:[%s10553 + $0xc8] sm:$0xff]
    %v10580 = vld [vmem:[%s10553 + $0xd0] sm:$0xff]
    %v10581 = vld [vmem:[%s10553 + $0xd8] sm:$0xff]
    %v10582 = vld [vmem:[%s10553 + $0xe0] sm:$0xff]
    %v10583 = vld [vmem:[%s10553 + $0xe8] sm:$0xff]
    %v10584 = vld [vmem:[%s10553 + $0xf0] sm:$0xff]
    %v10585 = vld [vmem:[%s10553 + $0xf8] sm:$0xff]
    %v10586 = vld [vmem:[%s10553 + $0x100] sm:$0xff]
    %v10587 = vld [vmem:[%s10553 + $0x108] sm:$0xff]
    %v10588 = vld [vmem:[%s10553 + $0x110] sm:$0xff]
    %v10589 = vld [vmem:[%s10553 + $0x118] sm:$0xff]
    %v10590 = vld [vmem:[%s10553 + $0x120] sm:$0xff]
    %v10591 = vld [vmem:[%s10553 + $0x128] sm:$0xff]
    %v10592 = vld [vmem:[%s10553 + $0x130] sm:$0xff]
    %v10593 = vld [vmem:[%s10553 + $0x138] sm:$0xff]
    %v10594 = vld [vmem:[%s10553 + $0x140] sm:$0xff]
    %v10595 = vld [vmem:[%s10553 + $0x148] sm:$0xff]
    %v10596 = vld [vmem:[%s10553 + $0x150] sm:$0xff]
    %v10597 = vld [vmem:[%s10553 + $0x158] sm:$0xff]
    %v10598 = vld [vmem:[%s10553 + $0x160] sm:$0xff]
    %v10599 = vld [vmem:[%s10553 + $0x168] sm:$0xff]
    %v10600 = vld [vmem:[%s10553 + $0x170] sm:$0xff]
    %v10601 = vld [vmem:[%s10553 + $0x178] sm:$0xff]
    %v10602 = vld [vmem:[%s10553 + $0x180] sm:$0xff]
    %v10603 = vld [vmem:[%s10553 + $0x188] sm:$0xff]
    %v10604 = vld [vmem:[%s10553 + $0x190] sm:$0xff]
    %v10605 = vld [vmem:[%s10553 + $0x198] sm:$0xff]
    %v10606 = vld [vmem:[%s10553 + $0x1a0] sm:$0xff]
    %v10607 = vld [vmem:[%s10553 + $0x1a8] sm:$0xff]
    %v10608 = vld [vmem:[%s10553 + $0x1b0] sm:$0xff]
    %v10609 = vld [vmem:[%s10553 + $0x1b8] sm:$0xff]
    %v10610 = vld [vmem:[%s10553 + $0x1c0] sm:$0xff]
    %v10611 = vld [vmem:[%s10553 + $0x1c8] sm:$0xff]
    %v10612 = vld [vmem:[%s10553 + $0x1d0] sm:$0xff]
    %v10613 = vld [vmem:[%s10553 + $0x1d8] sm:$0xff]
    %v10614 = vld [vmem:[%s10553 + $0x1e0] sm:$0xff]
    %v10615 = vld [vmem:[%s10553 + $0x1e8] sm:$0xff]
    %v10616 = vld [vmem:[%s10553 + $0x1f0] sm:$0xff]
    %v10617 = vld [vmem:[%s10553 + $0x1f8] sm:$0xff]
    %v10618 = vld [vmem:[%s10553 + $0x200] sm:$0xff]
    %v10619 = vld [vmem:[%s10553 + $0x208] sm:$0xff]
    %v10620 = vld [vmem:[%s10553 + $0x210] sm:$0xff]
    %v10621 = vld [vmem:[%s10553 + $0x218] sm:$0xff]
    %v10622 = vld [vmem:[%s10553 + $0x220] sm:$0xff]
    %v10623 = vld [vmem:[%s10553 + $0x228] sm:$0xff]
    %v10624 = vld [vmem:[%s10553 + $0x230] sm:$0xff]
    %v10625 = vld [vmem:[%s10553 + $0x238] sm:$0xff]
    %v10626 = vld [vmem:[%s10553 + $0x240] sm:$0xff]
    %v10627 = vld [vmem:[%s10553 + $0x248] sm:$0xff]
    %v10628 = vld [vmem:[%s10553 + $0x250] sm:$0xff]
    %v10629 = vld [vmem:[%s10553 + $0x258] sm:$0xff]
    %v10630 = vld [vmem:[%s10553 + $0x260] sm:$0xff]
    %v10631 = vld [vmem:[%s10553 + $0x268] sm:$0xff]
    %v10632 = vld [vmem:[%s10553 + $0x270] sm:$0xff]
    %v10633 = vld [vmem:[%s10553 + $0x278] sm:$0xff]
    %10634 = vst [vmem:[#allocation1] ss:$9 sm:$0xff] %v7989
    %s10635 = scalar_lea.vmem [#allocation1], 1
    %10636 = vst [vmem:[%s10635] ss:$9 sm:$0xff] %v7989
    %s10637 = scalar_lea.vmem [#allocation1], 2
    %10638 = vst [vmem:[%s10637] ss:$9 sm:$0xff] %v7989
    %s10639 = scalar_lea.vmem [#allocation1], 3
    %10640 = vst [vmem:[%s10639] ss:$9 sm:$0xff] %v7989
    %v10641 = vld [vmem:[#allocation1] sm:$0xff]
    %v10642 = vld [vmem:[#allocation1 + $0x9] sm:$0xff]
    %v10643 = vld [vmem:[#allocation1 + $0x12] sm:$0xff]
    %v10644 = vld [vmem:[#allocation1 + $0x1b] sm:$0xff]
    %v10645 = vld [vmem:[#allocation1 + $0x24] sm:$0xff]
    %v10731 = vunpack.c.l.b16 %v10554
    %v10732 = vunpack.c.h.b16 %v10554
    %v10733 = vunpack.c.l.b16 %v10555
    %v10734 = vunpack.c.h.b16 %v10555
    %v10735 = vunpack.c.l.b16 %v10556
    %v10736 = vunpack.c.h.b16 %v10556
    %v10737 = vunpack.c.l.b16 %v10557
    %v10738 = vunpack.c.h.b16 %v10557
    %v10739 = vunpack.c.l.b16 %v10558
    %v10740 = vunpack.c.h.b16 %v10558
    %v10741 = vunpack.c.l.b16 %v10559
    %v10742 = vunpack.c.h.b16 %v10559
    %v10743 = vunpack.c.l.b16 %v10560
    %v10744 = vunpack.c.h.b16 %v10560
    %v10745 = vunpack.c.l.b16 %v10561
    %v10746 = vunpack.c.h.b16 %v10561
    %v10747 = vunpack.c.l.b16 %v10562
    %v10748 = vunpack.c.h.b16 %v10562
    %v10749 = vunpack.c.l.b16 %v10563
    %v10750 = vunpack.c.h.b16 %v10563
    %v10751 = vunpack.c.l.b16 %v10564
    %v10752 = vunpack.c.h.b16 %v10564
    %v10753 = vunpack.c.l.b16 %v10565
    %v10754 = vunpack.c.h.b16 %v10565
    %v10755 = vunpack.c.l.b16 %v10566
    %v10756 = vunpack.c.h.b16 %v10566
    %v10757 = vunpack.c.l.b16 %v10567
    %v10758 = vunpack.c.h.b16 %v10567
    %v10759 = vunpack.c.l.b16 %v10568
    %v10760 = vunpack.c.h.b16 %v10568
    %v10761 = vunpack.c.l.b16 %v10569
    %v10762 = vunpack.c.h.b16 %v10569
    %v10763 = vunpack.c.l.b16 %v10570
    %v10764 = vunpack.c.h.b16 %v10570
    %v10765 = vunpack.c.l.b16 %v10571
    %v10766 = vunpack.c.h.b16 %v10571
    %v10767 = vunpack.c.l.b16 %v10572
    %v10768 = vunpack.c.h.b16 %v10572
    %v10769 = vunpack.c.l.b16 %v10573
    %v10770 = vunpack.c.h.b16 %v10573
    %v10771 = vunpack.c.l.b16 %v10574
    %v10772 = vunpack.c.h.b16 %v10574
    %v10773 = vunpack.c.l.b16 %v10575
    %v10774 = vunpack.c.h.b16 %v10575
    %v10775 = vunpack.c.l.b16 %v10576
    %v10776 = vunpack.c.h.b16 %v10576
    %v10777 = vunpack.c.l.b16 %v10577
    %v10778 = vunpack.c.h.b16 %v10577
    %v10779 = vunpack.c.l.b16 %v10578
    %v10780 = vunpack.c.h.b16 %v10578
    %v10781 = vunpack.c.l.b16 %v10579
    %v10782 = vunpack.c.h.b16 %v10579
    %v10783 = vunpack.c.l.b16 %v10580
    %v10784 = vunpack.c.h.b16 %v10580
    %v10785 = vunpack.c.l.b16 %v10581
    %v10786 = vunpack.c.h.b16 %v10581
    %v10787 = vunpack.c.l.b16 %v10582
    %v10788 = vunpack.c.h.b16 %v10582
    %v10789 = vunpack.c.l.b16 %v10583
    %v10790 = vunpack.c.h.b16 %v10583
    %v10791 = vunpack.c.l.b16 %v10584
    %v10792 = vunpack.c.h.b16 %v10584
    %v10793 = vunpack.c.l.b16 %v10585
    %v10794 = vunpack.c.h.b16 %v10585
    %v10795 = vunpack.c.l.b16 %v10586
    %v10796 = vunpack.c.h.b16 %v10586
    %v10797 = vunpack.c.l.b16 %v10587
    %v10798 = vunpack.c.h.b16 %v10587
    %v10799 = vunpack.c.l.b16 %v10588
    %v10800 = vunpack.c.h.b16 %v10588
    %v10801 = vunpack.c.l.b16 %v10589
    %v10802 = vunpack.c.h.b16 %v10589
    %v10803 = vunpack.c.l.b16 %v10590
    %v10804 = vunpack.c.h.b16 %v10590
    %v10805 = vunpack.c.l.b16 %v10591
    %v10806 = vunpack.c.h.b16 %v10591
    %v10807 = vunpack.c.l.b16 %v10592
    %v10808 = vunpack.c.h.b16 %v10592
    %v10809 = vunpack.c.l.b16 %v10593
    %v10810 = vunpack.c.h.b16 %v10593
    %v10811 = vunpack.c.l.b16 %v10594
    %v10812 = vunpack.c.h.b16 %v10594
    %v10813 = vunpack.c.l.b16 %v10595
    %v10814 = vunpack.c.h.b16 %v10595
    %v10815 = vunpack.c.l.b16 %v10596
    %v10816 = vunpack.c.h.b16 %v10596
    %v10817 = vunpack.c.l.b16 %v10597
    %v10818 = vunpack.c.h.b16 %v10597
    %v10819 = vunpack.c.l.b16 %v10598
    %v10820 = vunpack.c.h.b16 %v10598
    %v10821 = vunpack.c.l.b16 %v10599
    %v10822 = vunpack.c.h.b16 %v10599
    %v10823 = vunpack.c.l.b16 %v10600
    %v10824 = vunpack.c.h.b16 %v10600
    %v10825 = vunpack.c.l.b16 %v10601
    %v10826 = vunpack.c.h.b16 %v10601
    %v10827 = vunpack.c.l.b16 %v10602
    %v10828 = vunpack.c.h.b16 %v10602
    %v10829 = vunpack.c.l.b16 %v10603
    %v10830 = vunpack.c.h.b16 %v10603
    %v10831 = vunpack.c.l.b16 %v10604
    %v10832 = vunpack.c.h.b16 %v10604
    %v10833 = vunpack.c.l.b16 %v10605
    %v10834 = vunpack.c.h.b16 %v10605
    %v10835 = vunpack.c.l.b16 %v10606
    %v10836 = vunpack.c.h.b16 %v10606
    %v10837 = vunpack.c.l.b16 %v10607
    %v10838 = vunpack.c.h.b16 %v10607
    %v10839 = vunpack.c.l.b16 %v10608
    %v10840 = vunpack.c.h.b16 %v10608
    %v10841 = vunpack.c.l.b16 %v10609
    %v10842 = vunpack.c.h.b16 %v10609
    %v10843 = vunpack.c.l.b16 %v10610
    %v10844 = vunpack.c.h.b16 %v10610
    %v10845 = vunpack.c.l.b16 %v10611
    %v10846 = vunpack.c.h.b16 %v10611
    %v10847 = vunpack.c.l.b16 %v10612
    %v10848 = vunpack.c.h.b16 %v10612
    %v10849 = vunpack.c.l.b16 %v10613
    %v10850 = vunpack.c.h.b16 %v10613
    %v10851 = vunpack.c.l.b16 %v10614
    %v10852 = vunpack.c.h.b16 %v10614
    %v10853 = vunpack.c.l.b16 %v10615
    %v10854 = vunpack.c.h.b16 %v10615
    %v10855 = vunpack.c.l.b16 %v10616
    %v10856 = vunpack.c.h.b16 %v10616
    %v10857 = vunpack.c.l.b16 %v10617
    %v10858 = vunpack.c.h.b16 %v10617
    %v10859 = vunpack.c.l.b16 %v10618
    %v10860 = vunpack.c.h.b16 %v10618
    %v10861 = vunpack.c.l.b16 %v10619
    %v10862 = vunpack.c.h.b16 %v10619
    %v10863 = vunpack.c.l.b16 %v10620
    %v10864 = vunpack.c.h.b16 %v10620
    %v10865 = vunpack.c.l.b16 %v10621
    %v10866 = vunpack.c.h.b16 %v10621
    %v10867 = vunpack.c.l.b16 %v10622
    %v10868 = vunpack.c.h.b16 %v10622
    %v10869 = vunpack.c.l.b16 %v10623
    %v10870 = vunpack.c.h.b16 %v10623
    %v10871 = vunpack.c.l.b16 %v10624
    %v10872 = vunpack.c.h.b16 %v10624
    %v10873 = vunpack.c.l.b16 %v10625
    %v10874 = vunpack.c.h.b16 %v10625
    %v10875 = vunpack.c.l.b16 %v10626
    %v10876 = vunpack.c.h.b16 %v10626
    %v10877 = vunpack.c.l.b16 %v10627
    %v10878 = vunpack.c.h.b16 %v10627
    %v10879 = vunpack.c.l.b16 %v10628
    %v10880 = vunpack.c.h.b16 %v10628
    %v10881 = vunpack.c.l.b16 %v10629
    %v10882 = vunpack.c.h.b16 %v10629
    %v10883 = vunpack.c.l.b16 %v10630
    %v10884 = vunpack.c.h.b16 %v10630
    %v10885 = vunpack.c.l.b16 %v10631
    %v10886 = vunpack.c.h.b16 %v10631
    %v10887 = vunpack.c.l.b16 %v10632
    %v10888 = vunpack.c.h.b16 %v10632
    %v10889 = vunpack.c.l.b16 %v10633
    %v10890 = vunpack.c.h.b16 %v10633
    %v10891 = vpack.c.b16 %v10733, %v10731
    %v10892 = vpack.c.b16 %v10734, %v10732
    %v10893 = vpack.c.b16 %v10737, %v10735
    %v10894 = vpack.c.b16 %v10738, %v10736
    %v10895 = vpack.c.b16 %v10741, %v10739
    %v10896 = vpack.c.b16 %v10742, %v10740
    %v10897 = vpack.c.b16 %v10745, %v10743
    %v10898 = vpack.c.b16 %v10746, %v10744
    %v10899 = vpack.c.b16 %v10749, %v10747
    %v10900 = vpack.c.b16 %v10750, %v10748
    %v10901 = vpack.c.b16 %v10753, %v10751
    %v10902 = vpack.c.b16 %v10754, %v10752
    %v10903 = vpack.c.b16 %v10757, %v10755
    %v10904 = vpack.c.b16 %v10758, %v10756
    %v10905 = vpack.c.b16 %v10761, %v10759
    %v10906 = vpack.c.b16 %v10762, %v10760
    %v10907 = vpack.c.b16 %v10765, %v10763
    %v10908 = vpack.c.b16 %v10766, %v10764
    %v10909 = vpack.c.b16 %v10769, %v10767
    %v10910 = vpack.c.b16 %v10770, %v10768
    %v10911 = vpack.c.b16 %v10773, %v10771
    %v10912 = vpack.c.b16 %v10774, %v10772
    %v10913 = vpack.c.b16 %v10777, %v10775
    %v10914 = vpack.c.b16 %v10778, %v10776
    %v10915 = vpack.c.b16 %v10781, %v10779
    %v10916 = vpack.c.b16 %v10782, %v10780
    %v10917 = vpack.c.b16 %v10785, %v10783
    %v10918 = vpack.c.b16 %v10786, %v10784
    %v10919 = vpack.c.b16 %v10789, %v10787
    %v10920 = vpack.c.b16 %v10790, %v10788
    %v10921 = vpack.c.b16 %v10793, %v10791
    %v10922 = vpack.c.b16 %v10794, %v10792
    %v10923 = vpack.c.b16 %v10797, %v10795
    %v10924 = vpack.c.b16 %v10798, %v10796
    %v10925 = vpack.c.b16 %v10801, %v10799
    %v10926 = vpack.c.b16 %v10802, %v10800
    %v10927 = vpack.c.b16 %v10805, %v10803
    %v10928 = vpack.c.b16 %v10806, %v10804
    %v10929 = vpack.c.b16 %v10809, %v10807
    %v10930 = vpack.c.b16 %v10810, %v10808
    %v10931 = vpack.c.b16 %v10813, %v10811
    %v10932 = vpack.c.b16 %v10814, %v10812
    %v10933 = vpack.c.b16 %v10817, %v10815
    %v10934 = vpack.c.b16 %v10818, %v10816
    %v10935 = vpack.c.b16 %v10821, %v10819
    %v10936 = vpack.c.b16 %v10822, %v10820
    %v10937 = vpack.c.b16 %v10825, %v10823
    %v10938 = vpack.c.b16 %v10826, %v10824
    %v10939 = vpack.c.b16 %v10829, %v10827
    %v10940 = vpack.c.b16 %v10830, %v10828
    %v10941 = vpack.c.b16 %v10833, %v10831
    %v10942 = vpack.c.b16 %v10834, %v10832
    %v10943 = vpack.c.b16 %v10837, %v10835
    %v10944 = vpack.c.b16 %v10838, %v10836
    %v10945 = vpack.c.b16 %v10841, %v10839
    %v10946 = vpack.c.b16 %v10842, %v10840
    %v10947 = vpack.c.b16 %v10845, %v10843
    %v10948 = vpack.c.b16 %v10846, %v10844
    %v10949 = vpack.c.b16 %v10849, %v10847
    %v10950 = vpack.c.b16 %v10850, %v10848
    %v10951 = vpack.c.b16 %v10853, %v10851
    %v10952 = vpack.c.b16 %v10854, %v10852
    %v10953 = vpack.c.b16 %v10857, %v10855
    %v10954 = vpack.c.b16 %v10858, %v10856
    %v10955 = vpack.c.b16 %v10861, %v10859
    %v10956 = vpack.c.b16 %v10862, %v10860
    %v10957 = vpack.c.b16 %v10865, %v10863
    %v10958 = vpack.c.b16 %v10866, %v10864
    %v10959 = vpack.c.b16 %v10869, %v10867
    %v10960 = vpack.c.b16 %v10870, %v10868
    %v10961 = vpack.c.b16 %v10873, %v10871
    %v10962 = vpack.c.b16 %v10874, %v10872
    %v10963 = vpack.c.b16 %v10877, %v10875
    %v10964 = vpack.c.b16 %v10878, %v10876
    %v10965 = vpack.c.b16 %v10881, %v10879
    %v10966 = vpack.c.b16 %v10882, %v10880
    %v10967 = vpack.c.b16 %v10885, %v10883
    %v10968 = vpack.c.b16 %v10886, %v10884
    %v10969 = vpack.c.b16 %v10889, %v10887
    %v10970 = vpack.c.b16 %v10890, %v10888
    %11051 = vmatpush.bf16.msra.mxu0 %v10905
    %11052 = vmatpush.bf16.msra.mxu0 %v10903
    %11053 = vmatpush.bf16.msra.mxu0 %v10901
    %11054 = vmatpush.bf16.msra.mxu0 %v10899
    %11055 = vmatpush.bf16.msra.mxu0 %v10897
    %11056 = vmatpush.bf16.msra.mxu0 %v10895
    %11057 = vmatpush.bf16.msra.mxu0 %v10893
    %11058 = vmatpush.bf16.msra.mxu0 %v10891
    %11059 = vmatmul.bf16.gmra.mxu0 %v10641
    %v11060 = vpop.f32.mrf.mxu0
    %v11061 = vadd.f32 0.0, %v11060
    %v11062 = vpop.f32.mrf.mxu0
    %11063 = vdwg.mxu0
    %11064 = vmatpush.bf16.msra.mxu0 %v10921
    %11065 = vmatpush.bf16.msra.mxu0 %v10919
    %11066 = vmatpush.bf16.msra.mxu0 %v10917
    %11067 = vmatpush.bf16.msra.mxu0 %v10915
    %11068 = vmatpush.bf16.msra.mxu0 %v10913
    %11069 = vmatpush.bf16.msra.mxu0 %v10911
    %11070 = vmatpush.bf16.msra.mxu0 %v10909
    %11071 = vmatpush.bf16.msra.mxu0 %v10907
    %11072 = vmatmul.bf16.gmra.mxu0 %v10642
    %v11073 = vpop.f32.mrf.mxu0
    %v11074 = vadd.f32 %v11061, %v11073
    %v11075 = vpop.f32.mrf.mxu0
    %11076 = vdwg.mxu0
    %11077 = vmatpush.bf16.msra.mxu0 %v10937
    %11078 = vmatpush.bf16.msra.mxu0 %v10935
    %11079 = vmatpush.bf16.msra.mxu0 %v10933
    %11080 = vmatpush.bf16.msra.mxu0 %v10931
    %11081 = vmatpush.bf16.msra.mxu0 %v10929
    %11082 = vmatpush.bf16.msra.mxu0 %v10927
    %11083 = vmatpush.bf16.msra.mxu0 %v10925
    %11084 = vmatpush.bf16.msra.mxu0 %v10923
    %11085 = vmatmul.bf16.gmra.mxu0 %v10643
    %v11086 = vpop.f32.mrf.mxu0
    %v11087 = vadd.f32 %v11074, %v11086
    %v11088 = vpop.f32.mrf.mxu0
    %11089 = vdwg.mxu0
    %11090 = vmatpush.bf16.msra.mxu0 %v10953
    %11091 = vmatpush.bf16.msra.mxu0 %v10951
    %11092 = vmatpush.bf16.msra.mxu0 %v10949
    %11093 = vmatpush.bf16.msra.mxu0 %v10947
    %11094 = vmatpush.bf16.msra.mxu0 %v10945
    %11095 = vmatpush.bf16.msra.mxu0 %v10943
    %11096 = vmatpush.bf16.msra.mxu0 %v10941
    %11097 = vmatpush.bf16.msra.mxu0 %v10939
    %11098 = vmatmul.bf16.gmra.mxu0 %v10644
    %v11099 = vpop.f32.mrf.mxu0
    %v11100 = vadd.f32 %v11087, %v11099
    %v11101 = vpop.f32.mrf.mxu0
    %11102 = vdwg.mxu0
    %11103 = vmatpush.bf16.msra.mxu0 %v10969
    %11104 = vmatpush.bf16.msra.mxu0 %v10967
    %11105 = vmatpush.bf16.msra.mxu0 %v10965
    %11106 = vmatpush.bf16.msra.mxu0 %v10963
    %11107 = vmatpush.bf16.msra.mxu0 %v10961
    %11108 = vmatpush.bf16.msra.mxu0 %v10959
    %11109 = vmatpush.bf16.msra.mxu0 %v10957
    %11110 = vmatpush.bf16.msra.mxu0 %v10955
    %11111 = vmatmul.bf16.gmra.mxu0 %v10645
    %v11112 = vpop.f32.mrf.mxu0
    %v11113 = vadd.f32 %v11100, %v11112
    %v11114 = vpop.f32.mrf.mxu0
    %11115 = vdwg.mxu0
    %11116 = vmatpush.bf16.msra.mxu0 %v10906
    %11117 = vmatpush.bf16.msra.mxu0 %v10904
    %11118 = vmatpush.bf16.msra.mxu0 %v10902
    %11119 = vmatpush.bf16.msra.mxu0 %v10900
    %11120 = vmatpush.bf16.msra.mxu0 %v10898
    %11121 = vmatpush.bf16.msra.mxu0 %v10896
    %11122 = vmatpush.bf16.msra.mxu0 %v10894
    %11123 = vmatpush.bf16.msra.mxu0 %v10892
    %11124 = vmatmul.bf16.gmra.mxu0 %v10641
    %v11125 = vpop.f32.mrf.mxu0
    %v11126 = vadd.f32 0.0, %v11125
    %v11127 = vpop.f32.mrf.mxu0
    %11128 = vdwg.mxu0
    %11129 = vmatpush.bf16.msra.mxu0 %v10922
    %11130 = vmatpush.bf16.msra.mxu0 %v10920
    %11131 = vmatpush.bf16.msra.mxu0 %v10918
    %11132 = vmatpush.bf16.msra.mxu0 %v10916
    %11133 = vmatpush.bf16.msra.mxu0 %v10914
    %11134 = vmatpush.bf16.msra.mxu0 %v10912
    %11135 = vmatpush.bf16.msra.mxu0 %v10910
    %11136 = vmatpush.bf16.msra.mxu0 %v10908
    %11137 = vmatmul.bf16.gmra.mxu0 %v10642
    %v11138 = vpop.f32.mrf.mxu0
    %v11139 = vadd.f32 %v11126, %v11138
    %v11140 = vpop.f32.mrf.mxu0
    %11141 = vdwg.mxu0
    %11142 = vmatpush.bf16.msra.mxu0 %v10938
    %11143 = vmatpush.bf16.msra.mxu0 %v10936
    %11144 = vmatpush.bf16.msra.mxu0 %v10934
    %11145 = vmatpush.bf16.msra.mxu0 %v10932
    %11146 = vmatpush.bf16.msra.mxu0 %v10930
    %11147 = vmatpush.bf16.msra.mxu0 %v10928
    %11148 = vmatpush.bf16.msra.mxu0 %v10926
    %11149 = vmatpush.bf16.msra.mxu0 %v10924
    %11150 = vmatmul.bf16.gmra.mxu0 %v10643
    %v11151 = vpop.f32.mrf.mxu0
    %v11152 = vadd.f32 %v11139, %v11151
    %v11153 = vpop.f32.mrf.mxu0
    %11154 = vdwg.mxu0
    %11155 = vmatpush.bf16.msra.mxu0 %v10954
    %11156 = vmatpush.bf16.msra.mxu0 %v10952
    %11157 = vmatpush.bf16.msra.mxu0 %v10950
    %11158 = vmatpush.bf16.msra.mxu0 %v10948
    %11159 = vmatpush.bf16.msra.mxu0 %v10946
    %11160 = vmatpush.bf16.msra.mxu0 %v10944
    %11161 = vmatpush.bf16.msra.mxu0 %v10942
    %11162 = vmatpush.bf16.msra.mxu0 %v10940
    %11163 = vmatmul.bf16.gmra.mxu0 %v10644
    %v11164 = vpop.f32.mrf.mxu0
    %v11165 = vadd.f32 %v11152, %v11164
    %v11166 = vpop.f32.mrf.mxu0
    %11167 = vdwg.mxu0
    %11168 = vmatpush.bf16.msra.mxu0 %v10970
    %11169 = vmatpush.bf16.msra.mxu0 %v10968
    %11170 = vmatpush.bf16.msra.mxu0 %v10966
    %11171 = vmatpush.bf16.msra.mxu0 %v10964
    %11172 = vmatpush.bf16.msra.mxu0 %v10962
    %11173 = vmatpush.bf16.msra.mxu0 %v10960
    %11174 = vmatpush.bf16.msra.mxu0 %v10958
    %11175 = vmatpush.bf16.msra.mxu0 %v10956
    %11176 = vmatmul.bf16.gmra.mxu0 %v10645
    %v11177 = vpop.f32.mrf.mxu0
    %v11178 = vadd.f32 %v11165, %v11177
    %v11179 = vpop.f32.mrf.mxu0
    %11180 = vdwg.mxu0
    %v11181 = vadd.f32 %v10551, %v11113
    %v11182 = vadd.f32 %v10552, %v11178
    %v11183 = vld [vmem:[%s8] sm:$0x3]
    %v11185 = vperm.slane %v11183, 0
    %v11186 = vperm.slane %v11183, 1
    %v11189 = vadd.f32 %v11181, %v11185
    %v11190 = vadd.f32 %v11182, %v11186
    %v11191 = vmax.f32 %v11189, 0.0
    %v11192 = vmax.f32 %v11190, 0.0
    %v11195 = vrot.slane %v11192, 6
    %v11196 = vsel %vm4815, %v11191, %v11195
    %v11197 = vsel %vm7785, %v11191, %v11195
    %v11198 = vrot.slane %v11197, 2
    %v11199 = vsel %vm5359, %v11191, %v11195
    %v11200 = vrot.slane %v11199, 4
    %vm11201 = vcmask 1045504
    %v11202 = vsel %vm11201, %v11195, %v11191
    %v11203 = vrot.slane %v11202, 6
    %vm11208 = vmor %vm7785, %vm4815
    %v11209 = vsel %vm11208, %v11196, -inf
    %v11210 = vsel %vm11208, %v11198, -inf
    %v11211 = vmax.f32 %v11209, %v11210
    %v11212 = vsel %vm11208, %v11200, -inf
    %v11213 = vsel %vm11208, %v11203, -inf
    %v11214 = vmax.f32 %v11212, %v11213
    %11217 = vst [vmem:[#allocation1] ss:$4 sm:$0xff] %v11211
    %v11218 = vld.sshfl [vmem:[#allocation1] sm:$0xff pattern:$0x73625140]
    %v11219 = vld.sshfl [vmem:[#allocation1 + $0x8] sm:$0xff pattern:$0x73625140]
    %s11220 = scalar_lea.vmem [#allocation1], 32
    %11221 = vst [vmem:[%s11220] ss:$4 sm:$0xff] %v11214
    %v11222 = vld.sshfl [vmem:[#allocation1 + $0x20] sm:$0xff pattern:$0x73625140]
    %v11223 = vld.sshfl [vmem:[#allocation1 + $0x28] sm:$0xff pattern:$0x73625140]
    %v11228 = vsel %vm4815, %v11218, -inf
    %v11229 = vrot.slane %v11228, 4
    %v11230 = vmax.f32 %v11228, %v11229
    %v11231 = vrot.slane %v11230, 2
    %v11232 = vmax.f32 %v11230, %v11231
    %v11233 = vrot.slane %v11232, 1
    %v11234 = vmax.f32 %v11232, %v11233
    %v11235 = vsel %vm4815, %v11219, -inf
    %v11236 = vrot.slane %v11235, 4
    %v11237 = vmax.f32 %v11235, %v11236
    %v11238 = vrot.slane %v11237, 2
    %v11239 = vmax.f32 %v11237, %v11238
    %v11240 = vrot.slane %v11239, 1
    %v11241 = vmax.f32 %v11239, %v11240
    %v11242 = vsel %vm4815, %v11222, -inf
    %v11243 = vrot.slane %v11242, 4
    %v11244 = vmax.f32 %v11242, %v11243
    %v11245 = vrot.slane %v11244, 2
    %v11246 = vmax.f32 %v11244, %v11245
    %v11247 = vrot.slane %v11246, 1
    %v11248 = vmax.f32 %v11246, %v11247
    %v11249 = vsel %vm4815, %v11223, -inf
    %v11250 = vrot.slane %v11249, 4
    %v11251 = vmax.f32 %v11249, %v11250
    %v11252 = vrot.slane %v11251, 2
    %v11253 = vmax.f32 %v11251, %v11252
    %v11254 = vrot.slane %v11253, 1
    %v11255 = vmax.f32 %v11253, %v11254
    %v11256 = vld [vmem:[%s9] sm:$0x3]
    %v11258 = vperm.slane %v11256, 0
    %v11259 = vperm.slane %v11256, 1
    %v11262 = vmul.f32 %v11234, %v11258
    %v11263 = vmul.f32 %v11241, %v11259
    %v11264 = vmul.f32 %v11248, %v11258
    %v11265 = vmul.f32 %v11255, %v11259
    %v11266 = vld [vmem:[%s10] sm:$0x3]
    %v11268 = vperm.slane %v11266, 0
    %v11269 = vperm.slane %v11266, 1
    %v11272 = vadd.f32 %v11262, %v11268
    %v11273 = vadd.f32 %v11263, %v11269
    %v11274 = vadd.f32 %v11264, %v11268
    %v11275 = vadd.f32 %v11265, %v11269
    %v11280 = vrot.slane %v11273, 6
    %v11281 = vrot.slane %v11275, 6
    %v11282 = vsel %vm4815, %v11272, %v11280
    %v11283 = vsel %vm4815, %v11274, %v11281
    %v11284 = vsel %vm2333, %v11282, %v11282
    %v11285 = vsel %vm2337, %v11282, %v11284
    %v11286 = vrot.slane %v11283, 7
    %v11287 = vsel %vm2327, %v11286, %v11285
    %v11288 = vsel %vm2331, %v11286, %v11287
    %v11289 = vsel %vm2335, %v11286, %v11288
    %v11290 = vsel %vm2339, %v11286, %v11289
    %11292 = vst [vmem:[#allocation2] sm:$0xf] %v11290
    // Predicated region
    $region46: #{conv_block_forward.1} parent=1 // pred_check
      _
    $region47: #{conv_block_forward.1} parent=1 // pred_check_branch
      %11294 = sbr.rel (0) target = $region49
    $region48: #{conv_block_forward.1} parent=1 // pred_region
      %11296 = vsyncadd [#allocation3], 0
      %s11298 = sshll.u32 [#allocation2], 4
      %s11299 = int_to_ptr.vmem [resolvable:$true] %s11298
      %s11300 = sshll.u32 %s11, 4
      %s11301 = int_to_ptr.hbm [resolvable:$true] %s11300
      %11303 = dma.vmem_to_hbm [thread:$0]  %s11299, 64, %s11301, [#allocation3]
    $region49: #{conv_block_forward.1} parent=1 // pred_fallthru
      _
    // Predicated region
    $region50: #{conv_block_forward.1} parent=1 // pred_check
      _
    $region51: #{conv_block_forward.1} parent=1 // pred_check_branch
      %11305 = sbr.rel (0) target = $region53
    $region52: #{conv_block_forward.1} parent=1 // pred_region
      %11307 = dma.done [#allocation3], 64
    $region53: #{conv_block_forward.1} parent=1 // pred_fallthru
      _
    %11308 = vsyncpa [#allocation3], 1

</llo_original>
